<compile_context>
chip_gen: v7x
topology: tpu7x:2x2x1
jax: 0.10.0
libtpu: 0.0.40
codegen_flags: <defaults>
</compile_context>

<pallas_src>
import jax
import jax.numpy as jnp
from jax.experimental import pallas as pl
from jax.experimental.pallas import tpu as pltpu


def _round_up(x, m):
    return (x + m - 1) // m * m


def _block_diag_t(w):
    """(S, 4, In, Out) per-branch mats -> (S, 4*Out, 4*In) block-diag of transposes."""
    S, F, In, Out = w.shape
    eye = jnp.eye(F, dtype=jnp.float32)
    bd = jnp.einsum("fg,sfio->sfogi", eye, w.astype(jnp.float32))
    return bd.reshape(S, F * Out, F * In)


def _block_pair_t(w):
    """(S, 4, In, Out) -> (S, 2*Out, 4*In): [[w0^T w1^T 0 0], [0 0 w2^T w3^T]]."""
    S, F, In, Out = w.shape
    sel = jnp.asarray([[1.0, 1.0, 0.0, 0.0], [0.0, 0.0, 1.0, 1.0]], jnp.float32)
    bd = jnp.einsum("pg,sgio->spogi", sel, w.astype(jnp.float32))
    return bd.reshape(S, 2 * Out, F * In)


def _col_bias(b):
    """(S, 4, 1, Out) -> (S, 4*Out, 1) column bias."""
    S, F, _, Out = b.shape
    return b.astype(jnp.float32).reshape(S, F * Out, 1)


def _pair_bias(b):
    """(S, 4, 1, Out) -> (S, 2*Out, 1): [b0+b1 ; b2+b3]."""
    S, F, _, Out = b.shape
    bp = b.astype(jnp.float32).reshape(S, 2, 2, Out).sum(axis=2)
    return bp.reshape(S, 2 * Out, 1)


def fusion_forward(streaks, masks, params, *, stream_dtype=jnp.float32):
    """streaks: (S, B, 3, H, W), masks: (B, M, H, W) -> (B, 3, H, W) float32.

    stream_dtype controls the dtype used to stream masks/streaks HBM->VMEM;
    the kernel upcasts to f32 before any arithmetic.  Pass jnp.bfloat16 to
    halve HBM traffic at large H*W (costs ~1e-3-level output deviations).
    """
    S, B, C, H, W = streaks.shape
    assert C == 3
    M = masks.shape[1]
    HW = H * W
    w1, b1, w2, b2, w3, b3 = params
    Hd = w1.shape[-1]

    # Lane-dense pixel axis: pad H*W up to a multiple of 128.
    HWp = max(_round_up(HW, 128), 128)

    streaks_f = streaks.reshape(S, B, 3, HW).astype(stream_dtype)
    masks_f = masks.reshape(B, M, HW).astype(stream_dtype)
    if HWp != HW:
        streaks_f = jnp.pad(streaks_f, ((0, 0), (0, 0), (0, 0), (0, HWp - HW)))
        masks_f = jnp.pad(masks_f, ((0, 0), (0, 0), (0, HWp - HW)))

    # Host-side packing of the per-streak, per-branch 1x1-conv MLPs into
    # block-diagonal column operators (branch order: pos_avg, pos_max,
    # neg_avg, neg_max; the last layer also folds the per-pair logit sums).
    w1c = _block_diag_t(w1)      # (S, 4*Hd, 4*M)
    b1c = _col_bias(b1)          # (S, 4*Hd, 1)
    w2c = _block_diag_t(w2)      # (S, 4*Hd, 4*Hd)
    b2c = _col_bias(b2)          # (S, 4*Hd, 1)
    w3c = _block_pair_t(w3)      # (S, 2*M,  4*Hd)
    b3c = _pair_bias(b3)         # (S, 2*M,  1)

    # --- VMEM budget with (8,128) sublane/lane padding, and streaks/step K ---
    fb = 4
    sdb = jnp.dtype(stream_dtype).itemsize
    masks_blk = _round_up(M, 8) * HWp * sdb
    out_blk = _round_up(3, 8) * HWp * fb
    streak_unit = _round_up(3, 8) * HWp * sdb
    weight_unit = fb * (
        _round_up(4 * Hd, 8) * (_round_up(4 * M, 128) + 128 + _round_up(4 * Hd, 128) + 128)
        + _round_up(2 * M, 8) * (_round_up(4 * Hd, 128) + 128))

    try:
        phys_vmem = int(pltpu.get_tpu_info().vmem_capacity_bytes)
    except Exception:
        phys_vmem = 64 << 20          # v7x per-TensorCore size: safe lower bound
    cap = (phys_vmem * 3) // 4        # leave headroom for compiler scratch

    def _estimate(k):
        # every operand is double-buffered by the BlockSpec pipeline
        return 2 * (masks_blk + out_blk + k * (streak_unit + weight_unit)) + (2 << 20)

    K = 1
    for cand in range(S, 0, -1):
        if S % cand == 0 and _estimate(cand) <= cap:
            K = cand
            break
    # TODO(synk): if even K=1 exceeds the VMEM cap (very large H*W, esp. on
    # v7x's 64 MiB), tile the pixel axis (two-phase pooling + recombination)
    # and expose it as a second "parallel" grid axis so both v7x TensorCores
    # stay busy even at B=1.
    vmem_limit = int(min(max(_estimate(K), 16 << 20), cap))
    n_sb = S // K

    precision = jax.lax.Precision.HIGHEST

    def kernel(masks_ref, streak_ref, w1_ref, b1_ref, w2_ref, b2_ref,
               w3_ref, b3_ref, out_ref):
        sb = pl.program_id(1)

        @pl.when(sb == 0)
        def _():
            out_ref[...] = jnp.zeros_like(out_ref)

        masks_t = masks_ref[0].astype(jnp.float32)                 # (M, HWp)
        inv_hw = jnp.float32(1.0 / HW)
        if HWp != HW:
            lane = jax.lax.broadcasted_iota(jnp.int32, (M, HWp), 1)
            invalid = lane >= HW
        acc = jnp.zeros((3, HWp), jnp.float32)

        for k in range(K):                                         # static unroll
            streak = streak_ref[k, 0].astype(jnp.float32)          # (3, HWp)
            s1 = jnp.sum(streak, axis=0, keepdims=True)            # (1, HWp)

            posf = masks_t * s1                                    # (M, HWp)
            negf = s1 - posf                                       # == (1 - masks) * s1

            # adaptive avg-pool(1) == mean over real pixels (padding adds zeros)
            pos_avg = jnp.sum(posf, axis=-1, keepdims=True) * inv_hw   # (M, 1)
            s1_avg = jnp.sum(s1, axis=-1, keepdims=True) * inv_hw      # (1, 1)
            neg_avg = s1_avg - pos_avg                                  # (M, 1)

            # adaptive max-pool(1): exclude padded lanes
            if HWp != HW:
                ninf = jnp.float32(-jnp.inf)
                posf = jnp.where(invalid, ninf, posf)
                negf = jnp.where(invalid, ninf, negf)
            pos_max = jnp.max(posf, axis=-1, keepdims=True)             # (M, 1)
            neg_max = jnp.max(negf, axis=-1, keepdims=True)             # (M, 1)

            # 4 branches stacked as one column; the 3-layer MLP is three MXU
            # matvecs against block-diagonal weights (no relayouts, no XLU
            # reduce chain).
            x = jnp.concatenate([pos_avg, pos_max, neg_avg, neg_max], axis=0)  # (4M, 1)
            h = jnp.dot(w1_ref[k], x, precision=precision,
                        preferred_element_type=jnp.float32) + b1_ref[k]        # (4Hd, 1)
            h = jnp.maximum(h, 0.0)
            h = jnp.dot(w2_ref[k], h, precision=precision,
                        preferred_element_type=jnp.float32) + b2_ref[k]        # (4Hd, 1)
            h = jnp.maximum(h, 0.0)
            att = jnp.dot(w3_ref[k], h, precision=precision,
                          preferred_element_type=jnp.float32) + b3_ref[k]      # (2M, 1)
            sg = jax.nn.sigmoid(att)
            match = jax.nn.sigmoid(sg[:M] - sg[M:])                             # (M, 1)

            # sum_m masks[m, p] * match[m]: exact-f32 contraction over the tiny
            # mask-channel (sublane) axis.
            weighted = jnp.sum(masks_t * match, axis=0, keepdims=True)          # (1, HWp)
            acc = acc + streak * weighted

        out_ref[...] += acc[None]

    out = pl.pallas_call(
        kernel,
        out_shape=jax.ShapeDtypeStruct((B, 3, HWp), jnp.float32),
        grid_spec=pltpu.PrefetchScalarGridSpec(
            num_scalar_prefetch=0,
            grid=(B, n_sb),
            in_specs=[
                # masks: resident for the whole streak loop of one batch program
                pl.BlockSpec((1, M, HWp), lambda b, s: (b, 0, 0)),
                # K streaks per grid step, pipelined over the streak-block axis
                pl.BlockSpec((K, 1, 3, HWp), lambda b, s: (s, b, 0, 0)),
                # per-streak-block packed MLP weights, selected via index_map
                pl.BlockSpec((K, 4 * Hd, 4 * M), lambda b, s: (s, 0, 0)),
                pl.BlockSpec((K, 4 * Hd, 1), lambda b, s: (s, 0, 0)),
                pl.BlockSpec((K, 4 * Hd, 4 * Hd), lambda b, s: (s, 0, 0)),
                pl.BlockSpec((K, 4 * Hd, 1), lambda b, s: (s, 0, 0)),
                pl.BlockSpec((K, 2 * M, 4 * Hd), lambda b, s: (s, 0, 0)),
                pl.BlockSpec((K, 2 * M, 1), lambda b, s: (s, 0, 0)),
            ],
            out_specs=pl.BlockSpec((1, 3, HWp), lambda b, s: (b, 0, 0)),
        ),
        compiler_params=pltpu.CompilerParams(
            dimension_semantics=("parallel", "arbitrary"),
            vmem_limit_bytes=vmem_limit),
    )(masks_f, streaks_f, w1c, b1c, w2c, b2c, w3c, b3c)

    if HWp != HW:
        out = out[..., :HW]
    return out.reshape(B, 3, H, W)


def init_params(key, num_streak, num_mask, hidden=32):
    """Per-streak, per-attention-branch (4 branches) stacked 1x1-conv weights."""
    S, M, Hd = num_streak, num_mask, hidden
    ks = jax.random.split(key, 6)
    bM = 1.0 / jnp.sqrt(M)
    bH = 1.0 / jnp.sqrt(Hd)
    w1 = jax.random.uniform(ks[0], (S, 4, M, Hd), jnp.float32, -bM, bM)
    b1 = jax.random.uniform(ks[1], (S, 4, 1, Hd), jnp.float32, -bM, bM)
    w2 = jax.random.uniform(ks[2], (S, 4, Hd, Hd), jnp.float32, -bH, bH)
    b2 = jax.random.uniform(ks[3], (S, 4, 1, Hd), jnp.float32, -bH, bH)
    w3 = jax.random.uniform(ks[4], (S, 4, Hd, M), jnp.float32, -bH, bH)
    b3 = jax.random.uniform(ks[5], (S, 4, 1, M), jnp.float32, -bH, bH)
    return (w1, b1, w2, b2, w3, b3)


def fusion_reference(streaks, masks, params):
    """Pure-JAX reference mirroring the PyTorch FUSION forward."""
    w1, b1, w2, b2, w3, b3 = params
    S, B, _, H, W = streaks.shape

    def mlp(x, i, k):
        h = jnp.maximum(x @ w1[i, k] + b1[i, k, 0], 0.0)
        h = jnp.maximum(h @ w2[i, k] + b2[i, k, 0], 0.0)
        return h @ w3[i, k] + b3[i, k, 0]

    out = jnp.zeros((B, 3, H, W), jnp.float32)
    for i in range(S):
        st = streaks[i]
        s1 = st[:, 0] + st[:, 1] + st[:, 2]               # (B, H, W)
        posf = masks * s1[:, None]
        negf = (1.0 - masks) * s1[:, None]
        pos_at = jax.nn.sigmoid(mlp(posf.mean(axis=(2, 3)), i, 0)
                                + mlp(posf.max(axis=(2, 3)), i, 1))
        neg_at = jax.nn.sigmoid(mlp(negf.mean(axis=(2, 3)), i, 2)
                                + mlp(negf.max(axis=(2, 3)), i, 3))
        match = jax.nn.sigmoid(pos_at - neg_at)            # (B, M)
        weighted = jnp.sum(masks * match[:, :, None, None], axis=1)  # (B, H, W)
        out = out + st * weighted[:, None]
    return out


if __name__ == "__main__":
    def _check(S, M, B, H, W, seed):
        key = jax.random.PRNGKey(seed)
        ks, km, kp = jax.random.split(key, 3)
        streaks = jax.random.uniform(ks, (S, B, 3, H, W), jnp.float32)
        masks = jax.random.uniform(km, (B, M, H, W), jnp.float32)
        params = init_params(kp, S, M)
        out = jax.block_until_ready(fusion_forward(streaks, masks, params))
        ref = fusion_reference(streaks, masks, params)
        assert out.shape == (B, 3, H, W)
        err = float(jnp.max(jnp.abs(out - ref)))
        assert jnp.allclose(out, ref, atol=1e-3, rtol=1e-3), f"mismatch, max err {err:.3e}"

    # main case (lane-aligned H*W = 256)
    _check(S=2, M=4, B=2, H=16, W=16, seed=0)
    # non-multiple-of-128 pixel count exercises the padded / masked-max path
    _check(S=3, M=4, B=1, H=12, W=12, seed=0)

    print("KERNEL_OK")
</pallas_src>

<mosaic_0001>
module attributes {stable_mosaic.version = 11 : i64} {
  func.func @kernel(%arg0: i32, %arg1: i32, %arg2: memref<1x4x256xf32, #tpu.memory_space<vmem>>, %arg3: memref<2x1x3x256xf32, #tpu.memory_space<vmem>>, %arg4: memref<2x128x16xf32, #tpu.memory_space<vmem>>, %arg5: memref<2x128x1xf32, #tpu.memory_space<vmem>>, %arg6: memref<2x128x128xf32, #tpu.memory_space<vmem>>, %arg7: memref<2x128x1xf32, #tpu.memory_space<vmem>>, %arg8: memref<2x8x128xf32, #tpu.memory_space<vmem>>, %arg9: memref<2x8x1xf32, #tpu.memory_space<vmem>>, %arg10: memref<1x3x256xf32, #tpu.memory_space<vmem>>) attributes {dimension_semantics = [#tpu.dimension_semantics<parallel>, #tpu.dimension_semantics<arbitrary>], iteration_bounds = array<i64: 2, 1>, scalar_prefetch = 0 : i64, scratch_operands = 0 : i64, tpu.core_type = #tpu.core_type<tc>, window_params = [{transform_indices = @transform_0, window_bounds = array<i64: 1, 4, 256>}, {transform_indices = @transform_1, window_bounds = array<i64: 2, 1, 3, 256>}, {transform_indices = @transform_2, window_bounds = array<i64: 2, 128, 16>}, {transform_indices = @transform_3, window_bounds = array<i64: 2, 128, 1>}, {transform_indices = @transform_4, window_bounds = array<i64: 2, 128, 128>}, {transform_indices = @transform_5, window_bounds = array<i64: 2, 128, 1>}, {transform_indices = @transform_6, window_bounds = array<i64: 2, 8, 128>}, {transform_indices = @transform_7, window_bounds = array<i64: 2, 8, 1>}, {transform_indices = @transform_8, window_bounds = array<i64: 1, 3, 256>}]} {
    %c0_i32 = arith.constant 0 : i32
    %0 = arith.cmpi eq, %arg1, %c0_i32 : i32
    %1 = arith.extui %0 : i1 to i32
    %c0_i32_0 = arith.constant 0 : i32
    %2 = arith.cmpi ne, %1, %c0_i32_0 : i32
    scf.if %2 {
      %cst_82 = arith.constant 0.000000e+00 : f32
      %140 = vector.broadcast %cst_82 : f32 to vector<1x3x256xf32>
      %c0_83 = arith.constant 0 : index
      %c0_84 = arith.constant 0 : index
      %c0_85 = arith.constant 0 : index
      %141 = vector.load %arg10[%c0_83, %c0_84, %c0_85] : memref<1x3x256xf32, #tpu.memory_space<vmem>>, vector<1x3x256xf32>
      tpu.vector_store %arg10[%c0_83, %c0_84, %c0_85], %140 {strides = array<i32>} : memref<1x3x256xf32, #tpu.memory_space<vmem>>, vector<1x3x256xf32>,
    } else {
    }
    %c0 = arith.constant 0 : index
    %c0_1 = arith.constant 0 : index
    %c0_2 = arith.constant 0 : index
    %3 = vector.load %arg2[%c0, %c0_1, %c0_2] : memref<1x4x256xf32, #tpu.memory_space<vmem>>, vector<1x4x256xf32>
    %4 = vector.shape_cast %3 : vector<1x4x256xf32> to vector<4x256xf32>
    %cst = arith.constant 0.000000e+00 : f32
    %5 = vector.broadcast %cst : f32 to vector<3x256xf32>
    %c0_3 = arith.constant 0 : index
    %c0_4 = arith.constant 0 : index
    %c0_5 = arith.constant 0 : index
    %c0_6 = arith.constant 0 : index
    %6 = vector.load %arg3[%c0_3, %c0_4, %c0_5, %c0_6] : memref<2x1x3x256xf32, #tpu.memory_space<vmem>>, vector<1x1x3x256xf32>
    %7 = vector.shape_cast %6 : vector<1x1x3x256xf32> to vector<3x256xf32>
    %cst_7 = arith.constant dense<0.000000e+00> : vector<256xf32>
    %8 = vector.multi_reduction <add>, %7, %cst_7 [0] : vector<3x256xf32> to vector<256xf32>
    %9 = vector.shape_cast %8 : vector<256xf32> to vector<1x256xf32>
    %10 = vector.broadcast %9 : vector<1x256xf32> to vector<4x256xf32>
    %11 = arith.mulf %4, %10 : vector<4x256xf32>
    %12 = vector.broadcast %9 : vector<1x256xf32> to vector<4x256xf32>
    %13 = arith.subf %12, %11 : vector<4x256xf32>
    %cst_8 = arith.constant dense<0.000000e+00> : vector<4xf32>
    %14 = vector.multi_reduction <add>, %11, %cst_8 [1] : vector<4x256xf32> to vector<4xf32>
    %15 = vector.shape_cast %14 : vector<4xf32> to vector<4x1xf32>
    %cst_9 = arith.constant 3.906250e-03 : f32
    %16 = vector.broadcast %cst_9 : f32 to vector<4x1xf32>
    %17 = arith.mulf %15, %16 : vector<4x1xf32>
    %cst_10 = arith.constant dense<0.000000e+00> : vector<1xf32>
    %18 = vector.multi_reduction <add>, %9, %cst_10 [1] : vector<1x256xf32> to vector<1xf32>
    %19 = vector.shape_cast %18 : vector<1xf32> to vector<1x1xf32>
    %cst_11 = arith.constant 3.906250e-03 : f32
    %20 = vector.broadcast %cst_11 : f32 to vector<1x1xf32>
    %21 = arith.mulf %19, %20 : vector<1x1xf32>
    %22 = vector.broadcast %21 : vector<1x1xf32> to vector<4x1xf32>
    %23 = arith.subf %22, %17 : vector<4x1xf32>
    %cst_12 = arith.constant dense<0xFF800000> : vector<4xf32>
    %24 = vector.multi_reduction <maximumf>, %11, %cst_12 [1] : vector<4x256xf32> to vector<4xf32>
    %25 = vector.shape_cast %24 : vector<4xf32> to vector<4x1xf32>
    %cst_13 = arith.constant dense<0xFF800000> : vector<4xf32>
    %26 = vector.multi_reduction <maximumf>, %13, %cst_13 [1] : vector<4x256xf32> to vector<4xf32>
    %27 = vector.shape_cast %26 : vector<4xf32> to vector<4x1xf32>
    %28 = tpu.concatenate %17, %25, %23, %27 in 0 : vector<4x1xf32>, vector<4x1xf32>, vector<4x1xf32>, vector<4x1xf32> -> vector<16x1xf32>
    %c0_14 = arith.constant 0 : index
    %c0_15 = arith.constant 0 : index
    %c0_16 = arith.constant 0 : index
    %29 = vector.load %arg4[%c0_14, %c0_15, %c0_16] : memref<2x128x16xf32, #tpu.memory_space<vmem>>, vector<1x128x16xf32>
    %30 = vector.shape_cast %29 : vector<1x128x16xf32> to vector<128x16xf32>
    %cst_17 = arith.constant dense<0.000000e+00> : vector<128x1xf32>
    %31 = tpu.matmul %30, %28, %cst_17 {dimension_numbers = #tpu.dot_dimension_numbers<[1], [0], [0], [1], [0, 0, 1, 1], [], []>, precision = #tpu.contract_precision<fp32>} : vector<128x16xf32>, vector<16x1xf32>, vector<128x1xf32> -> vector<128x1xf32>
    %c0_18 = arith.constant 0 : index
    %c0_19 = arith.constant 0 : index
    %c0_20 = arith.constant 0 : index
    %32 = vector.load %arg5[%c0_18, %c0_19, %c0_20] : memref<2x128x1xf32, #tpu.memory_space<vmem>>, vector<1x128x1xf32>
    %33 = vector.shape_cast %32 : vector<1x128x1xf32> to vector<128x1xf32>
    %34 = arith.addf %31, %33 : vector<128x1xf32>
    %cst_21 = arith.constant 0.000000e+00 : f32
    %35 = vector.broadcast %cst_21 : f32 to vector<128x1xf32>
    %36 = arith.maximumf %34, %35 : vector<128x1xf32>
    %c0_22 = arith.constant 0 : index
    %c0_23 = arith.constant 0 : index
    %c0_24 = arith.constant 0 : index
    %37 = vector.load %arg6[%c0_22, %c0_23, %c0_24] : memref<2x128x128xf32, #tpu.memory_space<vmem>>, vector<1x128x128xf32>
    %38 = vector.shape_cast %37 : vector<1x128x128xf32> to vector<128x128xf32>
    %cst_25 = arith.constant dense<0.000000e+00> : vector<128x1xf32>
    %39 = tpu.matmul %38, %36, %cst_25 {dimension_numbers = #tpu.dot_dimension_numbers<[1], [0], [0], [1], [0, 0, 1, 1], [], []>, precision = #tpu.contract_precision<fp32>} : vector<128x128xf32>, vector<128x1xf32>, vector<128x1xf32> -> vector<128x1xf32>
    %c0_26 = arith.constant 0 : index
    %c0_27 = arith.constant 0 : index
    %c0_28 = arith.constant 0 : index
    %40 = vector.load %arg7[%c0_26, %c0_27, %c0_28] : memref<2x128x1xf32, #tpu.memory_space<vmem>>, vector<1x128x1xf32>
    %41 = vector.shape_cast %40 : vector<1x128x1xf32> to vector<128x1xf32>
    %42 = arith.addf %39, %41 : vector<128x1xf32>
    %cst_29 = arith.constant 0.000000e+00 : f32
    %43 = vector.broadcast %cst_29 : f32 to vector<128x1xf32>
    %44 = arith.maximumf %42, %43 : vector<128x1xf32>
    %c0_30 = arith.constant 0 : index
    %c0_31 = arith.constant 0 : index
    %c0_32 = arith.constant 0 : index
    %45 = vector.load %arg8[%c0_30, %c0_31, %c0_32] : memref<2x8x128xf32, #tpu.memory_space<vmem>>, vector<1x8x128xf32>
    %46 = vector.shape_cast %45 : vector<1x8x128xf32> to vector<8x128xf32>
    %cst_33 = arith.constant dense<0.000000e+00> : vector<8x1xf32>
    %47 = tpu.matmul %46, %44, %cst_33 {dimension_numbers = #tpu.dot_dimension_numbers<[1], [0], [0], [1], [0, 0, 1, 1], [], []>, precision = #tpu.contract_precision<fp32>} : vector<8x128xf32>, vector<128x1xf32>, vector<8x1xf32> -> vector<8x1xf32>
    %c0_34 = arith.constant 0 : index
    %c0_35 = arith.constant 0 : index
    %c0_36 = arith.constant 0 : index
    %48 = vector.load %arg9[%c0_34, %c0_35, %c0_36] : memref<2x8x1xf32, #tpu.memory_space<vmem>>, vector<1x8x1xf32>
    %49 = vector.shape_cast %48 : vector<1x8x1xf32> to vector<8x1xf32>
    %50 = arith.addf %47, %49 : vector<8x1xf32>
    %51 = arith.negf %50 : vector<8x1xf32>
    %52 = math.exp %51 : vector<8x1xf32>
    %cst_37 = arith.constant 1.000000e+00 : f32
    %53 = vector.broadcast %cst_37 : f32 to vector<8x1xf32>
    %54 = arith.addf %53, %52 : vector<8x1xf32>
    %55 = arith.divf %53, %54 : vector<8x1xf32>
    %56 = vector.extract_strided_slice %55 {offsets = [0, 0], sizes = [4, 1], strides = [1, 1]} : vector<8x1xf32> to vector<4x1xf32>
    %57 = vector.extract_strided_slice %55 {offsets = [4, 0], sizes = [4, 1], strides = [1, 1]} : vector<8x1xf32> to vector<4x1xf32>
    %58 = arith.subf %56, %57 : vector<4x1xf32>
    %59 = arith.negf %58 : vector<4x1xf32>
    %60 = math.exp %59 : vector<4x1xf32>
    %cst_38 = arith.constant 1.000000e+00 : f32
    %61 = vector.broadcast %cst_38 : f32 to vector<4x1xf32>
    %62 = arith.addf %61, %60 : vector<4x1xf32>
    %63 = arith.divf %61, %62 : vector<4x1xf32>
    %64 = vector.broadcast %63 : vector<4x1xf32> to vector<4x256xf32>
    %65 = arith.mulf %4, %64 : vector<4x256xf32>
    %cst_39 = arith.constant dense<0.000000e+00> : vector<256xf32>
    %66 = vector.multi_reduction <add>, %65, %cst_39 [0] : vector<4x256xf32> to vector<256xf32>
    %67 = vector.shape_cast %66 : vector<256xf32> to vector<1x256xf32>
    %68 = vector.broadcast %67 : vector<1x256xf32> to vector<3x256xf32>
    %69 = arith.mulf %7, %68 : vector<3x256xf32>
    %70 = arith.addf %5, %69 : vector<3x256xf32>
    %c1 = arith.constant 1 : index
    %c0_40 = arith.constant 0 : index
    %c0_41 = arith.constant 0 : index
    %c0_42 = arith.constant 0 : index
    %71 = vector.load %arg3[%c1, %c0_40, %c0_41, %c0_42] : memref<2x1x3x256xf32, #tpu.memory_space<vmem>>, vector<1x1x3x256xf32>
    %72 = vector.shape_cast %71 : vector<1x1x3x256xf32> to vector<3x256xf32>
    %cst_43 = arith.constant dense<0.000000e+00> : vector<256xf32>
    %73 = vector.multi_reduction <add>, %72, %cst_43 [0] : vector<3x256xf32> to vector<256xf32>
    %74 = vector.shape_cast %73 : vector<256xf32> to vector<1x256xf32>
    %75 = vector.broadcast %74 : vector<1x256xf32> to vector<4x256xf32>
    %76 = arith.mulf %4, %75 : vector<4x256xf32>
    %77 = vector.broadcast %74 : vector<1x256xf32> to vector<4x256xf32>
    %78 = arith.subf %77, %76 : vector<4x256xf32>
    %cst_44 = arith.constant dense<0.000000e+00> : vector<4xf32>
    %79 = vector.multi_reduction <add>, %76, %cst_44 [1] : vector<4x256xf32> to vector<4xf32>
    %80 = vector.shape_cast %79 : vector<4xf32> to vector<4x1xf32>
    %cst_45 = arith.constant 3.906250e-03 : f32
    %81 = vector.broadcast %cst_45 : f32 to vector<4x1xf32>
    %82 = arith.mulf %80, %81 : vector<4x1xf32>
    %cst_46 = arith.constant dense<0.000000e+00> : vector<1xf32>
    %83 = vector.multi_reduction <add>, %74, %cst_46 [1] : vector<1x256xf32> to vector<1xf32>
    %84 = vector.shape_cast %83 : vector<1xf32> to vector<1x1xf32>
    %cst_47 = arith.constant 3.906250e-03 : f32
    %85 = vector.broadcast %cst_47 : f32 to vector<1x1xf32>
    %86 = arith.mulf %84, %85 : vector<1x1xf32>
    %87 = vector.broadcast %86 : vector<1x1xf32> to vector<4x1xf32>
    %88 = arith.subf %87, %82 : vector<4x1xf32>
    %cst_48 = arith.constant dense<0xFF800000> : vector<4xf32>
    %89 = vector.multi_reduction <maximumf>, %76, %cst_48 [1] : vector<4x256xf32> to vector<4xf32>
    %90 = vector.shape_cast %89 : vector<4xf32> to vector<4x1xf32>
    %cst_49 = arith.constant dense<0xFF800000> : vector<4xf32>
    %91 = vector.multi_reduction <maximumf>, %78, %cst_49 [1] : vector<4x256xf32> to vector<4xf32>
    %92 = vector.shape_cast %91 : vector<4xf32> to vector<4x1xf32>
    %93 = tpu.concatenate %82, %90, %88, %92 in 0 : vector<4x1xf32>, vector<4x1xf32>, vector<4x1xf32>, vector<4x1xf32> -> vector<16x1xf32>
    %c1_50 = arith.constant 1 : index
    %c0_51 = arith.constant 0 : index
    %c0_52 = arith.constant 0 : index
    %94 = vector.load %arg4[%c1_50, %c0_51, %c0_52] : memref<2x128x16xf32, #tpu.memory_space<vmem>>, vector<1x128x16xf32>
    %95 = vector.shape_cast %94 : vector<1x128x16xf32> to vector<128x16xf32>
    %cst_53 = arith.constant dense<0.000000e+00> : vector<128x1xf32>
    %96 = tpu.matmul %95, %93, %cst_53 {dimension_numbers = #tpu.dot_dimension_numbers<[1], [0], [0], [1], [0, 0, 1, 1], [], []>, precision = #tpu.contract_precision<fp32>} : vector<128x16xf32>, vector<16x1xf32>, vector<128x1xf32> -> vector<128x1xf32>
    %c1_54 = arith.constant 1 : index
    %c0_55 = arith.constant 0 : index
    %c0_56 = arith.constant 0 : index
    %97 = vector.load %arg5[%c1_54, %c0_55, %c0_56] : memref<2x128x1xf32, #tpu.memory_space<vmem>>, vector<1x128x1xf32>
    %98 = vector.shape_cast %97 : vector<1x128x1xf32> to vector<128x1xf32>
    %99 = arith.addf %96, %98 : vector<128x1xf32>
    %cst_57 = arith.constant 0.000000e+00 : f32
    %100 = vector.broadcast %cst_57 : f32 to vector<128x1xf32>
    %101 = arith.maximumf %99, %100 : vector<128x1xf32>
    %c1_58 = arith.constant 1 : index
    %c0_59 = arith.constant 0 : index
    %c0_60 = arith.constant 0 : index
    %102 = vector.load %arg6[%c1_58, %c0_59, %c0_60] : memref<2x128x128xf32, #tpu.memory_space<vmem>>, vector<1x128x128xf32>
    %103 = vector.shape_cast %102 : vector<1x128x128xf32> to vector<128x128xf32>
    %cst_61 = arith.constant dense<0.000000e+00> : vector<128x1xf32>
    %104 = tpu.matmul %103, %101, %cst_61 {dimension_numbers = #tpu.dot_dimension_numbers<[1], [0], [0], [1], [0, 0, 1, 1], [], []>, precision = #tpu.contract_precision<fp32>} : vector<128x128xf32>, vector<128x1xf32>, vector<128x1xf32> -> vector<128x1xf32>
    %c1_62 = arith.constant 1 : index
    %c0_63 = arith.constant 0 : index
    %c0_64 = arith.constant 0 : index
    %105 = vector.load %arg7[%c1_62, %c0_63, %c0_64] : memref<2x128x1xf32, #tpu.memory_space<vmem>>, vector<1x128x1xf32>
    %106 = vector.shape_cast %105 : vector<1x128x1xf32> to vector<128x1xf32>
    %107 = arith.addf %104, %106 : vector<128x1xf32>
    %cst_65 = arith.constant 0.000000e+00 : f32
    %108 = vector.broadcast %cst_65 : f32 to vector<128x1xf32>
    %109 = arith.maximumf %107, %108 : vector<128x1xf32>
    %c1_66 = arith.constant 1 : index
    %c0_67 = arith.constant 0 : index
    %c0_68 = arith.constant 0 : index
    %110 = vector.load %arg8[%c1_66, %c0_67, %c0_68] : memref<2x8x128xf32, #tpu.memory_space<vmem>>, vector<1x8x128xf32>
    %111 = vector.shape_cast %110 : vector<1x8x128xf32> to vector<8x128xf32>
    %cst_69 = arith.constant dense<0.000000e+00> : vector<8x1xf32>
    %112 = tpu.matmul %111, %109, %cst_69 {dimension_numbers = #tpu.dot_dimension_numbers<[1], [0], [0], [1], [0, 0, 1, 1], [], []>, precision = #tpu.contract_precision<fp32>} : vector<8x128xf32>, vector<128x1xf32>, vector<8x1xf32> -> vector<8x1xf32>
    %c1_70 = arith.constant 1 : index
    %c0_71 = arith.constant 0 : index
    %c0_72 = arith.constant 0 : index
    %113 = vector.load %arg9[%c1_70, %c0_71, %c0_72] : memref<2x8x1xf32, #tpu.memory_space<vmem>>, vector<1x8x1xf32>
    %114 = vector.shape_cast %113 : vector<1x8x1xf32> to vector<8x1xf32>
    %115 = arith.addf %112, %114 : vector<8x1xf32>
    %116 = arith.negf %115 : vector<8x1xf32>
    %117 = math.exp %116 : vector<8x1xf32>
    %cst_73 = arith.constant 1.000000e+00 : f32
    %118 = vector.broadcast %cst_73 : f32 to vector<8x1xf32>
    %119 = arith.addf %118, %117 : vector<8x1xf32>
    %120 = arith.divf %118, %119 : vector<8x1xf32>
    %121 = vector.extract_strided_slice %120 {offsets = [0, 0], sizes = [4, 1], strides = [1, 1]} : vector<8x1xf32> to vector<4x1xf32>
    %122 = vector.extract_strided_slice %120 {offsets = [4, 0], sizes = [4, 1], strides = [1, 1]} : vector<8x1xf32> to vector<4x1xf32>
    %123 = arith.subf %121, %122 : vector<4x1xf32>
    %124 = arith.negf %123 : vector<4x1xf32>
    %125 = math.exp %124 : vector<4x1xf32>
    %cst_74 = arith.constant 1.000000e+00 : f32
    %126 = vector.broadcast %cst_74 : f32 to vector<4x1xf32>
    %127 = arith.addf %126, %125 : vector<4x1xf32>
    %128 = arith.divf %126, %127 : vector<4x1xf32>
    %129 = vector.broadcast %128 : vector<4x1xf32> to vector<4x256xf32>
    %130 = arith.mulf %4, %129 : vector<4x256xf32>
    %cst_75 = arith.constant dense<0.000000e+00> : vector<256xf32>
    %131 = vector.multi_reduction <add>, %130, %cst_75 [0] : vector<4x256xf32> to vector<256xf32>
    %132 = vector.shape_cast %131 : vector<256xf32> to vector<1x256xf32>
    %133 = vector.broadcast %132 : vector<1x256xf32> to vector<3x256xf32>
    %134 = arith.mulf %72, %133 : vector<3x256xf32>
    %135 = arith.addf %70, %134 : vector<3x256xf32>
    %c0_76 = arith.constant 0 : index
    %c0_77 = arith.constant 0 : index
    %c0_78 = arith.constant 0 : index
    %136 = vector.load %arg10[%c0_76, %c0_77, %c0_78] : memref<1x3x256xf32, #tpu.memory_space<vmem>>, vector<1x3x256xf32>
    %137 = vector.shape_cast %135 : vector<3x256xf32> to vector<1x3x256xf32>
    %138 = arith.addf %136, %137 : vector<1x3x256xf32>
    %c0_79 = arith.constant 0 : index
    %c0_80 = arith.constant 0 : index
    %c0_81 = arith.constant 0 : index
    %139 = vector.load %arg10[%c0_79, %c0_80, %c0_81] : memref<1x3x256xf32, #tpu.memory_space<vmem>>, vector<1x3x256xf32>
    tpu.vector_store %arg10[%c0_79, %c0_80, %c0_81], %138 {strides = array<i32>} : memref<1x3x256xf32, #tpu.memory_space<vmem>>, vector<1x3x256xf32>,
    return
  }
  func.func @transform_0(%arg0: i32, %arg1: i32) -> (i32, i32, i32) {
    %c0_i32 = arith.constant 0 : i32
    %c0_i32_0 = arith.constant 0 : i32
    %c0_i32_1 = arith.constant 0 : i32
    return %arg0, %c0_i32, %c0_i32_0 : i32, i32, i32
  }
  func.func @transform_1(%arg0: i32, %arg1: i32) -> (i32, i32, i32, i32) {
    %c0_i32 = arith.constant 0 : i32
    %c0_i32_0 = arith.constant 0 : i32
    %c0_i32_1 = arith.constant 0 : i32
    return %arg1, %arg0, %c0_i32, %c0_i32_0 : i32, i32, i32, i32
  }
  func.func @transform_2(%arg0: i32, %arg1: i32) -> (i32, i32, i32) {
    %c0_i32 = arith.constant 0 : i32
    %c0_i32_0 = arith.constant 0 : i32
    %c0_i32_1 = arith.constant 0 : i32
    return %arg1, %c0_i32, %c0_i32_0 : i32, i32, i32
  }
  func.func @transform_3(%arg0: i32, %arg1: i32) -> (i32, i32, i32) {
    %c0_i32 = arith.constant 0 : i32
    %c0_i32_0 = arith.constant 0 : i32
    %c0_i32_1 = arith.constant 0 : i32
    return %arg1, %c0_i32, %c0_i32_0 : i32, i32, i32
  }
  func.func @transform_4(%arg0: i32, %arg1: i32) -> (i32, i32, i32) {
    %c0_i32 = arith.constant 0 : i32
    %c0_i32_0 = arith.constant 0 : i32
    %c0_i32_1 = arith.constant 0 : i32
    return %arg1, %c0_i32, %c0_i32_0 : i32, i32, i32
  }
  func.func @transform_5(%arg0: i32, %arg1: i32) -> (i32, i32, i32) {
    %c0_i32 = arith.constant 0 : i32
    %c0_i32_0 = arith.constant 0 : i32
    %c0_i32_1 = arith.constant 0 : i32
    return %arg1, %c0_i32, %c0_i32_0 : i32, i32, i32
  }
  func.func @transform_6(%arg0: i32, %arg1: i32) -> (i32, i32, i32) {
    %c0_i32 = arith.constant 0 : i32
    %c0_i32_0 = arith.constant 0 : i32
    %c0_i32_1 = arith.constant 0 : i32
    return %arg1, %c0_i32, %c0_i32_0 : i32, i32, i32
  }
  func.func @transform_7(%arg0: i32, %arg1: i32) -> (i32, i32, i32) {
    %c0_i32 = arith.constant 0 : i32
    %c0_i32_0 = arith.constant 0 : i32
    %c0_i32_1 = arith.constant 0 : i32
    return %arg1, %c0_i32, %c0_i32_0 : i32, i32, i32
  }
  func.func @transform_8(%arg0: i32, %arg1: i32) -> (i32, i32, i32) {
    %c0_i32 = arith.constant 0 : i32
    %c0_i32_0 = arith.constant 0 : i32
    %c0_i32_1 = arith.constant 0 : i32
    return %arg0, %c0_i32, %c0_i32_0 : i32, i32, i32
  }
}

</mosaic_0001>

<llo_original>
// kernel: tpu_custom_call.1
$region0: #{tpu_custom_call.1}
  #allocation0 [shape = 'u32[]', space=smem, size = 0x4, offset = 0x4, fixed_abs, tag = 'smem constant byte address 0x4 - core index']
  #allocation1 [shape = 'u32[144,128]{1,0:T(1,128)}', space=vmem, size = 0x12000, scoped, tag = 'internal scratch']
  %s0 = inlined_call_operand.vmem [shape: f32[2,4,256], index: 0, kind: input, shape index: {}]
  %s1 = inlined_call_operand.vmem [shape: f32[2,2,3,256], index: 1, kind: input, shape index: {}]
  %s2 = inlined_call_operand.vmem [shape: f32[2,128,16], index: 2, kind: input, shape index: {}]
  %s3 = inlined_call_operand.vmem [shape: f32[2,128,1], index: 3, kind: input, shape index: {}]
  %s4 = inlined_call_operand.vmem [shape: f32[2,128,128], index: 4, kind: input, shape index: {}]
  %s5 = inlined_call_operand.vmem [shape: f32[2,128,1], index: 5, kind: input, shape index: {}]
  %s6 = inlined_call_operand.vmem [shape: f32[2,8,128], index: 6, kind: input, shape index: {}]
  %s7 = inlined_call_operand.vmem [shape: f32[2,8,1], index: 7, kind: input, shape index: {}]
  %s8 = inlined_call_operand.vmem [shape: f32[2,3,256], index: 8, kind: output, shape index: {}]
  %s9 = sld [smem:[#allocation0]]
  $region107: #{tpu_custom_call.1} parent=0
    _
  %s11 = ssub.s32 1, %s9
  %s12 = scalar_select 0, %s11, %s9
  $region1: #{tpu_custom_call.1} parent=0
    #allocation2 [shape = 'u8[16384]{0}', space=vmem, size = 0x4000, scoped, tag = 'input window, operand 1']
    loop: start=0, step=1, limit=4
    $region2: #{tpu_custom_call.1} parent=1 // loop_pre_header
      _
    $region3: #{tpu_custom_call.1} parent=1 // loop_header
      %s14 = sphi 0, %s18
      %p15 = scmp.ge.s32.totalorder %s14, 4
      %s21 = sphi 0, %s33
      %s22 = sphi 0, %s29
      %s23 = sphi 0, %s21
      %s24 = sphi 0, %s22
      %s25 = sphi 0, %s23
      %s26 = sphi 0, %s24
      %s36 = sphi 0, %s38
      %s39 = sphi 0, %s36
      %s40 = sphi 0, %s39
      %s56 = sphi 0, %s40
      %s64 = sphi 0, %s66
      %s67 = sphi 0, %s64
      %s68 = sphi 0, %s67
      %s84 = sphi 0, %s68
      %s90 = sphi 0, %s92
      %s93 = sphi 0, %s90
      %s94 = sphi 0, %s93
      %s110 = sphi 0, %s94
      %s116 = sphi 0, %s118
      %s119 = sphi 0, %s116
      %s120 = sphi 0, %s119
      %s136 = sphi 0, %s120
      %s142 = sphi 0, %s144
      %s145 = sphi 0, %s142
      %s146 = sphi 0, %s145
      %s162 = sphi 0, %s146
      %s168 = sphi 0, %s170
      %s171 = sphi 0, %s168
      %s172 = sphi 0, %s171
      %s188 = sphi 0, %s172
      %s194 = sphi 0, %s196
      %s197 = sphi 0, %s194
      %s198 = sphi 0, %s197
      %s214 = sphi 0, %s198
      %s220 = sphi 0, %s222
      %s223 = sphi 0, %s220
      %s224 = sphi 0, %s223
      %s240 = sphi 0, %s224
      %s246 = sphi 0, %s248
      %s249 = sphi 0, %s246
      %s250 = sphi 0, %s249
      %s266 = sphi 0, %s250
    $region4: #{tpu_custom_call.1} parent=1 // loop_header_branch
      %17 = sbr.rel (%p15) target = $region8
    $region5: #{tpu_custom_call.1} parent=1 // loop_body
      %s19 = ssub.s32 %s14, 1
      %s20 = ssub.s32 %s14, 2
      %s27 = sadd.s32 1, %s22
      %p28 = scmp.ge.s32.totalorder %s27, 1
      %s29 = scalar_select %p28, 0, %s27
      %s30 = sadd.s32 1, %s21
      %s31 = scalar_select %p28, %s30, %s21
      %p32 = scmp.ge.s32.totalorder %s31, 2
      %s33 = scalar_select %p32, 0, %s31
      %s34 = ssub.s32 %s21, %s33
      %p35 = scmp.eq.s32.totalorder %s34, 0
      %s37 = sadd.s32 %s36, 1
      %s38 = scalar_select %p35, %s36, %s37
      %p41 = pneg %p35
      %p42 = scmp.eq.s32.totalorder %s14, 1
      %p43 = por %p41, %p42
      %p44 = scmp.ne.s32.totalorder %s36, %s39
      %p45 = scmp.eq.s32.totalorder %s14, 0
      %p46 = por %p44, %p45
      %p47 = scmp.ne.s32.totalorder %s36, %s39
      %p48 = scmp.eq.s32.totalorder %s19, 1
      %p49 = por %p47, %p48
      %p50 = scmp.ne.s32.totalorder %s39, %s40
      %p51 = scmp.eq.s32.totalorder %s19, 0
      %p52 = por %p50, %p51
      %p53 = scmp.ne.s32.totalorder %s39, %s40
      %p54 = scmp.eq.s32.totalorder %s20, 1
      %p55 = por %p53, %p54
      %p57 = scmp.ne.s32.totalorder %s40, %s56
      %p58 = scmp.eq.s32.totalorder %s20, 0
      %p59 = por %p57, %p58
      %s60 = ssub.s32 %s22, %s29
      %s61 = ssub.s32 %s21, %s33
      %s62 = sor.u32 %s60, %s61
      %p63 = scmp.eq.s32.totalorder %s62, 0
      %s65 = sadd.s32 %s64, 1
      %s66 = scalar_select %p63, %s64, %s65
      %p69 = pneg %p63
      %p70 = scmp.eq.s32.totalorder %s14, 1
      %p71 = por %p69, %p70
      %p72 = scmp.ne.s32.totalorder %s64, %s67
      %p73 = scmp.eq.s32.totalorder %s14, 0
      %p74 = por %p72, %p73
      %p75 = scmp.ne.s32.totalorder %s64, %s67
      %p76 = scmp.eq.s32.totalorder %s19, 1
      %p77 = por %p75, %p76
      %p78 = scmp.ne.s32.totalorder %s67, %s68
      %p79 = scmp.eq.s32.totalorder %s19, 0
      %p80 = por %p78, %p79
      %p81 = scmp.ne.s32.totalorder %s67, %s68
      %p82 = scmp.eq.s32.totalorder %s20, 1
      %p83 = por %p81, %p82
      %p85 = scmp.ne.s32.totalorder %s68, %s84
      %p86 = scmp.eq.s32.totalorder %s20, 0
      %p87 = por %p85, %p86
      %s88 = ssub.s32 %s22, %s29
      %p89 = scmp.eq.s32.totalorder %s88, 0
      %s91 = sadd.s32 %s90, 1
      %s92 = scalar_select %p89, %s90, %s91
      %p95 = pneg %p89
      %p96 = scmp.eq.s32.totalorder %s14, 1
      %p97 = por %p95, %p96
      %p98 = scmp.ne.s32.totalorder %s90, %s93
      %p99 = scmp.eq.s32.totalorder %s14, 0
      %p100 = por %p98, %p99
      %p101 = scmp.ne.s32.totalorder %s90, %s93
      %p102 = scmp.eq.s32.totalorder %s19, 1
      %p103 = por %p101, %p102
      %p104 = scmp.ne.s32.totalorder %s93, %s94
      %p105 = scmp.eq.s32.totalorder %s19, 0
      %p106 = por %p104, %p105
      %p107 = scmp.ne.s32.totalorder %s93, %s94
      %p108 = scmp.eq.s32.totalorder %s20, 1
      %p109 = por %p107, %p108
      %p111 = scmp.ne.s32.totalorder %s94, %s110
      %p112 = scmp.eq.s32.totalorder %s20, 0
      %p113 = por %p111, %p112
      %s114 = ssub.s32 %s22, %s29
      %p115 = scmp.eq.s32.totalorder %s114, 0
      %s117 = sadd.s32 %s116, 1
      %s118 = scalar_select %p115, %s116, %s117
      %p121 = pneg %p115
      %p122 = scmp.eq.s32.totalorder %s14, 1
      %p123 = por %p121, %p122
      %p124 = scmp.ne.s32.totalorder %s116, %s119
      %p125 = scmp.eq.s32.totalorder %s14, 0
      %p126 = por %p124, %p125
      %p127 = scmp.ne.s32.totalorder %s116, %s119
      %p128 = scmp.eq.s32.totalorder %s19, 1
      %p129 = por %p127, %p128
      %p130 = scmp.ne.s32.totalorder %s119, %s120
      %p131 = scmp.eq.s32.totalorder %s19, 0
      %p132 = por %p130, %p131
      %p133 = scmp.ne.s32.totalorder %s119, %s120
      %p134 = scmp.eq.s32.totalorder %s20, 1
      %p135 = por %p133, %p134
      %p137 = scmp.ne.s32.totalorder %s120, %s136
      %p138 = scmp.eq.s32.totalorder %s20, 0
      %p139 = por %p137, %p138
      %s140 = ssub.s32 %s22, %s29
      %p141 = scmp.eq.s32.totalorder %s140, 0
      %s143 = sadd.s32 %s142, 1
      %s144 = scalar_select %p141, %s142, %s143
      %p147 = pneg %p141
      %p148 = scmp.eq.s32.totalorder %s14, 1
      %p149 = por %p147, %p148
      %p150 = scmp.ne.s32.totalorder %s142, %s145
      %p151 = scmp.eq.s32.totalorder %s14, 0
      %p152 = por %p150, %p151
      %p153 = scmp.ne.s32.totalorder %s142, %s145
      %p154 = scmp.eq.s32.totalorder %s19, 1
      %p155 = por %p153, %p154
      %p156 = scmp.ne.s32.totalorder %s145, %s146
      %p157 = scmp.eq.s32.totalorder %s19, 0
      %p158 = por %p156, %p157
      %p159 = scmp.ne.s32.totalorder %s145, %s146
      %p160 = scmp.eq.s32.totalorder %s20, 1
      %p161 = por %p159, %p160
      %p163 = scmp.ne.s32.totalorder %s146, %s162
      %p164 = scmp.eq.s32.totalorder %s20, 0
      %p165 = por %p163, %p164
      %s166 = ssub.s32 %s22, %s29
      %p167 = scmp.eq.s32.totalorder %s166, 0
      %s169 = sadd.s32 %s168, 1
      %s170 = scalar_select %p167, %s168, %s169
      %p173 = pneg %p167
      %p174 = scmp.eq.s32.totalorder %s14, 1
      %p175 = por %p173, %p174
      %p176 = scmp.ne.s32.totalorder %s168, %s171
      %p177 = scmp.eq.s32.totalorder %s14, 0
      %p178 = por %p176, %p177
      %p179 = scmp.ne.s32.totalorder %s168, %s171
      %p180 = scmp.eq.s32.totalorder %s19, 1
      %p181 = por %p179, %p180
      %p182 = scmp.ne.s32.totalorder %s171, %s172
      %p183 = scmp.eq.s32.totalorder %s19, 0
      %p184 = por %p182, %p183
      %p185 = scmp.ne.s32.totalorder %s171, %s172
      %p186 = scmp.eq.s32.totalorder %s20, 1
      %p187 = por %p185, %p186
      %p189 = scmp.ne.s32.totalorder %s172, %s188
      %p190 = scmp.eq.s32.totalorder %s20, 0
      %p191 = por %p189, %p190
      %s192 = ssub.s32 %s22, %s29
      %p193 = scmp.eq.s32.totalorder %s192, 0
      %s195 = sadd.s32 %s194, 1
      %s196 = scalar_select %p193, %s194, %s195
      %p199 = pneg %p193
      %p200 = scmp.eq.s32.totalorder %s14, 1
      %p201 = por %p199, %p200
      %p202 = scmp.ne.s32.totalorder %s194, %s197
      %p203 = scmp.eq.s32.totalorder %s14, 0
      %p204 = por %p202, %p203
      %p205 = scmp.ne.s32.totalorder %s194, %s197
      %p206 = scmp.eq.s32.totalorder %s19, 1
      %p207 = por %p205, %p206
      %p208 = scmp.ne.s32.totalorder %s197, %s198
      %p209 = scmp.eq.s32.totalorder %s19, 0
      %p210 = por %p208, %p209
      %p211 = scmp.ne.s32.totalorder %s197, %s198
      %p212 = scmp.eq.s32.totalorder %s20, 1
      %p213 = por %p211, %p212
      %p215 = scmp.ne.s32.totalorder %s198, %s214
      %p216 = scmp.eq.s32.totalorder %s20, 0
      %p217 = por %p215, %p216
      %s218 = ssub.s32 %s22, %s29
      %p219 = scmp.eq.s32.totalorder %s218, 0
      %s221 = sadd.s32 %s220, 1
      %s222 = scalar_select %p219, %s220, %s221
      %p225 = pneg %p219
      %p226 = scmp.eq.s32.totalorder %s14, 1
      %p227 = por %p225, %p226
      %p228 = scmp.ne.s32.totalorder %s220, %s223
      %p229 = scmp.eq.s32.totalorder %s14, 0
      %p230 = por %p228, %p229
      %p231 = scmp.ne.s32.totalorder %s220, %s223
      %p232 = scmp.eq.s32.totalorder %s19, 1
      %p233 = por %p231, %p232
      %p234 = scmp.ne.s32.totalorder %s223, %s224
      %p235 = scmp.eq.s32.totalorder %s19, 0
      %p236 = por %p234, %p235
      %p237 = scmp.ne.s32.totalorder %s223, %s224
      %p238 = scmp.eq.s32.totalorder %s20, 1
      %p239 = por %p237, %p238
      %p241 = scmp.ne.s32.totalorder %s224, %s240
      %p242 = scmp.eq.s32.totalorder %s20, 0
      %p243 = por %p241, %p242
      %s244 = ssub.s32 %s21, %s33
      %p245 = scmp.eq.s32.totalorder %s244, 0
      %s247 = sadd.s32 %s246, 1
      %s248 = scalar_select %p245, %s246, %s247
      %p251 = pneg %p245
      %p252 = scmp.eq.s32.totalorder %s14, 1
      %p253 = por %p251, %p252
      %p254 = scmp.ne.s32.totalorder %s246, %s249
      %p255 = scmp.eq.s32.totalorder %s14, 0
      %p256 = por %p254, %p255
      %p257 = scmp.ne.s32.totalorder %s246, %s249
      %p258 = scmp.eq.s32.totalorder %s19, 1
      %p259 = por %p257, %p258
      %p260 = scmp.ne.s32.totalorder %s249, %s250
      %p261 = scmp.eq.s32.totalorder %s19, 0
      %p262 = por %p260, %p261
      %p263 = scmp.ne.s32.totalorder %s249, %s250
      %p264 = scmp.eq.s32.totalorder %s20, 1
      %p265 = por %p263, %p264
      %p267 = scmp.ne.s32.totalorder %s250, %s266
      %p268 = scmp.eq.s32.totalorder %s20, 0
      %p269 = por %p267, %p268
      %p270 = scmp.le.s32.totalorder 1, %s14
      %p271 = scmp.lt.s32.totalorder %s14, 3
      %p272 = pnand %p270, %p271
      %p273 = pneg %p272
      // Predicated region
      $region9: #{tpu_custom_call.1} parent=5 // pred_check
        _
      $region10: #{tpu_custom_call.1} parent=5 // pred_check_branch
        %275 = sbr.rel (%p272) target = $region12
      $region11: #{tpu_custom_call.1} parent=5 // pred_region
        %s276 = ssub.s32 %s14, 1
        // Predicated region
        $region13: #{tpu_custom_call.1} parent=11 // pred_check
          %p277 = pneg %p106
        $region14: #{tpu_custom_call.1} parent=11 // pred_check_branch
          %279 = sbr.rel (%p277) target = $region16
        $region15: #{tpu_custom_call.1} parent=11 // pred_region
          %s280 = smul.u32 2, %s24
          %p281 = scmp.lt.s32.totalorder %s280, 1
          %s282 = scalar_select %p281, %s280, 1
          %s283 = smul.addr %s282, 16
          %s284 = smul.addr %s283, 8
          %s285 = scalar_lea.vmem %s2, %s284
          %s286 = smul.u32 2, %s24
        $region16: #{tpu_custom_call.1} parent=11 // pred_fallthru
          _
        // Predicated region
        $region17: #{tpu_custom_call.1} parent=11 // pred_check
          %p287 = pneg %p132
        $region18: #{tpu_custom_call.1} parent=11 // pred_check_branch
          %289 = sbr.rel (%p287) target = $region20
        $region19: #{tpu_custom_call.1} parent=11 // pred_region
          %s290 = smul.u32 2, %s24
          %p291 = scmp.lt.s32.totalorder %s290, 1
          %s292 = scalar_select %p291, %s290, 1
          %s293 = smul.addr %s292, 16
          %s294 = smul.addr %s293, 8
          %s295 = scalar_lea.vmem %s3, %s294
          %s296 = smul.u32 2, %s24
        $region20: #{tpu_custom_call.1} parent=11 // pred_fallthru
          _
        // Predicated region
        $region21: #{tpu_custom_call.1} parent=11 // pred_check
          %p297 = pneg %p158
        $region22: #{tpu_custom_call.1} parent=11 // pred_check_branch
          %299 = sbr.rel (%p297) target = $region24
        $region23: #{tpu_custom_call.1} parent=11 // pred_region
          %s300 = smul.u32 2, %s24
          %p301 = scmp.lt.s32.totalorder %s300, 1
          %s302 = scalar_select %p301, %s300, 1
          %s303 = smul.addr %s302, 16
          %s304 = smul.addr %s303, 8
          %s305 = scalar_lea.vmem %s4, %s304
          %s306 = smul.u32 2, %s24
        $region24: #{tpu_custom_call.1} parent=11 // pred_fallthru
          _
        // Predicated region
        $region25: #{tpu_custom_call.1} parent=11 // pred_check
          %p307 = pneg %p184
        $region26: #{tpu_custom_call.1} parent=11 // pred_check_branch
          %309 = sbr.rel (%p307) target = $region28
        $region27: #{tpu_custom_call.1} parent=11 // pred_region
          %s310 = smul.u32 2, %s24
          %p311 = scmp.lt.s32.totalorder %s310, 1
          %s312 = scalar_select %p311, %s310, 1
          %s313 = smul.addr %s312, 16
          %s314 = smul.addr %s313, 8
          %s315 = scalar_lea.vmem %s5, %s314
          %s316 = smul.u32 2, %s24
        $region28: #{tpu_custom_call.1} parent=11 // pred_fallthru
          _
        // Predicated region
        $region29: #{tpu_custom_call.1} parent=11 // pred_check
          %p317 = pneg %p210
        $region30: #{tpu_custom_call.1} parent=11 // pred_check_branch
          %319 = sbr.rel (%p317) target = $region32
        $region31: #{tpu_custom_call.1} parent=11 // pred_region
          %s320 = smul.u32 2, %s24
          %p321 = scmp.lt.s32.totalorder %s320, 1
          %s322 = scalar_select %p321, %s320, 1
          %s323 = smul.addr %s322, 8
          %s324 = scalar_lea.vmem %s6, %s323
          %s325 = smul.u32 2, %s24
        $region32: #{tpu_custom_call.1} parent=11 // pred_fallthru
          _
        // Predicated region
        $region33: #{tpu_custom_call.1} parent=11 // pred_check
          %p326 = pneg %p236
        $region34: #{tpu_custom_call.1} parent=11 // pred_check_branch
          %328 = sbr.rel (%p326) target = $region36
        $region35: #{tpu_custom_call.1} parent=11 // pred_region
          %s329 = smul.u32 2, %s24
          %p330 = scmp.lt.s32.totalorder %s329, 1
          %s331 = scalar_select %p330, %s329, 1
          %s332 = smul.addr %s331, 8
          %s333 = scalar_lea.vmem %s7, %s332
          %s334 = smul.u32 2, %s24
        $region36: #{tpu_custom_call.1} parent=11 // pred_fallthru
          _
      $region12: #{tpu_custom_call.1} parent=5 // pred_fallthru
        _
      %p335 = scmp.lt.s32.totalorder %s14, 2
      // Predicated region
      $region37: #{tpu_custom_call.1} parent=5 // pred_check
        %p336 = pneg %p335
      $region38: #{tpu_custom_call.1} parent=5 // pred_check_branch
        %338 = sbr.rel (%p336) target = $region40
      $region39: #{tpu_custom_call.1} parent=5 // pred_region
        // Predicated region
        $region41: #{tpu_custom_call.1} parent=39 // pred_check
          %p339 = pneg %p46
        $region42: #{tpu_custom_call.1} parent=39 // pred_check_branch
          %341 = sbr.rel (%p339) target = $region44
        $region43: #{tpu_custom_call.1} parent=39 // pred_region
          %p342 = scmp.lt.s32.totalorder %s21, 1
          %s343 = scalar_select %p342, %s21, 1
          %s344 = smul.addr %s343, 2
          %s345 = smul.addr %s344, 4
          %s346 = scalar_lea.vmem %s0, %s345
        $region44: #{tpu_custom_call.1} parent=39 // pred_fallthru
          _
        // Predicated region
        $region45: #{tpu_custom_call.1} parent=39 // pred_check
          %p347 = pneg %p74
        $region46: #{tpu_custom_call.1} parent=39 // pred_check_branch
          %349 = sbr.rel (%p347) target = $region48
        $region47: #{tpu_custom_call.1} parent=39 // pred_region
          %s350 = sand.u32 %s64, 1
          %s351 = sand.u32 %s64, 1
          %s352 = smul.addr %s351, 16
          %s353 = scalar_lea.vmem [#allocation2], %s352
          %s354 = smul.u32 2, %s22
          %s355 = smul.addr %s21, 2
          %s356 = smul.addr %s354, 4
          %s357 = sadd.s32 %s355, %s356
          %s358 = smul.addr %s357, 4
          %s359 = scalar_lea.vmem %s1, %s358
          // Predicated region
          $region49: #{tpu_custom_call.1} parent=47 // pred_check
            _
          $region50: #{tpu_custom_call.1} parent=47 // pred_check_branch
            %361 = sbr.rel (0) target = $region52
          $region51: #{tpu_custom_call.1} parent=47 // pred_region
            // Predicated region
            $region53: #{tpu_custom_call.1} parent=51 // pred_check
              _
            $region54: #{tpu_custom_call.1} parent=51 // pred_check_branch
              %363 = sbr.rel (0) target = $region56
            $region55: #{tpu_custom_call.1} parent=51 // pred_region
              // Predicated region
              $region68: #{tpu_custom_call.1} parent=55 // pred_check
                _
              $region69: #{tpu_custom_call.1} parent=55 // pred_check_branch
                %380 = sbr.rel (0) target = $region71
              $region70: #{tpu_custom_call.1} parent=55 // pred_region
                loop: start=0, step=1, limit=1
                $region72: #{tpu_custom_call.1} parent=70 // loop_pre_header
                  _
                $region73: #{tpu_custom_call.1} parent=70 // loop_header
                  %s382 = sphi 0, %s386
                  %p383 = scmp.ge.s32.totalorder %s382, 1
                  %s387 = sphi %s359, %s359
                  %s388 = sphi %s353, %s353
                $region74: #{tpu_custom_call.1} parent=70 // loop_header_branch
                  %385 = sbr.rel (%p383) target = $region78
                $region75: #{tpu_custom_call.1} parent=70 // loop_body
                  %v389 = vld [vmem:[%s387] sm:$0xff]
                  %390 = vst [vmem:[%s388] sm:$0xff] %v389
                  %v391 = vld [vmem:[%s387 + $0x10] sm:$0xff]
                  %392 = vst [vmem:[%s388 + $0x8] sm:$0xff] %v391
                $region76: #{tpu_custom_call.1} parent=70 // loop_footer
                  %s386 = sadd.s32 1, %s382
                $region77: #{tpu_custom_call.1} parent=70 // loop_footer_branch
                  %381 = sbr.rel target = $region73
                $region78: #{tpu_custom_call.1} parent=70 // loop_exit
                  _
              $region71: #{tpu_custom_call.1} parent=55 // pred_fallthru
                _
              // Predicated region
              $region79: #{tpu_custom_call.1} parent=55 // pred_check
                _
              $region80: #{tpu_custom_call.1} parent=55 // pred_check_branch
                %394 = sbr.rel target = $region82
              $region81: #{tpu_custom_call.1} parent=55 // pred_region
                _
              $region82: #{tpu_custom_call.1} parent=55 // pred_fallthru
                _
            $region56: #{tpu_custom_call.1} parent=51 // pred_fallthru
              _
            // Predicated region
            $region57: #{tpu_custom_call.1} parent=51 // pred_check
              _
            $region58: #{tpu_custom_call.1} parent=51 // pred_check_branch
              %365 = sbr.rel target = $region60
            $region59: #{tpu_custom_call.1} parent=51 // pred_region
              loop: start=0, step=1, limit=1
              $region61: #{tpu_custom_call.1} parent=59 // loop_pre_header
                _
              $region62: #{tpu_custom_call.1} parent=59 // loop_header
                %s368 = sphi 0, %s372
                %p369 = scmp.ge.s32.totalorder %s368, 1
                %s373 = sphi %s359, %s359
                %s374 = sphi %s353, %s353
              $region63: #{tpu_custom_call.1} parent=59 // loop_header_branch
                %371 = sbr.rel (%p369) target = $region67
              $region64: #{tpu_custom_call.1} parent=59 // loop_body
                %v375 = vld [vmem:[%s373] sm:$0xff]
                %376 = vst [vmem:[%s374] sm:$0xff] %v375
                %v377 = vld [vmem:[%s373 + $0x10] sm:$0xff]
                %378 = vst [vmem:[%s374 + $0x8] sm:$0xff] %v377
              $region65: #{tpu_custom_call.1} parent=59 // loop_footer
                %s372 = sadd.s32 1, %s368
              $region66: #{tpu_custom_call.1} parent=59 // loop_footer_branch
                %367 = sbr.rel target = $region62
              $region67: #{tpu_custom_call.1} parent=59 // loop_exit
                _
            $region60: #{tpu_custom_call.1} parent=51 // pred_fallthru
              _
          $region52: #{tpu_custom_call.1} parent=47 // pred_fallthru
            _
          %395 = vnop
        $region48: #{tpu_custom_call.1} parent=39 // pred_fallthru
          _
      $region40: #{tpu_custom_call.1} parent=5 // pred_fallthru
        _
      %p396 = scmp.le.s32.totalorder 1, %s14
      %p397 = scmp.lt.s32.totalorder %s14, 3
      %p398 = pnand %p396, %p397
      %p399 = pneg %p398
      // Predicated region
      $region83: #{tpu_custom_call.1} parent=5 // pred_check
        _
      $region84: #{tpu_custom_call.1} parent=5 // pred_check_branch
        %401 = sbr.rel (%p398) target = $region86
      $region85: #{tpu_custom_call.1} parent=5 // pred_region
        %s402 = ssub.s32 %s14, 1
        %s403 = sand.u32 %s67, 1
        %s404 = sand.u32 %s67, 1
        %s405 = smul.addr %s404, 16
        %s406 = scalar_lea.vmem [#allocation2], %s405
        // Predicated region
        $region87: #{tpu_custom_call.1} parent=85 // pred_check
          %p407 = pneg %p80
        $region88: #{tpu_custom_call.1} parent=85 // pred_check_branch
          %409 = sbr.rel (%p407) target = $region90
        $region89: #{tpu_custom_call.1} parent=85 // pred_region
          _
        $region90: #{tpu_custom_call.1} parent=85 // pred_fallthru
          _
        %p410 = scmp.lt.s32.totalorder %s23, 1
        %s411 = scalar_select %p410, %s23, 1
        %s412 = smul.addr %s411, 2
        %s413 = smul.addr %s412, 4
        %s414 = scalar_lea.vmem %s0, %s413
        %p415 = pneg %p52
        %p416 = pneg %p49
        %s417 = sand.u32 %s67, 1
        %s418 = sand.u32 %s67, 1
        %s419 = smul.addr %s418, 16
        %s420 = scalar_lea.vmem [#allocation2], %s419
        %p421 = pneg %p80
        %p422 = pneg %p77
        %s423 = smul.u32 2, %s24
        %p424 = scmp.lt.s32.totalorder %s423, 1
        %s425 = scalar_select %p424, %s423, 1
        %s426 = smul.addr %s425, 16
        %s427 = smul.addr %s426, 8
        %s428 = scalar_lea.vmem %s2, %s427
        %p429 = pneg %p106
        %p430 = pneg %p103
        %s431 = smul.u32 2, %s24
        %p432 = scmp.lt.s32.totalorder %s431, 1
        %s433 = scalar_select %p432, %s431, 1
        %s434 = smul.addr %s433, 16
        %s435 = smul.addr %s434, 8
        %s436 = scalar_lea.vmem %s3, %s435
        %p437 = pneg %p132
        %p438 = pneg %p129
        %s439 = smul.u32 2, %s24
        %p440 = scmp.lt.s32.totalorder %s439, 1
        %s441 = scalar_select %p440, %s439, 1
        %s442 = smul.addr %s441, 16
        %s443 = smul.addr %s442, 8
        %s444 = scalar_lea.vmem %s4, %s443
        %p445 = pneg %p158
        %p446 = pneg %p155
        %s447 = smul.u32 2, %s24
        %p448 = scmp.lt.s32.totalorder %s447, 1
        %s449 = scalar_select %p448, %s447, 1
        %s450 = smul.addr %s449, 16
        %s451 = smul.addr %s450, 8
        %s452 = scalar_lea.vmem %s5, %s451
        %p453 = pneg %p184
        %p454 = pneg %p181
        %s455 = smul.u32 2, %s24
        %p456 = scmp.lt.s32.totalorder %s455, 1
        %s457 = scalar_select %p456, %s455, 1
        %s458 = smul.addr %s457, 8
        %s459 = scalar_lea.vmem %s6, %s458
        %p460 = pneg %p210
        %p461 = pneg %p207
        %s462 = smul.u32 2, %s24
        %p463 = scmp.lt.s32.totalorder %s462, 1
        %s464 = scalar_select %p463, %s462, 1
        %s465 = smul.addr %s464, 8
        %s466 = scalar_lea.vmem %s7, %s465
        %p467 = pneg %p236
        %p468 = pneg %p233
        %p469 = pneg %p262
        %p470 = pneg %p259
        %p471 = scmp.lt.s32.totalorder %s23, 1
        %s472 = scalar_select %p471, %s23, 1
        %s473 = smul.addr %s472, 2
        %s474 = smul.addr %s473, 4
        %s475 = scalar_lea.vmem %s8, %s474
        %p476 = scmp.lt.s32.totalorder %s23, 1
        %s477 = scalar_select %p476, %s23, 1
        %s478 = smul.addr %s477, 2
        %s479 = smul.addr %s478, 4
        %s480 = scalar_lea.vmem %s0, %s479
        %s481 = smul.u32 2, %s24
        %s482 = smul.u32 2, %s24
        %p483 = scmp.lt.s32.totalorder %s482, 1
        %s484 = scalar_select %p483, %s482, 1
        %s485 = smul.addr %s484, 16
        %s486 = smul.addr %s485, 8
        %s487 = scalar_lea.vmem %s2, %s486
        %s488 = smul.u32 2, %s24
        %s489 = smul.u32 2, %s24
        %p490 = scmp.lt.s32.totalorder %s489, 1
        %s491 = scalar_select %p490, %s489, 1
        %s492 = smul.addr %s491, 16
        %s493 = smul.addr %s492, 8
        %s494 = scalar_lea.vmem %s3, %s493
        %s495 = smul.u32 2, %s24
        %s496 = smul.u32 2, %s24
        %p497 = scmp.lt.s32.totalorder %s496, 1
        %s498 = scalar_select %p497, %s496, 1
        %s499 = smul.addr %s498, 16
        %s500 = smul.addr %s499, 8
        %s501 = scalar_lea.vmem %s4, %s500
        %s502 = smul.u32 2, %s24
        %s503 = smul.u32 2, %s24
        %p504 = scmp.lt.s32.totalorder %s503, 1
        %s505 = scalar_select %p504, %s503, 1
        %s506 = smul.addr %s505, 16
        %s507 = smul.addr %s506, 8
        %s508 = scalar_lea.vmem %s5, %s507
        %s509 = smul.u32 2, %s24
        %s510 = smul.u32 2, %s24
        %p511 = scmp.lt.s32.totalorder %s510, 1
        %s512 = scalar_select %p511, %s510, 1
        %s513 = smul.addr %s512, 8
        %s514 = scalar_lea.vmem %s6, %s513
        %s515 = smul.u32 2, %s24
        %s516 = smul.u32 2, %s24
        %p517 = scmp.lt.s32.totalorder %s516, 1
        %s518 = scalar_select %p517, %s516, 1
        %s519 = smul.addr %s518, 8
        %s520 = scalar_lea.vmem %s7, %s519
        %s521 = smul.u32 2, %s24
        %p522 = scmp.lt.s32.totalorder %s23, 1
        %s523 = scalar_select %p522, %s23, 1
        %s524 = smul.addr %s523, 2
        %s525 = smul.addr %s524, 4
        %s526 = scalar_lea.vmem %s8, %s525
        %p527 = scmp.eq.s32.totalorder %s24, 0
        // Predicated region
        $region91: #{tpu_custom_call.1} parent=85 // pred_check
          %p528 = pneg %p527
        $region92: #{tpu_custom_call.1} parent=85 // pred_check_branch
          %530 = sbr.rel (%p528) target = $region94
        $region93: #{tpu_custom_call.1} parent=85 // pred_region
          %531 = vst [vmem:[%s526] sm:$0x77] 0.0
        $region94: #{tpu_custom_call.1} parent=85 // pred_fallthru
          _
        %v532 = vld [vmem:[%s480] sm:$0xff]
        %v533 = vld [vmem:[%s406] sm:$0x77]
        %v535 = vcombine.high %v533, %v533
        %vm537 = vcmask 1042432
        %v538 = vsel %vm537, %v533, 0.0
        %v539 = vrot.slane %v538, 4
        %v540 = vadd.f32 %v538, %v539
        %v541 = vrot.slane %v540, 2
        %v542 = vadd.f32 %v540, %v541
        %v543 = vrot.slane %v542, 1
        %v544 = vadd.f32 %v542, %v543
        %v545 = vsel %vm537, %v535, 0.0
        %v546 = vrot.slane %v545, 4
        %v547 = vadd.f32 %v545, %v546
        %v548 = vrot.slane %v547, 2
        %v549 = vadd.f32 %v547, %v548
        %v550 = vrot.slane %v549, 1
        %v551 = vadd.f32 %v549, %v550
        %v554 = vcombine.low %v544, %v551
        %v556 = vmul.f32 %v532, %v554
        %v558 = vcombine.high %v556, %v556
        %v560 = vsub.f32 %v544, %v556
        %v561 = vsub.f32 %v551, %v558
        %vm562 = vcmask 1043456
        %v563 = vsel %vm562, %v556, 0.0
        %v564 = vsel %vm562, %v558, 0.0
        %v565 = vadd.f32 %v563, %v564
        %566 = vadd.xlane.f32.xlu0 %v565
        %v567 = vpop.xlane.xlu0 %566
        %v568 = vmul.f32 %v567, 0.00390625
        %v569 = vadd.f32 %v544, %v551
        %570 = vadd.xlane.f32.xlu0 %v569
        %v571 = vpop.xlane.xlu0 %570
        %v572 = vmul.f32 %v571, 0.00390625
        %v573 = vsub.f32 %v572, %v568
        %v574 = vsel %vm562, %v556, -inf
        %v575 = vsel %vm562, %v558, -inf
        %v576 = vmax.f32 %v574, %v575
        %577 = vmax.xlane.f32.xlu0 %v576
        %v578 = vpop.xlane.xlu0 %577
        %v579 = vsel %vm562, %v560, -inf
        %v580 = vsel %vm562, %v561, -inf
        %v581 = vmax.f32 %v579, %v580
        %582 = vmax.xlane.f32.xlu0 %v581
        %v583 = vpop.xlane.xlu0 %582
        %v585 = vrot.slane %v578, 4
        %v588 = vrot.slane %v583, 4
        %v590 = vsel %vm562, %v568, %v585
        %v591 = vsel %vm562, %v573, %v588
        %v592 = vld [vmem:[%s487] sm:$0xff]
        %v593 = vld [vmem:[%s487 + $0x8] sm:$0xff]
        %v594 = vld [vmem:[%s487 + $0x10] sm:$0xff]
        %v595 = vld [vmem:[%s487 + $0x18] sm:$0xff]
        %v596 = vld [vmem:[%s487 + $0x20] sm:$0xff]
        %v597 = vld [vmem:[%s487 + $0x28] sm:$0xff]
        %v598 = vld [vmem:[%s487 + $0x30] sm:$0xff]
        %v599 = vld [vmem:[%s487 + $0x38] sm:$0xff]
        %v600 = vld [vmem:[%s487 + $0x40] sm:$0xff]
        %v601 = vld [vmem:[%s487 + $0x48] sm:$0xff]
        %v602 = vld [vmem:[%s487 + $0x50] sm:$0xff]
        %v603 = vld [vmem:[%s487 + $0x58] sm:$0xff]
        %v604 = vld [vmem:[%s487 + $0x60] sm:$0xff]
        %v605 = vld [vmem:[%s487 + $0x68] sm:$0xff]
        %v606 = vld [vmem:[%s487 + $0x70] sm:$0xff]
        %v607 = vld [vmem:[%s487 + $0x78] sm:$0xff]
        %v608 = vld [vmem:[%s494] sm:$0xff]
        %v609 = vld [vmem:[%s494 + $0x8] sm:$0xff]
        %v610 = vld [vmem:[%s494 + $0x10] sm:$0xff]
        %v611 = vld [vmem:[%s494 + $0x18] sm:$0xff]
        %v612 = vld [vmem:[%s494 + $0x20] sm:$0xff]
        %v613 = vld [vmem:[%s494 + $0x28] sm:$0xff]
        %v614 = vld [vmem:[%s494 + $0x30] sm:$0xff]
        %v615 = vld [vmem:[%s494 + $0x38] sm:$0xff]
        %v616 = vld [vmem:[%s494 + $0x40] sm:$0xff]
        %v617 = vld [vmem:[%s494 + $0x48] sm:$0xff]
        %v618 = vld [vmem:[%s494 + $0x50] sm:$0xff]
        %v619 = vld [vmem:[%s494 + $0x58] sm:$0xff]
        %v620 = vld [vmem:[%s494 + $0x60] sm:$0xff]
        %v621 = vld [vmem:[%s494 + $0x68] sm:$0xff]
        %v622 = vld [vmem:[%s494 + $0x70] sm:$0xff]
        %v623 = vld [vmem:[%s494 + $0x78] sm:$0xff]
        %vm624 = vcmask 130048
        %v626 = vsel %vm624, %v592, 0
        %v629 = vsel %vm624, %v593, 0
        %v632 = vsel %vm624, %v594, 0
        %v635 = vsel %vm624, %v595, 0
        %v638 = vsel %vm624, %v596, 0
        %v641 = vsel %vm624, %v597, 0
        %v644 = vsel %vm624, %v598, 0
        %v647 = vsel %vm624, %v599, 0
        %v650 = vsel %vm624, %v600, 0
        %v653 = vsel %vm624, %v601, 0
        %v656 = vsel %vm624, %v602, 0
        %v659 = vsel %vm624, %v603, 0
        %v662 = vsel %vm624, %v604, 0
        %v665 = vsel %vm624, %v605, 0
        %v668 = vsel %vm624, %v606, 0
        %v671 = vsel %vm624, %v607, 0
        %673 = vmatprep.subr.mxu0 0.0
        %v674 = vand.u32 %v590, 4294901760
        %675 = vmatpush1.msra.mxu0 %v674
        %676 = vmatprep.subr.mxu0 0.0
        %v677 = vand.u32 %v591, 4294901760
        %678 = vmatpush1.msra.mxu0 %v677
        %679 = vmatprep.subr.mxu0 0.0
        %680 = vmatpush1.msra.mxu0 0.0
        %681 = vmatprep.subr.mxu0 0.0
        %682 = vmatpush1.msra.mxu0 0.0
        %683 = vmatprep.subr.mxu0 0.0
        %684 = vmatpush1.msra.mxu0 0.0
        %685 = vmatprep.subr.mxu0 0.0
        %686 = vmatpush1.msra.mxu0 0.0
        %687 = vmatprep.subr.mxu0 0.0
        %688 = vmatpush1.msra.mxu0 0.0
        %689 = vmatprep.subr.mxu0 0.0
        %690 = vmatpush1.msra.mxu0 0.0
        %691 = vmatprep.subr.mxu0 0.0
        %692 = vmatpush1.msra.mxu0 0.0
        %693 = vmatprep.subr.mxu0 0.0
        %694 = vmatpush1.msra.mxu0 0.0
        %695 = vmatprep.subr.mxu0 0.0
        %696 = vmatpush1.msra.mxu0 0.0
        %697 = vmatprep.subr.mxu0 0.0
        %698 = vmatpush1.msra.mxu0 0.0
        %699 = vmatprep.subr.mxu0 0.0
        %700 = vmatpush1.msra.mxu0 0.0
        %701 = vmatprep.subr.mxu0 0.0
        %702 = vmatpush1.msra.mxu0 0.0
        %703 = vmatprep.subr.mxu0 0.0
        %704 = vmatpush1.msra.mxu0 0.0
        %705 = vmatprep.subr.mxu0 0.0
        %706 = vmatpush1.msra.mxu0 0.0
        %707 = vmatprep.subr.mxu0 0.0
        %708 = vmatpush1.msra.mxu0 0.0
        %709 = vmatprep.subr.mxu0 0.0
        %710 = vmatpush1.msra.mxu0 0.0
        %711 = vmatprep.subr.mxu0 0.0
        %712 = vmatpush1.msra.mxu0 0.0
        %713 = vmatprep.subr.mxu0 0.0
        %714 = vmatpush1.msra.mxu0 0.0
        %715 = vmatprep.subr.mxu0 0.0
        %716 = vmatpush1.msra.mxu0 0.0
        %717 = vmatprep.subr.mxu0 0.0
        %718 = vmatpush1.msra.mxu0 0.0
        %719 = vmatprep.subr.mxu0 0.0
        %720 = vmatpush1.msra.mxu0 0.0
        %721 = vmatprep.subr.mxu0 0.0
        %722 = vmatpush1.msra.mxu0 0.0
        %723 = vmatprep.subr.mxu0 0.0
        %724 = vmatpush1.msra.mxu0 0.0
        %725 = vmatprep.subr.mxu0 0.0
        %726 = vmatpush1.msra.mxu0 0.0
        %727 = vmatprep.subr.mxu0 0.0
        %728 = vmatpush1.msra.mxu0 0.0
        %729 = vmatprep.subr.mxu0 0.0
        %730 = vmatpush1.msra.mxu0 0.0
        %731 = vmatprep.subr.mxu0 0.0
        %732 = vmatpush1.msra.mxu0 0.0
        %733 = vmatprep.subr.mxu0 0.0
        %734 = vmatpush1.msra.mxu0 0.0
        %735 = vmatprep.subr.mxu0 0.0
        %736 = vmatpush1.msra.mxu0 0.0
        %737 = vmatprep.subr.mxu0 0.0
        %738 = vmatpush1.msra.mxu0 0.0
        %739 = vmatprep.mubr.f32.mxu0 0.0
        %v740 = vand.u32 %v626, 4294901760
        %v741 = vsub.f32 %v626, %v740
        %v742 = vand.u32 %v741, 4294901760
        %v743 = vsub.f32 %v741, %v742
        %v744 = vand.u32 %v743, 4294901760
        %745 = vmatmul.mubr.f32.gmra.mrb[0].mxu0 %v744
        %v746 = vpop.f32.mrb[0].mxu0
        %v747 = vadd.f32 %v608, %v746
        %v748 = vpop.f32.mrb[0].mxu0
        %749 = vmatprep.mubr.f32.mxu0 0.0
        %v750 = vand.u32 %v629, 4294901760
        %v751 = vsub.f32 %v629, %v750
        %v752 = vand.u32 %v751, 4294901760
        %v753 = vsub.f32 %v751, %v752
        %v754 = vand.u32 %v753, 4294901760
        %755 = vmatmul.mubr.f32.gmra.mrb[0].mxu0 %v754
        %v756 = vpop.f32.mrb[0].mxu0
        %v757 = vadd.f32 %v609, %v756
        %v758 = vpop.f32.mrb[0].mxu0
        %759 = vmatprep.mubr.f32.mxu0 0.0
        %v760 = vand.u32 %v632, 4294901760
        %v761 = vsub.f32 %v632, %v760
        %v762 = vand.u32 %v761, 4294901760
        %v763 = vsub.f32 %v761, %v762
        %v764 = vand.u32 %v763, 4294901760
        %765 = vmatmul.mubr.f32.gmra.mrb[0].mxu0 %v764
        %v766 = vpop.f32.mrb[0].mxu0
        %v767 = vadd.f32 %v610, %v766
        %v768 = vpop.f32.mrb[0].mxu0
        %769 = vmatprep.mubr.f32.mxu0 0.0
        %v770 = vand.u32 %v635, 4294901760
        %v771 = vsub.f32 %v635, %v770
        %v772 = vand.u32 %v771, 4294901760
        %v773 = vsub.f32 %v771, %v772
        %v774 = vand.u32 %v773, 4294901760
        %775 = vmatmul.mubr.f32.gmra.mrb[0].mxu0 %v774
        %v776 = vpop.f32.mrb[0].mxu0
        %v777 = vadd.f32 %v611, %v776
        %v778 = vpop.f32.mrb[0].mxu0
        %779 = vmatprep.mubr.f32.mxu0 0.0
        %v780 = vand.u32 %v638, 4294901760
        %v781 = vsub.f32 %v638, %v780
        %v782 = vand.u32 %v781, 4294901760
        %v783 = vsub.f32 %v781, %v782
        %v784 = vand.u32 %v783, 4294901760
        %785 = vmatmul.mubr.f32.gmra.mrb[0].mxu0 %v784
        %v786 = vpop.f32.mrb[0].mxu0
        %v787 = vadd.f32 %v612, %v786
        %v788 = vpop.f32.mrb[0].mxu0
        %789 = vmatprep.mubr.f32.mxu0 0.0
        %v790 = vand.u32 %v641, 4294901760
        %v791 = vsub.f32 %v641, %v790
        %v792 = vand.u32 %v791, 4294901760
        %v793 = vsub.f32 %v791, %v792
        %v794 = vand.u32 %v793, 4294901760
        %795 = vmatmul.mubr.f32.gmra.mrb[0].mxu0 %v794
        %v796 = vpop.f32.mrb[0].mxu0
        %v797 = vadd.f32 %v613, %v796
        %v798 = vpop.f32.mrb[0].mxu0
        %799 = vmatprep.mubr.f32.mxu0 0.0
        %v800 = vand.u32 %v644, 4294901760
        %v801 = vsub.f32 %v644, %v800
        %v802 = vand.u32 %v801, 4294901760
        %v803 = vsub.f32 %v801, %v802
        %v804 = vand.u32 %v803, 4294901760
        %805 = vmatmul.mubr.f32.gmra.mrb[0].mxu0 %v804
        %v806 = vpop.f32.mrb[0].mxu0
        %v807 = vadd.f32 %v614, %v806
        %v808 = vpop.f32.mrb[0].mxu0
        %809 = vmatprep.mubr.f32.mxu0 0.0
        %v810 = vand.u32 %v647, 4294901760
        %v811 = vsub.f32 %v647, %v810
        %v812 = vand.u32 %v811, 4294901760
        %v813 = vsub.f32 %v811, %v812
        %v814 = vand.u32 %v813, 4294901760
        %815 = vmatmul.mubr.f32.gmra.mrb[0].mxu0 %v814
        %v816 = vpop.f32.mrb[0].mxu0
        %v817 = vadd.f32 %v615, %v816
        %v818 = vpop.f32.mrb[0].mxu0
        %819 = vmatprep.mubr.f32.mxu0 0.0
        %v820 = vand.u32 %v650, 4294901760
        %v821 = vsub.f32 %v650, %v820
        %v822 = vand.u32 %v821, 4294901760
        %v823 = vsub.f32 %v821, %v822
        %v824 = vand.u32 %v823, 4294901760
        %825 = vmatmul.mubr.f32.gmra.mrb[0].mxu0 %v824
        %v826 = vpop.f32.mrb[0].mxu0
        %v827 = vadd.f32 %v616, %v826
        %v828 = vpop.f32.mrb[0].mxu0
        %829 = vmatprep.mubr.f32.mxu0 0.0
        %v830 = vand.u32 %v653, 4294901760
        %v831 = vsub.f32 %v653, %v830
        %v832 = vand.u32 %v831, 4294901760
        %v833 = vsub.f32 %v831, %v832
        %v834 = vand.u32 %v833, 4294901760
        %835 = vmatmul.mubr.f32.gmra.mrb[0].mxu0 %v834
        %v836 = vpop.f32.mrb[0].mxu0
        %v837 = vadd.f32 %v617, %v836
        %v838 = vpop.f32.mrb[0].mxu0
        %839 = vmatprep.mubr.f32.mxu0 0.0
        %v840 = vand.u32 %v656, 4294901760
        %v841 = vsub.f32 %v656, %v840
        %v842 = vand.u32 %v841, 4294901760
        %v843 = vsub.f32 %v841, %v842
        %v844 = vand.u32 %v843, 4294901760
        %845 = vmatmul.mubr.f32.gmra.mrb[0].mxu0 %v844
        %v846 = vpop.f32.mrb[0].mxu0
        %v847 = vadd.f32 %v618, %v846
        %v848 = vpop.f32.mrb[0].mxu0
        %849 = vmatprep.mubr.f32.mxu0 0.0
        %v850 = vand.u32 %v659, 4294901760
        %v851 = vsub.f32 %v659, %v850
        %v852 = vand.u32 %v851, 4294901760
        %v853 = vsub.f32 %v851, %v852
        %v854 = vand.u32 %v853, 4294901760
        %855 = vmatmul.mubr.f32.gmra.mrb[0].mxu0 %v854
        %v856 = vpop.f32.mrb[0].mxu0
        %v857 = vadd.f32 %v619, %v856
        %v858 = vpop.f32.mrb[0].mxu0
        %859 = vmatprep.mubr.f32.mxu0 0.0
        %v860 = vand.u32 %v662, 4294901760
        %v861 = vsub.f32 %v662, %v860
        %v862 = vand.u32 %v861, 4294901760
        %v863 = vsub.f32 %v861, %v862
        %v864 = vand.u32 %v863, 4294901760
        %865 = vmatmul.mubr.f32.gmra.mrb[0].mxu0 %v864
        %v866 = vpop.f32.mrb[0].mxu0
        %v867 = vadd.f32 %v620, %v866
        %v868 = vpop.f32.mrb[0].mxu0
        %869 = vmatprep.mubr.f32.mxu0 0.0
        %v870 = vand.u32 %v665, 4294901760
        %v871 = vsub.f32 %v665, %v870
        %v872 = vand.u32 %v871, 4294901760
        %v873 = vsub.f32 %v871, %v872
        %v874 = vand.u32 %v873, 4294901760
        %875 = vmatmul.mubr.f32.gmra.mrb[0].mxu0 %v874
        %v876 = vpop.f32.mrb[0].mxu0
        %v877 = vadd.f32 %v621, %v876
        %v878 = vpop.f32.mrb[0].mxu0
        %879 = vmatprep.mubr.f32.mxu0 0.0
        %v880 = vand.u32 %v668, 4294901760
        %v881 = vsub.f32 %v668, %v880
        %v882 = vand.u32 %v881, 4294901760
        %v883 = vsub.f32 %v881, %v882
        %v884 = vand.u32 %v883, 4294901760
        %885 = vmatmul.mubr.f32.gmra.mrb[0].mxu0 %v884
        %v886 = vpop.f32.mrb[0].mxu0
        %v887 = vadd.f32 %v622, %v886
        %v888 = vpop.f32.mrb[0].mxu0
        %889 = vmatprep.mubr.f32.mxu0 0.0
        %v890 = vand.u32 %v671, 4294901760
        %v891 = vsub.f32 %v671, %v890
        %v892 = vand.u32 %v891, 4294901760
        %v893 = vsub.f32 %v891, %v892
        %v894 = vand.u32 %v893, 4294901760
        %895 = vmatmul.mubr.f32.gmra.mrb[0].mxu0 %v894
        %v896 = vpop.f32.mrb[0].mxu0
        %v897 = vadd.f32 %v623, %v896
        %v898 = vpop.f32.mrb[0].mxu0
        %899 = vdwg.mxu0
        %900 = vmatprep.subr.mxu0 0.0
        %v901 = vand.u32 %v590, 4294901760
        %v902 = vsub.f32 %v590, %v901
        %v903 = vand.u32 %v902, 4294901760
        %v904 = vsub.f32 %v902, %v903
        %v905 = vand.u32 %v904, 4294901760
        %906 = vmatpush1.msra.mxu0 %v905
        %907 = vmatprep.subr.mxu0 0.0
        %v908 = vand.u32 %v591, 4294901760
        %v909 = vsub.f32 %v591, %v908
        %v910 = vand.u32 %v909, 4294901760
        %v911 = vsub.f32 %v909, %v910
        %v912 = vand.u32 %v911, 4294901760
        %913 = vmatpush1.msra.mxu0 %v912
        %914 = vmatprep.subr.mxu0 0.0
        %915 = vmatpush1.msra.mxu0 0.0
        %916 = vmatprep.subr.mxu0 0.0
        %917 = vmatpush1.msra.mxu0 0.0
        %918 = vmatprep.subr.mxu0 0.0
        %919 = vmatpush1.msra.mxu0 0.0
        %920 = vmatprep.subr.mxu0 0.0
        %921 = vmatpush1.msra.mxu0 0.0
        %922 = vmatprep.subr.mxu0 0.0
        %923 = vmatpush1.msra.mxu0 0.0
        %924 = vmatprep.subr.mxu0 0.0
        %925 = vmatpush1.msra.mxu0 0.0
        %926 = vmatprep.subr.mxu0 0.0
        %927 = vmatpush1.msra.mxu0 0.0
        %928 = vmatprep.subr.mxu0 0.0
        %929 = vmatpush1.msra.mxu0 0.0
        %930 = vmatprep.subr.mxu0 0.0
        %931 = vmatpush1.msra.mxu0 0.0
        %932 = vmatprep.subr.mxu0 0.0
        %933 = vmatpush1.msra.mxu0 0.0
        %934 = vmatprep.subr.mxu0 0.0
        %935 = vmatpush1.msra.mxu0 0.0
        %936 = vmatprep.subr.mxu0 0.0
        %937 = vmatpush1.msra.mxu0 0.0
        %938 = vmatprep.subr.mxu0 0.0
        %939 = vmatpush1.msra.mxu0 0.0
        %940 = vmatprep.subr.mxu0 0.0
        %941 = vmatpush1.msra.mxu0 0.0
        %942 = vmatprep.subr.mxu0 0.0
        %943 = vmatpush1.msra.mxu0 0.0
        %944 = vmatprep.subr.mxu0 0.0
        %945 = vmatpush1.msra.mxu0 0.0
        %946 = vmatprep.subr.mxu0 0.0
        %947 = vmatpush1.msra.mxu0 0.0
        %948 = vmatprep.subr.mxu0 0.0
        %949 = vmatpush1.msra.mxu0 0.0
        %950 = vmatprep.subr.mxu0 0.0
        %951 = vmatpush1.msra.mxu0 0.0
        %952 = vmatprep.subr.mxu0 0.0
        %953 = vmatpush1.msra.mxu0 0.0
        %954 = vmatprep.subr.mxu0 0.0
        %955 = vmatpush1.msra.mxu0 0.0
        %956 = vmatprep.subr.mxu0 0.0
        %957 = vmatpush1.msra.mxu0 0.0
        %958 = vmatprep.subr.mxu0 0.0
        %959 = vmatpush1.msra.mxu0 0.0
        %960 = vmatprep.subr.mxu0 0.0
        %961 = vmatpush1.msra.mxu0 0.0
        %962 = vmatprep.subr.mxu0 0.0
        %963 = vmatpush1.msra.mxu0 0.0
        %964 = vmatprep.subr.mxu0 0.0
        %965 = vmatpush1.msra.mxu0 0.0
        %966 = vmatprep.subr.mxu0 0.0
        %967 = vmatpush1.msra.mxu0 0.0
        %968 = vmatprep.subr.mxu0 0.0
        %969 = vmatpush1.msra.mxu0 0.0
        %970 = vmatprep.subr.mxu0 0.0
        %971 = vmatpush1.msra.mxu0 0.0
        %972 = vmatprep.subr.mxu0 0.0
        %973 = vmatpush1.msra.mxu0 0.0
        %974 = vmatprep.mubr.f32.mxu0 0.0
        %v975 = vand.u32 %v626, 4294901760
        %976 = vmatmul.mubr.f32.gmra.mrb[0].mxu0 %v975
        %v977 = vpop.f32.mrb[0].mxu0
        %v978 = vadd.f32 %v747, %v977
        %v979 = vpop.f32.mrb[0].mxu0
        %980 = vmatprep.mubr.f32.mxu0 0.0
        %v981 = vand.u32 %v629, 4294901760
        %982 = vmatmul.mubr.f32.gmra.mrb[0].mxu0 %v981
        %v983 = vpop.f32.mrb[0].mxu0
        %v984 = vadd.f32 %v757, %v983
        %v985 = vpop.f32.mrb[0].mxu0
        %986 = vmatprep.mubr.f32.mxu0 0.0
        %v987 = vand.u32 %v632, 4294901760
        %988 = vmatmul.mubr.f32.gmra.mrb[0].mxu0 %v987
        %v989 = vpop.f32.mrb[0].mxu0
        %v990 = vadd.f32 %v767, %v989
        %v991 = vpop.f32.mrb[0].mxu0
        %992 = vmatprep.mubr.f32.mxu0 0.0
        %v993 = vand.u32 %v635, 4294901760
        %994 = vmatmul.mubr.f32.gmra.mrb[0].mxu0 %v993
        %v995 = vpop.f32.mrb[0].mxu0
        %v996 = vadd.f32 %v777, %v995
        %v997 = vpop.f32.mrb[0].mxu0
        %998 = vmatprep.mubr.f32.mxu0 0.0
        %v999 = vand.u32 %v638, 4294901760
        %1000 = vmatmul.mubr.f32.gmra.mrb[0].mxu0 %v999
        %v1001 = vpop.f32.mrb[0].mxu0
        %v1002 = vadd.f32 %v787, %v1001
        %v1003 = vpop.f32.mrb[0].mxu0
        %1004 = vmatprep.mubr.f32.mxu0 0.0
        %v1005 = vand.u32 %v641, 4294901760
        %1006 = vmatmul.mubr.f32.gmra.mrb[0].mxu0 %v1005
        %v1007 = vpop.f32.mrb[0].mxu0
        %v1008 = vadd.f32 %v797, %v1007
        %v1009 = vpop.f32.mrb[0].mxu0
        %1010 = vmatprep.mubr.f32.mxu0 0.0
        %v1011 = vand.u32 %v644, 4294901760
        %1012 = vmatmul.mubr.f32.gmra.mrb[0].mxu0 %v1011
        %v1013 = vpop.f32.mrb[0].mxu0
        %v1014 = vadd.f32 %v807, %v1013
        %v1015 = vpop.f32.mrb[0].mxu0
        %1016 = vmatprep.mubr.f32.mxu0 0.0
        %v1017 = vand.u32 %v647, 4294901760
        %1018 = vmatmul.mubr.f32.gmra.mrb[0].mxu0 %v1017
        %v1019 = vpop.f32.mrb[0].mxu0
        %v1020 = vadd.f32 %v817, %v1019
        %v1021 = vpop.f32.mrb[0].mxu0
        %1022 = vmatprep.mubr.f32.mxu0 0.0
        %v1023 = vand.u32 %v650, 4294901760
        %1024 = vmatmul.mubr.f32.gmra.mrb[0].mxu0 %v1023
        %v1025 = vpop.f32.mrb[0].mxu0
        %v1026 = vadd.f32 %v827, %v1025
        %v1027 = vpop.f32.mrb[0].mxu0
        %1028 = vmatprep.mubr.f32.mxu0 0.0
        %v1029 = vand.u32 %v653, 4294901760
        %1030 = vmatmul.mubr.f32.gmra.mrb[0].mxu0 %v1029
        %v1031 = vpop.f32.mrb[0].mxu0
        %v1032 = vadd.f32 %v837, %v1031
        %v1033 = vpop.f32.mrb[0].mxu0
        %1034 = vmatprep.mubr.f32.mxu0 0.0
        %v1035 = vand.u32 %v656, 4294901760
        %1036 = vmatmul.mubr.f32.gmra.mrb[0].mxu0 %v1035
        %v1037 = vpop.f32.mrb[0].mxu0
        %v1038 = vadd.f32 %v847, %v1037
        %v1039 = vpop.f32.mrb[0].mxu0
        %1040 = vmatprep.mubr.f32.mxu0 0.0
        %v1041 = vand.u32 %v659, 4294901760
        %1042 = vmatmul.mubr.f32.gmra.mrb[0].mxu0 %v1041
        %v1043 = vpop.f32.mrb[0].mxu0
        %v1044 = vadd.f32 %v857, %v1043
        %v1045 = vpop.f32.mrb[0].mxu0
        %1046 = vmatprep.mubr.f32.mxu0 0.0
        %v1047 = vand.u32 %v662, 4294901760
        %1048 = vmatmul.mubr.f32.gmra.mrb[0].mxu0 %v1047
        %v1049 = vpop.f32.mrb[0].mxu0
        %v1050 = vadd.f32 %v867, %v1049
        %v1051 = vpop.f32.mrb[0].mxu0
        %1052 = vmatprep.mubr.f32.mxu0 0.0
        %v1053 = vand.u32 %v665, 4294901760
        %1054 = vmatmul.mubr.f32.gmra.mrb[0].mxu0 %v1053
        %v1055 = vpop.f32.mrb[0].mxu0
        %v1056 = vadd.f32 %v877, %v1055
        %v1057 = vpop.f32.mrb[0].mxu0
        %1058 = vmatprep.mubr.f32.mxu0 0.0
        %v1059 = vand.u32 %v668, 4294901760
        %1060 = vmatmul.mubr.f32.gmra.mrb[0].mxu0 %v1059
        %v1061 = vpop.f32.mrb[0].mxu0
        %v1062 = vadd.f32 %v887, %v1061
        %v1063 = vpop.f32.mrb[0].mxu0
        %1064 = vmatprep.mubr.f32.mxu0 0.0
        %v1065 = vand.u32 %v671, 4294901760
        %1066 = vmatmul.mubr.f32.gmra.mrb[0].mxu0 %v1065
        %v1067 = vpop.f32.mrb[0].mxu0
        %v1068 = vadd.f32 %v897, %v1067
        %v1069 = vpop.f32.mrb[0].mxu0
        %1070 = vdwg.mxu0
        %1071 = vmatprep.subr.mxu0 0.0
        %v1072 = vand.u32 %v590, 4294901760
        %v1073 = vsub.f32 %v590, %v1072
        %1074 = vmatpush1.msra.mxu0 %v1073
        %1075 = vmatprep.subr.mxu0 0.0
        %v1076 = vand.u32 %v591, 4294901760
        %v1077 = vsub.f32 %v591, %v1076
        %1078 = vmatpush1.msra.mxu0 %v1077
        %1079 = vmatprep.subr.mxu0 0.0
        %1080 = vmatpush1.msra.mxu0 0.0
        %1081 = vmatprep.subr.mxu0 0.0
        %1082 = vmatpush1.msra.mxu0 0.0
        %1083 = vmatprep.subr.mxu0 0.0
        %1084 = vmatpush1.msra.mxu0 0.0
        %1085 = vmatprep.subr.mxu0 0.0
        %1086 = vmatpush1.msra.mxu0 0.0
        %1087 = vmatprep.subr.mxu0 0.0
        %1088 = vmatpush1.msra.mxu0 0.0
        %1089 = vmatprep.subr.mxu0 0.0
        %1090 = vmatpush1.msra.mxu0 0.0
        %1091 = vmatprep.subr.mxu0 0.0
        %1092 = vmatpush1.msra.mxu0 0.0
        %1093 = vmatprep.subr.mxu0 0.0
        %1094 = vmatpush1.msra.mxu0 0.0
        %1095 = vmatprep.subr.mxu0 0.0
        %1096 = vmatpush1.msra.mxu0 0.0
        %1097 = vmatprep.subr.mxu0 0.0
        %1098 = vmatpush1.msra.mxu0 0.0
        %1099 = vmatprep.subr.mxu0 0.0
        %1100 = vmatpush1.msra.mxu0 0.0
        %1101 = vmatprep.subr.mxu0 0.0
        %1102 = vmatpush1.msra.mxu0 0.0
        %1103 = vmatprep.subr.mxu0 0.0
        %1104 = vmatpush1.msra.mxu0 0.0
        %1105 = vmatprep.subr.mxu0 0.0
        %1106 = vmatpush1.msra.mxu0 0.0
        %1107 = vmatprep.subr.mxu0 0.0
        %1108 = vmatpush1.msra.mxu0 0.0
        %1109 = vmatprep.subr.mxu0 0.0
        %1110 = vmatpush1.msra.mxu0 0.0
        %1111 = vmatprep.subr.mxu0 0.0
        %1112 = vmatpush1.msra.mxu0 0.0
        %1113 = vmatprep.subr.mxu0 0.0
        %1114 = vmatpush1.msra.mxu0 0.0
        %1115 = vmatprep.subr.mxu0 0.0
        %1116 = vmatpush1.msra.mxu0 0.0
        %1117 = vmatprep.subr.mxu0 0.0
        %1118 = vmatpush1.msra.mxu0 0.0
        %1119 = vmatprep.subr.mxu0 0.0
        %1120 = vmatpush1.msra.mxu0 0.0
        %1121 = vmatprep.subr.mxu0 0.0
        %1122 = vmatpush1.msra.mxu0 0.0
        %1123 = vmatprep.subr.mxu0 0.0
        %1124 = vmatpush1.msra.mxu0 0.0
        %1125 = vmatprep.subr.mxu0 0.0
        %1126 = vmatpush1.msra.mxu0 0.0
        %1127 = vmatprep.subr.mxu0 0.0
        %1128 = vmatpush1.msra.mxu0 0.0
        %1129 = vmatprep.subr.mxu0 0.0
        %1130 = vmatpush1.msra.mxu0 0.0
        %1131 = vmatprep.subr.mxu0 0.0
        %1132 = vmatpush1.msra.mxu0 0.0
        %1133 = vmatprep.subr.mxu0 0.0
        %1134 = vmatpush1.msra.mxu0 0.0
        %1135 = vmatprep.subr.mxu0 0.0
        %1136 = vmatpush1.msra.mxu0 0.0
        %1137 = vmatprep.subr.mxu0 0.0
        %1138 = vmatpush1.msra.mxu0 0.0
        %1139 = vmatprep.mubr.f32.mxu0 0.0
        %v1140 = vand.u32 %v626, 4294901760
        %v1141 = vsub.f32 %v626, %v1140
        %1142 = vmatmul.mubr.f32.gmra.mrb[0].mxu0 %v1141
        %v1143 = vpop.f32.mrb[0].mxu0
        %v1144 = vadd.f32 %v978, %v1143
        %v1145 = vpop.f32.mrb[0].mxu0
        %1146 = vmatprep.mubr.f32.mxu0 0.0
        %v1147 = vand.u32 %v629, 4294901760
        %v1148 = vsub.f32 %v629, %v1147
        %1149 = vmatmul.mubr.f32.gmra.mrb[0].mxu0 %v1148
        %v1150 = vpop.f32.mrb[0].mxu0
        %v1151 = vadd.f32 %v984, %v1150
        %v1152 = vpop.f32.mrb[0].mxu0
        %1153 = vmatprep.mubr.f32.mxu0 0.0
        %v1154 = vand.u32 %v632, 4294901760
        %v1155 = vsub.f32 %v632, %v1154
        %1156 = vmatmul.mubr.f32.gmra.mrb[0].mxu0 %v1155
        %v1157 = vpop.f32.mrb[0].mxu0
        %v1158 = vadd.f32 %v990, %v1157
        %v1159 = vpop.f32.mrb[0].mxu0
        %1160 = vmatprep.mubr.f32.mxu0 0.0
        %v1161 = vand.u32 %v635, 4294901760
        %v1162 = vsub.f32 %v635, %v1161
        %1163 = vmatmul.mubr.f32.gmra.mrb[0].mxu0 %v1162
        %v1164 = vpop.f32.mrb[0].mxu0
        %v1165 = vadd.f32 %v996, %v1164
        %v1166 = vpop.f32.mrb[0].mxu0
        %1167 = vmatprep.mubr.f32.mxu0 0.0
        %v1168 = vand.u32 %v638, 4294901760
        %v1169 = vsub.f32 %v638, %v1168
        %1170 = vmatmul.mubr.f32.gmra.mrb[0].mxu0 %v1169
        %v1171 = vpop.f32.mrb[0].mxu0
        %v1172 = vadd.f32 %v1002, %v1171
        %v1173 = vpop.f32.mrb[0].mxu0
        %1174 = vmatprep.mubr.f32.mxu0 0.0
        %v1175 = vand.u32 %v641, 4294901760
        %v1176 = vsub.f32 %v641, %v1175
        %1177 = vmatmul.mubr.f32.gmra.mrb[0].mxu0 %v1176
        %v1178 = vpop.f32.mrb[0].mxu0
        %v1179 = vadd.f32 %v1008, %v1178
        %v1180 = vpop.f32.mrb[0].mxu0
        %1181 = vmatprep.mubr.f32.mxu0 0.0
        %v1182 = vand.u32 %v644, 4294901760
        %v1183 = vsub.f32 %v644, %v1182
        %1184 = vmatmul.mubr.f32.gmra.mrb[0].mxu0 %v1183
        %v1185 = vpop.f32.mrb[0].mxu0
        %v1186 = vadd.f32 %v1014, %v1185
        %v1187 = vpop.f32.mrb[0].mxu0
        %1188 = vmatprep.mubr.f32.mxu0 0.0
        %v1189 = vand.u32 %v647, 4294901760
        %v1190 = vsub.f32 %v647, %v1189
        %1191 = vmatmul.mubr.f32.gmra.mrb[0].mxu0 %v1190
        %v1192 = vpop.f32.mrb[0].mxu0
        %v1193 = vadd.f32 %v1020, %v1192
        %v1194 = vpop.f32.mrb[0].mxu0
        %1195 = vmatprep.mubr.f32.mxu0 0.0
        %v1196 = vand.u32 %v650, 4294901760
        %v1197 = vsub.f32 %v650, %v1196
        %1198 = vmatmul.mubr.f32.gmra.mrb[0].mxu0 %v1197
        %v1199 = vpop.f32.mrb[0].mxu0
        %v1200 = vadd.f32 %v1026, %v1199
        %v1201 = vpop.f32.mrb[0].mxu0
        %1202 = vmatprep.mubr.f32.mxu0 0.0
        %v1203 = vand.u32 %v653, 4294901760
        %v1204 = vsub.f32 %v653, %v1203
        %1205 = vmatmul.mubr.f32.gmra.mrb[0].mxu0 %v1204
        %v1206 = vpop.f32.mrb[0].mxu0
        %v1207 = vadd.f32 %v1032, %v1206
        %v1208 = vpop.f32.mrb[0].mxu0
        %1209 = vmatprep.mubr.f32.mxu0 0.0
        %v1210 = vand.u32 %v656, 4294901760
        %v1211 = vsub.f32 %v656, %v1210
        %1212 = vmatmul.mubr.f32.gmra.mrb[0].mxu0 %v1211
        %v1213 = vpop.f32.mrb[0].mxu0
        %v1214 = vadd.f32 %v1038, %v1213
        %v1215 = vpop.f32.mrb[0].mxu0
        %1216 = vmatprep.mubr.f32.mxu0 0.0
        %v1217 = vand.u32 %v659, 4294901760
        %v1218 = vsub.f32 %v659, %v1217
        %1219 = vmatmul.mubr.f32.gmra.mrb[0].mxu0 %v1218
        %v1220 = vpop.f32.mrb[0].mxu0
        %v1221 = vadd.f32 %v1044, %v1220
        %v1222 = vpop.f32.mrb[0].mxu0
        %1223 = vmatprep.mubr.f32.mxu0 0.0
        %v1224 = vand.u32 %v662, 4294901760
        %v1225 = vsub.f32 %v662, %v1224
        %1226 = vmatmul.mubr.f32.gmra.mrb[0].mxu0 %v1225
        %v1227 = vpop.f32.mrb[0].mxu0
        %v1228 = vadd.f32 %v1050, %v1227
        %v1229 = vpop.f32.mrb[0].mxu0
        %1230 = vmatprep.mubr.f32.mxu0 0.0
        %v1231 = vand.u32 %v665, 4294901760
        %v1232 = vsub.f32 %v665, %v1231
        %1233 = vmatmul.mubr.f32.gmra.mrb[0].mxu0 %v1232
        %v1234 = vpop.f32.mrb[0].mxu0
        %v1235 = vadd.f32 %v1056, %v1234
        %v1236 = vpop.f32.mrb[0].mxu0
        %1237 = vmatprep.mubr.f32.mxu0 0.0
        %v1238 = vand.u32 %v668, 4294901760
        %v1239 = vsub.f32 %v668, %v1238
        %1240 = vmatmul.mubr.f32.gmra.mrb[0].mxu0 %v1239
        %v1241 = vpop.f32.mrb[0].mxu0
        %v1242 = vadd.f32 %v1062, %v1241
        %v1243 = vpop.f32.mrb[0].mxu0
        %1244 = vmatprep.mubr.f32.mxu0 0.0
        %v1245 = vand.u32 %v671, 4294901760
        %v1246 = vsub.f32 %v671, %v1245
        %1247 = vmatmul.mubr.f32.gmra.mrb[0].mxu0 %v1246
        %v1248 = vpop.f32.mrb[0].mxu0
        %v1249 = vadd.f32 %v1068, %v1248
        %v1250 = vpop.f32.mrb[0].mxu0
        %1251 = vdwg.mxu0
        %1252 = vmatprep.subr.mxu0 0.0
        %v1253 = vand.u32 %v590, 4294901760
        %1254 = vmatpush1.msra.mxu0 %v1253
        %1255 = vmatprep.subr.mxu0 0.0
        %v1256 = vand.u32 %v591, 4294901760
        %1257 = vmatpush1.msra.mxu0 %v1256
        %1258 = vmatprep.subr.mxu0 0.0
        %1259 = vmatpush1.msra.mxu0 0.0
        %1260 = vmatprep.subr.mxu0 0.0
        %1261 = vmatpush1.msra.mxu0 0.0
        %1262 = vmatprep.subr.mxu0 0.0
        %1263 = vmatpush1.msra.mxu0 0.0
        %1264 = vmatprep.subr.mxu0 0.0
        %1265 = vmatpush1.msra.mxu0 0.0
        %1266 = vmatprep.subr.mxu0 0.0
        %1267 = vmatpush1.msra.mxu0 0.0
        %1268 = vmatprep.subr.mxu0 0.0
        %1269 = vmatpush1.msra.mxu0 0.0
        %1270 = vmatprep.subr.mxu0 0.0
        %1271 = vmatpush1.msra.mxu0 0.0
        %1272 = vmatprep.subr.mxu0 0.0
        %1273 = vmatpush1.msra.mxu0 0.0
        %1274 = vmatprep.subr.mxu0 0.0
        %1275 = vmatpush1.msra.mxu0 0.0
        %1276 = vmatprep.subr.mxu0 0.0
        %1277 = vmatpush1.msra.mxu0 0.0
        %1278 = vmatprep.subr.mxu0 0.0
        %1279 = vmatpush1.msra.mxu0 0.0
        %1280 = vmatprep.subr.mxu0 0.0
        %1281 = vmatpush1.msra.mxu0 0.0
        %1282 = vmatprep.subr.mxu0 0.0
        %1283 = vmatpush1.msra.mxu0 0.0
        %1284 = vmatprep.subr.mxu0 0.0
        %1285 = vmatpush1.msra.mxu0 0.0
        %1286 = vmatprep.subr.mxu0 0.0
        %1287 = vmatpush1.msra.mxu0 0.0
        %1288 = vmatprep.subr.mxu0 0.0
        %1289 = vmatpush1.msra.mxu0 0.0
        %1290 = vmatprep.subr.mxu0 0.0
        %1291 = vmatpush1.msra.mxu0 0.0
        %1292 = vmatprep.subr.mxu0 0.0
        %1293 = vmatpush1.msra.mxu0 0.0
        %1294 = vmatprep.subr.mxu0 0.0
        %1295 = vmatpush1.msra.mxu0 0.0
        %1296 = vmatprep.subr.mxu0 0.0
        %1297 = vmatpush1.msra.mxu0 0.0
        %1298 = vmatprep.subr.mxu0 0.0
        %1299 = vmatpush1.msra.mxu0 0.0
        %1300 = vmatprep.subr.mxu0 0.0
        %1301 = vmatpush1.msra.mxu0 0.0
        %1302 = vmatprep.subr.mxu0 0.0
        %1303 = vmatpush1.msra.mxu0 0.0
        %1304 = vmatprep.subr.mxu0 0.0
        %1305 = vmatpush1.msra.mxu0 0.0
        %1306 = vmatprep.subr.mxu0 0.0
        %1307 = vmatpush1.msra.mxu0 0.0
        %1308 = vmatprep.subr.mxu0 0.0
        %1309 = vmatpush1.msra.mxu0 0.0
        %1310 = vmatprep.subr.mxu0 0.0
        %1311 = vmatpush1.msra.mxu0 0.0
        %1312 = vmatprep.subr.mxu0 0.0
        %1313 = vmatpush1.msra.mxu0 0.0
        %1314 = vmatprep.subr.mxu0 0.0
        %1315 = vmatpush1.msra.mxu0 0.0
        %1316 = vmatprep.subr.mxu0 0.0
        %1317 = vmatpush1.msra.mxu0 0.0
        %1318 = vmatprep.mubr.f32.mxu0 0.0
        %v1319 = vand.u32 %v626, 4294901760
        %v1320 = vsub.f32 %v626, %v1319
        %v1321 = vand.u32 %v1320, 4294901760
        %1322 = vmatmul.mubr.f32.gmra.mrb[0].mxu0 %v1321
        %v1323 = vpop.f32.mrb[0].mxu0
        %v1324 = vadd.f32 %v1144, %v1323
        %v1325 = vpop.f32.mrb[0].mxu0
        %1326 = vmatprep.mubr.f32.mxu0 0.0
        %v1327 = vand.u32 %v629, 4294901760
        %v1328 = vsub.f32 %v629, %v1327
        %v1329 = vand.u32 %v1328, 4294901760
        %1330 = vmatmul.mubr.f32.gmra.mrb[0].mxu0 %v1329
        %v1331 = vpop.f32.mrb[0].mxu0
        %v1332 = vadd.f32 %v1151, %v1331
        %v1333 = vpop.f32.mrb[0].mxu0
        %1334 = vmatprep.mubr.f32.mxu0 0.0
        %v1335 = vand.u32 %v632, 4294901760
        %v1336 = vsub.f32 %v632, %v1335
        %v1337 = vand.u32 %v1336, 4294901760
        %1338 = vmatmul.mubr.f32.gmra.mrb[0].mxu0 %v1337
        %v1339 = vpop.f32.mrb[0].mxu0
        %v1340 = vadd.f32 %v1158, %v1339
        %v1341 = vpop.f32.mrb[0].mxu0
        %1342 = vmatprep.mubr.f32.mxu0 0.0
        %v1343 = vand.u32 %v635, 4294901760
        %v1344 = vsub.f32 %v635, %v1343
        %v1345 = vand.u32 %v1344, 4294901760
        %1346 = vmatmul.mubr.f32.gmra.mrb[0].mxu0 %v1345
        %v1347 = vpop.f32.mrb[0].mxu0
        %v1348 = vadd.f32 %v1165, %v1347
        %v1349 = vpop.f32.mrb[0].mxu0
        %1350 = vmatprep.mubr.f32.mxu0 0.0
        %v1351 = vand.u32 %v638, 4294901760
        %v1352 = vsub.f32 %v638, %v1351
        %v1353 = vand.u32 %v1352, 4294901760
        %1354 = vmatmul.mubr.f32.gmra.mrb[0].mxu0 %v1353
        %v1355 = vpop.f32.mrb[0].mxu0
        %v1356 = vadd.f32 %v1172, %v1355
        %v1357 = vpop.f32.mrb[0].mxu0
        %1358 = vmatprep.mubr.f32.mxu0 0.0
        %v1359 = vand.u32 %v641, 4294901760
        %v1360 = vsub.f32 %v641, %v1359
        %v1361 = vand.u32 %v1360, 4294901760
        %1362 = vmatmul.mubr.f32.gmra.mrb[0].mxu0 %v1361
        %v1363 = vpop.f32.mrb[0].mxu0
        %v1364 = vadd.f32 %v1179, %v1363
        %v1365 = vpop.f32.mrb[0].mxu0
        %1366 = vmatprep.mubr.f32.mxu0 0.0
        %v1367 = vand.u32 %v644, 4294901760
        %v1368 = vsub.f32 %v644, %v1367
        %v1369 = vand.u32 %v1368, 4294901760
        %1370 = vmatmul.mubr.f32.gmra.mrb[0].mxu0 %v1369
        %v1371 = vpop.f32.mrb[0].mxu0
        %v1372 = vadd.f32 %v1186, %v1371
        %v1373 = vpop.f32.mrb[0].mxu0
        %1374 = vmatprep.mubr.f32.mxu0 0.0
        %v1375 = vand.u32 %v647, 4294901760
        %v1376 = vsub.f32 %v647, %v1375
        %v1377 = vand.u32 %v1376, 4294901760
        %1378 = vmatmul.mubr.f32.gmra.mrb[0].mxu0 %v1377
        %v1379 = vpop.f32.mrb[0].mxu0
        %v1380 = vadd.f32 %v1193, %v1379
        %v1381 = vpop.f32.mrb[0].mxu0
        %1382 = vmatprep.mubr.f32.mxu0 0.0
        %v1383 = vand.u32 %v650, 4294901760
        %v1384 = vsub.f32 %v650, %v1383
        %v1385 = vand.u32 %v1384, 4294901760
        %1386 = vmatmul.mubr.f32.gmra.mrb[0].mxu0 %v1385
        %v1387 = vpop.f32.mrb[0].mxu0
        %v1388 = vadd.f32 %v1200, %v1387
        %v1389 = vpop.f32.mrb[0].mxu0
        %1390 = vmatprep.mubr.f32.mxu0 0.0
        %v1391 = vand.u32 %v653, 4294901760
        %v1392 = vsub.f32 %v653, %v1391
        %v1393 = vand.u32 %v1392, 4294901760
        %1394 = vmatmul.mubr.f32.gmra.mrb[0].mxu0 %v1393
        %v1395 = vpop.f32.mrb[0].mxu0
        %v1396 = vadd.f32 %v1207, %v1395
        %v1397 = vpop.f32.mrb[0].mxu0
        %1398 = vmatprep.mubr.f32.mxu0 0.0
        %v1399 = vand.u32 %v656, 4294901760
        %v1400 = vsub.f32 %v656, %v1399
        %v1401 = vand.u32 %v1400, 4294901760
        %1402 = vmatmul.mubr.f32.gmra.mrb[0].mxu0 %v1401
        %v1403 = vpop.f32.mrb[0].mxu0
        %v1404 = vadd.f32 %v1214, %v1403
        %v1405 = vpop.f32.mrb[0].mxu0
        %1406 = vmatprep.mubr.f32.mxu0 0.0
        %v1407 = vand.u32 %v659, 4294901760
        %v1408 = vsub.f32 %v659, %v1407
        %v1409 = vand.u32 %v1408, 4294901760
        %1410 = vmatmul.mubr.f32.gmra.mrb[0].mxu0 %v1409
        %v1411 = vpop.f32.mrb[0].mxu0
        %v1412 = vadd.f32 %v1221, %v1411
        %v1413 = vpop.f32.mrb[0].mxu0
        %1414 = vmatprep.mubr.f32.mxu0 0.0
        %v1415 = vand.u32 %v662, 4294901760
        %v1416 = vsub.f32 %v662, %v1415
        %v1417 = vand.u32 %v1416, 4294901760
        %1418 = vmatmul.mubr.f32.gmra.mrb[0].mxu0 %v1417
        %v1419 = vpop.f32.mrb[0].mxu0
        %v1420 = vadd.f32 %v1228, %v1419
        %v1421 = vpop.f32.mrb[0].mxu0
        %1422 = vmatprep.mubr.f32.mxu0 0.0
        %v1423 = vand.u32 %v665, 4294901760
        %v1424 = vsub.f32 %v665, %v1423
        %v1425 = vand.u32 %v1424, 4294901760
        %1426 = vmatmul.mubr.f32.gmra.mrb[0].mxu0 %v1425
        %v1427 = vpop.f32.mrb[0].mxu0
        %v1428 = vadd.f32 %v1235, %v1427
        %v1429 = vpop.f32.mrb[0].mxu0
        %1430 = vmatprep.mubr.f32.mxu0 0.0
        %v1431 = vand.u32 %v668, 4294901760
        %v1432 = vsub.f32 %v668, %v1431
        %v1433 = vand.u32 %v1432, 4294901760
        %1434 = vmatmul.mubr.f32.gmra.mrb[0].mxu0 %v1433
        %v1435 = vpop.f32.mrb[0].mxu0
        %v1436 = vadd.f32 %v1242, %v1435
        %v1437 = vpop.f32.mrb[0].mxu0
        %1438 = vmatprep.mubr.f32.mxu0 0.0
        %v1439 = vand.u32 %v671, 4294901760
        %v1440 = vsub.f32 %v671, %v1439
        %v1441 = vand.u32 %v1440, 4294901760
        %1442 = vmatmul.mubr.f32.gmra.mrb[0].mxu0 %v1441
        %v1443 = vpop.f32.mrb[0].mxu0
        %v1444 = vadd.f32 %v1249, %v1443
        %v1445 = vpop.f32.mrb[0].mxu0
        %1446 = vdwg.mxu0
        %1447 = vmatprep.subr.mxu0 0.0
        %v1448 = vand.u32 %v590, 4294901760
        %v1449 = vsub.f32 %v590, %v1448
        %v1450 = vand.u32 %v1449, 4294901760
        %1451 = vmatpush1.msra.mxu0 %v1450
        %1452 = vmatprep.subr.mxu0 0.0
        %v1453 = vand.u32 %v591, 4294901760
        %v1454 = vsub.f32 %v591, %v1453
        %v1455 = vand.u32 %v1454, 4294901760
        %1456 = vmatpush1.msra.mxu0 %v1455
        %1457 = vmatprep.subr.mxu0 0.0
        %1458 = vmatpush1.msra.mxu0 0.0
        %1459 = vmatprep.subr.mxu0 0.0
        %1460 = vmatpush1.msra.mxu0 0.0
        %1461 = vmatprep.subr.mxu0 0.0
        %1462 = vmatpush1.msra.mxu0 0.0
        %1463 = vmatprep.subr.mxu0 0.0
        %1464 = vmatpush1.msra.mxu0 0.0
        %1465 = vmatprep.subr.mxu0 0.0
        %1466 = vmatpush1.msra.mxu0 0.0
        %1467 = vmatprep.subr.mxu0 0.0
        %1468 = vmatpush1.msra.mxu0 0.0
        %1469 = vmatprep.subr.mxu0 0.0
        %1470 = vmatpush1.msra.mxu0 0.0
        %1471 = vmatprep.subr.mxu0 0.0
        %1472 = vmatpush1.msra.mxu0 0.0
        %1473 = vmatprep.subr.mxu0 0.0
        %1474 = vmatpush1.msra.mxu0 0.0
        %1475 = vmatprep.subr.mxu0 0.0
        %1476 = vmatpush1.msra.mxu0 0.0
        %1477 = vmatprep.subr.mxu0 0.0
        %1478 = vmatpush1.msra.mxu0 0.0
        %1479 = vmatprep.subr.mxu0 0.0
        %1480 = vmatpush1.msra.mxu0 0.0
        %1481 = vmatprep.subr.mxu0 0.0
        %1482 = vmatpush1.msra.mxu0 0.0
        %1483 = vmatprep.subr.mxu0 0.0
        %1484 = vmatpush1.msra.mxu0 0.0
        %1485 = vmatprep.subr.mxu0 0.0
        %1486 = vmatpush1.msra.mxu0 0.0
        %1487 = vmatprep.subr.mxu0 0.0
        %1488 = vmatpush1.msra.mxu0 0.0
        %1489 = vmatprep.subr.mxu0 0.0
        %1490 = vmatpush1.msra.mxu0 0.0
        %1491 = vmatprep.subr.mxu0 0.0
        %1492 = vmatpush1.msra.mxu0 0.0
        %1493 = vmatprep.subr.mxu0 0.0
        %1494 = vmatpush1.msra.mxu0 0.0
        %1495 = vmatprep.subr.mxu0 0.0
        %1496 = vmatpush1.msra.mxu0 0.0
        %1497 = vmatprep.subr.mxu0 0.0
        %1498 = vmatpush1.msra.mxu0 0.0
        %1499 = vmatprep.subr.mxu0 0.0
        %1500 = vmatpush1.msra.mxu0 0.0
        %1501 = vmatprep.subr.mxu0 0.0
        %1502 = vmatpush1.msra.mxu0 0.0
        %1503 = vmatprep.subr.mxu0 0.0
        %1504 = vmatpush1.msra.mxu0 0.0
        %1505 = vmatprep.subr.mxu0 0.0
        %1506 = vmatpush1.msra.mxu0 0.0
        %1507 = vmatprep.subr.mxu0 0.0
        %1508 = vmatpush1.msra.mxu0 0.0
        %1509 = vmatprep.subr.mxu0 0.0
        %1510 = vmatpush1.msra.mxu0 0.0
        %1511 = vmatprep.subr.mxu0 0.0
        %1512 = vmatpush1.msra.mxu0 0.0
        %1513 = vmatprep.subr.mxu0 0.0
        %1514 = vmatpush1.msra.mxu0 0.0
        %1515 = vmatprep.subr.mxu0 0.0
        %1516 = vmatpush1.msra.mxu0 0.0
        %1517 = vmatprep.mubr.f32.mxu0 0.0
        %v1518 = vand.u32 %v626, 4294901760
        %1519 = vmatmul.mubr.f32.gmra.mrb[0].mxu0 %v1518
        %v1520 = vpop.f32.mrb[0].mxu0
        %v1521 = vadd.f32 %v1324, %v1520
        %v1522 = vpop.f32.mrb[0].mxu0
        %1523 = vmatprep.mubr.f32.mxu0 0.0
        %v1524 = vand.u32 %v629, 4294901760
        %1525 = vmatmul.mubr.f32.gmra.mrb[0].mxu0 %v1524
        %v1526 = vpop.f32.mrb[0].mxu0
        %v1527 = vadd.f32 %v1332, %v1526
        %v1528 = vpop.f32.mrb[0].mxu0
        %1529 = vmatprep.mubr.f32.mxu0 0.0
        %v1530 = vand.u32 %v632, 4294901760
        %1531 = vmatmul.mubr.f32.gmra.mrb[0].mxu0 %v1530
        %v1532 = vpop.f32.mrb[0].mxu0
        %v1533 = vadd.f32 %v1340, %v1532
        %v1534 = vpop.f32.mrb[0].mxu0
        %1535 = vmatprep.mubr.f32.mxu0 0.0
        %v1536 = vand.u32 %v635, 4294901760
        %1537 = vmatmul.mubr.f32.gmra.mrb[0].mxu0 %v1536
        %v1538 = vpop.f32.mrb[0].mxu0
        %v1539 = vadd.f32 %v1348, %v1538
        %v1540 = vpop.f32.mrb[0].mxu0
        %1541 = vmatprep.mubr.f32.mxu0 0.0
        %v1542 = vand.u32 %v638, 4294901760
        %1543 = vmatmul.mubr.f32.gmra.mrb[0].mxu0 %v1542
        %v1544 = vpop.f32.mrb[0].mxu0
        %v1545 = vadd.f32 %v1356, %v1544
        %v1546 = vpop.f32.mrb[0].mxu0
        %1547 = vmatprep.mubr.f32.mxu0 0.0
        %v1548 = vand.u32 %v641, 4294901760
        %1549 = vmatmul.mubr.f32.gmra.mrb[0].mxu0 %v1548
        %v1550 = vpop.f32.mrb[0].mxu0
        %v1551 = vadd.f32 %v1364, %v1550
        %v1552 = vpop.f32.mrb[0].mxu0
        %1553 = vmatprep.mubr.f32.mxu0 0.0
        %v1554 = vand.u32 %v644, 4294901760
        %1555 = vmatmul.mubr.f32.gmra.mrb[0].mxu0 %v1554
        %v1556 = vpop.f32.mrb[0].mxu0
        %v1557 = vadd.f32 %v1372, %v1556
        %v1558 = vpop.f32.mrb[0].mxu0
        %1559 = vmatprep.mubr.f32.mxu0 0.0
        %v1560 = vand.u32 %v647, 4294901760
        %1561 = vmatmul.mubr.f32.gmra.mrb[0].mxu0 %v1560
        %v1562 = vpop.f32.mrb[0].mxu0
        %v1563 = vadd.f32 %v1380, %v1562
        %v1564 = vpop.f32.mrb[0].mxu0
        %1565 = vmatprep.mubr.f32.mxu0 0.0
        %v1566 = vand.u32 %v650, 4294901760
        %1567 = vmatmul.mubr.f32.gmra.mrb[0].mxu0 %v1566
        %v1568 = vpop.f32.mrb[0].mxu0
        %v1569 = vadd.f32 %v1388, %v1568
        %v1570 = vpop.f32.mrb[0].mxu0
        %1571 = vmatprep.mubr.f32.mxu0 0.0
        %v1572 = vand.u32 %v653, 4294901760
        %1573 = vmatmul.mubr.f32.gmra.mrb[0].mxu0 %v1572
        %v1574 = vpop.f32.mrb[0].mxu0
        %v1575 = vadd.f32 %v1396, %v1574
        %v1576 = vpop.f32.mrb[0].mxu0
        %1577 = vmatprep.mubr.f32.mxu0 0.0
        %v1578 = vand.u32 %v656, 4294901760
        %1579 = vmatmul.mubr.f32.gmra.mrb[0].mxu0 %v1578
        %v1580 = vpop.f32.mrb[0].mxu0
        %v1581 = vadd.f32 %v1404, %v1580
        %v1582 = vpop.f32.mrb[0].mxu0
        %1583 = vmatprep.mubr.f32.mxu0 0.0
        %v1584 = vand.u32 %v659, 4294901760
        %1585 = vmatmul.mubr.f32.gmra.mrb[0].mxu0 %v1584
        %v1586 = vpop.f32.mrb[0].mxu0
        %v1587 = vadd.f32 %v1412, %v1586
        %v1588 = vpop.f32.mrb[0].mxu0
        %1589 = vmatprep.mubr.f32.mxu0 0.0
        %v1590 = vand.u32 %v662, 4294901760
        %1591 = vmatmul.mubr.f32.gmra.mrb[0].mxu0 %v1590
        %v1592 = vpop.f32.mrb[0].mxu0
        %v1593 = vadd.f32 %v1420, %v1592
        %v1594 = vpop.f32.mrb[0].mxu0
        %1595 = vmatprep.mubr.f32.mxu0 0.0
        %v1596 = vand.u32 %v665, 4294901760
        %1597 = vmatmul.mubr.f32.gmra.mrb[0].mxu0 %v1596
        %v1598 = vpop.f32.mrb[0].mxu0
        %v1599 = vadd.f32 %v1428, %v1598
        %v1600 = vpop.f32.mrb[0].mxu0
        %1601 = vmatprep.mubr.f32.mxu0 0.0
        %v1602 = vand.u32 %v668, 4294901760
        %1603 = vmatmul.mubr.f32.gmra.mrb[0].mxu0 %v1602
        %v1604 = vpop.f32.mrb[0].mxu0
        %v1605 = vadd.f32 %v1436, %v1604
        %v1606 = vpop.f32.mrb[0].mxu0
        %1607 = vmatprep.mubr.f32.mxu0 0.0
        %v1608 = vand.u32 %v671, 4294901760
        %1609 = vmatmul.mubr.f32.gmra.mrb[0].mxu0 %v1608
        %v1610 = vpop.f32.mrb[0].mxu0
        %v1611 = vadd.f32 %v1444, %v1610
        %v1612 = vpop.f32.mrb[0].mxu0
        %1613 = vdwg.mxu0
        %1614 = vmatprep.subr.mxu0 0.0
        %v1615 = vand.u32 %v590, 4294901760
        %1616 = vmatpush1.msra.mxu0 %v1615
        %1617 = vmatprep.subr.mxu0 0.0
        %v1618 = vand.u32 %v591, 4294901760
        %1619 = vmatpush1.msra.mxu0 %v1618
        %1620 = vmatprep.subr.mxu0 0.0
        %1621 = vmatpush1.msra.mxu0 0.0
        %1622 = vmatprep.subr.mxu0 0.0
        %1623 = vmatpush1.msra.mxu0 0.0
        %1624 = vmatprep.subr.mxu0 0.0
        %1625 = vmatpush1.msra.mxu0 0.0
        %1626 = vmatprep.subr.mxu0 0.0
        %1627 = vmatpush1.msra.mxu0 0.0
        %1628 = vmatprep.subr.mxu0 0.0
        %1629 = vmatpush1.msra.mxu0 0.0
        %1630 = vmatprep.subr.mxu0 0.0
        %1631 = vmatpush1.msra.mxu0 0.0
        %1632 = vmatprep.subr.mxu0 0.0
        %1633 = vmatpush1.msra.mxu0 0.0
        %1634 = vmatprep.subr.mxu0 0.0
        %1635 = vmatpush1.msra.mxu0 0.0
        %1636 = vmatprep.subr.mxu0 0.0
        %1637 = vmatpush1.msra.mxu0 0.0
        %1638 = vmatprep.subr.mxu0 0.0
        %1639 = vmatpush1.msra.mxu0 0.0
        %1640 = vmatprep.subr.mxu0 0.0
        %1641 = vmatpush1.msra.mxu0 0.0
        %1642 = vmatprep.subr.mxu0 0.0
        %1643 = vmatpush1.msra.mxu0 0.0
        %1644 = vmatprep.subr.mxu0 0.0
        %1645 = vmatpush1.msra.mxu0 0.0
        %1646 = vmatprep.subr.mxu0 0.0
        %1647 = vmatpush1.msra.mxu0 0.0
        %1648 = vmatprep.subr.mxu0 0.0
        %1649 = vmatpush1.msra.mxu0 0.0
        %1650 = vmatprep.subr.mxu0 0.0
        %1651 = vmatpush1.msra.mxu0 0.0
        %1652 = vmatprep.subr.mxu0 0.0
        %1653 = vmatpush1.msra.mxu0 0.0
        %1654 = vmatprep.subr.mxu0 0.0
        %1655 = vmatpush1.msra.mxu0 0.0
        %1656 = vmatprep.subr.mxu0 0.0
        %1657 = vmatpush1.msra.mxu0 0.0
        %1658 = vmatprep.subr.mxu0 0.0
        %1659 = vmatpush1.msra.mxu0 0.0
        %1660 = vmatprep.subr.mxu0 0.0
        %1661 = vmatpush1.msra.mxu0 0.0
        %1662 = vmatprep.subr.mxu0 0.0
        %1663 = vmatpush1.msra.mxu0 0.0
        %1664 = vmatprep.subr.mxu0 0.0
        %1665 = vmatpush1.msra.mxu0 0.0
        %1666 = vmatprep.subr.mxu0 0.0
        %1667 = vmatpush1.msra.mxu0 0.0
        %1668 = vmatprep.subr.mxu0 0.0
        %1669 = vmatpush1.msra.mxu0 0.0
        %1670 = vmatprep.subr.mxu0 0.0
        %1671 = vmatpush1.msra.mxu0 0.0
        %1672 = vmatprep.subr.mxu0 0.0
        %1673 = vmatpush1.msra.mxu0 0.0
        %1674 = vmatprep.subr.mxu0 0.0
        %1675 = vmatpush1.msra.mxu0 0.0
        %1676 = vmatprep.subr.mxu0 0.0
        %1677 = vmatpush1.msra.mxu0 0.0
        %1678 = vmatprep.subr.mxu0 0.0
        %1679 = vmatpush1.msra.mxu0 0.0
        %1680 = vmatprep.mubr.f32.mxu0 0.0
        %v1681 = vand.u32 %v626, 4294901760
        %1682 = vmatmul.mubr.f32.gmra.mrb[0].mxu0 %v1681
        %v1683 = vpop.f32.mrb[0].mxu0
        %v1684 = vadd.f32 %v1521, %v1683
        %v1685 = vpop.f32.mrb[0].mxu0
        %1686 = vmatprep.mubr.f32.mxu0 0.0
        %v1687 = vand.u32 %v629, 4294901760
        %1688 = vmatmul.mubr.f32.gmra.mrb[0].mxu0 %v1687
        %v1689 = vpop.f32.mrb[0].mxu0
        %v1690 = vadd.f32 %v1527, %v1689
        %v1691 = vpop.f32.mrb[0].mxu0
        %1692 = vmatprep.mubr.f32.mxu0 0.0
        %v1693 = vand.u32 %v632, 4294901760
        %1694 = vmatmul.mubr.f32.gmra.mrb[0].mxu0 %v1693
        %v1695 = vpop.f32.mrb[0].mxu0
        %v1696 = vadd.f32 %v1533, %v1695
        %v1697 = vpop.f32.mrb[0].mxu0
        %1698 = vmatprep.mubr.f32.mxu0 0.0
        %v1699 = vand.u32 %v635, 4294901760
        %1700 = vmatmul.mubr.f32.gmra.mrb[0].mxu0 %v1699
        %v1701 = vpop.f32.mrb[0].mxu0
        %v1702 = vadd.f32 %v1539, %v1701
        %v1703 = vpop.f32.mrb[0].mxu0
        %1704 = vmatprep.mubr.f32.mxu0 0.0
        %v1705 = vand.u32 %v638, 4294901760
        %1706 = vmatmul.mubr.f32.gmra.mrb[0].mxu0 %v1705
        %v1707 = vpop.f32.mrb[0].mxu0
        %v1708 = vadd.f32 %v1545, %v1707
        %v1709 = vpop.f32.mrb[0].mxu0
        %1710 = vmatprep.mubr.f32.mxu0 0.0
        %v1711 = vand.u32 %v641, 4294901760
        %1712 = vmatmul.mubr.f32.gmra.mrb[0].mxu0 %v1711
        %v1713 = vpop.f32.mrb[0].mxu0
        %v1714 = vadd.f32 %v1551, %v1713
        %v1715 = vpop.f32.mrb[0].mxu0
        %1716 = vmatprep.mubr.f32.mxu0 0.0
        %v1717 = vand.u32 %v644, 4294901760
        %1718 = vmatmul.mubr.f32.gmra.mrb[0].mxu0 %v1717
        %v1719 = vpop.f32.mrb[0].mxu0
        %v1720 = vadd.f32 %v1557, %v1719
        %v1721 = vpop.f32.mrb[0].mxu0
        %1722 = vmatprep.mubr.f32.mxu0 0.0
        %v1723 = vand.u32 %v647, 4294901760
        %1724 = vmatmul.mubr.f32.gmra.mrb[0].mxu0 %v1723
        %v1725 = vpop.f32.mrb[0].mxu0
        %v1726 = vadd.f32 %v1563, %v1725
        %v1727 = vpop.f32.mrb[0].mxu0
        %1728 = vmatprep.mubr.f32.mxu0 0.0
        %v1729 = vand.u32 %v650, 4294901760
        %1730 = vmatmul.mubr.f32.gmra.mrb[0].mxu0 %v1729
        %v1731 = vpop.f32.mrb[0].mxu0
        %v1732 = vadd.f32 %v1569, %v1731
        %v1733 = vpop.f32.mrb[0].mxu0
        %1734 = vmatprep.mubr.f32.mxu0 0.0
        %v1735 = vand.u32 %v653, 4294901760
        %1736 = vmatmul.mubr.f32.gmra.mrb[0].mxu0 %v1735
        %v1737 = vpop.f32.mrb[0].mxu0
        %v1738 = vadd.f32 %v1575, %v1737
        %v1739 = vpop.f32.mrb[0].mxu0
        %1740 = vmatprep.mubr.f32.mxu0 0.0
        %v1741 = vand.u32 %v656, 4294901760
        %1742 = vmatmul.mubr.f32.gmra.mrb[0].mxu0 %v1741
        %v1743 = vpop.f32.mrb[0].mxu0
        %v1744 = vadd.f32 %v1581, %v1743
        %v1745 = vpop.f32.mrb[0].mxu0
        %1746 = vmatprep.mubr.f32.mxu0 0.0
        %v1747 = vand.u32 %v659, 4294901760
        %1748 = vmatmul.mubr.f32.gmra.mrb[0].mxu0 %v1747
        %v1749 = vpop.f32.mrb[0].mxu0
        %v1750 = vadd.f32 %v1587, %v1749
        %v1751 = vpop.f32.mrb[0].mxu0
        %1752 = vmatprep.mubr.f32.mxu0 0.0
        %v1753 = vand.u32 %v662, 4294901760
        %1754 = vmatmul.mubr.f32.gmra.mrb[0].mxu0 %v1753
        %v1755 = vpop.f32.mrb[0].mxu0
        %v1756 = vadd.f32 %v1593, %v1755
        %v1757 = vpop.f32.mrb[0].mxu0
        %1758 = vmatprep.mubr.f32.mxu0 0.0
        %v1759 = vand.u32 %v665, 4294901760
        %1760 = vmatmul.mubr.f32.gmra.mrb[0].mxu0 %v1759
        %v1761 = vpop.f32.mrb[0].mxu0
        %v1762 = vadd.f32 %v1599, %v1761
        %v1763 = vpop.f32.mrb[0].mxu0
        %1764 = vmatprep.mubr.f32.mxu0 0.0
        %v1765 = vand.u32 %v668, 4294901760
        %1766 = vmatmul.mubr.f32.gmra.mrb[0].mxu0 %v1765
        %v1767 = vpop.f32.mrb[0].mxu0
        %v1768 = vadd.f32 %v1605, %v1767
        %v1769 = vpop.f32.mrb[0].mxu0
        %1770 = vmatprep.mubr.f32.mxu0 0.0
        %v1771 = vand.u32 %v671, 4294901760
        %1772 = vmatmul.mubr.f32.gmra.mrb[0].mxu0 %v1771
        %v1773 = vpop.f32.mrb[0].mxu0
        %v1774 = vadd.f32 %v1611, %v1773
        %v1775 = vpop.f32.mrb[0].mxu0
        %1776 = vdwg.mxu0
        %v1777 = vmax.f32 %v1684, 0.0
        %v1778 = vmax.f32 %v1690, 0.0
        %v1779 = vmax.f32 %v1696, 0.0
        %v1780 = vmax.f32 %v1702, 0.0
        %v1781 = vmax.f32 %v1708, 0.0
        %v1782 = vmax.f32 %v1714, 0.0
        %v1783 = vmax.f32 %v1720, 0.0
        %v1784 = vmax.f32 %v1726, 0.0
        %v1785 = vmax.f32 %v1732, 0.0
        %v1786 = vmax.f32 %v1738, 0.0
        %v1787 = vmax.f32 %v1744, 0.0
        %v1788 = vmax.f32 %v1750, 0.0
        %v1789 = vmax.f32 %v1756, 0.0
        %v1790 = vmax.f32 %v1762, 0.0
        %v1791 = vmax.f32 %v1768, 0.0
        %v1792 = vmax.f32 %v1774, 0.0
        %v1793 = vld [vmem:[%s501] sm:$0xff]
        %v1794 = vld [vmem:[%s501 + $0x8] sm:$0xff]
        %v1795 = vld [vmem:[%s501 + $0x10] sm:$0xff]
        %v1796 = vld [vmem:[%s501 + $0x18] sm:$0xff]
        %v1797 = vld [vmem:[%s501 + $0x20] sm:$0xff]
        %v1798 = vld [vmem:[%s501 + $0x28] sm:$0xff]
        %v1799 = vld [vmem:[%s501 + $0x30] sm:$0xff]
        %v1800 = vld [vmem:[%s501 + $0x38] sm:$0xff]
        %v1801 = vld [vmem:[%s501 + $0x40] sm:$0xff]
        %v1802 = vld [vmem:[%s501 + $0x48] sm:$0xff]
        %v1803 = vld [vmem:[%s501 + $0x50] sm:$0xff]
        %v1804 = vld [vmem:[%s501 + $0x58] sm:$0xff]
        %v1805 = vld [vmem:[%s501 + $0x60] sm:$0xff]
        %v1806 = vld [vmem:[%s501 + $0x68] sm:$0xff]
        %v1807 = vld [vmem:[%s501 + $0x70] sm:$0xff]
        %v1808 = vld [vmem:[%s501 + $0x78] sm:$0xff]
        %v1809 = vld [vmem:[%s508] sm:$0xff]
        %v1810 = vld [vmem:[%s508 + $0x8] sm:$0xff]
        %v1811 = vld [vmem:[%s508 + $0x10] sm:$0xff]
        %v1812 = vld [vmem:[%s508 + $0x18] sm:$0xff]
        %v1813 = vld [vmem:[%s508 + $0x20] sm:$0xff]
        %v1814 = vld [vmem:[%s508 + $0x28] sm:$0xff]
        %v1815 = vld [vmem:[%s508 + $0x30] sm:$0xff]
        %v1816 = vld [vmem:[%s508 + $0x38] sm:$0xff]
        %v1817 = vld [vmem:[%s508 + $0x40] sm:$0xff]
        %v1818 = vld [vmem:[%s508 + $0x48] sm:$0xff]
        %v1819 = vld [vmem:[%s508 + $0x50] sm:$0xff]
        %v1820 = vld [vmem:[%s508 + $0x58] sm:$0xff]
        %v1821 = vld [vmem:[%s508 + $0x60] sm:$0xff]
        %v1822 = vld [vmem:[%s508 + $0x68] sm:$0xff]
        %v1823 = vld [vmem:[%s508 + $0x70] sm:$0xff]
        %v1824 = vld [vmem:[%s508 + $0x78] sm:$0xff]
        %1825 = vmatprep.subr.mxu0 0.0
        %v1826 = vand.u32 %v1777, 4294901760
        %1827 = vmatpush1.msra.mxu0 %v1826
        %1828 = vmatprep.subr.mxu0 0.0
        %v1829 = vand.u32 %v1778, 4294901760
        %1830 = vmatpush1.msra.mxu0 %v1829
        %1831 = vmatprep.subr.mxu0 0.0
        %v1832 = vand.u32 %v1779, 4294901760
        %1833 = vmatpush1.msra.mxu0 %v1832
        %1834 = vmatprep.subr.mxu0 0.0
        %v1835 = vand.u32 %v1780, 4294901760
        %1836 = vmatpush1.msra.mxu0 %v1835
        %1837 = vmatprep.subr.mxu0 0.0
        %v1838 = vand.u32 %v1781, 4294901760
        %1839 = vmatpush1.msra.mxu0 %v1838
        %1840 = vmatprep.subr.mxu0 0.0
        %v1841 = vand.u32 %v1782, 4294901760
        %1842 = vmatpush1.msra.mxu0 %v1841
        %1843 = vmatprep.subr.mxu0 0.0
        %v1844 = vand.u32 %v1783, 4294901760
        %1845 = vmatpush1.msra.mxu0 %v1844
        %1846 = vmatprep.subr.mxu0 0.0
        %v1847 = vand.u32 %v1784, 4294901760
        %1848 = vmatpush1.msra.mxu0 %v1847
        %1849 = vmatprep.subr.mxu0 0.0
        %v1850 = vand.u32 %v1785, 4294901760
        %1851 = vmatpush1.msra.mxu0 %v1850
        %1852 = vmatprep.subr.mxu0 0.0
        %v1853 = vand.u32 %v1786, 4294901760
        %1854 = vmatpush1.msra.mxu0 %v1853
        %1855 = vmatprep.subr.mxu0 0.0
        %v1856 = vand.u32 %v1787, 4294901760
        %1857 = vmatpush1.msra.mxu0 %v1856
        %1858 = vmatprep.subr.mxu0 0.0
        %v1859 = vand.u32 %v1788, 4294901760
        %1860 = vmatpush1.msra.mxu0 %v1859
        %1861 = vmatprep.subr.mxu0 0.0
        %v1862 = vand.u32 %v1789, 4294901760
        %1863 = vmatpush1.msra.mxu0 %v1862
        %1864 = vmatprep.subr.mxu0 0.0
        %v1865 = vand.u32 %v1790, 4294901760
        %1866 = vmatpush1.msra.mxu0 %v1865
        %1867 = vmatprep.subr.mxu0 0.0
        %v1868 = vand.u32 %v1791, 4294901760
        %1869 = vmatpush1.msra.mxu0 %v1868
        %1870 = vmatprep.subr.mxu0 0.0
        %v1871 = vand.u32 %v1792, 4294901760
        %1872 = vmatpush1.msra.mxu0 %v1871
        %1873 = vmatprep.subr.mxu0 0.0
        %1874 = vmatpush1.msra.mxu0 0.0
        %1875 = vmatprep.subr.mxu0 0.0
        %1876 = vmatpush1.msra.mxu0 0.0
        %1877 = vmatprep.subr.mxu0 0.0
        %1878 = vmatpush1.msra.mxu0 0.0
        %1879 = vmatprep.subr.mxu0 0.0
        %1880 = vmatpush1.msra.mxu0 0.0
        %1881 = vmatprep.subr.mxu0 0.0
        %1882 = vmatpush1.msra.mxu0 0.0
        %1883 = vmatprep.subr.mxu0 0.0
        %1884 = vmatpush1.msra.mxu0 0.0
        %1885 = vmatprep.subr.mxu0 0.0
        %1886 = vmatpush1.msra.mxu0 0.0
        %1887 = vmatprep.subr.mxu0 0.0
        %1888 = vmatpush1.msra.mxu0 0.0
        %1889 = vmatprep.subr.mxu0 0.0
        %1890 = vmatpush1.msra.mxu0 0.0
        %1891 = vmatprep.subr.mxu0 0.0
        %1892 = vmatpush1.msra.mxu0 0.0
        %1893 = vmatprep.subr.mxu0 0.0
        %1894 = vmatpush1.msra.mxu0 0.0
        %1895 = vmatprep.subr.mxu0 0.0
        %1896 = vmatpush1.msra.mxu0 0.0
        %1897 = vmatprep.subr.mxu0 0.0
        %1898 = vmatpush1.msra.mxu0 0.0
        %1899 = vmatprep.subr.mxu0 0.0
        %1900 = vmatpush1.msra.mxu0 0.0
        %1901 = vmatprep.subr.mxu0 0.0
        %1902 = vmatpush1.msra.mxu0 0.0
        %1903 = vmatprep.subr.mxu0 0.0
        %1904 = vmatpush1.msra.mxu0 0.0
        %1905 = vmatprep.mubr.f32.mxu0 0.0
        %v1906 = vand.u32 %v1793, 4294901760
        %v1907 = vsub.f32 %v1793, %v1906
        %v1908 = vand.u32 %v1907, 4294901760
        %v1909 = vsub.f32 %v1907, %v1908
        %v1910 = vand.u32 %v1909, 4294901760
        %1911 = vmatmul.mubr.f32.gmra.mrb[0].mxu0 %v1910
        %v1912 = vpop.f32.mrb[0].mxu0
        %v1913 = vadd.f32 %v1809, %v1912
        %v1914 = vpop.f32.mrb[0].mxu0
        %1915 = vmatprep.mubr.f32.mxu0 0.0
        %v1916 = vand.u32 %v1794, 4294901760
        %v1917 = vsub.f32 %v1794, %v1916
        %v1918 = vand.u32 %v1917, 4294901760
        %v1919 = vsub.f32 %v1917, %v1918
        %v1920 = vand.u32 %v1919, 4294901760
        %1921 = vmatmul.mubr.f32.gmra.mrb[0].mxu0 %v1920
        %v1922 = vpop.f32.mrb[0].mxu0
        %v1923 = vadd.f32 %v1810, %v1922
        %v1924 = vpop.f32.mrb[0].mxu0
        %1925 = vmatprep.mubr.f32.mxu0 0.0
        %v1926 = vand.u32 %v1795, 4294901760
        %v1927 = vsub.f32 %v1795, %v1926
        %v1928 = vand.u32 %v1927, 4294901760
        %v1929 = vsub.f32 %v1927, %v1928
        %v1930 = vand.u32 %v1929, 4294901760
        %1931 = vmatmul.mubr.f32.gmra.mrb[0].mxu0 %v1930
        %v1932 = vpop.f32.mrb[0].mxu0
        %v1933 = vadd.f32 %v1811, %v1932
        %v1934 = vpop.f32.mrb[0].mxu0
        %1935 = vmatprep.mubr.f32.mxu0 0.0
        %v1936 = vand.u32 %v1796, 4294901760
        %v1937 = vsub.f32 %v1796, %v1936
        %v1938 = vand.u32 %v1937, 4294901760
        %v1939 = vsub.f32 %v1937, %v1938
        %v1940 = vand.u32 %v1939, 4294901760
        %1941 = vmatmul.mubr.f32.gmra.mrb[0].mxu0 %v1940
        %v1942 = vpop.f32.mrb[0].mxu0
        %v1943 = vadd.f32 %v1812, %v1942
        %v1944 = vpop.f32.mrb[0].mxu0
        %1945 = vmatprep.mubr.f32.mxu0 0.0
        %v1946 = vand.u32 %v1797, 4294901760
        %v1947 = vsub.f32 %v1797, %v1946
        %v1948 = vand.u32 %v1947, 4294901760
        %v1949 = vsub.f32 %v1947, %v1948
        %v1950 = vand.u32 %v1949, 4294901760
        %1951 = vmatmul.mubr.f32.gmra.mrb[0].mxu0 %v1950
        %v1952 = vpop.f32.mrb[0].mxu0
        %v1953 = vadd.f32 %v1813, %v1952
        %v1954 = vpop.f32.mrb[0].mxu0
        %1955 = vmatprep.mubr.f32.mxu0 0.0
        %v1956 = vand.u32 %v1798, 4294901760
        %v1957 = vsub.f32 %v1798, %v1956
        %v1958 = vand.u32 %v1957, 4294901760
        %v1959 = vsub.f32 %v1957, %v1958
        %v1960 = vand.u32 %v1959, 4294901760
        %1961 = vmatmul.mubr.f32.gmra.mrb[0].mxu0 %v1960
        %v1962 = vpop.f32.mrb[0].mxu0
        %v1963 = vadd.f32 %v1814, %v1962
        %v1964 = vpop.f32.mrb[0].mxu0
        %1965 = vmatprep.mubr.f32.mxu0 0.0
        %v1966 = vand.u32 %v1799, 4294901760
        %v1967 = vsub.f32 %v1799, %v1966
        %v1968 = vand.u32 %v1967, 4294901760
        %v1969 = vsub.f32 %v1967, %v1968
        %v1970 = vand.u32 %v1969, 4294901760
        %1971 = vmatmul.mubr.f32.gmra.mrb[0].mxu0 %v1970
        %v1972 = vpop.f32.mrb[0].mxu0
        %v1973 = vadd.f32 %v1815, %v1972
        %v1974 = vpop.f32.mrb[0].mxu0
        %1975 = vmatprep.mubr.f32.mxu0 0.0
        %v1976 = vand.u32 %v1800, 4294901760
        %v1977 = vsub.f32 %v1800, %v1976
        %v1978 = vand.u32 %v1977, 4294901760
        %v1979 = vsub.f32 %v1977, %v1978
        %v1980 = vand.u32 %v1979, 4294901760
        %1981 = vmatmul.mubr.f32.gmra.mrb[0].mxu0 %v1980
        %v1982 = vpop.f32.mrb[0].mxu0
        %v1983 = vadd.f32 %v1816, %v1982
        %v1984 = vpop.f32.mrb[0].mxu0
        %1985 = vmatprep.mubr.f32.mxu0 0.0
        %v1986 = vand.u32 %v1801, 4294901760
        %v1987 = vsub.f32 %v1801, %v1986
        %v1988 = vand.u32 %v1987, 4294901760
        %v1989 = vsub.f32 %v1987, %v1988
        %v1990 = vand.u32 %v1989, 4294901760
        %1991 = vmatmul.mubr.f32.gmra.mrb[0].mxu0 %v1990
        %v1992 = vpop.f32.mrb[0].mxu0
        %v1993 = vadd.f32 %v1817, %v1992
        %v1994 = vpop.f32.mrb[0].mxu0
        %1995 = vmatprep.mubr.f32.mxu0 0.0
        %v1996 = vand.u32 %v1802, 4294901760
        %v1997 = vsub.f32 %v1802, %v1996
        %v1998 = vand.u32 %v1997, 4294901760
        %v1999 = vsub.f32 %v1997, %v1998
        %v2000 = vand.u32 %v1999, 4294901760
        %2001 = vmatmul.mubr.f32.gmra.mrb[0].mxu0 %v2000
        %v2002 = vpop.f32.mrb[0].mxu0
        %v2003 = vadd.f32 %v1818, %v2002
        %v2004 = vpop.f32.mrb[0].mxu0
        %2005 = vmatprep.mubr.f32.mxu0 0.0
        %v2006 = vand.u32 %v1803, 4294901760
        %v2007 = vsub.f32 %v1803, %v2006
        %v2008 = vand.u32 %v2007, 4294901760
        %v2009 = vsub.f32 %v2007, %v2008
        %v2010 = vand.u32 %v2009, 4294901760
        %2011 = vmatmul.mubr.f32.gmra.mrb[0].mxu0 %v2010
        %v2012 = vpop.f32.mrb[0].mxu0
        %v2013 = vadd.f32 %v1819, %v2012
        %v2014 = vpop.f32.mrb[0].mxu0
        %2015 = vmatprep.mubr.f32.mxu0 0.0
        %v2016 = vand.u32 %v1804, 4294901760
        %v2017 = vsub.f32 %v1804, %v2016
        %v2018 = vand.u32 %v2017, 4294901760
        %v2019 = vsub.f32 %v2017, %v2018
        %v2020 = vand.u32 %v2019, 4294901760
        %2021 = vmatmul.mubr.f32.gmra.mrb[0].mxu0 %v2020
        %v2022 = vpop.f32.mrb[0].mxu0
        %v2023 = vadd.f32 %v1820, %v2022
        %v2024 = vpop.f32.mrb[0].mxu0
        %2025 = vmatprep.mubr.f32.mxu0 0.0
        %v2026 = vand.u32 %v1805, 4294901760
        %v2027 = vsub.f32 %v1805, %v2026
        %v2028 = vand.u32 %v2027, 4294901760
        %v2029 = vsub.f32 %v2027, %v2028
        %v2030 = vand.u32 %v2029, 4294901760
        %2031 = vmatmul.mubr.f32.gmra.mrb[0].mxu0 %v2030
        %v2032 = vpop.f32.mrb[0].mxu0
        %v2033 = vadd.f32 %v1821, %v2032
        %v2034 = vpop.f32.mrb[0].mxu0
        %2035 = vmatprep.mubr.f32.mxu0 0.0
        %v2036 = vand.u32 %v1806, 4294901760
        %v2037 = vsub.f32 %v1806, %v2036
        %v2038 = vand.u32 %v2037, 4294901760
        %v2039 = vsub.f32 %v2037, %v2038
        %v2040 = vand.u32 %v2039, 4294901760
        %2041 = vmatmul.mubr.f32.gmra.mrb[0].mxu0 %v2040
        %v2042 = vpop.f32.mrb[0].mxu0
        %v2043 = vadd.f32 %v1822, %v2042
        %v2044 = vpop.f32.mrb[0].mxu0
        %2045 = vmatprep.mubr.f32.mxu0 0.0
        %v2046 = vand.u32 %v1807, 4294901760
        %v2047 = vsub.f32 %v1807, %v2046
        %v2048 = vand.u32 %v2047, 4294901760
        %v2049 = vsub.f32 %v2047, %v2048
        %v2050 = vand.u32 %v2049, 4294901760
        %2051 = vmatmul.mubr.f32.gmra.mrb[0].mxu0 %v2050
        %v2052 = vpop.f32.mrb[0].mxu0
        %v2053 = vadd.f32 %v1823, %v2052
        %v2054 = vpop.f32.mrb[0].mxu0
        %2055 = vmatprep.mubr.f32.mxu0 0.0
        %v2056 = vand.u32 %v1808, 4294901760
        %v2057 = vsub.f32 %v1808, %v2056
        %v2058 = vand.u32 %v2057, 4294901760
        %v2059 = vsub.f32 %v2057, %v2058
        %v2060 = vand.u32 %v2059, 4294901760
        %2061 = vmatmul.mubr.f32.gmra.mrb[0].mxu0 %v2060
        %v2062 = vpop.f32.mrb[0].mxu0
        %v2063 = vadd.f32 %v1824, %v2062
        %v2064 = vpop.f32.mrb[0].mxu0
        %2065 = vdwg.mxu0
        %2066 = vmatprep.subr.mxu0 0.0
        %v2067 = vand.u32 %v1777, 4294901760
        %v2068 = vsub.f32 %v1777, %v2067
        %v2069 = vand.u32 %v2068, 4294901760
        %v2070 = vsub.f32 %v2068, %v2069
        %v2071 = vand.u32 %v2070, 4294901760
        %2072 = vmatpush1.msra.mxu0 %v2071
        %2073 = vmatprep.subr.mxu0 0.0
        %v2074 = vand.u32 %v1778, 4294901760
        %v2075 = vsub.f32 %v1778, %v2074
        %v2076 = vand.u32 %v2075, 4294901760
        %v2077 = vsub.f32 %v2075, %v2076
        %v2078 = vand.u32 %v2077, 4294901760
        %2079 = vmatpush1.msra.mxu0 %v2078
        %2080 = vmatprep.subr.mxu0 0.0
        %v2081 = vand.u32 %v1779, 4294901760
        %v2082 = vsub.f32 %v1779, %v2081
        %v2083 = vand.u32 %v2082, 4294901760
        %v2084 = vsub.f32 %v2082, %v2083
        %v2085 = vand.u32 %v2084, 4294901760
        %2086 = vmatpush1.msra.mxu0 %v2085
        %2087 = vmatprep.subr.mxu0 0.0
        %v2088 = vand.u32 %v1780, 4294901760
        %v2089 = vsub.f32 %v1780, %v2088
        %v2090 = vand.u32 %v2089, 4294901760
        %v2091 = vsub.f32 %v2089, %v2090
        %v2092 = vand.u32 %v2091, 4294901760
        %2093 = vmatpush1.msra.mxu0 %v2092
        %2094 = vmatprep.subr.mxu0 0.0
        %v2095 = vand.u32 %v1781, 4294901760
        %v2096 = vsub.f32 %v1781, %v2095
        %v2097 = vand.u32 %v2096, 4294901760
        %v2098 = vsub.f32 %v2096, %v2097
        %v2099 = vand.u32 %v2098, 4294901760
        %2100 = vmatpush1.msra.mxu0 %v2099
        %2101 = vmatprep.subr.mxu0 0.0
        %v2102 = vand.u32 %v1782, 4294901760
        %v2103 = vsub.f32 %v1782, %v2102
        %v2104 = vand.u32 %v2103, 4294901760
        %v2105 = vsub.f32 %v2103, %v2104
        %v2106 = vand.u32 %v2105, 4294901760
        %2107 = vmatpush1.msra.mxu0 %v2106
        %2108 = vmatprep.subr.mxu0 0.0
        %v2109 = vand.u32 %v1783, 4294901760
        %v2110 = vsub.f32 %v1783, %v2109
        %v2111 = vand.u32 %v2110, 4294901760
        %v2112 = vsub.f32 %v2110, %v2111
        %v2113 = vand.u32 %v2112, 4294901760
        %2114 = vmatpush1.msra.mxu0 %v2113
        %2115 = vmatprep.subr.mxu0 0.0
        %v2116 = vand.u32 %v1784, 4294901760
        %v2117 = vsub.f32 %v1784, %v2116
        %v2118 = vand.u32 %v2117, 4294901760
        %v2119 = vsub.f32 %v2117, %v2118
        %v2120 = vand.u32 %v2119, 4294901760
        %2121 = vmatpush1.msra.mxu0 %v2120
        %2122 = vmatprep.subr.mxu0 0.0
        %v2123 = vand.u32 %v1785, 4294901760
        %v2124 = vsub.f32 %v1785, %v2123
        %v2125 = vand.u32 %v2124, 4294901760
        %v2126 = vsub.f32 %v2124, %v2125
        %v2127 = vand.u32 %v2126, 4294901760
        %2128 = vmatpush1.msra.mxu0 %v2127
        %2129 = vmatprep.subr.mxu0 0.0
        %v2130 = vand.u32 %v1786, 4294901760
        %v2131 = vsub.f32 %v1786, %v2130
        %v2132 = vand.u32 %v2131, 4294901760
        %v2133 = vsub.f32 %v2131, %v2132
        %v2134 = vand.u32 %v2133, 4294901760
        %2135 = vmatpush1.msra.mxu0 %v2134
        %2136 = vmatprep.subr.mxu0 0.0
        %v2137 = vand.u32 %v1787, 4294901760
        %v2138 = vsub.f32 %v1787, %v2137
        %v2139 = vand.u32 %v2138, 4294901760
        %v2140 = vsub.f32 %v2138, %v2139
        %v2141 = vand.u32 %v2140, 4294901760
        %2142 = vmatpush1.msra.mxu0 %v2141
        %2143 = vmatprep.subr.mxu0 0.0
        %v2144 = vand.u32 %v1788, 4294901760
        %v2145 = vsub.f32 %v1788, %v2144
        %v2146 = vand.u32 %v2145, 4294901760
        %v2147 = vsub.f32 %v2145, %v2146
        %v2148 = vand.u32 %v2147, 4294901760
        %2149 = vmatpush1.msra.mxu0 %v2148
        %2150 = vmatprep.subr.mxu0 0.0
        %v2151 = vand.u32 %v1789, 4294901760
        %v2152 = vsub.f32 %v1789, %v2151
        %v2153 = vand.u32 %v2152, 4294901760
        %v2154 = vsub.f32 %v2152, %v2153
        %v2155 = vand.u32 %v2154, 4294901760
        %2156 = vmatpush1.msra.mxu0 %v2155
        %2157 = vmatprep.subr.mxu0 0.0
        %v2158 = vand.u32 %v1790, 4294901760
        %v2159 = vsub.f32 %v1790, %v2158
        %v2160 = vand.u32 %v2159, 4294901760
        %v2161 = vsub.f32 %v2159, %v2160
        %v2162 = vand.u32 %v2161, 4294901760
        %2163 = vmatpush1.msra.mxu0 %v2162
        %2164 = vmatprep.subr.mxu0 0.0
        %v2165 = vand.u32 %v1791, 4294901760
        %v2166 = vsub.f32 %v1791, %v2165
        %v2167 = vand.u32 %v2166, 4294901760
        %v2168 = vsub.f32 %v2166, %v2167
        %v2169 = vand.u32 %v2168, 4294901760
        %2170 = vmatpush1.msra.mxu0 %v2169
        %2171 = vmatprep.subr.mxu0 0.0
        %v2172 = vand.u32 %v1792, 4294901760
        %v2173 = vsub.f32 %v1792, %v2172
        %v2174 = vand.u32 %v2173, 4294901760
        %v2175 = vsub.f32 %v2173, %v2174
        %v2176 = vand.u32 %v2175, 4294901760
        %2177 = vmatpush1.msra.mxu0 %v2176
        %2178 = vmatprep.subr.mxu0 0.0
        %2179 = vmatpush1.msra.mxu0 0.0
        %2180 = vmatprep.subr.mxu0 0.0
        %2181 = vmatpush1.msra.mxu0 0.0
        %2182 = vmatprep.subr.mxu0 0.0
        %2183 = vmatpush1.msra.mxu0 0.0
        %2184 = vmatprep.subr.mxu0 0.0
        %2185 = vmatpush1.msra.mxu0 0.0
        %2186 = vmatprep.subr.mxu0 0.0
        %2187 = vmatpush1.msra.mxu0 0.0
        %2188 = vmatprep.subr.mxu0 0.0
        %2189 = vmatpush1.msra.mxu0 0.0
        %2190 = vmatprep.subr.mxu0 0.0
        %2191 = vmatpush1.msra.mxu0 0.0
        %2192 = vmatprep.subr.mxu0 0.0
        %2193 = vmatpush1.msra.mxu0 0.0
        %2194 = vmatprep.subr.mxu0 0.0
        %2195 = vmatpush1.msra.mxu0 0.0
        %2196 = vmatprep.subr.mxu0 0.0
        %2197 = vmatpush1.msra.mxu0 0.0
        %2198 = vmatprep.subr.mxu0 0.0
        %2199 = vmatpush1.msra.mxu0 0.0
        %2200 = vmatprep.subr.mxu0 0.0
        %2201 = vmatpush1.msra.mxu0 0.0
        %2202 = vmatprep.subr.mxu0 0.0
        %2203 = vmatpush1.msra.mxu0 0.0
        %2204 = vmatprep.subr.mxu0 0.0
        %2205 = vmatpush1.msra.mxu0 0.0
        %2206 = vmatprep.subr.mxu0 0.0
        %2207 = vmatpush1.msra.mxu0 0.0
        %2208 = vmatprep.subr.mxu0 0.0
        %2209 = vmatpush1.msra.mxu0 0.0
        %2210 = vmatprep.mubr.f32.mxu0 0.0
        %v2211 = vand.u32 %v1793, 4294901760
        %2212 = vmatmul.mubr.f32.gmra.mrb[0].mxu0 %v2211
        %v2213 = vpop.f32.mrb[0].mxu0
        %v2214 = vadd.f32 %v1913, %v2213
        %v2215 = vpop.f32.mrb[0].mxu0
        %2216 = vmatprep.mubr.f32.mxu0 0.0
        %v2217 = vand.u32 %v1794, 4294901760
        %2218 = vmatmul.mubr.f32.gmra.mrb[0].mxu0 %v2217
        %v2219 = vpop.f32.mrb[0].mxu0
        %v2220 = vadd.f32 %v1923, %v2219
        %v2221 = vpop.f32.mrb[0].mxu0
        %2222 = vmatprep.mubr.f32.mxu0 0.0
        %v2223 = vand.u32 %v1795, 4294901760
        %2224 = vmatmul.mubr.f32.gmra.mrb[0].mxu0 %v2223
        %v2225 = vpop.f32.mrb[0].mxu0
        %v2226 = vadd.f32 %v1933, %v2225
        %v2227 = vpop.f32.mrb[0].mxu0
        %2228 = vmatprep.mubr.f32.mxu0 0.0
        %v2229 = vand.u32 %v1796, 4294901760
        %2230 = vmatmul.mubr.f32.gmra.mrb[0].mxu0 %v2229
        %v2231 = vpop.f32.mrb[0].mxu0
        %v2232 = vadd.f32 %v1943, %v2231
        %v2233 = vpop.f32.mrb[0].mxu0
        %2234 = vmatprep.mubr.f32.mxu0 0.0
        %v2235 = vand.u32 %v1797, 4294901760
        %2236 = vmatmul.mubr.f32.gmra.mrb[0].mxu0 %v2235
        %v2237 = vpop.f32.mrb[0].mxu0
        %v2238 = vadd.f32 %v1953, %v2237
        %v2239 = vpop.f32.mrb[0].mxu0
        %2240 = vmatprep.mubr.f32.mxu0 0.0
        %v2241 = vand.u32 %v1798, 4294901760
        %2242 = vmatmul.mubr.f32.gmra.mrb[0].mxu0 %v2241
        %v2243 = vpop.f32.mrb[0].mxu0
        %v2244 = vadd.f32 %v1963, %v2243
        %v2245 = vpop.f32.mrb[0].mxu0
        %2246 = vmatprep.mubr.f32.mxu0 0.0
        %v2247 = vand.u32 %v1799, 4294901760
        %2248 = vmatmul.mubr.f32.gmra.mrb[0].mxu0 %v2247
        %v2249 = vpop.f32.mrb[0].mxu0
        %v2250 = vadd.f32 %v1973, %v2249
        %v2251 = vpop.f32.mrb[0].mxu0
        %2252 = vmatprep.mubr.f32.mxu0 0.0
        %v2253 = vand.u32 %v1800, 4294901760
        %2254 = vmatmul.mubr.f32.gmra.mrb[0].mxu0 %v2253
        %v2255 = vpop.f32.mrb[0].mxu0
        %v2256 = vadd.f32 %v1983, %v2255
        %v2257 = vpop.f32.mrb[0].mxu0
        %2258 = vmatprep.mubr.f32.mxu0 0.0
        %v2259 = vand.u32 %v1801, 4294901760
        %2260 = vmatmul.mubr.f32.gmra.mrb[0].mxu0 %v2259
        %v2261 = vpop.f32.mrb[0].mxu0
        %v2262 = vadd.f32 %v1993, %v2261
        %v2263 = vpop.f32.mrb[0].mxu0
        %2264 = vmatprep.mubr.f32.mxu0 0.0
        %v2265 = vand.u32 %v1802, 4294901760
        %2266 = vmatmul.mubr.f32.gmra.mrb[0].mxu0 %v2265
        %v2267 = vpop.f32.mrb[0].mxu0
        %v2268 = vadd.f32 %v2003, %v2267
        %v2269 = vpop.f32.mrb[0].mxu0
        %2270 = vmatprep.mubr.f32.mxu0 0.0
        %v2271 = vand.u32 %v1803, 4294901760
        %2272 = vmatmul.mubr.f32.gmra.mrb[0].mxu0 %v2271
        %v2273 = vpop.f32.mrb[0].mxu0
        %v2274 = vadd.f32 %v2013, %v2273
        %v2275 = vpop.f32.mrb[0].mxu0
        %2276 = vmatprep.mubr.f32.mxu0 0.0
        %v2277 = vand.u32 %v1804, 4294901760
        %2278 = vmatmul.mubr.f32.gmra.mrb[0].mxu0 %v2277
        %v2279 = vpop.f32.mrb[0].mxu0
        %v2280 = vadd.f32 %v2023, %v2279
        %v2281 = vpop.f32.mrb[0].mxu0
        %2282 = vmatprep.mubr.f32.mxu0 0.0
        %v2283 = vand.u32 %v1805, 4294901760
        %2284 = vmatmul.mubr.f32.gmra.mrb[0].mxu0 %v2283
        %v2285 = vpop.f32.mrb[0].mxu0
        %v2286 = vadd.f32 %v2033, %v2285
        %v2287 = vpop.f32.mrb[0].mxu0
        %2288 = vmatprep.mubr.f32.mxu0 0.0
        %v2289 = vand.u32 %v1806, 4294901760
        %2290 = vmatmul.mubr.f32.gmra.mrb[0].mxu0 %v2289
        %v2291 = vpop.f32.mrb[0].mxu0
        %v2292 = vadd.f32 %v2043, %v2291
        %v2293 = vpop.f32.mrb[0].mxu0
        %2294 = vmatprep.mubr.f32.mxu0 0.0
        %v2295 = vand.u32 %v1807, 4294901760
        %2296 = vmatmul.mubr.f32.gmra.mrb[0].mxu0 %v2295
        %v2297 = vpop.f32.mrb[0].mxu0
        %v2298 = vadd.f32 %v2053, %v2297
        %v2299 = vpop.f32.mrb[0].mxu0
        %2300 = vmatprep.mubr.f32.mxu0 0.0
        %v2301 = vand.u32 %v1808, 4294901760
        %2302 = vmatmul.mubr.f32.gmra.mrb[0].mxu0 %v2301
        %v2303 = vpop.f32.mrb[0].mxu0
        %v2304 = vadd.f32 %v2063, %v2303
        %v2305 = vpop.f32.mrb[0].mxu0
        %2306 = vdwg.mxu0
        %2307 = vmatprep.subr.mxu0 0.0
        %v2308 = vand.u32 %v1777, 4294901760
        %v2309 = vsub.f32 %v1777, %v2308
        %2310 = vmatpush1.msra.mxu0 %v2309
        %2311 = vmatprep.subr.mxu0 0.0
        %v2312 = vand.u32 %v1778, 4294901760
        %v2313 = vsub.f32 %v1778, %v2312
        %2314 = vmatpush1.msra.mxu0 %v2313
        %2315 = vmatprep.subr.mxu0 0.0
        %v2316 = vand.u32 %v1779, 4294901760
        %v2317 = vsub.f32 %v1779, %v2316
        %2318 = vmatpush1.msra.mxu0 %v2317
        %2319 = vmatprep.subr.mxu0 0.0
        %v2320 = vand.u32 %v1780, 4294901760
        %v2321 = vsub.f32 %v1780, %v2320
        %2322 = vmatpush1.msra.mxu0 %v2321
        %2323 = vmatprep.subr.mxu0 0.0
        %v2324 = vand.u32 %v1781, 4294901760
        %v2325 = vsub.f32 %v1781, %v2324
        %2326 = vmatpush1.msra.mxu0 %v2325
        %2327 = vmatprep.subr.mxu0 0.0
        %v2328 = vand.u32 %v1782, 4294901760
        %v2329 = vsub.f32 %v1782, %v2328
        %2330 = vmatpush1.msra.mxu0 %v2329
        %2331 = vmatprep.subr.mxu0 0.0
        %v2332 = vand.u32 %v1783, 4294901760
        %v2333 = vsub.f32 %v1783, %v2332
        %2334 = vmatpush1.msra.mxu0 %v2333
        %2335 = vmatprep.subr.mxu0 0.0
        %v2336 = vand.u32 %v1784, 4294901760
        %v2337 = vsub.f32 %v1784, %v2336
        %2338 = vmatpush1.msra.mxu0 %v2337
        %2339 = vmatprep.subr.mxu0 0.0
        %v2340 = vand.u32 %v1785, 4294901760
        %v2341 = vsub.f32 %v1785, %v2340
        %2342 = vmatpush1.msra.mxu0 %v2341
        %2343 = vmatprep.subr.mxu0 0.0
        %v2344 = vand.u32 %v1786, 4294901760
        %v2345 = vsub.f32 %v1786, %v2344
        %2346 = vmatpush1.msra.mxu0 %v2345
        %2347 = vmatprep.subr.mxu0 0.0
        %v2348 = vand.u32 %v1787, 4294901760
        %v2349 = vsub.f32 %v1787, %v2348
        %2350 = vmatpush1.msra.mxu0 %v2349
        %2351 = vmatprep.subr.mxu0 0.0
        %v2352 = vand.u32 %v1788, 4294901760
        %v2353 = vsub.f32 %v1788, %v2352
        %2354 = vmatpush1.msra.mxu0 %v2353
        %2355 = vmatprep.subr.mxu0 0.0
        %v2356 = vand.u32 %v1789, 4294901760
        %v2357 = vsub.f32 %v1789, %v2356
        %2358 = vmatpush1.msra.mxu0 %v2357
        %2359 = vmatprep.subr.mxu0 0.0
        %v2360 = vand.u32 %v1790, 4294901760
        %v2361 = vsub.f32 %v1790, %v2360
        %2362 = vmatpush1.msra.mxu0 %v2361
        %2363 = vmatprep.subr.mxu0 0.0
        %v2364 = vand.u32 %v1791, 4294901760
        %v2365 = vsub.f32 %v1791, %v2364
        %2366 = vmatpush1.msra.mxu0 %v2365
        %2367 = vmatprep.subr.mxu0 0.0
        %v2368 = vand.u32 %v1792, 4294901760
        %v2369 = vsub.f32 %v1792, %v2368
        %2370 = vmatpush1.msra.mxu0 %v2369
        %2371 = vmatprep.subr.mxu0 0.0
        %2372 = vmatpush1.msra.mxu0 0.0
        %2373 = vmatprep.subr.mxu0 0.0
        %2374 = vmatpush1.msra.mxu0 0.0
        %2375 = vmatprep.subr.mxu0 0.0
        %2376 = vmatpush1.msra.mxu0 0.0
        %2377 = vmatprep.subr.mxu0 0.0
        %2378 = vmatpush1.msra.mxu0 0.0
        %2379 = vmatprep.subr.mxu0 0.0
        %2380 = vmatpush1.msra.mxu0 0.0
        %2381 = vmatprep.subr.mxu0 0.0
        %2382 = vmatpush1.msra.mxu0 0.0
        %2383 = vmatprep.subr.mxu0 0.0
        %2384 = vmatpush1.msra.mxu0 0.0
        %2385 = vmatprep.subr.mxu0 0.0
        %2386 = vmatpush1.msra.mxu0 0.0
        %2387 = vmatprep.subr.mxu0 0.0
        %2388 = vmatpush1.msra.mxu0 0.0
        %2389 = vmatprep.subr.mxu0 0.0
        %2390 = vmatpush1.msra.mxu0 0.0
        %2391 = vmatprep.subr.mxu0 0.0
        %2392 = vmatpush1.msra.mxu0 0.0
        %2393 = vmatprep.subr.mxu0 0.0
        %2394 = vmatpush1.msra.mxu0 0.0
        %2395 = vmatprep.subr.mxu0 0.0
        %2396 = vmatpush1.msra.mxu0 0.0
        %2397 = vmatprep.subr.mxu0 0.0
        %2398 = vmatpush1.msra.mxu0 0.0
        %2399 = vmatprep.subr.mxu0 0.0
        %2400 = vmatpush1.msra.mxu0 0.0
        %2401 = vmatprep.subr.mxu0 0.0
        %2402 = vmatpush1.msra.mxu0 0.0
        %2403 = vmatprep.mubr.f32.mxu0 0.0
        %v2404 = vand.u32 %v1793, 4294901760
        %v2405 = vsub.f32 %v1793, %v2404
        %2406 = vmatmul.mubr.f32.gmra.mrb[0].mxu0 %v2405
        %v2407 = vpop.f32.mrb[0].mxu0
        %v2408 = vadd.f32 %v2214, %v2407
        %v2409 = vpop.f32.mrb[0].mxu0
        %2410 = vmatprep.mubr.f32.mxu0 0.0
        %v2411 = vand.u32 %v1794, 4294901760
        %v2412 = vsub.f32 %v1794, %v2411
        %2413 = vmatmul.mubr.f32.gmra.mrb[0].mxu0 %v2412
        %v2414 = vpop.f32.mrb[0].mxu0
        %v2415 = vadd.f32 %v2220, %v2414
        %v2416 = vpop.f32.mrb[0].mxu0
        %2417 = vmatprep.mubr.f32.mxu0 0.0
        %v2418 = vand.u32 %v1795, 4294901760
        %v2419 = vsub.f32 %v1795, %v2418
        %2420 = vmatmul.mubr.f32.gmra.mrb[0].mxu0 %v2419
        %v2421 = vpop.f32.mrb[0].mxu0
        %v2422 = vadd.f32 %v2226, %v2421
        %v2423 = vpop.f32.mrb[0].mxu0
        %2424 = vmatprep.mubr.f32.mxu0 0.0
        %v2425 = vand.u32 %v1796, 4294901760
        %v2426 = vsub.f32 %v1796, %v2425
        %2427 = vmatmul.mubr.f32.gmra.mrb[0].mxu0 %v2426
        %v2428 = vpop.f32.mrb[0].mxu0
        %v2429 = vadd.f32 %v2232, %v2428
        %v2430 = vpop.f32.mrb[0].mxu0
        %2431 = vmatprep.mubr.f32.mxu0 0.0
        %v2432 = vand.u32 %v1797, 4294901760
        %v2433 = vsub.f32 %v1797, %v2432
        %2434 = vmatmul.mubr.f32.gmra.mrb[0].mxu0 %v2433
        %v2435 = vpop.f32.mrb[0].mxu0
        %v2436 = vadd.f32 %v2238, %v2435
        %v2437 = vpop.f32.mrb[0].mxu0
        %2438 = vmatprep.mubr.f32.mxu0 0.0
        %v2439 = vand.u32 %v1798, 4294901760
        %v2440 = vsub.f32 %v1798, %v2439
        %2441 = vmatmul.mubr.f32.gmra.mrb[0].mxu0 %v2440
        %v2442 = vpop.f32.mrb[0].mxu0
        %v2443 = vadd.f32 %v2244, %v2442
        %v2444 = vpop.f32.mrb[0].mxu0
        %2445 = vmatprep.mubr.f32.mxu0 0.0
        %v2446 = vand.u32 %v1799, 4294901760
        %v2447 = vsub.f32 %v1799, %v2446
        %2448 = vmatmul.mubr.f32.gmra.mrb[0].mxu0 %v2447
        %v2449 = vpop.f32.mrb[0].mxu0
        %v2450 = vadd.f32 %v2250, %v2449
        %v2451 = vpop.f32.mrb[0].mxu0
        %2452 = vmatprep.mubr.f32.mxu0 0.0
        %v2453 = vand.u32 %v1800, 4294901760
        %v2454 = vsub.f32 %v1800, %v2453
        %2455 = vmatmul.mubr.f32.gmra.mrb[0].mxu0 %v2454
        %v2456 = vpop.f32.mrb[0].mxu0
        %v2457 = vadd.f32 %v2256, %v2456
        %v2458 = vpop.f32.mrb[0].mxu0
        %2459 = vmatprep.mubr.f32.mxu0 0.0
        %v2460 = vand.u32 %v1801, 4294901760
        %v2461 = vsub.f32 %v1801, %v2460
        %2462 = vmatmul.mubr.f32.gmra.mrb[0].mxu0 %v2461
        %v2463 = vpop.f32.mrb[0].mxu0
        %v2464 = vadd.f32 %v2262, %v2463
        %v2465 = vpop.f32.mrb[0].mxu0
        %2466 = vmatprep.mubr.f32.mxu0 0.0
        %v2467 = vand.u32 %v1802, 4294901760
        %v2468 = vsub.f32 %v1802, %v2467
        %2469 = vmatmul.mubr.f32.gmra.mrb[0].mxu0 %v2468
        %v2470 = vpop.f32.mrb[0].mxu0
        %v2471 = vadd.f32 %v2268, %v2470
        %v2472 = vpop.f32.mrb[0].mxu0
        %2473 = vmatprep.mubr.f32.mxu0 0.0
        %v2474 = vand.u32 %v1803, 4294901760
        %v2475 = vsub.f32 %v1803, %v2474
        %2476 = vmatmul.mubr.f32.gmra.mrb[0].mxu0 %v2475
        %v2477 = vpop.f32.mrb[0].mxu0
        %v2478 = vadd.f32 %v2274, %v2477
        %v2479 = vpop.f32.mrb[0].mxu0
        %2480 = vmatprep.mubr.f32.mxu0 0.0
        %v2481 = vand.u32 %v1804, 4294901760
        %v2482 = vsub.f32 %v1804, %v2481
        %2483 = vmatmul.mubr.f32.gmra.mrb[0].mxu0 %v2482
        %v2484 = vpop.f32.mrb[0].mxu0
        %v2485 = vadd.f32 %v2280, %v2484
        %v2486 = vpop.f32.mrb[0].mxu0
        %2487 = vmatprep.mubr.f32.mxu0 0.0
        %v2488 = vand.u32 %v1805, 4294901760
        %v2489 = vsub.f32 %v1805, %v2488
        %2490 = vmatmul.mubr.f32.gmra.mrb[0].mxu0 %v2489
        %v2491 = vpop.f32.mrb[0].mxu0
        %v2492 = vadd.f32 %v2286, %v2491
        %v2493 = vpop.f32.mrb[0].mxu0
        %2494 = vmatprep.mubr.f32.mxu0 0.0
        %v2495 = vand.u32 %v1806, 4294901760
        %v2496 = vsub.f32 %v1806, %v2495
        %2497 = vmatmul.mubr.f32.gmra.mrb[0].mxu0 %v2496
        %v2498 = vpop.f32.mrb[0].mxu0
        %v2499 = vadd.f32 %v2292, %v2498
        %v2500 = vpop.f32.mrb[0].mxu0
        %2501 = vmatprep.mubr.f32.mxu0 0.0
        %v2502 = vand.u32 %v1807, 4294901760
        %v2503 = vsub.f32 %v1807, %v2502
        %2504 = vmatmul.mubr.f32.gmra.mrb[0].mxu0 %v2503
        %v2505 = vpop.f32.mrb[0].mxu0
        %v2506 = vadd.f32 %v2298, %v2505
        %v2507 = vpop.f32.mrb[0].mxu0
        %2508 = vmatprep.mubr.f32.mxu0 0.0
        %v2509 = vand.u32 %v1808, 4294901760
        %v2510 = vsub.f32 %v1808, %v2509
        %2511 = vmatmul.mubr.f32.gmra.mrb[0].mxu0 %v2510
        %v2512 = vpop.f32.mrb[0].mxu0
        %v2513 = vadd.f32 %v2304, %v2512
        %v2514 = vpop.f32.mrb[0].mxu0
        %2515 = vdwg.mxu0
        %2516 = vmatprep.subr.mxu0 0.0
        %v2517 = vand.u32 %v1777, 4294901760
        %2518 = vmatpush1.msra.mxu0 %v2517
        %2519 = vmatprep.subr.mxu0 0.0
        %v2520 = vand.u32 %v1778, 4294901760
        %2521 = vmatpush1.msra.mxu0 %v2520
        %2522 = vmatprep.subr.mxu0 0.0
        %v2523 = vand.u32 %v1779, 4294901760
        %2524 = vmatpush1.msra.mxu0 %v2523
        %2525 = vmatprep.subr.mxu0 0.0
        %v2526 = vand.u32 %v1780, 4294901760
        %2527 = vmatpush1.msra.mxu0 %v2526
        %2528 = vmatprep.subr.mxu0 0.0
        %v2529 = vand.u32 %v1781, 4294901760
        %2530 = vmatpush1.msra.mxu0 %v2529
        %2531 = vmatprep.subr.mxu0 0.0
        %v2532 = vand.u32 %v1782, 4294901760
        %2533 = vmatpush1.msra.mxu0 %v2532
        %2534 = vmatprep.subr.mxu0 0.0
        %v2535 = vand.u32 %v1783, 4294901760
        %2536 = vmatpush1.msra.mxu0 %v2535
        %2537 = vmatprep.subr.mxu0 0.0
        %v2538 = vand.u32 %v1784, 4294901760
        %2539 = vmatpush1.msra.mxu0 %v2538
        %2540 = vmatprep.subr.mxu0 0.0
        %v2541 = vand.u32 %v1785, 4294901760
        %2542 = vmatpush1.msra.mxu0 %v2541
        %2543 = vmatprep.subr.mxu0 0.0
        %v2544 = vand.u32 %v1786, 4294901760
        %2545 = vmatpush1.msra.mxu0 %v2544
        %2546 = vmatprep.subr.mxu0 0.0
        %v2547 = vand.u32 %v1787, 4294901760
        %2548 = vmatpush1.msra.mxu0 %v2547
        %2549 = vmatprep.subr.mxu0 0.0
        %v2550 = vand.u32 %v1788, 4294901760
        %2551 = vmatpush1.msra.mxu0 %v2550
        %2552 = vmatprep.subr.mxu0 0.0
        %v2553 = vand.u32 %v1789, 4294901760
        %2554 = vmatpush1.msra.mxu0 %v2553
        %2555 = vmatprep.subr.mxu0 0.0
        %v2556 = vand.u32 %v1790, 4294901760
        %2557 = vmatpush1.msra.mxu0 %v2556
        %2558 = vmatprep.subr.mxu0 0.0
        %v2559 = vand.u32 %v1791, 4294901760
        %2560 = vmatpush1.msra.mxu0 %v2559
        %2561 = vmatprep.subr.mxu0 0.0
        %v2562 = vand.u32 %v1792, 4294901760
        %2563 = vmatpush1.msra.mxu0 %v2562
        %2564 = vmatprep.subr.mxu0 0.0
        %2565 = vmatpush1.msra.mxu0 0.0
        %2566 = vmatprep.subr.mxu0 0.0
        %2567 = vmatpush1.msra.mxu0 0.0
        %2568 = vmatprep.subr.mxu0 0.0
        %2569 = vmatpush1.msra.mxu0 0.0
        %2570 = vmatprep.subr.mxu0 0.0
        %2571 = vmatpush1.msra.mxu0 0.0
        %2572 = vmatprep.subr.mxu0 0.0
        %2573 = vmatpush1.msra.mxu0 0.0
        %2574 = vmatprep.subr.mxu0 0.0
        %2575 = vmatpush1.msra.mxu0 0.0
        %2576 = vmatprep.subr.mxu0 0.0
        %2577 = vmatpush1.msra.mxu0 0.0
        %2578 = vmatprep.subr.mxu0 0.0
        %2579 = vmatpush1.msra.mxu0 0.0
        %2580 = vmatprep.subr.mxu0 0.0
        %2581 = vmatpush1.msra.mxu0 0.0
        %2582 = vmatprep.subr.mxu0 0.0
        %2583 = vmatpush1.msra.mxu0 0.0
        %2584 = vmatprep.subr.mxu0 0.0
        %2585 = vmatpush1.msra.mxu0 0.0
        %2586 = vmatprep.subr.mxu0 0.0
        %2587 = vmatpush1.msra.mxu0 0.0
        %2588 = vmatprep.subr.mxu0 0.0
        %2589 = vmatpush1.msra.mxu0 0.0
        %2590 = vmatprep.subr.mxu0 0.0
        %2591 = vmatpush1.msra.mxu0 0.0
        %2592 = vmatprep.subr.mxu0 0.0
        %2593 = vmatpush1.msra.mxu0 0.0
        %2594 = vmatprep.subr.mxu0 0.0
        %2595 = vmatpush1.msra.mxu0 0.0
        %2596 = vmatprep.mubr.f32.mxu0 0.0
        %v2597 = vand.u32 %v1793, 4294901760
        %v2598 = vsub.f32 %v1793, %v2597
        %v2599 = vand.u32 %v2598, 4294901760
        %2600 = vmatmul.mubr.f32.gmra.mrb[0].mxu0 %v2599
        %v2601 = vpop.f32.mrb[0].mxu0
        %v2602 = vadd.f32 %v2408, %v2601
        %v2603 = vpop.f32.mrb[0].mxu0
        %2604 = vmatprep.mubr.f32.mxu0 0.0
        %v2605 = vand.u32 %v1794, 4294901760
        %v2606 = vsub.f32 %v1794, %v2605
        %v2607 = vand.u32 %v2606, 4294901760
        %2608 = vmatmul.mubr.f32.gmra.mrb[0].mxu0 %v2607
        %v2609 = vpop.f32.mrb[0].mxu0
        %v2610 = vadd.f32 %v2415, %v2609
        %v2611 = vpop.f32.mrb[0].mxu0
        %2612 = vmatprep.mubr.f32.mxu0 0.0
        %v2613 = vand.u32 %v1795, 4294901760
        %v2614 = vsub.f32 %v1795, %v2613
        %v2615 = vand.u32 %v2614, 4294901760
        %2616 = vmatmul.mubr.f32.gmra.mrb[0].mxu0 %v2615
        %v2617 = vpop.f32.mrb[0].mxu0
        %v2618 = vadd.f32 %v2422, %v2617
        %v2619 = vpop.f32.mrb[0].mxu0
        %2620 = vmatprep.mubr.f32.mxu0 0.0
        %v2621 = vand.u32 %v1796, 4294901760
        %v2622 = vsub.f32 %v1796, %v2621
        %v2623 = vand.u32 %v2622, 4294901760
        %2624 = vmatmul.mubr.f32.gmra.mrb[0].mxu0 %v2623
        %v2625 = vpop.f32.mrb[0].mxu0
        %v2626 = vadd.f32 %v2429, %v2625
        %v2627 = vpop.f32.mrb[0].mxu0
        %2628 = vmatprep.mubr.f32.mxu0 0.0
        %v2629 = vand.u32 %v1797, 4294901760
        %v2630 = vsub.f32 %v1797, %v2629
        %v2631 = vand.u32 %v2630, 4294901760
        %2632 = vmatmul.mubr.f32.gmra.mrb[0].mxu0 %v2631
        %v2633 = vpop.f32.mrb[0].mxu0
        %v2634 = vadd.f32 %v2436, %v2633
        %v2635 = vpop.f32.mrb[0].mxu0
        %2636 = vmatprep.mubr.f32.mxu0 0.0
        %v2637 = vand.u32 %v1798, 4294901760
        %v2638 = vsub.f32 %v1798, %v2637
        %v2639 = vand.u32 %v2638, 4294901760
        %2640 = vmatmul.mubr.f32.gmra.mrb[0].mxu0 %v2639
        %v2641 = vpop.f32.mrb[0].mxu0
        %v2642 = vadd.f32 %v2443, %v2641
        %v2643 = vpop.f32.mrb[0].mxu0
        %2644 = vmatprep.mubr.f32.mxu0 0.0
        %v2645 = vand.u32 %v1799, 4294901760
        %v2646 = vsub.f32 %v1799, %v2645
        %v2647 = vand.u32 %v2646, 4294901760
        %2648 = vmatmul.mubr.f32.gmra.mrb[0].mxu0 %v2647
        %v2649 = vpop.f32.mrb[0].mxu0
        %v2650 = vadd.f32 %v2450, %v2649
        %v2651 = vpop.f32.mrb[0].mxu0
        %2652 = vmatprep.mubr.f32.mxu0 0.0
        %v2653 = vand.u32 %v1800, 4294901760
        %v2654 = vsub.f32 %v1800, %v2653
        %v2655 = vand.u32 %v2654, 4294901760
        %2656 = vmatmul.mubr.f32.gmra.mrb[0].mxu0 %v2655
        %v2657 = vpop.f32.mrb[0].mxu0
        %v2658 = vadd.f32 %v2457, %v2657
        %v2659 = vpop.f32.mrb[0].mxu0
        %2660 = vmatprep.mubr.f32.mxu0 0.0
        %v2661 = vand.u32 %v1801, 4294901760
        %v2662 = vsub.f32 %v1801, %v2661
        %v2663 = vand.u32 %v2662, 4294901760
        %2664 = vmatmul.mubr.f32.gmra.mrb[0].mxu0 %v2663
        %v2665 = vpop.f32.mrb[0].mxu0
        %v2666 = vadd.f32 %v2464, %v2665
        %v2667 = vpop.f32.mrb[0].mxu0
        %2668 = vmatprep.mubr.f32.mxu0 0.0
        %v2669 = vand.u32 %v1802, 4294901760
        %v2670 = vsub.f32 %v1802, %v2669
        %v2671 = vand.u32 %v2670, 4294901760
        %2672 = vmatmul.mubr.f32.gmra.mrb[0].mxu0 %v2671
        %v2673 = vpop.f32.mrb[0].mxu0
        %v2674 = vadd.f32 %v2471, %v2673
        %v2675 = vpop.f32.mrb[0].mxu0
        %2676 = vmatprep.mubr.f32.mxu0 0.0
        %v2677 = vand.u32 %v1803, 4294901760
        %v2678 = vsub.f32 %v1803, %v2677
        %v2679 = vand.u32 %v2678, 4294901760
        %2680 = vmatmul.mubr.f32.gmra.mrb[0].mxu0 %v2679
        %v2681 = vpop.f32.mrb[0].mxu0
        %v2682 = vadd.f32 %v2478, %v2681
        %v2683 = vpop.f32.mrb[0].mxu0
        %2684 = vmatprep.mubr.f32.mxu0 0.0
        %v2685 = vand.u32 %v1804, 4294901760
        %v2686 = vsub.f32 %v1804, %v2685
        %v2687 = vand.u32 %v2686, 4294901760
        %2688 = vmatmul.mubr.f32.gmra.mrb[0].mxu0 %v2687
        %v2689 = vpop.f32.mrb[0].mxu0
        %v2690 = vadd.f32 %v2485, %v2689
        %v2691 = vpop.f32.mrb[0].mxu0
        %2692 = vmatprep.mubr.f32.mxu0 0.0
        %v2693 = vand.u32 %v1805, 4294901760
        %v2694 = vsub.f32 %v1805, %v2693
        %v2695 = vand.u32 %v2694, 4294901760
        %2696 = vmatmul.mubr.f32.gmra.mrb[0].mxu0 %v2695
        %v2697 = vpop.f32.mrb[0].mxu0
        %v2698 = vadd.f32 %v2492, %v2697
        %v2699 = vpop.f32.mrb[0].mxu0
        %2700 = vmatprep.mubr.f32.mxu0 0.0
        %v2701 = vand.u32 %v1806, 4294901760
        %v2702 = vsub.f32 %v1806, %v2701
        %v2703 = vand.u32 %v2702, 4294901760
        %2704 = vmatmul.mubr.f32.gmra.mrb[0].mxu0 %v2703
        %v2705 = vpop.f32.mrb[0].mxu0
        %v2706 = vadd.f32 %v2499, %v2705
        %v2707 = vpop.f32.mrb[0].mxu0
        %2708 = vmatprep.mubr.f32.mxu0 0.0
        %v2709 = vand.u32 %v1807, 4294901760
        %v2710 = vsub.f32 %v1807, %v2709
        %v2711 = vand.u32 %v2710, 4294901760
        %2712 = vmatmul.mubr.f32.gmra.mrb[0].mxu0 %v2711
        %v2713 = vpop.f32.mrb[0].mxu0
        %v2714 = vadd.f32 %v2506, %v2713
        %v2715 = vpop.f32.mrb[0].mxu0
        %2716 = vmatprep.mubr.f32.mxu0 0.0
        %v2717 = vand.u32 %v1808, 4294901760
        %v2718 = vsub.f32 %v1808, %v2717
        %v2719 = vand.u32 %v2718, 4294901760
        %2720 = vmatmul.mubr.f32.gmra.mrb[0].mxu0 %v2719
        %v2721 = vpop.f32.mrb[0].mxu0
        %v2722 = vadd.f32 %v2513, %v2721
        %v2723 = vpop.f32.mrb[0].mxu0
        %2724 = vdwg.mxu0
        %2725 = vmatprep.subr.mxu0 0.0
        %v2726 = vand.u32 %v1777, 4294901760
        %v2727 = vsub.f32 %v1777, %v2726
        %v2728 = vand.u32 %v2727, 4294901760
        %2729 = vmatpush1.msra.mxu0 %v2728
        %2730 = vmatprep.subr.mxu0 0.0
        %v2731 = vand.u32 %v1778, 4294901760
        %v2732 = vsub.f32 %v1778, %v2731
        %v2733 = vand.u32 %v2732, 4294901760
        %2734 = vmatpush1.msra.mxu0 %v2733
        %2735 = vmatprep.subr.mxu0 0.0
        %v2736 = vand.u32 %v1779, 4294901760
        %v2737 = vsub.f32 %v1779, %v2736
        %v2738 = vand.u32 %v2737, 4294901760
        %2739 = vmatpush1.msra.mxu0 %v2738
        %2740 = vmatprep.subr.mxu0 0.0
        %v2741 = vand.u32 %v1780, 4294901760
        %v2742 = vsub.f32 %v1780, %v2741
        %v2743 = vand.u32 %v2742, 4294901760
        %2744 = vmatpush1.msra.mxu0 %v2743
        %2745 = vmatprep.subr.mxu0 0.0
        %v2746 = vand.u32 %v1781, 4294901760
        %v2747 = vsub.f32 %v1781, %v2746
        %v2748 = vand.u32 %v2747, 4294901760
        %2749 = vmatpush1.msra.mxu0 %v2748
        %2750 = vmatprep.subr.mxu0 0.0
        %v2751 = vand.u32 %v1782, 4294901760
        %v2752 = vsub.f32 %v1782, %v2751
        %v2753 = vand.u32 %v2752, 4294901760
        %2754 = vmatpush1.msra.mxu0 %v2753
        %2755 = vmatprep.subr.mxu0 0.0
        %v2756 = vand.u32 %v1783, 4294901760
        %v2757 = vsub.f32 %v1783, %v2756
        %v2758 = vand.u32 %v2757, 4294901760
        %2759 = vmatpush1.msra.mxu0 %v2758
        %2760 = vmatprep.subr.mxu0 0.0
        %v2761 = vand.u32 %v1784, 4294901760
        %v2762 = vsub.f32 %v1784, %v2761
        %v2763 = vand.u32 %v2762, 4294901760
        %2764 = vmatpush1.msra.mxu0 %v2763
        %2765 = vmatprep.subr.mxu0 0.0
        %v2766 = vand.u32 %v1785, 4294901760
        %v2767 = vsub.f32 %v1785, %v2766
        %v2768 = vand.u32 %v2767, 4294901760
        %2769 = vmatpush1.msra.mxu0 %v2768
        %2770 = vmatprep.subr.mxu0 0.0
        %v2771 = vand.u32 %v1786, 4294901760
        %v2772 = vsub.f32 %v1786, %v2771
        %v2773 = vand.u32 %v2772, 4294901760
        %2774 = vmatpush1.msra.mxu0 %v2773
        %2775 = vmatprep.subr.mxu0 0.0
        %v2776 = vand.u32 %v1787, 4294901760
        %v2777 = vsub.f32 %v1787, %v2776
        %v2778 = vand.u32 %v2777, 4294901760
        %2779 = vmatpush1.msra.mxu0 %v2778
        %2780 = vmatprep.subr.mxu0 0.0
        %v2781 = vand.u32 %v1788, 4294901760
        %v2782 = vsub.f32 %v1788, %v2781
        %v2783 = vand.u32 %v2782, 4294901760
        %2784 = vmatpush1.msra.mxu0 %v2783
        %2785 = vmatprep.subr.mxu0 0.0
        %v2786 = vand.u32 %v1789, 4294901760
        %v2787 = vsub.f32 %v1789, %v2786
        %v2788 = vand.u32 %v2787, 4294901760
        %2789 = vmatpush1.msra.mxu0 %v2788
        %2790 = vmatprep.subr.mxu0 0.0
        %v2791 = vand.u32 %v1790, 4294901760
        %v2792 = vsub.f32 %v1790, %v2791
        %v2793 = vand.u32 %v2792, 4294901760
        %2794 = vmatpush1.msra.mxu0 %v2793
        %2795 = vmatprep.subr.mxu0 0.0
        %v2796 = vand.u32 %v1791, 4294901760
        %v2797 = vsub.f32 %v1791, %v2796
        %v2798 = vand.u32 %v2797, 4294901760
        %2799 = vmatpush1.msra.mxu0 %v2798
        %2800 = vmatprep.subr.mxu0 0.0
        %v2801 = vand.u32 %v1792, 4294901760
        %v2802 = vsub.f32 %v1792, %v2801
        %v2803 = vand.u32 %v2802, 4294901760
        %2804 = vmatpush1.msra.mxu0 %v2803
        %2805 = vmatprep.subr.mxu0 0.0
        %2806 = vmatpush1.msra.mxu0 0.0
        %2807 = vmatprep.subr.mxu0 0.0
        %2808 = vmatpush1.msra.mxu0 0.0
        %2809 = vmatprep.subr.mxu0 0.0
        %2810 = vmatpush1.msra.mxu0 0.0
        %2811 = vmatprep.subr.mxu0 0.0
        %2812 = vmatpush1.msra.mxu0 0.0
        %2813 = vmatprep.subr.mxu0 0.0
        %2814 = vmatpush1.msra.mxu0 0.0
        %2815 = vmatprep.subr.mxu0 0.0
        %2816 = vmatpush1.msra.mxu0 0.0
        %2817 = vmatprep.subr.mxu0 0.0
        %2818 = vmatpush1.msra.mxu0 0.0
        %2819 = vmatprep.subr.mxu0 0.0
        %2820 = vmatpush1.msra.mxu0 0.0
        %2821 = vmatprep.subr.mxu0 0.0
        %2822 = vmatpush1.msra.mxu0 0.0
        %2823 = vmatprep.subr.mxu0 0.0
        %2824 = vmatpush1.msra.mxu0 0.0
        %2825 = vmatprep.subr.mxu0 0.0
        %2826 = vmatpush1.msra.mxu0 0.0
        %2827 = vmatprep.subr.mxu0 0.0
        %2828 = vmatpush1.msra.mxu0 0.0
        %2829 = vmatprep.subr.mxu0 0.0
        %2830 = vmatpush1.msra.mxu0 0.0
        %2831 = vmatprep.subr.mxu0 0.0
        %2832 = vmatpush1.msra.mxu0 0.0
        %2833 = vmatprep.subr.mxu0 0.0
        %2834 = vmatpush1.msra.mxu0 0.0
        %2835 = vmatprep.subr.mxu0 0.0
        %2836 = vmatpush1.msra.mxu0 0.0
        %2837 = vmatprep.mubr.f32.mxu0 0.0
        %v2838 = vand.u32 %v1793, 4294901760
        %2839 = vmatmul.mubr.f32.gmra.mrb[0].mxu0 %v2838
        %v2840 = vpop.f32.mrb[0].mxu0
        %v2841 = vadd.f32 %v2602, %v2840
        %v2842 = vpop.f32.mrb[0].mxu0
        %2843 = vmatprep.mubr.f32.mxu0 0.0
        %v2844 = vand.u32 %v1794, 4294901760
        %2845 = vmatmul.mubr.f32.gmra.mrb[0].mxu0 %v2844
        %v2846 = vpop.f32.mrb[0].mxu0
        %v2847 = vadd.f32 %v2610, %v2846
        %v2848 = vpop.f32.mrb[0].mxu0
        %2849 = vmatprep.mubr.f32.mxu0 0.0
        %v2850 = vand.u32 %v1795, 4294901760
        %2851 = vmatmul.mubr.f32.gmra.mrb[0].mxu0 %v2850
        %v2852 = vpop.f32.mrb[0].mxu0
        %v2853 = vadd.f32 %v2618, %v2852
        %v2854 = vpop.f32.mrb[0].mxu0
        %2855 = vmatprep.mubr.f32.mxu0 0.0
        %v2856 = vand.u32 %v1796, 4294901760
        %2857 = vmatmul.mubr.f32.gmra.mrb[0].mxu0 %v2856
        %v2858 = vpop.f32.mrb[0].mxu0
        %v2859 = vadd.f32 %v2626, %v2858
        %v2860 = vpop.f32.mrb[0].mxu0
        %2861 = vmatprep.mubr.f32.mxu0 0.0
        %v2862 = vand.u32 %v1797, 4294901760
        %2863 = vmatmul.mubr.f32.gmra.mrb[0].mxu0 %v2862
        %v2864 = vpop.f32.mrb[0].mxu0
        %v2865 = vadd.f32 %v2634, %v2864
        %v2866 = vpop.f32.mrb[0].mxu0
        %2867 = vmatprep.mubr.f32.mxu0 0.0
        %v2868 = vand.u32 %v1798, 4294901760
        %2869 = vmatmul.mubr.f32.gmra.mrb[0].mxu0 %v2868
        %v2870 = vpop.f32.mrb[0].mxu0
        %v2871 = vadd.f32 %v2642, %v2870
        %v2872 = vpop.f32.mrb[0].mxu0
        %2873 = vmatprep.mubr.f32.mxu0 0.0
        %v2874 = vand.u32 %v1799, 4294901760
        %2875 = vmatmul.mubr.f32.gmra.mrb[0].mxu0 %v2874
        %v2876 = vpop.f32.mrb[0].mxu0
        %v2877 = vadd.f32 %v2650, %v2876
        %v2878 = vpop.f32.mrb[0].mxu0
        %2879 = vmatprep.mubr.f32.mxu0 0.0
        %v2880 = vand.u32 %v1800, 4294901760
        %2881 = vmatmul.mubr.f32.gmra.mrb[0].mxu0 %v2880
        %v2882 = vpop.f32.mrb[0].mxu0
        %v2883 = vadd.f32 %v2658, %v2882
        %v2884 = vpop.f32.mrb[0].mxu0
        %2885 = vmatprep.mubr.f32.mxu0 0.0
        %v2886 = vand.u32 %v1801, 4294901760
        %2887 = vmatmul.mubr.f32.gmra.mrb[0].mxu0 %v2886
        %v2888 = vpop.f32.mrb[0].mxu0
        %v2889 = vadd.f32 %v2666, %v2888
        %v2890 = vpop.f32.mrb[0].mxu0
        %2891 = vmatprep.mubr.f32.mxu0 0.0
        %v2892 = vand.u32 %v1802, 4294901760
        %2893 = vmatmul.mubr.f32.gmra.mrb[0].mxu0 %v2892
        %v2894 = vpop.f32.mrb[0].mxu0
        %v2895 = vadd.f32 %v2674, %v2894
        %v2896 = vpop.f32.mrb[0].mxu0
        %2897 = vmatprep.mubr.f32.mxu0 0.0
        %v2898 = vand.u32 %v1803, 4294901760
        %2899 = vmatmul.mubr.f32.gmra.mrb[0].mxu0 %v2898
        %v2900 = vpop.f32.mrb[0].mxu0
        %v2901 = vadd.f32 %v2682, %v2900
        %v2902 = vpop.f32.mrb[0].mxu0
        %2903 = vmatprep.mubr.f32.mxu0 0.0
        %v2904 = vand.u32 %v1804, 4294901760
        %2905 = vmatmul.mubr.f32.gmra.mrb[0].mxu0 %v2904
        %v2906 = vpop.f32.mrb[0].mxu0
        %v2907 = vadd.f32 %v2690, %v2906
        %v2908 = vpop.f32.mrb[0].mxu0
        %2909 = vmatprep.mubr.f32.mxu0 0.0
        %v2910 = vand.u32 %v1805, 4294901760
        %2911 = vmatmul.mubr.f32.gmra.mrb[0].mxu0 %v2910
        %v2912 = vpop.f32.mrb[0].mxu0
        %v2913 = vadd.f32 %v2698, %v2912
        %v2914 = vpop.f32.mrb[0].mxu0
        %2915 = vmatprep.mubr.f32.mxu0 0.0
        %v2916 = vand.u32 %v1806, 4294901760
        %2917 = vmatmul.mubr.f32.gmra.mrb[0].mxu0 %v2916
        %v2918 = vpop.f32.mrb[0].mxu0
        %v2919 = vadd.f32 %v2706, %v2918
        %v2920 = vpop.f32.mrb[0].mxu0
        %2921 = vmatprep.mubr.f32.mxu0 0.0
        %v2922 = vand.u32 %v1807, 4294901760
        %2923 = vmatmul.mubr.f32.gmra.mrb[0].mxu0 %v2922
        %v2924 = vpop.f32.mrb[0].mxu0
        %v2925 = vadd.f32 %v2714, %v2924
        %v2926 = vpop.f32.mrb[0].mxu0
        %2927 = vmatprep.mubr.f32.mxu0 0.0
        %v2928 = vand.u32 %v1808, 4294901760
        %2929 = vmatmul.mubr.f32.gmra.mrb[0].mxu0 %v2928
        %v2930 = vpop.f32.mrb[0].mxu0
        %v2931 = vadd.f32 %v2722, %v2930
        %v2932 = vpop.f32.mrb[0].mxu0
        %2933 = vdwg.mxu0
        %2934 = vmatprep.subr.mxu0 0.0
        %v2935 = vand.u32 %v1777, 4294901760
        %2936 = vmatpush1.msra.mxu0 %v2935
        %2937 = vmatprep.subr.mxu0 0.0
        %v2938 = vand.u32 %v1778, 4294901760
        %2939 = vmatpush1.msra.mxu0 %v2938
        %2940 = vmatprep.subr.mxu0 0.0
        %v2941 = vand.u32 %v1779, 4294901760
        %2942 = vmatpush1.msra.mxu0 %v2941
        %2943 = vmatprep.subr.mxu0 0.0
        %v2944 = vand.u32 %v1780, 4294901760
        %2945 = vmatpush1.msra.mxu0 %v2944
        %2946 = vmatprep.subr.mxu0 0.0
        %v2947 = vand.u32 %v1781, 4294901760
        %2948 = vmatpush1.msra.mxu0 %v2947
        %2949 = vmatprep.subr.mxu0 0.0
        %v2950 = vand.u32 %v1782, 4294901760
        %2951 = vmatpush1.msra.mxu0 %v2950
        %2952 = vmatprep.subr.mxu0 0.0
        %v2953 = vand.u32 %v1783, 4294901760
        %2954 = vmatpush1.msra.mxu0 %v2953
        %2955 = vmatprep.subr.mxu0 0.0
        %v2956 = vand.u32 %v1784, 4294901760
        %2957 = vmatpush1.msra.mxu0 %v2956
        %2958 = vmatprep.subr.mxu0 0.0
        %v2959 = vand.u32 %v1785, 4294901760
        %2960 = vmatpush1.msra.mxu0 %v2959
        %2961 = vmatprep.subr.mxu0 0.0
        %v2962 = vand.u32 %v1786, 4294901760
        %2963 = vmatpush1.msra.mxu0 %v2962
        %2964 = vmatprep.subr.mxu0 0.0
        %v2965 = vand.u32 %v1787, 4294901760
        %2966 = vmatpush1.msra.mxu0 %v2965
        %2967 = vmatprep.subr.mxu0 0.0
        %v2968 = vand.u32 %v1788, 4294901760
        %2969 = vmatpush1.msra.mxu0 %v2968
        %2970 = vmatprep.subr.mxu0 0.0
        %v2971 = vand.u32 %v1789, 4294901760
        %2972 = vmatpush1.msra.mxu0 %v2971
        %2973 = vmatprep.subr.mxu0 0.0
        %v2974 = vand.u32 %v1790, 4294901760
        %2975 = vmatpush1.msra.mxu0 %v2974
        %2976 = vmatprep.subr.mxu0 0.0
        %v2977 = vand.u32 %v1791, 4294901760
        %2978 = vmatpush1.msra.mxu0 %v2977
        %2979 = vmatprep.subr.mxu0 0.0
        %v2980 = vand.u32 %v1792, 4294901760
        %2981 = vmatpush1.msra.mxu0 %v2980
        %2982 = vmatprep.subr.mxu0 0.0
        %2983 = vmatpush1.msra.mxu0 0.0
        %2984 = vmatprep.subr.mxu0 0.0
        %2985 = vmatpush1.msra.mxu0 0.0
        %2986 = vmatprep.subr.mxu0 0.0
        %2987 = vmatpush1.msra.mxu0 0.0
        %2988 = vmatprep.subr.mxu0 0.0
        %2989 = vmatpush1.msra.mxu0 0.0
        %2990 = vmatprep.subr.mxu0 0.0
        %2991 = vmatpush1.msra.mxu0 0.0
        %2992 = vmatprep.subr.mxu0 0.0
        %2993 = vmatpush1.msra.mxu0 0.0
        %2994 = vmatprep.subr.mxu0 0.0
        %2995 = vmatpush1.msra.mxu0 0.0
        %2996 = vmatprep.subr.mxu0 0.0
        %2997 = vmatpush1.msra.mxu0 0.0
        %2998 = vmatprep.subr.mxu0 0.0
        %2999 = vmatpush1.msra.mxu0 0.0
        %3000 = vmatprep.subr.mxu0 0.0
        %3001 = vmatpush1.msra.mxu0 0.0
        %3002 = vmatprep.subr.mxu0 0.0
        %3003 = vmatpush1.msra.mxu0 0.0
        %3004 = vmatprep.subr.mxu0 0.0
        %3005 = vmatpush1.msra.mxu0 0.0
        %3006 = vmatprep.subr.mxu0 0.0
        %3007 = vmatpush1.msra.mxu0 0.0
        %3008 = vmatprep.subr.mxu0 0.0
        %3009 = vmatpush1.msra.mxu0 0.0
        %3010 = vmatprep.subr.mxu0 0.0
        %3011 = vmatpush1.msra.mxu0 0.0
        %3012 = vmatprep.subr.mxu0 0.0
        %3013 = vmatpush1.msra.mxu0 0.0
        %3014 = vmatprep.mubr.f32.mxu0 0.0
        %v3015 = vand.u32 %v1793, 4294901760
        %3016 = vmatmul.mubr.f32.gmra.mrb[0].mxu0 %v3015
        %v3017 = vpop.f32.mrb[0].mxu0
        %v3018 = vadd.f32 %v2841, %v3017
        %v3019 = vpop.f32.mrb[0].mxu0
        %3020 = vmatprep.mubr.f32.mxu0 0.0
        %v3021 = vand.u32 %v1794, 4294901760
        %3022 = vmatmul.mubr.f32.gmra.mrb[0].mxu0 %v3021
        %v3023 = vpop.f32.mrb[0].mxu0
        %v3024 = vadd.f32 %v2847, %v3023
        %v3025 = vpop.f32.mrb[0].mxu0
        %3026 = vmatprep.mubr.f32.mxu0 0.0
        %v3027 = vand.u32 %v1795, 4294901760
        %3028 = vmatmul.mubr.f32.gmra.mrb[0].mxu0 %v3027
        %v3029 = vpop.f32.mrb[0].mxu0
        %v3030 = vadd.f32 %v2853, %v3029
        %v3031 = vpop.f32.mrb[0].mxu0
        %3032 = vmatprep.mubr.f32.mxu0 0.0
        %v3033 = vand.u32 %v1796, 4294901760
        %3034 = vmatmul.mubr.f32.gmra.mrb[0].mxu0 %v3033
        %v3035 = vpop.f32.mrb[0].mxu0
        %v3036 = vadd.f32 %v2859, %v3035
        %v3037 = vpop.f32.mrb[0].mxu0
        %3038 = vmatprep.mubr.f32.mxu0 0.0
        %v3039 = vand.u32 %v1797, 4294901760
        %3040 = vmatmul.mubr.f32.gmra.mrb[0].mxu0 %v3039
        %v3041 = vpop.f32.mrb[0].mxu0
        %v3042 = vadd.f32 %v2865, %v3041
        %v3043 = vpop.f32.mrb[0].mxu0
        %3044 = vmatprep.mubr.f32.mxu0 0.0
        %v3045 = vand.u32 %v1798, 4294901760
        %3046 = vmatmul.mubr.f32.gmra.mrb[0].mxu0 %v3045
        %v3047 = vpop.f32.mrb[0].mxu0
        %v3048 = vadd.f32 %v2871, %v3047
        %v3049 = vpop.f32.mrb[0].mxu0
        %3050 = vmatprep.mubr.f32.mxu0 0.0
        %v3051 = vand.u32 %v1799, 4294901760
        %3052 = vmatmul.mubr.f32.gmra.mrb[0].mxu0 %v3051
        %v3053 = vpop.f32.mrb[0].mxu0
        %v3054 = vadd.f32 %v2877, %v3053
        %v3055 = vpop.f32.mrb[0].mxu0
        %3056 = vmatprep.mubr.f32.mxu0 0.0
        %v3057 = vand.u32 %v1800, 4294901760
        %3058 = vmatmul.mubr.f32.gmra.mrb[0].mxu0 %v3057
        %v3059 = vpop.f32.mrb[0].mxu0
        %v3060 = vadd.f32 %v2883, %v3059
        %v3061 = vpop.f32.mrb[0].mxu0
        %3062 = vmatprep.mubr.f32.mxu0 0.0
        %v3063 = vand.u32 %v1801, 4294901760
        %3064 = vmatmul.mubr.f32.gmra.mrb[0].mxu0 %v3063
        %v3065 = vpop.f32.mrb[0].mxu0
        %v3066 = vadd.f32 %v2889, %v3065
        %v3067 = vpop.f32.mrb[0].mxu0
        %3068 = vmatprep.mubr.f32.mxu0 0.0
        %v3069 = vand.u32 %v1802, 4294901760
        %3070 = vmatmul.mubr.f32.gmra.mrb[0].mxu0 %v3069
        %v3071 = vpop.f32.mrb[0].mxu0
        %v3072 = vadd.f32 %v2895, %v3071
        %v3073 = vpop.f32.mrb[0].mxu0
        %3074 = vmatprep.mubr.f32.mxu0 0.0
        %v3075 = vand.u32 %v1803, 4294901760
        %3076 = vmatmul.mubr.f32.gmra.mrb[0].mxu0 %v3075
        %v3077 = vpop.f32.mrb[0].mxu0
        %v3078 = vadd.f32 %v2901, %v3077
        %v3079 = vpop.f32.mrb[0].mxu0
        %3080 = vmatprep.mubr.f32.mxu0 0.0
        %v3081 = vand.u32 %v1804, 4294901760
        %3082 = vmatmul.mubr.f32.gmra.mrb[0].mxu0 %v3081
        %v3083 = vpop.f32.mrb[0].mxu0
        %v3084 = vadd.f32 %v2907, %v3083
        %v3085 = vpop.f32.mrb[0].mxu0
        %3086 = vmatprep.mubr.f32.mxu0 0.0
        %v3087 = vand.u32 %v1805, 4294901760
        %3088 = vmatmul.mubr.f32.gmra.mrb[0].mxu0 %v3087
        %v3089 = vpop.f32.mrb[0].mxu0
        %v3090 = vadd.f32 %v2913, %v3089
        %v3091 = vpop.f32.mrb[0].mxu0
        %3092 = vmatprep.mubr.f32.mxu0 0.0
        %v3093 = vand.u32 %v1806, 4294901760
        %3094 = vmatmul.mubr.f32.gmra.mrb[0].mxu0 %v3093
        %v3095 = vpop.f32.mrb[0].mxu0
        %v3096 = vadd.f32 %v2919, %v3095
        %v3097 = vpop.f32.mrb[0].mxu0
        %3098 = vmatprep.mubr.f32.mxu0 0.0
        %v3099 = vand.u32 %v1807, 4294901760
        %3100 = vmatmul.mubr.f32.gmra.mrb[0].mxu0 %v3099
        %v3101 = vpop.f32.mrb[0].mxu0
        %v3102 = vadd.f32 %v2925, %v3101
        %v3103 = vpop.f32.mrb[0].mxu0
        %3104 = vmatprep.mubr.f32.mxu0 0.0
        %v3105 = vand.u32 %v1808, 4294901760
        %3106 = vmatmul.mubr.f32.gmra.mrb[0].mxu0 %v3105
        %v3107 = vpop.f32.mrb[0].mxu0
        %v3108 = vadd.f32 %v2931, %v3107
        %v3109 = vpop.f32.mrb[0].mxu0
        %3110 = vdwg.mxu0
        %v3111 = vmax.f32 %v3018, 0.0
        %v3112 = vmax.f32 %v3024, 0.0
        %v3113 = vmax.f32 %v3030, 0.0
        %v3114 = vmax.f32 %v3036, 0.0
        %v3115 = vmax.f32 %v3042, 0.0
        %v3116 = vmax.f32 %v3048, 0.0
        %v3117 = vmax.f32 %v3054, 0.0
        %v3118 = vmax.f32 %v3060, 0.0
        %v3119 = vmax.f32 %v3066, 0.0
        %v3120 = vmax.f32 %v3072, 0.0
        %v3121 = vmax.f32 %v3078, 0.0
        %v3122 = vmax.f32 %v3084, 0.0
        %v3123 = vmax.f32 %v3090, 0.0
        %v3124 = vmax.f32 %v3096, 0.0
        %v3125 = vmax.f32 %v3102, 0.0
        %v3126 = vmax.f32 %v3108, 0.0
        %v3127 = vld [vmem:[%s514] sm:$0xff]
        %v3128 = vld [vmem:[%s520] sm:$0xff]
        %3129 = vmatprep.subr.mxu0 0.0
        %v3130 = vand.u32 %v3111, 4294901760
        %3131 = vmatpush1.msra.mxu0 %v3130
        %3132 = vmatprep.subr.mxu0 0.0
        %v3133 = vand.u32 %v3112, 4294901760
        %3134 = vmatpush1.msra.mxu0 %v3133
        %3135 = vmatprep.subr.mxu0 0.0
        %v3136 = vand.u32 %v3113, 4294901760
        %3137 = vmatpush1.msra.mxu0 %v3136
        %3138 = vmatprep.subr.mxu0 0.0
        %v3139 = vand.u32 %v3114, 4294901760
        %3140 = vmatpush1.msra.mxu0 %v3139
        %3141 = vmatprep.subr.mxu0 0.0
        %v3142 = vand.u32 %v3115, 4294901760
        %3143 = vmatpush1.msra.mxu0 %v3142
        %3144 = vmatprep.subr.mxu0 0.0
        %v3145 = vand.u32 %v3116, 4294901760
        %3146 = vmatpush1.msra.mxu0 %v3145
        %3147 = vmatprep.subr.mxu0 0.0
        %v3148 = vand.u32 %v3117, 4294901760
        %3149 = vmatpush1.msra.mxu0 %v3148
        %3150 = vmatprep.subr.mxu0 0.0
        %v3151 = vand.u32 %v3118, 4294901760
        %3152 = vmatpush1.msra.mxu0 %v3151
        %3153 = vmatprep.subr.mxu0 0.0
        %v3154 = vand.u32 %v3119, 4294901760
        %3155 = vmatpush1.msra.mxu0 %v3154
        %3156 = vmatprep.subr.mxu0 0.0
        %v3157 = vand.u32 %v3120, 4294901760
        %3158 = vmatpush1.msra.mxu0 %v3157
        %3159 = vmatprep.subr.mxu0 0.0
        %v3160 = vand.u32 %v3121, 4294901760
        %3161 = vmatpush1.msra.mxu0 %v3160
        %3162 = vmatprep.subr.mxu0 0.0
        %v3163 = vand.u32 %v3122, 4294901760
        %3164 = vmatpush1.msra.mxu0 %v3163
        %3165 = vmatprep.subr.mxu0 0.0
        %v3166 = vand.u32 %v3123, 4294901760
        %3167 = vmatpush1.msra.mxu0 %v3166
        %3168 = vmatprep.subr.mxu0 0.0
        %v3169 = vand.u32 %v3124, 4294901760
        %3170 = vmatpush1.msra.mxu0 %v3169
        %3171 = vmatprep.subr.mxu0 0.0
        %v3172 = vand.u32 %v3125, 4294901760
        %3173 = vmatpush1.msra.mxu0 %v3172
        %3174 = vmatprep.subr.mxu0 0.0
        %v3175 = vand.u32 %v3126, 4294901760
        %3176 = vmatpush1.msra.mxu0 %v3175
        %3177 = vmatprep.subr.mxu0 0.0
        %3178 = vmatpush1.msra.mxu0 0.0
        %3179 = vmatprep.subr.mxu0 0.0
        %3180 = vmatpush1.msra.mxu0 0.0
        %3181 = vmatprep.subr.mxu0 0.0
        %3182 = vmatpush1.msra.mxu0 0.0
        %3183 = vmatprep.subr.mxu0 0.0
        %3184 = vmatpush1.msra.mxu0 0.0
        %3185 = vmatprep.subr.mxu0 0.0
        %3186 = vmatpush1.msra.mxu0 0.0
        %3187 = vmatprep.subr.mxu0 0.0
        %3188 = vmatpush1.msra.mxu0 0.0
        %3189 = vmatprep.subr.mxu0 0.0
        %3190 = vmatpush1.msra.mxu0 0.0
        %3191 = vmatprep.subr.mxu0 0.0
        %3192 = vmatpush1.msra.mxu0 0.0
        %3193 = vmatprep.subr.mxu0 0.0
        %3194 = vmatpush1.msra.mxu0 0.0
        %3195 = vmatprep.subr.mxu0 0.0
        %3196 = vmatpush1.msra.mxu0 0.0
        %3197 = vmatprep.subr.mxu0 0.0
        %3198 = vmatpush1.msra.mxu0 0.0
        %3199 = vmatprep.subr.mxu0 0.0
        %3200 = vmatpush1.msra.mxu0 0.0
        %3201 = vmatprep.subr.mxu0 0.0
        %3202 = vmatpush1.msra.mxu0 0.0
        %3203 = vmatprep.subr.mxu0 0.0
        %3204 = vmatpush1.msra.mxu0 0.0
        %3205 = vmatprep.subr.mxu0 0.0
        %3206 = vmatpush1.msra.mxu0 0.0
        %3207 = vmatprep.subr.mxu0 0.0
        %3208 = vmatpush1.msra.mxu0 0.0
        %3209 = vmatprep.mubr.f32.mxu0 0.0
        %v3210 = vand.u32 %v3127, 4294901760
        %v3211 = vsub.f32 %v3127, %v3210
        %v3212 = vand.u32 %v3211, 4294901760
        %v3213 = vsub.f32 %v3211, %v3212
        %v3214 = vand.u32 %v3213, 4294901760
        %3215 = vmatmul.mubr.f32.gmra.mrb[0].mxu0 %v3214
        %v3216 = vpop.f32.mrb[0].mxu0
        %v3217 = vadd.f32 %v3128, %v3216
        %v3218 = vpop.f32.mrb[0].mxu0
        %3219 = vdwg.mxu0
        %3220 = vmatprep.subr.mxu0 0.0
        %v3221 = vand.u32 %v3111, 4294901760
        %v3222 = vsub.f32 %v3111, %v3221
        %v3223 = vand.u32 %v3222, 4294901760
        %v3224 = vsub.f32 %v3222, %v3223
        %v3225 = vand.u32 %v3224, 4294901760
        %3226 = vmatpush1.msra.mxu0 %v3225
        %3227 = vmatprep.subr.mxu0 0.0
        %v3228 = vand.u32 %v3112, 4294901760
        %v3229 = vsub.f32 %v3112, %v3228
        %v3230 = vand.u32 %v3229, 4294901760
        %v3231 = vsub.f32 %v3229, %v3230
        %v3232 = vand.u32 %v3231, 4294901760
        %3233 = vmatpush1.msra.mxu0 %v3232
        %3234 = vmatprep.subr.mxu0 0.0
        %v3235 = vand.u32 %v3113, 4294901760
        %v3236 = vsub.f32 %v3113, %v3235
        %v3237 = vand.u32 %v3236, 4294901760
        %v3238 = vsub.f32 %v3236, %v3237
        %v3239 = vand.u32 %v3238, 4294901760
        %3240 = vmatpush1.msra.mxu0 %v3239
        %3241 = vmatprep.subr.mxu0 0.0
        %v3242 = vand.u32 %v3114, 4294901760
        %v3243 = vsub.f32 %v3114, %v3242
        %v3244 = vand.u32 %v3243, 4294901760
        %v3245 = vsub.f32 %v3243, %v3244
        %v3246 = vand.u32 %v3245, 4294901760
        %3247 = vmatpush1.msra.mxu0 %v3246
        %3248 = vmatprep.subr.mxu0 0.0
        %v3249 = vand.u32 %v3115, 4294901760
        %v3250 = vsub.f32 %v3115, %v3249
        %v3251 = vand.u32 %v3250, 4294901760
        %v3252 = vsub.f32 %v3250, %v3251
        %v3253 = vand.u32 %v3252, 4294901760
        %3254 = vmatpush1.msra.mxu0 %v3253
        %3255 = vmatprep.subr.mxu0 0.0
        %v3256 = vand.u32 %v3116, 4294901760
        %v3257 = vsub.f32 %v3116, %v3256
        %v3258 = vand.u32 %v3257, 4294901760
        %v3259 = vsub.f32 %v3257, %v3258
        %v3260 = vand.u32 %v3259, 4294901760
        %3261 = vmatpush1.msra.mxu0 %v3260
        %3262 = vmatprep.subr.mxu0 0.0
        %v3263 = vand.u32 %v3117, 4294901760
        %v3264 = vsub.f32 %v3117, %v3263
        %v3265 = vand.u32 %v3264, 4294901760
        %v3266 = vsub.f32 %v3264, %v3265
        %v3267 = vand.u32 %v3266, 4294901760
        %3268 = vmatpush1.msra.mxu0 %v3267
        %3269 = vmatprep.subr.mxu0 0.0
        %v3270 = vand.u32 %v3118, 4294901760
        %v3271 = vsub.f32 %v3118, %v3270
        %v3272 = vand.u32 %v3271, 4294901760
        %v3273 = vsub.f32 %v3271, %v3272
        %v3274 = vand.u32 %v3273, 4294901760
        %3275 = vmatpush1.msra.mxu0 %v3274
        %3276 = vmatprep.subr.mxu0 0.0
        %v3277 = vand.u32 %v3119, 4294901760
        %v3278 = vsub.f32 %v3119, %v3277
        %v3279 = vand.u32 %v3278, 4294901760
        %v3280 = vsub.f32 %v3278, %v3279
        %v3281 = vand.u32 %v3280, 4294901760
        %3282 = vmatpush1.msra.mxu0 %v3281
        %3283 = vmatprep.subr.mxu0 0.0
        %v3284 = vand.u32 %v3120, 4294901760
        %v3285 = vsub.f32 %v3120, %v3284
        %v3286 = vand.u32 %v3285, 4294901760
        %v3287 = vsub.f32 %v3285, %v3286
        %v3288 = vand.u32 %v3287, 4294901760
        %3289 = vmatpush1.msra.mxu0 %v3288
        %3290 = vmatprep.subr.mxu0 0.0
        %v3291 = vand.u32 %v3121, 4294901760
        %v3292 = vsub.f32 %v3121, %v3291
        %v3293 = vand.u32 %v3292, 4294901760
        %v3294 = vsub.f32 %v3292, %v3293
        %v3295 = vand.u32 %v3294, 4294901760
        %3296 = vmatpush1.msra.mxu0 %v3295
        %3297 = vmatprep.subr.mxu0 0.0
        %v3298 = vand.u32 %v3122, 4294901760
        %v3299 = vsub.f32 %v3122, %v3298
        %v3300 = vand.u32 %v3299, 4294901760
        %v3301 = vsub.f32 %v3299, %v3300
        %v3302 = vand.u32 %v3301, 4294901760
        %3303 = vmatpush1.msra.mxu0 %v3302
        %3304 = vmatprep.subr.mxu0 0.0
        %v3305 = vand.u32 %v3123, 4294901760
        %v3306 = vsub.f32 %v3123, %v3305
        %v3307 = vand.u32 %v3306, 4294901760
        %v3308 = vsub.f32 %v3306, %v3307
        %v3309 = vand.u32 %v3308, 4294901760
        %3310 = vmatpush1.msra.mxu0 %v3309
        %3311 = vmatprep.subr.mxu0 0.0
        %v3312 = vand.u32 %v3124, 4294901760
        %v3313 = vsub.f32 %v3124, %v3312
        %v3314 = vand.u32 %v3313, 4294901760
        %v3315 = vsub.f32 %v3313, %v3314
        %v3316 = vand.u32 %v3315, 4294901760
        %3317 = vmatpush1.msra.mxu0 %v3316
        %3318 = vmatprep.subr.mxu0 0.0
        %v3319 = vand.u32 %v3125, 4294901760
        %v3320 = vsub.f32 %v3125, %v3319
        %v3321 = vand.u32 %v3320, 4294901760
        %v3322 = vsub.f32 %v3320, %v3321
        %v3323 = vand.u32 %v3322, 4294901760
        %3324 = vmatpush1.msra.mxu0 %v3323
        %3325 = vmatprep.subr.mxu0 0.0
        %v3326 = vand.u32 %v3126, 4294901760
        %v3327 = vsub.f32 %v3126, %v3326
        %v3328 = vand.u32 %v3327, 4294901760
        %v3329 = vsub.f32 %v3327, %v3328
        %v3330 = vand.u32 %v3329, 4294901760
        %3331 = vmatpush1.msra.mxu0 %v3330
        %3332 = vmatprep.subr.mxu0 0.0
        %3333 = vmatpush1.msra.mxu0 0.0
        %3334 = vmatprep.subr.mxu0 0.0
        %3335 = vmatpush1.msra.mxu0 0.0
        %3336 = vmatprep.subr.mxu0 0.0
        %3337 = vmatpush1.msra.mxu0 0.0
        %3338 = vmatprep.subr.mxu0 0.0
        %3339 = vmatpush1.msra.mxu0 0.0
        %3340 = vmatprep.subr.mxu0 0.0
        %3341 = vmatpush1.msra.mxu0 0.0
        %3342 = vmatprep.subr.mxu0 0.0
        %3343 = vmatpush1.msra.mxu0 0.0
        %3344 = vmatprep.subr.mxu0 0.0
        %3345 = vmatpush1.msra.mxu0 0.0
        %3346 = vmatprep.subr.mxu0 0.0
        %3347 = vmatpush1.msra.mxu0 0.0
        %3348 = vmatprep.subr.mxu0 0.0
        %3349 = vmatpush1.msra.mxu0 0.0
        %3350 = vmatprep.subr.mxu0 0.0
        %3351 = vmatpush1.msra.mxu0 0.0
        %3352 = vmatprep.subr.mxu0 0.0
        %3353 = vmatpush1.msra.mxu0 0.0
        %3354 = vmatprep.subr.mxu0 0.0
        %3355 = vmatpush1.msra.mxu0 0.0
        %3356 = vmatprep.subr.mxu0 0.0
        %3357 = vmatpush1.msra.mxu0 0.0
        %3358 = vmatprep.subr.mxu0 0.0
        %3359 = vmatpush1.msra.mxu0 0.0
        %3360 = vmatprep.subr.mxu0 0.0
        %3361 = vmatpush1.msra.mxu0 0.0
        %3362 = vmatprep.subr.mxu0 0.0
        %3363 = vmatpush1.msra.mxu0 0.0
        %3364 = vmatprep.mubr.f32.mxu0 0.0
        %v3365 = vand.u32 %v3127, 4294901760
        %3366 = vmatmul.mubr.f32.gmra.mrb[0].mxu0 %v3365
        %v3367 = vpop.f32.mrb[0].mxu0
        %v3368 = vadd.f32 %v3217, %v3367
        %v3369 = vpop.f32.mrb[0].mxu0
        %3370 = vdwg.mxu0
        %3371 = vmatprep.subr.mxu0 0.0
        %v3372 = vand.u32 %v3111, 4294901760
        %v3373 = vsub.f32 %v3111, %v3372
        %3374 = vmatpush1.msra.mxu0 %v3373
        %3375 = vmatprep.subr.mxu0 0.0
        %v3376 = vand.u32 %v3112, 4294901760
        %v3377 = vsub.f32 %v3112, %v3376
        %3378 = vmatpush1.msra.mxu0 %v3377
        %3379 = vmatprep.subr.mxu0 0.0
        %v3380 = vand.u32 %v3113, 4294901760
        %v3381 = vsub.f32 %v3113, %v3380
        %3382 = vmatpush1.msra.mxu0 %v3381
        %3383 = vmatprep.subr.mxu0 0.0
        %v3384 = vand.u32 %v3114, 4294901760
        %v3385 = vsub.f32 %v3114, %v3384
        %3386 = vmatpush1.msra.mxu0 %v3385
        %3387 = vmatprep.subr.mxu0 0.0
        %v3388 = vand.u32 %v3115, 4294901760
        %v3389 = vsub.f32 %v3115, %v3388
        %3390 = vmatpush1.msra.mxu0 %v3389
        %3391 = vmatprep.subr.mxu0 0.0
        %v3392 = vand.u32 %v3116, 4294901760
        %v3393 = vsub.f32 %v3116, %v3392
        %3394 = vmatpush1.msra.mxu0 %v3393
        %3395 = vmatprep.subr.mxu0 0.0
        %v3396 = vand.u32 %v3117, 4294901760
        %v3397 = vsub.f32 %v3117, %v3396
        %3398 = vmatpush1.msra.mxu0 %v3397
        %3399 = vmatprep.subr.mxu0 0.0
        %v3400 = vand.u32 %v3118, 4294901760
        %v3401 = vsub.f32 %v3118, %v3400
        %3402 = vmatpush1.msra.mxu0 %v3401
        %3403 = vmatprep.subr.mxu0 0.0
        %v3404 = vand.u32 %v3119, 4294901760
        %v3405 = vsub.f32 %v3119, %v3404
        %3406 = vmatpush1.msra.mxu0 %v3405
        %3407 = vmatprep.subr.mxu0 0.0
        %v3408 = vand.u32 %v3120, 4294901760
        %v3409 = vsub.f32 %v3120, %v3408
        %3410 = vmatpush1.msra.mxu0 %v3409
        %3411 = vmatprep.subr.mxu0 0.0
        %v3412 = vand.u32 %v3121, 4294901760
        %v3413 = vsub.f32 %v3121, %v3412
        %3414 = vmatpush1.msra.mxu0 %v3413
        %3415 = vmatprep.subr.mxu0 0.0
        %v3416 = vand.u32 %v3122, 4294901760
        %v3417 = vsub.f32 %v3122, %v3416
        %3418 = vmatpush1.msra.mxu0 %v3417
        %3419 = vmatprep.subr.mxu0 0.0
        %v3420 = vand.u32 %v3123, 4294901760
        %v3421 = vsub.f32 %v3123, %v3420
        %3422 = vmatpush1.msra.mxu0 %v3421
        %3423 = vmatprep.subr.mxu0 0.0
        %v3424 = vand.u32 %v3124, 4294901760
        %v3425 = vsub.f32 %v3124, %v3424
        %3426 = vmatpush1.msra.mxu0 %v3425
        %3427 = vmatprep.subr.mxu0 0.0
        %v3428 = vand.u32 %v3125, 4294901760
        %v3429 = vsub.f32 %v3125, %v3428
        %3430 = vmatpush1.msra.mxu0 %v3429
        %3431 = vmatprep.subr.mxu0 0.0
        %v3432 = vand.u32 %v3126, 4294901760
        %v3433 = vsub.f32 %v3126, %v3432
        %3434 = vmatpush1.msra.mxu0 %v3433
        %3435 = vmatprep.subr.mxu0 0.0
        %3436 = vmatpush1.msra.mxu0 0.0
        %3437 = vmatprep.subr.mxu0 0.0
        %3438 = vmatpush1.msra.mxu0 0.0
        %3439 = vmatprep.subr.mxu0 0.0
        %3440 = vmatpush1.msra.mxu0 0.0
        %3441 = vmatprep.subr.mxu0 0.0
        %3442 = vmatpush1.msra.mxu0 0.0
        %3443 = vmatprep.subr.mxu0 0.0
        %3444 = vmatpush1.msra.mxu0 0.0
        %3445 = vmatprep.subr.mxu0 0.0
        %3446 = vmatpush1.msra.mxu0 0.0
        %3447 = vmatprep.subr.mxu0 0.0
        %3448 = vmatpush1.msra.mxu0 0.0
        %3449 = vmatprep.subr.mxu0 0.0
        %3450 = vmatpush1.msra.mxu0 0.0
        %3451 = vmatprep.subr.mxu0 0.0
        %3452 = vmatpush1.msra.mxu0 0.0
        %3453 = vmatprep.subr.mxu0 0.0
        %3454 = vmatpush1.msra.mxu0 0.0
        %3455 = vmatprep.subr.mxu0 0.0
        %3456 = vmatpush1.msra.mxu0 0.0
        %3457 = vmatprep.subr.mxu0 0.0
        %3458 = vmatpush1.msra.mxu0 0.0
        %3459 = vmatprep.subr.mxu0 0.0
        %3460 = vmatpush1.msra.mxu0 0.0
        %3461 = vmatprep.subr.mxu0 0.0
        %3462 = vmatpush1.msra.mxu0 0.0
        %3463 = vmatprep.subr.mxu0 0.0
        %3464 = vmatpush1.msra.mxu0 0.0
        %3465 = vmatprep.subr.mxu0 0.0
        %3466 = vmatpush1.msra.mxu0 0.0
        %3467 = vmatprep.mubr.f32.mxu0 0.0
        %v3468 = vand.u32 %v3127, 4294901760
        %v3469 = vsub.f32 %v3127, %v3468
        %3470 = vmatmul.mubr.f32.gmra.mrb[0].mxu0 %v3469
        %v3471 = vpop.f32.mrb[0].mxu0
        %v3472 = vadd.f32 %v3368, %v3471
        %v3473 = vpop.f32.mrb[0].mxu0
        %3474 = vdwg.mxu0
        %3475 = vmatprep.subr.mxu0 0.0
        %v3476 = vand.u32 %v3111, 4294901760
        %3477 = vmatpush1.msra.mxu0 %v3476
        %3478 = vmatprep.subr.mxu0 0.0
        %v3479 = vand.u32 %v3112, 4294901760
        %3480 = vmatpush1.msra.mxu0 %v3479
        %3481 = vmatprep.subr.mxu0 0.0
        %v3482 = vand.u32 %v3113, 4294901760
        %3483 = vmatpush1.msra.mxu0 %v3482
        %3484 = vmatprep.subr.mxu0 0.0
        %v3485 = vand.u32 %v3114, 4294901760
        %3486 = vmatpush1.msra.mxu0 %v3485
        %3487 = vmatprep.subr.mxu0 0.0
        %v3488 = vand.u32 %v3115, 4294901760
        %3489 = vmatpush1.msra.mxu0 %v3488
        %3490 = vmatprep.subr.mxu0 0.0
        %v3491 = vand.u32 %v3116, 4294901760
        %3492 = vmatpush1.msra.mxu0 %v3491
        %3493 = vmatprep.subr.mxu0 0.0
        %v3494 = vand.u32 %v3117, 4294901760
        %3495 = vmatpush1.msra.mxu0 %v3494
        %3496 = vmatprep.subr.mxu0 0.0
        %v3497 = vand.u32 %v3118, 4294901760
        %3498 = vmatpush1.msra.mxu0 %v3497
        %3499 = vmatprep.subr.mxu0 0.0
        %v3500 = vand.u32 %v3119, 4294901760
        %3501 = vmatpush1.msra.mxu0 %v3500
        %3502 = vmatprep.subr.mxu0 0.0
        %v3503 = vand.u32 %v3120, 4294901760
        %3504 = vmatpush1.msra.mxu0 %v3503
        %3505 = vmatprep.subr.mxu0 0.0
        %v3506 = vand.u32 %v3121, 4294901760
        %3507 = vmatpush1.msra.mxu0 %v3506
        %3508 = vmatprep.subr.mxu0 0.0
        %v3509 = vand.u32 %v3122, 4294901760
        %3510 = vmatpush1.msra.mxu0 %v3509
        %3511 = vmatprep.subr.mxu0 0.0
        %v3512 = vand.u32 %v3123, 4294901760
        %3513 = vmatpush1.msra.mxu0 %v3512
        %3514 = vmatprep.subr.mxu0 0.0
        %v3515 = vand.u32 %v3124, 4294901760
        %3516 = vmatpush1.msra.mxu0 %v3515
        %3517 = vmatprep.subr.mxu0 0.0
        %v3518 = vand.u32 %v3125, 4294901760
        %3519 = vmatpush1.msra.mxu0 %v3518
        %3520 = vmatprep.subr.mxu0 0.0
        %v3521 = vand.u32 %v3126, 4294901760
        %3522 = vmatpush1.msra.mxu0 %v3521
        %3523 = vmatprep.subr.mxu0 0.0
        %3524 = vmatpush1.msra.mxu0 0.0
        %3525 = vmatprep.subr.mxu0 0.0
        %3526 = vmatpush1.msra.mxu0 0.0
        %3527 = vmatprep.subr.mxu0 0.0
        %3528 = vmatpush1.msra.mxu0 0.0
        %3529 = vmatprep.subr.mxu0 0.0
        %3530 = vmatpush1.msra.mxu0 0.0
        %3531 = vmatprep.subr.mxu0 0.0
        %3532 = vmatpush1.msra.mxu0 0.0
        %3533 = vmatprep.subr.mxu0 0.0
        %3534 = vmatpush1.msra.mxu0 0.0
        %3535 = vmatprep.subr.mxu0 0.0
        %3536 = vmatpush1.msra.mxu0 0.0
        %3537 = vmatprep.subr.mxu0 0.0
        %3538 = vmatpush1.msra.mxu0 0.0
        %3539 = vmatprep.subr.mxu0 0.0
        %3540 = vmatpush1.msra.mxu0 0.0
        %3541 = vmatprep.subr.mxu0 0.0
        %3542 = vmatpush1.msra.mxu0 0.0
        %3543 = vmatprep.subr.mxu0 0.0
        %3544 = vmatpush1.msra.mxu0 0.0
        %3545 = vmatprep.subr.mxu0 0.0
        %3546 = vmatpush1.msra.mxu0 0.0
        %3547 = vmatprep.subr.mxu0 0.0
        %3548 = vmatpush1.msra.mxu0 0.0
        %3549 = vmatprep.subr.mxu0 0.0
        %3550 = vmatpush1.msra.mxu0 0.0
        %3551 = vmatprep.subr.mxu0 0.0
        %3552 = vmatpush1.msra.mxu0 0.0
        %3553 = vmatprep.subr.mxu0 0.0
        %3554 = vmatpush1.msra.mxu0 0.0
        %3555 = vmatprep.mubr.f32.mxu0 0.0
        %v3556 = vand.u32 %v3127, 4294901760
        %v3557 = vsub.f32 %v3127, %v3556
        %v3558 = vand.u32 %v3557, 4294901760
        %3559 = vmatmul.mubr.f32.gmra.mrb[0].mxu0 %v3558
        %v3560 = vpop.f32.mrb[0].mxu0
        %v3561 = vadd.f32 %v3472, %v3560
        %v3562 = vpop.f32.mrb[0].mxu0
        %3563 = vdwg.mxu0
        %3564 = vmatprep.subr.mxu0 0.0
        %v3565 = vand.u32 %v3111, 4294901760
        %v3566 = vsub.f32 %v3111, %v3565
        %v3567 = vand.u32 %v3566, 4294901760
        %3568 = vmatpush1.msra.mxu0 %v3567
        %3569 = vmatprep.subr.mxu0 0.0
        %v3570 = vand.u32 %v3112, 4294901760
        %v3571 = vsub.f32 %v3112, %v3570
        %v3572 = vand.u32 %v3571, 4294901760
        %3573 = vmatpush1.msra.mxu0 %v3572
        %3574 = vmatprep.subr.mxu0 0.0
        %v3575 = vand.u32 %v3113, 4294901760
        %v3576 = vsub.f32 %v3113, %v3575
        %v3577 = vand.u32 %v3576, 4294901760
        %3578 = vmatpush1.msra.mxu0 %v3577
        %3579 = vmatprep.subr.mxu0 0.0
        %v3580 = vand.u32 %v3114, 4294901760
        %v3581 = vsub.f32 %v3114, %v3580
        %v3582 = vand.u32 %v3581, 4294901760
        %3583 = vmatpush1.msra.mxu0 %v3582
        %3584 = vmatprep.subr.mxu0 0.0
        %v3585 = vand.u32 %v3115, 4294901760
        %v3586 = vsub.f32 %v3115, %v3585
        %v3587 = vand.u32 %v3586, 4294901760
        %3588 = vmatpush1.msra.mxu0 %v3587
        %3589 = vmatprep.subr.mxu0 0.0
        %v3590 = vand.u32 %v3116, 4294901760
        %v3591 = vsub.f32 %v3116, %v3590
        %v3592 = vand.u32 %v3591, 4294901760
        %3593 = vmatpush1.msra.mxu0 %v3592
        %3594 = vmatprep.subr.mxu0 0.0
        %v3595 = vand.u32 %v3117, 4294901760
        %v3596 = vsub.f32 %v3117, %v3595
        %v3597 = vand.u32 %v3596, 4294901760
        %3598 = vmatpush1.msra.mxu0 %v3597
        %3599 = vmatprep.subr.mxu0 0.0
        %v3600 = vand.u32 %v3118, 4294901760
        %v3601 = vsub.f32 %v3118, %v3600
        %v3602 = vand.u32 %v3601, 4294901760
        %3603 = vmatpush1.msra.mxu0 %v3602
        %3604 = vmatprep.subr.mxu0 0.0
        %v3605 = vand.u32 %v3119, 4294901760
        %v3606 = vsub.f32 %v3119, %v3605
        %v3607 = vand.u32 %v3606, 4294901760
        %3608 = vmatpush1.msra.mxu0 %v3607
        %3609 = vmatprep.subr.mxu0 0.0
        %v3610 = vand.u32 %v3120, 4294901760
        %v3611 = vsub.f32 %v3120, %v3610
        %v3612 = vand.u32 %v3611, 4294901760
        %3613 = vmatpush1.msra.mxu0 %v3612
        %3614 = vmatprep.subr.mxu0 0.0
        %v3615 = vand.u32 %v3121, 4294901760
        %v3616 = vsub.f32 %v3121, %v3615
        %v3617 = vand.u32 %v3616, 4294901760
        %3618 = vmatpush1.msra.mxu0 %v3617
        %3619 = vmatprep.subr.mxu0 0.0
        %v3620 = vand.u32 %v3122, 4294901760
        %v3621 = vsub.f32 %v3122, %v3620
        %v3622 = vand.u32 %v3621, 4294901760
        %3623 = vmatpush1.msra.mxu0 %v3622
        %3624 = vmatprep.subr.mxu0 0.0
        %v3625 = vand.u32 %v3123, 4294901760
        %v3626 = vsub.f32 %v3123, %v3625
        %v3627 = vand.u32 %v3626, 4294901760
        %3628 = vmatpush1.msra.mxu0 %v3627
        %3629 = vmatprep.subr.mxu0 0.0
        %v3630 = vand.u32 %v3124, 4294901760
        %v3631 = vsub.f32 %v3124, %v3630
        %v3632 = vand.u32 %v3631, 4294901760
        %3633 = vmatpush1.msra.mxu0 %v3632
        %3634 = vmatprep.subr.mxu0 0.0
        %v3635 = vand.u32 %v3125, 4294901760
        %v3636 = vsub.f32 %v3125, %v3635
        %v3637 = vand.u32 %v3636, 4294901760
        %3638 = vmatpush1.msra.mxu0 %v3637
        %3639 = vmatprep.subr.mxu0 0.0
        %v3640 = vand.u32 %v3126, 4294901760
        %v3641 = vsub.f32 %v3126, %v3640
        %v3642 = vand.u32 %v3641, 4294901760
        %3643 = vmatpush1.msra.mxu0 %v3642
        %3644 = vmatprep.subr.mxu0 0.0
        %3645 = vmatpush1.msra.mxu0 0.0
        %3646 = vmatprep.subr.mxu0 0.0
        %3647 = vmatpush1.msra.mxu0 0.0
        %3648 = vmatprep.subr.mxu0 0.0
        %3649 = vmatpush1.msra.mxu0 0.0
        %3650 = vmatprep.subr.mxu0 0.0
        %3651 = vmatpush1.msra.mxu0 0.0
        %3652 = vmatprep.subr.mxu0 0.0
        %3653 = vmatpush1.msra.mxu0 0.0
        %3654 = vmatprep.subr.mxu0 0.0
        %3655 = vmatpush1.msra.mxu0 0.0
        %3656 = vmatprep.subr.mxu0 0.0
        %3657 = vmatpush1.msra.mxu0 0.0
        %3658 = vmatprep.subr.mxu0 0.0
        %3659 = vmatpush1.msra.mxu0 0.0
        %3660 = vmatprep.subr.mxu0 0.0
        %3661 = vmatpush1.msra.mxu0 0.0
        %3662 = vmatprep.subr.mxu0 0.0
        %3663 = vmatpush1.msra.mxu0 0.0
        %3664 = vmatprep.subr.mxu0 0.0
        %3665 = vmatpush1.msra.mxu0 0.0
        %3666 = vmatprep.subr.mxu0 0.0
        %3667 = vmatpush1.msra.mxu0 0.0
        %3668 = vmatprep.subr.mxu0 0.0
        %3669 = vmatpush1.msra.mxu0 0.0
        %3670 = vmatprep.subr.mxu0 0.0
        %3671 = vmatpush1.msra.mxu0 0.0
        %3672 = vmatprep.subr.mxu0 0.0
        %3673 = vmatpush1.msra.mxu0 0.0
        %3674 = vmatprep.subr.mxu0 0.0
        %3675 = vmatpush1.msra.mxu0 0.0
        %3676 = vmatprep.mubr.f32.mxu0 0.0
        %v3677 = vand.u32 %v3127, 4294901760
        %3678 = vmatmul.mubr.f32.gmra.mrb[0].mxu0 %v3677
        %v3679 = vpop.f32.mrb[0].mxu0
        %v3680 = vadd.f32 %v3561, %v3679
        %v3681 = vpop.f32.mrb[0].mxu0
        %3682 = vdwg.mxu0
        %3683 = vmatprep.subr.mxu0 0.0
        %v3684 = vand.u32 %v3111, 4294901760
        %3685 = vmatpush1.msra.mxu0 %v3684
        %3686 = vmatprep.subr.mxu0 0.0
        %v3687 = vand.u32 %v3112, 4294901760
        %3688 = vmatpush1.msra.mxu0 %v3687
        %3689 = vmatprep.subr.mxu0 0.0
        %v3690 = vand.u32 %v3113, 4294901760
        %3691 = vmatpush1.msra.mxu0 %v3690
        %3692 = vmatprep.subr.mxu0 0.0
        %v3693 = vand.u32 %v3114, 4294901760
        %3694 = vmatpush1.msra.mxu0 %v3693
        %3695 = vmatprep.subr.mxu0 0.0
        %v3696 = vand.u32 %v3115, 4294901760
        %3697 = vmatpush1.msra.mxu0 %v3696
        %3698 = vmatprep.subr.mxu0 0.0
        %v3699 = vand.u32 %v3116, 4294901760
        %3700 = vmatpush1.msra.mxu0 %v3699
        %3701 = vmatprep.subr.mxu0 0.0
        %v3702 = vand.u32 %v3117, 4294901760
        %3703 = vmatpush1.msra.mxu0 %v3702
        %3704 = vmatprep.subr.mxu0 0.0
        %v3705 = vand.u32 %v3118, 4294901760
        %3706 = vmatpush1.msra.mxu0 %v3705
        %3707 = vmatprep.subr.mxu0 0.0
        %v3708 = vand.u32 %v3119, 4294901760
        %3709 = vmatpush1.msra.mxu0 %v3708
        %3710 = vmatprep.subr.mxu0 0.0
        %v3711 = vand.u32 %v3120, 4294901760
        %3712 = vmatpush1.msra.mxu0 %v3711
        %3713 = vmatprep.subr.mxu0 0.0
        %v3714 = vand.u32 %v3121, 4294901760
        %3715 = vmatpush1.msra.mxu0 %v3714
        %3716 = vmatprep.subr.mxu0 0.0
        %v3717 = vand.u32 %v3122, 4294901760
        %3718 = vmatpush1.msra.mxu0 %v3717
        %3719 = vmatprep.subr.mxu0 0.0
        %v3720 = vand.u32 %v3123, 4294901760
        %3721 = vmatpush1.msra.mxu0 %v3720
        %3722 = vmatprep.subr.mxu0 0.0
        %v3723 = vand.u32 %v3124, 4294901760
        %3724 = vmatpush1.msra.mxu0 %v3723
        %3725 = vmatprep.subr.mxu0 0.0
        %v3726 = vand.u32 %v3125, 4294901760
        %3727 = vmatpush1.msra.mxu0 %v3726
        %3728 = vmatprep.subr.mxu0 0.0
        %v3729 = vand.u32 %v3126, 4294901760
        %3730 = vmatpush1.msra.mxu0 %v3729
        %3731 = vmatprep.subr.mxu0 0.0
        %3732 = vmatpush1.msra.mxu0 0.0
        %3733 = vmatprep.subr.mxu0 0.0
        %3734 = vmatpush1.msra.mxu0 0.0
        %3735 = vmatprep.subr.mxu0 0.0
        %3736 = vmatpush1.msra.mxu0 0.0
        %3737 = vmatprep.subr.mxu0 0.0
        %3738 = vmatpush1.msra.mxu0 0.0
        %3739 = vmatprep.subr.mxu0 0.0
        %3740 = vmatpush1.msra.mxu0 0.0
        %3741 = vmatprep.subr.mxu0 0.0
        %3742 = vmatpush1.msra.mxu0 0.0
        %3743 = vmatprep.subr.mxu0 0.0
        %3744 = vmatpush1.msra.mxu0 0.0
        %3745 = vmatprep.subr.mxu0 0.0
        %3746 = vmatpush1.msra.mxu0 0.0
        %3747 = vmatprep.subr.mxu0 0.0
        %3748 = vmatpush1.msra.mxu0 0.0
        %3749 = vmatprep.subr.mxu0 0.0
        %3750 = vmatpush1.msra.mxu0 0.0
        %3751 = vmatprep.subr.mxu0 0.0
        %3752 = vmatpush1.msra.mxu0 0.0
        %3753 = vmatprep.subr.mxu0 0.0
        %3754 = vmatpush1.msra.mxu0 0.0
        %3755 = vmatprep.subr.mxu0 0.0
        %3756 = vmatpush1.msra.mxu0 0.0
        %3757 = vmatprep.subr.mxu0 0.0
        %3758 = vmatpush1.msra.mxu0 0.0
        %3759 = vmatprep.subr.mxu0 0.0
        %3760 = vmatpush1.msra.mxu0 0.0
        %3761 = vmatprep.subr.mxu0 0.0
        %3762 = vmatpush1.msra.mxu0 0.0
        %3763 = vmatprep.mubr.f32.mxu0 0.0
        %v3764 = vand.u32 %v3127, 4294901760
        %3765 = vmatmul.mubr.f32.gmra.mrb[0].mxu0 %v3764
        %v3766 = vpop.f32.mrb[0].mxu0
        %v3767 = vadd.f32 %v3680, %v3766
        %v3768 = vpop.f32.mrb[0].mxu0
        %3769 = vdwg.mxu0
        %v3770 = vxor.u32 %v3767, 2147483648
        %v3771 = vmul.f32 %v3770, 1.442695
        %v3772 = vpow.pop %v3771
        %v3773 = vadd.f32 %v3772, 1.0
        %v3774 = vrcp.pop %v3773
        %v3775 = vmul.f32 1.0, %v3774
        %v3777 = vrot.slane %v3775, 4
        %v3779 = vsub.f32 %v3775, %v3777
        %v3780 = vxor.u32 %v3779, 2147483648
        %v3781 = vmul.f32 %v3780, 1.442695
        %v3782 = vpow.pop %v3781
        %v3783 = vadd.f32 %v3782, 1.0
        %v3784 = vrcp.pop %v3783
        %v3785 = vmul.f32 1.0, %v3784
        %3787 = vset.pattern.permute.xlu0 0
        %3788 = vperm.xlu0 %3787, %v3785
        %v3789 = vpop.permute.xlu0 %3788
        %v3791 = vunpack.c.l.s4 839922192
        %v3792 = vunpack.c.0.s8 %v3791
        %v3793 = vlaneseq
        %v3794 = vshrl.u32 %v3793, 7
        %v3795 = vsub.s32 %v3792, %v3794
        %v3796 = vrot.slane %v3789, %v3795
        %v3798 = vmul.f32 %v532, %v3796
        %v3800 = vcombine.high %v3798, %v3798
        %v3802 = vsel %vm562, %v3798, 0.0
        %v3803 = vrot.slane %v3802, 4
        %v3804 = vadd.f32 %v3802, %v3803
        %v3805 = vrot.slane %v3804, 2
        %v3806 = vadd.f32 %v3804, %v3805
        %v3807 = vrot.slane %v3806, 1
        %v3808 = vadd.f32 %v3806, %v3807
        %v3809 = vsel %vm562, %v3800, 0.0
        %v3810 = vrot.slane %v3809, 4
        %v3811 = vadd.f32 %v3809, %v3810
        %v3812 = vrot.slane %v3811, 2
        %v3813 = vadd.f32 %v3811, %v3812
        %v3814 = vrot.slane %v3813, 1
        %v3815 = vadd.f32 %v3813, %v3814
        %v3818 = vcombine.low %v3808, %v3815
        %v3820 = vmul.f32 %v533, %v3818
        %v3821 = vadd.f32 %v3820, 0.0
        %s3822 = scalar_lea.vmem %s406, 8 [#allocation2]
        %v3823 = vld [vmem:[%s3822] sm:$0x77]
        %v3825 = vcombine.high %v3823, %v3823
        %v3827 = vsel %vm537, %v3823, 0.0
        %v3828 = vrot.slane %v3827, 4
        %v3829 = vadd.f32 %v3827, %v3828
        %v3830 = vrot.slane %v3829, 2
        %v3831 = vadd.f32 %v3829, %v3830
        %v3832 = vrot.slane %v3831, 1
        %v3833 = vadd.f32 %v3831, %v3832
        %v3834 = vsel %vm537, %v3825, 0.0
        %v3835 = vrot.slane %v3834, 4
        %v3836 = vadd.f32 %v3834, %v3835
        %v3837 = vrot.slane %v3836, 2
        %v3838 = vadd.f32 %v3836, %v3837
        %v3839 = vrot.slane %v3838, 1
        %v3840 = vadd.f32 %v3838, %v3839
        %v3843 = vcombine.low %v3833, %v3840
        %v3845 = vmul.f32 %v532, %v3843
        %v3847 = vcombine.high %v3845, %v3845
        %v3849 = vsub.f32 %v3833, %v3845
        %v3850 = vsub.f32 %v3840, %v3847
        %v3851 = vsel %vm562, %v3845, 0.0
        %v3852 = vsel %vm562, %v3847, 0.0
        %v3853 = vadd.f32 %v3851, %v3852
        %3854 = vadd.xlane.f32.xlu0 %v3853
        %v3855 = vpop.xlane.xlu0 %3854
        %v3856 = vmul.f32 %v3855, 0.00390625
        %v3857 = vadd.f32 %v3833, %v3840
        %3858 = vadd.xlane.f32.xlu0 %v3857
        %v3859 = vpop.xlane.xlu0 %3858
        %v3860 = vmul.f32 %v3859, 0.00390625
        %v3861 = vsub.f32 %v3860, %v3856
        %v3862 = vsel %vm562, %v3845, -inf
        %v3863 = vsel %vm562, %v3847, -inf
        %v3864 = vmax.f32 %v3862, %v3863
        %3865 = vmax.xlane.f32.xlu0 %v3864
        %v3866 = vpop.xlane.xlu0 %3865
        %v3867 = vsel %vm562, %v3849, -inf
        %v3868 = vsel %vm562, %v3850, -inf
        %v3869 = vmax.f32 %v3867, %v3868
        %3870 = vmax.xlane.f32.xlu0 %v3869
        %v3871 = vpop.xlane.xlu0 %3870
        %v3873 = vrot.slane %v3866, 4
        %v3876 = vrot.slane %v3871, 4
        %v3878 = vsel %vm562, %v3856, %v3873
        %v3879 = vsel %vm562, %v3861, %v3876
        %s3880 = scalar_lea.vmem %s487, 128
        %v3881 = vld [vmem:[%s3880] sm:$0xff]
        %v3882 = vld [vmem:[%s3880 + $0x8] sm:$0xff]
        %v3883 = vld [vmem:[%s3880 + $0x10] sm:$0xff]
        %v3884 = vld [vmem:[%s3880 + $0x18] sm:$0xff]
        %v3885 = vld [vmem:[%s3880 + $0x20] sm:$0xff]
        %v3886 = vld [vmem:[%s3880 + $0x28] sm:$0xff]
        %v3887 = vld [vmem:[%s3880 + $0x30] sm:$0xff]
        %v3888 = vld [vmem:[%s3880 + $0x38] sm:$0xff]
        %v3889 = vld [vmem:[%s3880 + $0x40] sm:$0xff]
        %v3890 = vld [vmem:[%s3880 + $0x48] sm:$0xff]
        %v3891 = vld [vmem:[%s3880 + $0x50] sm:$0xff]
        %v3892 = vld [vmem:[%s3880 + $0x58] sm:$0xff]
        %v3893 = vld [vmem:[%s3880 + $0x60] sm:$0xff]
        %v3894 = vld [vmem:[%s3880 + $0x68] sm:$0xff]
        %v3895 = vld [vmem:[%s3880 + $0x70] sm:$0xff]
        %v3896 = vld [vmem:[%s3880 + $0x78] sm:$0xff]
        %s3897 = scalar_lea.vmem %s494, 128
        %v3898 = vld [vmem:[%s3897] sm:$0xff]
        %v3899 = vld [vmem:[%s3897 + $0x8] sm:$0xff]
        %v3900 = vld [vmem:[%s3897 + $0x10] sm:$0xff]
        %v3901 = vld [vmem:[%s3897 + $0x18] sm:$0xff]
        %v3902 = vld [vmem:[%s3897 + $0x20] sm:$0xff]
        %v3903 = vld [vmem:[%s3897 + $0x28] sm:$0xff]
        %v3904 = vld [vmem:[%s3897 + $0x30] sm:$0xff]
        %v3905 = vld [vmem:[%s3897 + $0x38] sm:$0xff]
        %v3906 = vld [vmem:[%s3897 + $0x40] sm:$0xff]
        %v3907 = vld [vmem:[%s3897 + $0x48] sm:$0xff]
        %v3908 = vld [vmem:[%s3897 + $0x50] sm:$0xff]
        %v3909 = vld [vmem:[%s3897 + $0x58] sm:$0xff]
        %v3910 = vld [vmem:[%s3897 + $0x60] sm:$0xff]
        %v3911 = vld [vmem:[%s3897 + $0x68] sm:$0xff]
        %v3912 = vld [vmem:[%s3897 + $0x70] sm:$0xff]
        %v3913 = vld [vmem:[%s3897 + $0x78] sm:$0xff]
        %v3915 = vsel %vm624, %v3881, 0
        %v3918 = vsel %vm624, %v3882, 0
        %v3921 = vsel %vm624, %v3883, 0
        %v3924 = vsel %vm624, %v3884, 0
        %v3927 = vsel %vm624, %v3885, 0
        %v3930 = vsel %vm624, %v3886, 0
        %v3933 = vsel %vm624, %v3887, 0
        %v3936 = vsel %vm624, %v3888, 0
        %v3939 = vsel %vm624, %v3889, 0
        %v3942 = vsel %vm624, %v3890, 0
        %v3945 = vsel %vm624, %v3891, 0
        %v3948 = vsel %vm624, %v3892, 0
        %v3951 = vsel %vm624, %v3893, 0
        %v3954 = vsel %vm624, %v3894, 0
        %v3957 = vsel %vm624, %v3895, 0
        %v3960 = vsel %vm624, %v3896, 0
        %3962 = vmatprep.subr.mxu0 0.0
        %v3963 = vand.u32 %v3878, 4294901760
        %3964 = vmatpush1.msra.mxu0 %v3963
        %3965 = vmatprep.subr.mxu0 0.0
        %v3966 = vand.u32 %v3879, 4294901760
        %3967 = vmatpush1.msra.mxu0 %v3966
        %3968 = vmatprep.subr.mxu0 0.0
        %3969 = vmatpush1.msra.mxu0 0.0
        %3970 = vmatprep.subr.mxu0 0.0
        %3971 = vmatpush1.msra.mxu0 0.0
        %3972 = vmatprep.subr.mxu0 0.0
        %3973 = vmatpush1.msra.mxu0 0.0
        %3974 = vmatprep.subr.mxu0 0.0
        %3975 = vmatpush1.msra.mxu0 0.0
        %3976 = vmatprep.subr.mxu0 0.0
        %3977 = vmatpush1.msra.mxu0 0.0
        %3978 = vmatprep.subr.mxu0 0.0
        %3979 = vmatpush1.msra.mxu0 0.0
        %3980 = vmatprep.subr.mxu0 0.0
        %3981 = vmatpush1.msra.mxu0 0.0
        %3982 = vmatprep.subr.mxu0 0.0
        %3983 = vmatpush1.msra.mxu0 0.0
        %3984 = vmatprep.subr.mxu0 0.0
        %3985 = vmatpush1.msra.mxu0 0.0
        %3986 = vmatprep.subr.mxu0 0.0
        %3987 = vmatpush1.msra.mxu0 0.0
        %3988 = vmatprep.subr.mxu0 0.0
        %3989 = vmatpush1.msra.mxu0 0.0
        %3990 = vmatprep.subr.mxu0 0.0
        %3991 = vmatpush1.msra.mxu0 0.0
        %3992 = vmatprep.subr.mxu0 0.0
        %3993 = vmatpush1.msra.mxu0 0.0
        %3994 = vmatprep.subr.mxu0 0.0
        %3995 = vmatpush1.msra.mxu0 0.0
        %3996 = vmatprep.subr.mxu0 0.0
        %3997 = vmatpush1.msra.mxu0 0.0
        %3998 = vmatprep.subr.mxu0 0.0
        %3999 = vmatpush1.msra.mxu0 0.0
        %4000 = vmatprep.subr.mxu0 0.0
        %4001 = vmatpush1.msra.mxu0 0.0
        %4002 = vmatprep.subr.mxu0 0.0
        %4003 = vmatpush1.msra.mxu0 0.0
        %4004 = vmatprep.subr.mxu0 0.0
        %4005 = vmatpush1.msra.mxu0 0.0
        %4006 = vmatprep.subr.mxu0 0.0
        %4007 = vmatpush1.msra.mxu0 0.0
        %4008 = vmatprep.subr.mxu0 0.0
        %4009 = vmatpush1.msra.mxu0 0.0
        %4010 = vmatprep.subr.mxu0 0.0
        %4011 = vmatpush1.msra.mxu0 0.0
        %4012 = vmatprep.subr.mxu0 0.0
        %4013 = vmatpush1.msra.mxu0 0.0
        %4014 = vmatprep.subr.mxu0 0.0
        %4015 = vmatpush1.msra.mxu0 0.0
        %4016 = vmatprep.subr.mxu0 0.0
        %4017 = vmatpush1.msra.mxu0 0.0
        %4018 = vmatprep.subr.mxu0 0.0
        %4019 = vmatpush1.msra.mxu0 0.0
        %4020 = vmatprep.subr.mxu0 0.0
        %4021 = vmatpush1.msra.mxu0 0.0
        %4022 = vmatprep.subr.mxu0 0.0
        %4023 = vmatpush1.msra.mxu0 0.0
        %4024 = vmatprep.subr.mxu0 0.0
        %4025 = vmatpush1.msra.mxu0 0.0
        %4026 = vmatprep.subr.mxu0 0.0
        %4027 = vmatpush1.msra.mxu0 0.0
        %4028 = vmatprep.mubr.f32.mxu0 0.0
        %v4029 = vand.u32 %v3915, 4294901760
        %v4030 = vsub.f32 %v3915, %v4029
        %v4031 = vand.u32 %v4030, 4294901760
        %v4032 = vsub.f32 %v4030, %v4031
        %v4033 = vand.u32 %v4032, 4294901760
        %4034 = vmatmul.mubr.f32.gmra.mrb[0].mxu0 %v4033
        %v4035 = vpop.f32.mrb[0].mxu0
        %v4036 = vadd.f32 %v3898, %v4035
        %v4037 = vpop.f32.mrb[0].mxu0
        %4038 = vmatprep.mubr.f32.mxu0 0.0
        %v4039 = vand.u32 %v3918, 4294901760
        %v4040 = vsub.f32 %v3918, %v4039
        %v4041 = vand.u32 %v4040, 4294901760
        %v4042 = vsub.f32 %v4040, %v4041
        %v4043 = vand.u32 %v4042, 4294901760
        %4044 = vmatmul.mubr.f32.gmra.mrb[0].mxu0 %v4043
        %v4045 = vpop.f32.mrb[0].mxu0
        %v4046 = vadd.f32 %v3899, %v4045
        %v4047 = vpop.f32.mrb[0].mxu0
        %4048 = vmatprep.mubr.f32.mxu0 0.0
        %v4049 = vand.u32 %v3921, 4294901760
        %v4050 = vsub.f32 %v3921, %v4049
        %v4051 = vand.u32 %v4050, 4294901760
        %v4052 = vsub.f32 %v4050, %v4051
        %v4053 = vand.u32 %v4052, 4294901760
        %4054 = vmatmul.mubr.f32.gmra.mrb[0].mxu0 %v4053
        %v4055 = vpop.f32.mrb[0].mxu0
        %v4056 = vadd.f32 %v3900, %v4055
        %v4057 = vpop.f32.mrb[0].mxu0
        %4058 = vmatprep.mubr.f32.mxu0 0.0
        %v4059 = vand.u32 %v3924, 4294901760
        %v4060 = vsub.f32 %v3924, %v4059
        %v4061 = vand.u32 %v4060, 4294901760
        %v4062 = vsub.f32 %v4060, %v4061
        %v4063 = vand.u32 %v4062, 4294901760
        %4064 = vmatmul.mubr.f32.gmra.mrb[0].mxu0 %v4063
        %v4065 = vpop.f32.mrb[0].mxu0
        %v4066 = vadd.f32 %v3901, %v4065
        %v4067 = vpop.f32.mrb[0].mxu0
        %4068 = vmatprep.mubr.f32.mxu0 0.0
        %v4069 = vand.u32 %v3927, 4294901760
        %v4070 = vsub.f32 %v3927, %v4069
        %v4071 = vand.u32 %v4070, 4294901760
        %v4072 = vsub.f32 %v4070, %v4071
        %v4073 = vand.u32 %v4072, 4294901760
        %4074 = vmatmul.mubr.f32.gmra.mrb[0].mxu0 %v4073
        %v4075 = vpop.f32.mrb[0].mxu0
        %v4076 = vadd.f32 %v3902, %v4075
        %v4077 = vpop.f32.mrb[0].mxu0
        %4078 = vmatprep.mubr.f32.mxu0 0.0
        %v4079 = vand.u32 %v3930, 4294901760
        %v4080 = vsub.f32 %v3930, %v4079
        %v4081 = vand.u32 %v4080, 4294901760
        %v4082 = vsub.f32 %v4080, %v4081
        %v4083 = vand.u32 %v4082, 4294901760
        %4084 = vmatmul.mubr.f32.gmra.mrb[0].mxu0 %v4083
        %v4085 = vpop.f32.mrb[0].mxu0
        %v4086 = vadd.f32 %v3903, %v4085
        %v4087 = vpop.f32.mrb[0].mxu0
        %4088 = vmatprep.mubr.f32.mxu0 0.0
        %v4089 = vand.u32 %v3933, 4294901760
        %v4090 = vsub.f32 %v3933, %v4089
        %v4091 = vand.u32 %v4090, 4294901760
        %v4092 = vsub.f32 %v4090, %v4091
        %v4093 = vand.u32 %v4092, 4294901760
        %4094 = vmatmul.mubr.f32.gmra.mrb[0].mxu0 %v4093
        %v4095 = vpop.f32.mrb[0].mxu0
        %v4096 = vadd.f32 %v3904, %v4095
        %v4097 = vpop.f32.mrb[0].mxu0
        %4098 = vmatprep.mubr.f32.mxu0 0.0
        %v4099 = vand.u32 %v3936, 4294901760
        %v4100 = vsub.f32 %v3936, %v4099
        %v4101 = vand.u32 %v4100, 4294901760
        %v4102 = vsub.f32 %v4100, %v4101
        %v4103 = vand.u32 %v4102, 4294901760
        %4104 = vmatmul.mubr.f32.gmra.mrb[0].mxu0 %v4103
        %v4105 = vpop.f32.mrb[0].mxu0
        %v4106 = vadd.f32 %v3905, %v4105
        %v4107 = vpop.f32.mrb[0].mxu0
        %4108 = vmatprep.mubr.f32.mxu0 0.0
        %v4109 = vand.u32 %v3939, 4294901760
        %v4110 = vsub.f32 %v3939, %v4109
        %v4111 = vand.u32 %v4110, 4294901760
        %v4112 = vsub.f32 %v4110, %v4111
        %v4113 = vand.u32 %v4112, 4294901760
        %4114 = vmatmul.mubr.f32.gmra.mrb[0].mxu0 %v4113
        %v4115 = vpop.f32.mrb[0].mxu0
        %v4116 = vadd.f32 %v3906, %v4115
        %v4117 = vpop.f32.mrb[0].mxu0
        %4118 = vmatprep.mubr.f32.mxu0 0.0
        %v4119 = vand.u32 %v3942, 4294901760
        %v4120 = vsub.f32 %v3942, %v4119
        %v4121 = vand.u32 %v4120, 4294901760
        %v4122 = vsub.f32 %v4120, %v4121
        %v4123 = vand.u32 %v4122, 4294901760
        %4124 = vmatmul.mubr.f32.gmra.mrb[0].mxu0 %v4123
        %v4125 = vpop.f32.mrb[0].mxu0
        %v4126 = vadd.f32 %v3907, %v4125
        %v4127 = vpop.f32.mrb[0].mxu0
        %4128 = vmatprep.mubr.f32.mxu0 0.0
        %v4129 = vand.u32 %v3945, 4294901760
        %v4130 = vsub.f32 %v3945, %v4129
        %v4131 = vand.u32 %v4130, 4294901760
        %v4132 = vsub.f32 %v4130, %v4131
        %v4133 = vand.u32 %v4132, 4294901760
        %4134 = vmatmul.mubr.f32.gmra.mrb[0].mxu0 %v4133
        %v4135 = vpop.f32.mrb[0].mxu0
        %v4136 = vadd.f32 %v3908, %v4135
        %v4137 = vpop.f32.mrb[0].mxu0
        %4138 = vmatprep.mubr.f32.mxu0 0.0
        %v4139 = vand.u32 %v3948, 4294901760
        %v4140 = vsub.f32 %v3948, %v4139
        %v4141 = vand.u32 %v4140, 4294901760
        %v4142 = vsub.f32 %v4140, %v4141
        %v4143 = vand.u32 %v4142, 4294901760
        %4144 = vmatmul.mubr.f32.gmra.mrb[0].mxu0 %v4143
        %v4145 = vpop.f32.mrb[0].mxu0
        %v4146 = vadd.f32 %v3909, %v4145
        %v4147 = vpop.f32.mrb[0].mxu0
        %4148 = vmatprep.mubr.f32.mxu0 0.0
        %v4149 = vand.u32 %v3951, 4294901760
        %v4150 = vsub.f32 %v3951, %v4149
        %v4151 = vand.u32 %v4150, 4294901760
        %v4152 = vsub.f32 %v4150, %v4151
        %v4153 = vand.u32 %v4152, 4294901760
        %4154 = vmatmul.mubr.f32.gmra.mrb[0].mxu0 %v4153
        %v4155 = vpop.f32.mrb[0].mxu0
        %v4156 = vadd.f32 %v3910, %v4155
        %v4157 = vpop.f32.mrb[0].mxu0
        %4158 = vmatprep.mubr.f32.mxu0 0.0
        %v4159 = vand.u32 %v3954, 4294901760
        %v4160 = vsub.f32 %v3954, %v4159
        %v4161 = vand.u32 %v4160, 4294901760
        %v4162 = vsub.f32 %v4160, %v4161
        %v4163 = vand.u32 %v4162, 4294901760
        %4164 = vmatmul.mubr.f32.gmra.mrb[0].mxu0 %v4163
        %v4165 = vpop.f32.mrb[0].mxu0
        %v4166 = vadd.f32 %v3911, %v4165
        %v4167 = vpop.f32.mrb[0].mxu0
        %4168 = vmatprep.mubr.f32.mxu0 0.0
        %v4169 = vand.u32 %v3957, 4294901760
        %v4170 = vsub.f32 %v3957, %v4169
        %v4171 = vand.u32 %v4170, 4294901760
        %v4172 = vsub.f32 %v4170, %v4171
        %v4173 = vand.u32 %v4172, 4294901760
        %4174 = vmatmul.mubr.f32.gmra.mrb[0].mxu0 %v4173
        %v4175 = vpop.f32.mrb[0].mxu0
        %v4176 = vadd.f32 %v3912, %v4175
        %v4177 = vpop.f32.mrb[0].mxu0
        %4178 = vmatprep.mubr.f32.mxu0 0.0
        %v4179 = vand.u32 %v3960, 4294901760
        %v4180 = vsub.f32 %v3960, %v4179
        %v4181 = vand.u32 %v4180, 4294901760
        %v4182 = vsub.f32 %v4180, %v4181
        %v4183 = vand.u32 %v4182, 4294901760
        %4184 = vmatmul.mubr.f32.gmra.mrb[0].mxu0 %v4183
        %v4185 = vpop.f32.mrb[0].mxu0
        %v4186 = vadd.f32 %v3913, %v4185
        %v4187 = vpop.f32.mrb[0].mxu0
        %4188 = vdwg.mxu0
        %4189 = vmatprep.subr.mxu0 0.0
        %v4190 = vand.u32 %v3878, 4294901760
        %v4191 = vsub.f32 %v3878, %v4190
        %v4192 = vand.u32 %v4191, 4294901760
        %v4193 = vsub.f32 %v4191, %v4192
        %v4194 = vand.u32 %v4193, 4294901760
        %4195 = vmatpush1.msra.mxu0 %v4194
        %4196 = vmatprep.subr.mxu0 0.0
        %v4197 = vand.u32 %v3879, 4294901760
        %v4198 = vsub.f32 %v3879, %v4197
        %v4199 = vand.u32 %v4198, 4294901760
        %v4200 = vsub.f32 %v4198, %v4199
        %v4201 = vand.u32 %v4200, 4294901760
        %4202 = vmatpush1.msra.mxu0 %v4201
        %4203 = vmatprep.subr.mxu0 0.0
        %4204 = vmatpush1.msra.mxu0 0.0
        %4205 = vmatprep.subr.mxu0 0.0
        %4206 = vmatpush1.msra.mxu0 0.0
        %4207 = vmatprep.subr.mxu0 0.0
        %4208 = vmatpush1.msra.mxu0 0.0
        %4209 = vmatprep.subr.mxu0 0.0
        %4210 = vmatpush1.msra.mxu0 0.0
        %4211 = vmatprep.subr.mxu0 0.0
        %4212 = vmatpush1.msra.mxu0 0.0
        %4213 = vmatprep.subr.mxu0 0.0
        %4214 = vmatpush1.msra.mxu0 0.0
        %4215 = vmatprep.subr.mxu0 0.0
        %4216 = vmatpush1.msra.mxu0 0.0
        %4217 = vmatprep.subr.mxu0 0.0
        %4218 = vmatpush1.msra.mxu0 0.0
        %4219 = vmatprep.subr.mxu0 0.0
        %4220 = vmatpush1.msra.mxu0 0.0
        %4221 = vmatprep.subr.mxu0 0.0
        %4222 = vmatpush1.msra.mxu0 0.0
        %4223 = vmatprep.subr.mxu0 0.0
        %4224 = vmatpush1.msra.mxu0 0.0
        %4225 = vmatprep.subr.mxu0 0.0
        %4226 = vmatpush1.msra.mxu0 0.0
        %4227 = vmatprep.subr.mxu0 0.0
        %4228 = vmatpush1.msra.mxu0 0.0
        %4229 = vmatprep.subr.mxu0 0.0
        %4230 = vmatpush1.msra.mxu0 0.0
        %4231 = vmatprep.subr.mxu0 0.0
        %4232 = vmatpush1.msra.mxu0 0.0
        %4233 = vmatprep.subr.mxu0 0.0
        %4234 = vmatpush1.msra.mxu0 0.0
        %4235 = vmatprep.subr.mxu0 0.0
        %4236 = vmatpush1.msra.mxu0 0.0
        %4237 = vmatprep.subr.mxu0 0.0
        %4238 = vmatpush1.msra.mxu0 0.0
        %4239 = vmatprep.subr.mxu0 0.0
        %4240 = vmatpush1.msra.mxu0 0.0
        %4241 = vmatprep.subr.mxu0 0.0
        %4242 = vmatpush1.msra.mxu0 0.0
        %4243 = vmatprep.subr.mxu0 0.0
        %4244 = vmatpush1.msra.mxu0 0.0
        %4245 = vmatprep.subr.mxu0 0.0
        %4246 = vmatpush1.msra.mxu0 0.0
        %4247 = vmatprep.subr.mxu0 0.0
        %4248 = vmatpush1.msra.mxu0 0.0
        %4249 = vmatprep.subr.mxu0 0.0
        %4250 = vmatpush1.msra.mxu0 0.0
        %4251 = vmatprep.subr.mxu0 0.0
        %4252 = vmatpush1.msra.mxu0 0.0
        %4253 = vmatprep.subr.mxu0 0.0
        %4254 = vmatpush1.msra.mxu0 0.0
        %4255 = vmatprep.subr.mxu0 0.0
        %4256 = vmatpush1.msra.mxu0 0.0
        %4257 = vmatprep.subr.mxu0 0.0
        %4258 = vmatpush1.msra.mxu0 0.0
        %4259 = vmatprep.subr.mxu0 0.0
        %4260 = vmatpush1.msra.mxu0 0.0
        %4261 = vmatprep.subr.mxu0 0.0
        %4262 = vmatpush1.msra.mxu0 0.0
        %4263 = vmatprep.mubr.f32.mxu0 0.0
        %v4264 = vand.u32 %v3915, 4294901760
        %4265 = vmatmul.mubr.f32.gmra.mrb[0].mxu0 %v4264
        %v4266 = vpop.f32.mrb[0].mxu0
        %v4267 = vadd.f32 %v4036, %v4266
        %v4268 = vpop.f32.mrb[0].mxu0
        %4269 = vmatprep.mubr.f32.mxu0 0.0
        %v4270 = vand.u32 %v3918, 4294901760
        %4271 = vmatmul.mubr.f32.gmra.mrb[0].mxu0 %v4270
        %v4272 = vpop.f32.mrb[0].mxu0
        %v4273 = vadd.f32 %v4046, %v4272
        %v4274 = vpop.f32.mrb[0].mxu0
        %4275 = vmatprep.mubr.f32.mxu0 0.0
        %v4276 = vand.u32 %v3921, 4294901760
        %4277 = vmatmul.mubr.f32.gmra.mrb[0].mxu0 %v4276
        %v4278 = vpop.f32.mrb[0].mxu0
        %v4279 = vadd.f32 %v4056, %v4278
        %v4280 = vpop.f32.mrb[0].mxu0
        %4281 = vmatprep.mubr.f32.mxu0 0.0
        %v4282 = vand.u32 %v3924, 4294901760
        %4283 = vmatmul.mubr.f32.gmra.mrb[0].mxu0 %v4282
        %v4284 = vpop.f32.mrb[0].mxu0
        %v4285 = vadd.f32 %v4066, %v4284
        %v4286 = vpop.f32.mrb[0].mxu0
        %4287 = vmatprep.mubr.f32.mxu0 0.0
        %v4288 = vand.u32 %v3927, 4294901760
        %4289 = vmatmul.mubr.f32.gmra.mrb[0].mxu0 %v4288
        %v4290 = vpop.f32.mrb[0].mxu0
        %v4291 = vadd.f32 %v4076, %v4290
        %v4292 = vpop.f32.mrb[0].mxu0
        %4293 = vmatprep.mubr.f32.mxu0 0.0
        %v4294 = vand.u32 %v3930, 4294901760
        %4295 = vmatmul.mubr.f32.gmra.mrb[0].mxu0 %v4294
        %v4296 = vpop.f32.mrb[0].mxu0
        %v4297 = vadd.f32 %v4086, %v4296
        %v4298 = vpop.f32.mrb[0].mxu0
        %4299 = vmatprep.mubr.f32.mxu0 0.0
        %v4300 = vand.u32 %v3933, 4294901760
        %4301 = vmatmul.mubr.f32.gmra.mrb[0].mxu0 %v4300
        %v4302 = vpop.f32.mrb[0].mxu0
        %v4303 = vadd.f32 %v4096, %v4302
        %v4304 = vpop.f32.mrb[0].mxu0
        %4305 = vmatprep.mubr.f32.mxu0 0.0
        %v4306 = vand.u32 %v3936, 4294901760
        %4307 = vmatmul.mubr.f32.gmra.mrb[0].mxu0 %v4306
        %v4308 = vpop.f32.mrb[0].mxu0
        %v4309 = vadd.f32 %v4106, %v4308
        %v4310 = vpop.f32.mrb[0].mxu0
        %4311 = vmatprep.mubr.f32.mxu0 0.0
        %v4312 = vand.u32 %v3939, 4294901760
        %4313 = vmatmul.mubr.f32.gmra.mrb[0].mxu0 %v4312
        %v4314 = vpop.f32.mrb[0].mxu0
        %v4315 = vadd.f32 %v4116, %v4314
        %v4316 = vpop.f32.mrb[0].mxu0
        %4317 = vmatprep.mubr.f32.mxu0 0.0
        %v4318 = vand.u32 %v3942, 4294901760
        %4319 = vmatmul.mubr.f32.gmra.mrb[0].mxu0 %v4318
        %v4320 = vpop.f32.mrb[0].mxu0
        %v4321 = vadd.f32 %v4126, %v4320
        %v4322 = vpop.f32.mrb[0].mxu0
        %4323 = vmatprep.mubr.f32.mxu0 0.0
        %v4324 = vand.u32 %v3945, 4294901760
        %4325 = vmatmul.mubr.f32.gmra.mrb[0].mxu0 %v4324
        %v4326 = vpop.f32.mrb[0].mxu0
        %v4327 = vadd.f32 %v4136, %v4326
        %v4328 = vpop.f32.mrb[0].mxu0
        %4329 = vmatprep.mubr.f32.mxu0 0.0
        %v4330 = vand.u32 %v3948, 4294901760
        %4331 = vmatmul.mubr.f32.gmra.mrb[0].mxu0 %v4330
        %v4332 = vpop.f32.mrb[0].mxu0
        %v4333 = vadd.f32 %v4146, %v4332
        %v4334 = vpop.f32.mrb[0].mxu0
        %4335 = vmatprep.mubr.f32.mxu0 0.0
        %v4336 = vand.u32 %v3951, 4294901760
        %4337 = vmatmul.mubr.f32.gmra.mrb[0].mxu0 %v4336
        %v4338 = vpop.f32.mrb[0].mxu0
        %v4339 = vadd.f32 %v4156, %v4338
        %v4340 = vpop.f32.mrb[0].mxu0
        %4341 = vmatprep.mubr.f32.mxu0 0.0
        %v4342 = vand.u32 %v3954, 4294901760
        %4343 = vmatmul.mubr.f32.gmra.mrb[0].mxu0 %v4342
        %v4344 = vpop.f32.mrb[0].mxu0
        %v4345 = vadd.f32 %v4166, %v4344
        %v4346 = vpop.f32.mrb[0].mxu0
        %4347 = vmatprep.mubr.f32.mxu0 0.0
        %v4348 = vand.u32 %v3957, 4294901760
        %4349 = vmatmul.mubr.f32.gmra.mrb[0].mxu0 %v4348
        %v4350 = vpop.f32.mrb[0].mxu0
        %v4351 = vadd.f32 %v4176, %v4350
        %v4352 = vpop.f32.mrb[0].mxu0
        %4353 = vmatprep.mubr.f32.mxu0 0.0
        %v4354 = vand.u32 %v3960, 4294901760
        %4355 = vmatmul.mubr.f32.gmra.mrb[0].mxu0 %v4354
        %v4356 = vpop.f32.mrb[0].mxu0
        %v4357 = vadd.f32 %v4186, %v4356
        %v4358 = vpop.f32.mrb[0].mxu0
        %4359 = vdwg.mxu0
        %4360 = vmatprep.subr.mxu0 0.0
        %v4361 = vand.u32 %v3878, 4294901760
        %v4362 = vsub.f32 %v3878, %v4361
        %4363 = vmatpush1.msra.mxu0 %v4362
        %4364 = vmatprep.subr.mxu0 0.0
        %v4365 = vand.u32 %v3879, 4294901760
        %v4366 = vsub.f32 %v3879, %v4365
        %4367 = vmatpush1.msra.mxu0 %v4366
        %4368 = vmatprep.subr.mxu0 0.0
        %4369 = vmatpush1.msra.mxu0 0.0
        %4370 = vmatprep.subr.mxu0 0.0
        %4371 = vmatpush1.msra.mxu0 0.0
        %4372 = vmatprep.subr.mxu0 0.0
        %4373 = vmatpush1.msra.mxu0 0.0
        %4374 = vmatprep.subr.mxu0 0.0
        %4375 = vmatpush1.msra.mxu0 0.0
        %4376 = vmatprep.subr.mxu0 0.0
        %4377 = vmatpush1.msra.mxu0 0.0
        %4378 = vmatprep.subr.mxu0 0.0
        %4379 = vmatpush1.msra.mxu0 0.0
        %4380 = vmatprep.subr.mxu0 0.0
        %4381 = vmatpush1.msra.mxu0 0.0
        %4382 = vmatprep.subr.mxu0 0.0
        %4383 = vmatpush1.msra.mxu0 0.0
        %4384 = vmatprep.subr.mxu0 0.0
        %4385 = vmatpush1.msra.mxu0 0.0
        %4386 = vmatprep.subr.mxu0 0.0
        %4387 = vmatpush1.msra.mxu0 0.0
        %4388 = vmatprep.subr.mxu0 0.0
        %4389 = vmatpush1.msra.mxu0 0.0
        %4390 = vmatprep.subr.mxu0 0.0
        %4391 = vmatpush1.msra.mxu0 0.0
        %4392 = vmatprep.subr.mxu0 0.0
        %4393 = vmatpush1.msra.mxu0 0.0
        %4394 = vmatprep.subr.mxu0 0.0
        %4395 = vmatpush1.msra.mxu0 0.0
        %4396 = vmatprep.subr.mxu0 0.0
        %4397 = vmatpush1.msra.mxu0 0.0
        %4398 = vmatprep.subr.mxu0 0.0
        %4399 = vmatpush1.msra.mxu0 0.0
        %4400 = vmatprep.subr.mxu0 0.0
        %4401 = vmatpush1.msra.mxu0 0.0
        %4402 = vmatprep.subr.mxu0 0.0
        %4403 = vmatpush1.msra.mxu0 0.0
        %4404 = vmatprep.subr.mxu0 0.0
        %4405 = vmatpush1.msra.mxu0 0.0
        %4406 = vmatprep.subr.mxu0 0.0
        %4407 = vmatpush1.msra.mxu0 0.0
        %4408 = vmatprep.subr.mxu0 0.0
        %4409 = vmatpush1.msra.mxu0 0.0
        %4410 = vmatprep.subr.mxu0 0.0
        %4411 = vmatpush1.msra.mxu0 0.0
        %4412 = vmatprep.subr.mxu0 0.0
        %4413 = vmatpush1.msra.mxu0 0.0
        %4414 = vmatprep.subr.mxu0 0.0
        %4415 = vmatpush1.msra.mxu0 0.0
        %4416 = vmatprep.subr.mxu0 0.0
        %4417 = vmatpush1.msra.mxu0 0.0
        %4418 = vmatprep.subr.mxu0 0.0
        %4419 = vmatpush1.msra.mxu0 0.0
        %4420 = vmatprep.subr.mxu0 0.0
        %4421 = vmatpush1.msra.mxu0 0.0
        %4422 = vmatprep.subr.mxu0 0.0
        %4423 = vmatpush1.msra.mxu0 0.0
        %4424 = vmatprep.subr.mxu0 0.0
        %4425 = vmatpush1.msra.mxu0 0.0
        %4426 = vmatprep.subr.mxu0 0.0
        %4427 = vmatpush1.msra.mxu0 0.0
        %4428 = vmatprep.mubr.f32.mxu0 0.0
        %v4429 = vand.u32 %v3915, 4294901760
        %v4430 = vsub.f32 %v3915, %v4429
        %4431 = vmatmul.mubr.f32.gmra.mrb[0].mxu0 %v4430
        %v4432 = vpop.f32.mrb[0].mxu0
        %v4433 = vadd.f32 %v4267, %v4432
        %v4434 = vpop.f32.mrb[0].mxu0
        %4435 = vmatprep.mubr.f32.mxu0 0.0
        %v4436 = vand.u32 %v3918, 4294901760
        %v4437 = vsub.f32 %v3918, %v4436
        %4438 = vmatmul.mubr.f32.gmra.mrb[0].mxu0 %v4437
        %v4439 = vpop.f32.mrb[0].mxu0
        %v4440 = vadd.f32 %v4273, %v4439
        %v4441 = vpop.f32.mrb[0].mxu0
        %4442 = vmatprep.mubr.f32.mxu0 0.0
        %v4443 = vand.u32 %v3921, 4294901760
        %v4444 = vsub.f32 %v3921, %v4443
        %4445 = vmatmul.mubr.f32.gmra.mrb[0].mxu0 %v4444
        %v4446 = vpop.f32.mrb[0].mxu0
        %v4447 = vadd.f32 %v4279, %v4446
        %v4448 = vpop.f32.mrb[0].mxu0
        %4449 = vmatprep.mubr.f32.mxu0 0.0
        %v4450 = vand.u32 %v3924, 4294901760
        %v4451 = vsub.f32 %v3924, %v4450
        %4452 = vmatmul.mubr.f32.gmra.mrb[0].mxu0 %v4451
        %v4453 = vpop.f32.mrb[0].mxu0
        %v4454 = vadd.f32 %v4285, %v4453
        %v4455 = vpop.f32.mrb[0].mxu0
        %4456 = vmatprep.mubr.f32.mxu0 0.0
        %v4457 = vand.u32 %v3927, 4294901760
        %v4458 = vsub.f32 %v3927, %v4457
        %4459 = vmatmul.mubr.f32.gmra.mrb[0].mxu0 %v4458
        %v4460 = vpop.f32.mrb[0].mxu0
        %v4461 = vadd.f32 %v4291, %v4460
        %v4462 = vpop.f32.mrb[0].mxu0
        %4463 = vmatprep.mubr.f32.mxu0 0.0
        %v4464 = vand.u32 %v3930, 4294901760
        %v4465 = vsub.f32 %v3930, %v4464
        %4466 = vmatmul.mubr.f32.gmra.mrb[0].mxu0 %v4465
        %v4467 = vpop.f32.mrb[0].mxu0
        %v4468 = vadd.f32 %v4297, %v4467
        %v4469 = vpop.f32.mrb[0].mxu0
        %4470 = vmatprep.mubr.f32.mxu0 0.0
        %v4471 = vand.u32 %v3933, 4294901760
        %v4472 = vsub.f32 %v3933, %v4471
        %4473 = vmatmul.mubr.f32.gmra.mrb[0].mxu0 %v4472
        %v4474 = vpop.f32.mrb[0].mxu0
        %v4475 = vadd.f32 %v4303, %v4474
        %v4476 = vpop.f32.mrb[0].mxu0
        %4477 = vmatprep.mubr.f32.mxu0 0.0
        %v4478 = vand.u32 %v3936, 4294901760
        %v4479 = vsub.f32 %v3936, %v4478
        %4480 = vmatmul.mubr.f32.gmra.mrb[0].mxu0 %v4479
        %v4481 = vpop.f32.mrb[0].mxu0
        %v4482 = vadd.f32 %v4309, %v4481
        %v4483 = vpop.f32.mrb[0].mxu0
        %4484 = vmatprep.mubr.f32.mxu0 0.0
        %v4485 = vand.u32 %v3939, 4294901760
        %v4486 = vsub.f32 %v3939, %v4485
        %4487 = vmatmul.mubr.f32.gmra.mrb[0].mxu0 %v4486
        %v4488 = vpop.f32.mrb[0].mxu0
        %v4489 = vadd.f32 %v4315, %v4488
        %v4490 = vpop.f32.mrb[0].mxu0
        %4491 = vmatprep.mubr.f32.mxu0 0.0
        %v4492 = vand.u32 %v3942, 4294901760
        %v4493 = vsub.f32 %v3942, %v4492
        %4494 = vmatmul.mubr.f32.gmra.mrb[0].mxu0 %v4493
        %v4495 = vpop.f32.mrb[0].mxu0
        %v4496 = vadd.f32 %v4321, %v4495
        %v4497 = vpop.f32.mrb[0].mxu0
        %4498 = vmatprep.mubr.f32.mxu0 0.0
        %v4499 = vand.u32 %v3945, 4294901760
        %v4500 = vsub.f32 %v3945, %v4499
        %4501 = vmatmul.mubr.f32.gmra.mrb[0].mxu0 %v4500
        %v4502 = vpop.f32.mrb[0].mxu0
        %v4503 = vadd.f32 %v4327, %v4502
        %v4504 = vpop.f32.mrb[0].mxu0
        %4505 = vmatprep.mubr.f32.mxu0 0.0
        %v4506 = vand.u32 %v3948, 4294901760
        %v4507 = vsub.f32 %v3948, %v4506
        %4508 = vmatmul.mubr.f32.gmra.mrb[0].mxu0 %v4507
        %v4509 = vpop.f32.mrb[0].mxu0
        %v4510 = vadd.f32 %v4333, %v4509
        %v4511 = vpop.f32.mrb[0].mxu0
        %4512 = vmatprep.mubr.f32.mxu0 0.0
        %v4513 = vand.u32 %v3951, 4294901760
        %v4514 = vsub.f32 %v3951, %v4513
        %4515 = vmatmul.mubr.f32.gmra.mrb[0].mxu0 %v4514
        %v4516 = vpop.f32.mrb[0].mxu0
        %v4517 = vadd.f32 %v4339, %v4516
        %v4518 = vpop.f32.mrb[0].mxu0
        %4519 = vmatprep.mubr.f32.mxu0 0.0
        %v4520 = vand.u32 %v3954, 4294901760
        %v4521 = vsub.f32 %v3954, %v4520
        %4522 = vmatmul.mubr.f32.gmra.mrb[0].mxu0 %v4521
        %v4523 = vpop.f32.mrb[0].mxu0
        %v4524 = vadd.f32 %v4345, %v4523
        %v4525 = vpop.f32.mrb[0].mxu0
        %4526 = vmatprep.mubr.f32.mxu0 0.0
        %v4527 = vand.u32 %v3957, 4294901760
        %v4528 = vsub.f32 %v3957, %v4527
        %4529 = vmatmul.mubr.f32.gmra.mrb[0].mxu0 %v4528
        %v4530 = vpop.f32.mrb[0].mxu0
        %v4531 = vadd.f32 %v4351, %v4530
        %v4532 = vpop.f32.mrb[0].mxu0
        %4533 = vmatprep.mubr.f32.mxu0 0.0
        %v4534 = vand.u32 %v3960, 4294901760
        %v4535 = vsub.f32 %v3960, %v4534
        %4536 = vmatmul.mubr.f32.gmra.mrb[0].mxu0 %v4535
        %v4537 = vpop.f32.mrb[0].mxu0
        %v4538 = vadd.f32 %v4357, %v4537
        %v4539 = vpop.f32.mrb[0].mxu0
        %4540 = vdwg.mxu0
        %4541 = vmatprep.subr.mxu0 0.0
        %v4542 = vand.u32 %v3878, 4294901760
        %4543 = vmatpush1.msra.mxu0 %v4542
        %4544 = vmatprep.subr.mxu0 0.0
        %v4545 = vand.u32 %v3879, 4294901760
        %4546 = vmatpush1.msra.mxu0 %v4545
        %4547 = vmatprep.subr.mxu0 0.0
        %4548 = vmatpush1.msra.mxu0 0.0
        %4549 = vmatprep.subr.mxu0 0.0
        %4550 = vmatpush1.msra.mxu0 0.0
        %4551 = vmatprep.subr.mxu0 0.0
        %4552 = vmatpush1.msra.mxu0 0.0
        %4553 = vmatprep.subr.mxu0 0.0
        %4554 = vmatpush1.msra.mxu0 0.0
        %4555 = vmatprep.subr.mxu0 0.0
        %4556 = vmatpush1.msra.mxu0 0.0
        %4557 = vmatprep.subr.mxu0 0.0
        %4558 = vmatpush1.msra.mxu0 0.0
        %4559 = vmatprep.subr.mxu0 0.0
        %4560 = vmatpush1.msra.mxu0 0.0
        %4561 = vmatprep.subr.mxu0 0.0
        %4562 = vmatpush1.msra.mxu0 0.0
        %4563 = vmatprep.subr.mxu0 0.0
        %4564 = vmatpush1.msra.mxu0 0.0
        %4565 = vmatprep.subr.mxu0 0.0
        %4566 = vmatpush1.msra.mxu0 0.0
        %4567 = vmatprep.subr.mxu0 0.0
        %4568 = vmatpush1.msra.mxu0 0.0
        %4569 = vmatprep.subr.mxu0 0.0
        %4570 = vmatpush1.msra.mxu0 0.0
        %4571 = vmatprep.subr.mxu0 0.0
        %4572 = vmatpush1.msra.mxu0 0.0
        %4573 = vmatprep.subr.mxu0 0.0
        %4574 = vmatpush1.msra.mxu0 0.0
        %4575 = vmatprep.subr.mxu0 0.0
        %4576 = vmatpush1.msra.mxu0 0.0
        %4577 = vmatprep.subr.mxu0 0.0
        %4578 = vmatpush1.msra.mxu0 0.0
        %4579 = vmatprep.subr.mxu0 0.0
        %4580 = vmatpush1.msra.mxu0 0.0
        %4581 = vmatprep.subr.mxu0 0.0
        %4582 = vmatpush1.msra.mxu0 0.0
        %4583 = vmatprep.subr.mxu0 0.0
        %4584 = vmatpush1.msra.mxu0 0.0
        %4585 = vmatprep.subr.mxu0 0.0
        %4586 = vmatpush1.msra.mxu0 0.0
        %4587 = vmatprep.subr.mxu0 0.0
        %4588 = vmatpush1.msra.mxu0 0.0
        %4589 = vmatprep.subr.mxu0 0.0
        %4590 = vmatpush1.msra.mxu0 0.0
        %4591 = vmatprep.subr.mxu0 0.0
        %4592 = vmatpush1.msra.mxu0 0.0
        %4593 = vmatprep.subr.mxu0 0.0
        %4594 = vmatpush1.msra.mxu0 0.0
        %4595 = vmatprep.subr.mxu0 0.0
        %4596 = vmatpush1.msra.mxu0 0.0
        %4597 = vmatprep.subr.mxu0 0.0
        %4598 = vmatpush1.msra.mxu0 0.0
        %4599 = vmatprep.subr.mxu0 0.0
        %4600 = vmatpush1.msra.mxu0 0.0
        %4601 = vmatprep.subr.mxu0 0.0
        %4602 = vmatpush1.msra.mxu0 0.0
        %4603 = vmatprep.subr.mxu0 0.0
        %4604 = vmatpush1.msra.mxu0 0.0
        %4605 = vmatprep.subr.mxu0 0.0
        %4606 = vmatpush1.msra.mxu0 0.0
        %4607 = vmatprep.mubr.f32.mxu0 0.0
        %v4608 = vand.u32 %v3915, 4294901760
        %v4609 = vsub.f32 %v3915, %v4608
        %v4610 = vand.u32 %v4609, 4294901760
        %4611 = vmatmul.mubr.f32.gmra.mrb[0].mxu0 %v4610
        %v4612 = vpop.f32.mrb[0].mxu0
        %v4613 = vadd.f32 %v4433, %v4612
        %v4614 = vpop.f32.mrb[0].mxu0
        %4615 = vmatprep.mubr.f32.mxu0 0.0
        %v4616 = vand.u32 %v3918, 4294901760
        %v4617 = vsub.f32 %v3918, %v4616
        %v4618 = vand.u32 %v4617, 4294901760
        %4619 = vmatmul.mubr.f32.gmra.mrb[0].mxu0 %v4618
        %v4620 = vpop.f32.mrb[0].mxu0
        %v4621 = vadd.f32 %v4440, %v4620
        %v4622 = vpop.f32.mrb[0].mxu0
        %4623 = vmatprep.mubr.f32.mxu0 0.0
        %v4624 = vand.u32 %v3921, 4294901760
        %v4625 = vsub.f32 %v3921, %v4624
        %v4626 = vand.u32 %v4625, 4294901760
        %4627 = vmatmul.mubr.f32.gmra.mrb[0].mxu0 %v4626
        %v4628 = vpop.f32.mrb[0].mxu0
        %v4629 = vadd.f32 %v4447, %v4628
        %v4630 = vpop.f32.mrb[0].mxu0
        %4631 = vmatprep.mubr.f32.mxu0 0.0
        %v4632 = vand.u32 %v3924, 4294901760
        %v4633 = vsub.f32 %v3924, %v4632
        %v4634 = vand.u32 %v4633, 4294901760
        %4635 = vmatmul.mubr.f32.gmra.mrb[0].mxu0 %v4634
        %v4636 = vpop.f32.mrb[0].mxu0
        %v4637 = vadd.f32 %v4454, %v4636
        %v4638 = vpop.f32.mrb[0].mxu0
        %4639 = vmatprep.mubr.f32.mxu0 0.0
        %v4640 = vand.u32 %v3927, 4294901760
        %v4641 = vsub.f32 %v3927, %v4640
        %v4642 = vand.u32 %v4641, 4294901760
        %4643 = vmatmul.mubr.f32.gmra.mrb[0].mxu0 %v4642
        %v4644 = vpop.f32.mrb[0].mxu0
        %v4645 = vadd.f32 %v4461, %v4644
        %v4646 = vpop.f32.mrb[0].mxu0
        %4647 = vmatprep.mubr.f32.mxu0 0.0
        %v4648 = vand.u32 %v3930, 4294901760
        %v4649 = vsub.f32 %v3930, %v4648
        %v4650 = vand.u32 %v4649, 4294901760
        %4651 = vmatmul.mubr.f32.gmra.mrb[0].mxu0 %v4650
        %v4652 = vpop.f32.mrb[0].mxu0
        %v4653 = vadd.f32 %v4468, %v4652
        %v4654 = vpop.f32.mrb[0].mxu0
        %4655 = vmatprep.mubr.f32.mxu0 0.0
        %v4656 = vand.u32 %v3933, 4294901760
        %v4657 = vsub.f32 %v3933, %v4656
        %v4658 = vand.u32 %v4657, 4294901760
        %4659 = vmatmul.mubr.f32.gmra.mrb[0].mxu0 %v4658
        %v4660 = vpop.f32.mrb[0].mxu0
        %v4661 = vadd.f32 %v4475, %v4660
        %v4662 = vpop.f32.mrb[0].mxu0
        %4663 = vmatprep.mubr.f32.mxu0 0.0
        %v4664 = vand.u32 %v3936, 4294901760
        %v4665 = vsub.f32 %v3936, %v4664
        %v4666 = vand.u32 %v4665, 4294901760
        %4667 = vmatmul.mubr.f32.gmra.mrb[0].mxu0 %v4666
        %v4668 = vpop.f32.mrb[0].mxu0
        %v4669 = vadd.f32 %v4482, %v4668
        %v4670 = vpop.f32.mrb[0].mxu0
        %4671 = vmatprep.mubr.f32.mxu0 0.0
        %v4672 = vand.u32 %v3939, 4294901760
        %v4673 = vsub.f32 %v3939, %v4672
        %v4674 = vand.u32 %v4673, 4294901760
        %4675 = vmatmul.mubr.f32.gmra.mrb[0].mxu0 %v4674
        %v4676 = vpop.f32.mrb[0].mxu0
        %v4677 = vadd.f32 %v4489, %v4676
        %v4678 = vpop.f32.mrb[0].mxu0
        %4679 = vmatprep.mubr.f32.mxu0 0.0
        %v4680 = vand.u32 %v3942, 4294901760
        %v4681 = vsub.f32 %v3942, %v4680
        %v4682 = vand.u32 %v4681, 4294901760
        %4683 = vmatmul.mubr.f32.gmra.mrb[0].mxu0 %v4682
        %v4684 = vpop.f32.mrb[0].mxu0
        %v4685 = vadd.f32 %v4496, %v4684
        %v4686 = vpop.f32.mrb[0].mxu0
        %4687 = vmatprep.mubr.f32.mxu0 0.0
        %v4688 = vand.u32 %v3945, 4294901760
        %v4689 = vsub.f32 %v3945, %v4688
        %v4690 = vand.u32 %v4689, 4294901760
        %4691 = vmatmul.mubr.f32.gmra.mrb[0].mxu0 %v4690
        %v4692 = vpop.f32.mrb[0].mxu0
        %v4693 = vadd.f32 %v4503, %v4692
        %v4694 = vpop.f32.mrb[0].mxu0
        %4695 = vmatprep.mubr.f32.mxu0 0.0
        %v4696 = vand.u32 %v3948, 4294901760
        %v4697 = vsub.f32 %v3948, %v4696
        %v4698 = vand.u32 %v4697, 4294901760
        %4699 = vmatmul.mubr.f32.gmra.mrb[0].mxu0 %v4698
        %v4700 = vpop.f32.mrb[0].mxu0
        %v4701 = vadd.f32 %v4510, %v4700
        %v4702 = vpop.f32.mrb[0].mxu0
        %4703 = vmatprep.mubr.f32.mxu0 0.0
        %v4704 = vand.u32 %v3951, 4294901760
        %v4705 = vsub.f32 %v3951, %v4704
        %v4706 = vand.u32 %v4705, 4294901760
        %4707 = vmatmul.mubr.f32.gmra.mrb[0].mxu0 %v4706
        %v4708 = vpop.f32.mrb[0].mxu0
        %v4709 = vadd.f32 %v4517, %v4708
        %v4710 = vpop.f32.mrb[0].mxu0
        %4711 = vmatprep.mubr.f32.mxu0 0.0
        %v4712 = vand.u32 %v3954, 4294901760
        %v4713 = vsub.f32 %v3954, %v4712
        %v4714 = vand.u32 %v4713, 4294901760
        %4715 = vmatmul.mubr.f32.gmra.mrb[0].mxu0 %v4714
        %v4716 = vpop.f32.mrb[0].mxu0
        %v4717 = vadd.f32 %v4524, %v4716
        %v4718 = vpop.f32.mrb[0].mxu0
        %4719 = vmatprep.mubr.f32.mxu0 0.0
        %v4720 = vand.u32 %v3957, 4294901760
        %v4721 = vsub.f32 %v3957, %v4720
        %v4722 = vand.u32 %v4721, 4294901760
        %4723 = vmatmul.mubr.f32.gmra.mrb[0].mxu0 %v4722
        %v4724 = vpop.f32.mrb[0].mxu0
        %v4725 = vadd.f32 %v4531, %v4724
        %v4726 = vpop.f32.mrb[0].mxu0
        %4727 = vmatprep.mubr.f32.mxu0 0.0
        %v4728 = vand.u32 %v3960, 4294901760
        %v4729 = vsub.f32 %v3960, %v4728
        %v4730 = vand.u32 %v4729, 4294901760
        %4731 = vmatmul.mubr.f32.gmra.mrb[0].mxu0 %v4730
        %v4732 = vpop.f32.mrb[0].mxu0
        %v4733 = vadd.f32 %v4538, %v4732
        %v4734 = vpop.f32.mrb[0].mxu0
        %4735 = vdwg.mxu0
        %4736 = vmatprep.subr.mxu0 0.0
        %v4737 = vand.u32 %v3878, 4294901760
        %v4738 = vsub.f32 %v3878, %v4737
        %v4739 = vand.u32 %v4738, 4294901760
        %4740 = vmatpush1.msra.mxu0 %v4739
        %4741 = vmatprep.subr.mxu0 0.0
        %v4742 = vand.u32 %v3879, 4294901760
        %v4743 = vsub.f32 %v3879, %v4742
        %v4744 = vand.u32 %v4743, 4294901760
        %4745 = vmatpush1.msra.mxu0 %v4744
        %4746 = vmatprep.subr.mxu0 0.0
        %4747 = vmatpush1.msra.mxu0 0.0
        %4748 = vmatprep.subr.mxu0 0.0
        %4749 = vmatpush1.msra.mxu0 0.0
        %4750 = vmatprep.subr.mxu0 0.0
        %4751 = vmatpush1.msra.mxu0 0.0
        %4752 = vmatprep.subr.mxu0 0.0
        %4753 = vmatpush1.msra.mxu0 0.0
        %4754 = vmatprep.subr.mxu0 0.0
        %4755 = vmatpush1.msra.mxu0 0.0
        %4756 = vmatprep.subr.mxu0 0.0
        %4757 = vmatpush1.msra.mxu0 0.0
        %4758 = vmatprep.subr.mxu0 0.0
        %4759 = vmatpush1.msra.mxu0 0.0
        %4760 = vmatprep.subr.mxu0 0.0
        %4761 = vmatpush1.msra.mxu0 0.0
        %4762 = vmatprep.subr.mxu0 0.0
        %4763 = vmatpush1.msra.mxu0 0.0
        %4764 = vmatprep.subr.mxu0 0.0
        %4765 = vmatpush1.msra.mxu0 0.0
        %4766 = vmatprep.subr.mxu0 0.0
        %4767 = vmatpush1.msra.mxu0 0.0
        %4768 = vmatprep.subr.mxu0 0.0
        %4769 = vmatpush1.msra.mxu0 0.0
        %4770 = vmatprep.subr.mxu0 0.0
        %4771 = vmatpush1.msra.mxu0 0.0
        %4772 = vmatprep.subr.mxu0 0.0
        %4773 = vmatpush1.msra.mxu0 0.0
        %4774 = vmatprep.subr.mxu0 0.0
        %4775 = vmatpush1.msra.mxu0 0.0
        %4776 = vmatprep.subr.mxu0 0.0
        %4777 = vmatpush1.msra.mxu0 0.0
        %4778 = vmatprep.subr.mxu0 0.0
        %4779 = vmatpush1.msra.mxu0 0.0
        %4780 = vmatprep.subr.mxu0 0.0
        %4781 = vmatpush1.msra.mxu0 0.0
        %4782 = vmatprep.subr.mxu0 0.0
        %4783 = vmatpush1.msra.mxu0 0.0
        %4784 = vmatprep.subr.mxu0 0.0
        %4785 = vmatpush1.msra.mxu0 0.0
        %4786 = vmatprep.subr.mxu0 0.0
        %4787 = vmatpush1.msra.mxu0 0.0
        %4788 = vmatprep.subr.mxu0 0.0
        %4789 = vmatpush1.msra.mxu0 0.0
        %4790 = vmatprep.subr.mxu0 0.0
        %4791 = vmatpush1.msra.mxu0 0.0
        %4792 = vmatprep.subr.mxu0 0.0
        %4793 = vmatpush1.msra.mxu0 0.0
        %4794 = vmatprep.subr.mxu0 0.0
        %4795 = vmatpush1.msra.mxu0 0.0
        %4796 = vmatprep.subr.mxu0 0.0
        %4797 = vmatpush1.msra.mxu0 0.0
        %4798 = vmatprep.subr.mxu0 0.0
        %4799 = vmatpush1.msra.mxu0 0.0
        %4800 = vmatprep.subr.mxu0 0.0
        %4801 = vmatpush1.msra.mxu0 0.0
        %4802 = vmatprep.subr.mxu0 0.0
        %4803 = vmatpush1.msra.mxu0 0.0
        %4804 = vmatprep.subr.mxu0 0.0
        %4805 = vmatpush1.msra.mxu0 0.0
        %4806 = vmatprep.mubr.f32.mxu0 0.0
        %v4807 = vand.u32 %v3915, 4294901760
        %4808 = vmatmul.mubr.f32.gmra.mrb[0].mxu0 %v4807
        %v4809 = vpop.f32.mrb[0].mxu0
        %v4810 = vadd.f32 %v4613, %v4809
        %v4811 = vpop.f32.mrb[0].mxu0
        %4812 = vmatprep.mubr.f32.mxu0 0.0
        %v4813 = vand.u32 %v3918, 4294901760
        %4814 = vmatmul.mubr.f32.gmra.mrb[0].mxu0 %v4813
        %v4815 = vpop.f32.mrb[0].mxu0
        %v4816 = vadd.f32 %v4621, %v4815
        %v4817 = vpop.f32.mrb[0].mxu0
        %4818 = vmatprep.mubr.f32.mxu0 0.0
        %v4819 = vand.u32 %v3921, 4294901760
        %4820 = vmatmul.mubr.f32.gmra.mrb[0].mxu0 %v4819
        %v4821 = vpop.f32.mrb[0].mxu0
        %v4822 = vadd.f32 %v4629, %v4821
        %v4823 = vpop.f32.mrb[0].mxu0
        %4824 = vmatprep.mubr.f32.mxu0 0.0
        %v4825 = vand.u32 %v3924, 4294901760
        %4826 = vmatmul.mubr.f32.gmra.mrb[0].mxu0 %v4825
        %v4827 = vpop.f32.mrb[0].mxu0
        %v4828 = vadd.f32 %v4637, %v4827
        %v4829 = vpop.f32.mrb[0].mxu0
        %4830 = vmatprep.mubr.f32.mxu0 0.0
        %v4831 = vand.u32 %v3927, 4294901760
        %4832 = vmatmul.mubr.f32.gmra.mrb[0].mxu0 %v4831
        %v4833 = vpop.f32.mrb[0].mxu0
        %v4834 = vadd.f32 %v4645, %v4833
        %v4835 = vpop.f32.mrb[0].mxu0
        %4836 = vmatprep.mubr.f32.mxu0 0.0
        %v4837 = vand.u32 %v3930, 4294901760
        %4838 = vmatmul.mubr.f32.gmra.mrb[0].mxu0 %v4837
        %v4839 = vpop.f32.mrb[0].mxu0
        %v4840 = vadd.f32 %v4653, %v4839
        %v4841 = vpop.f32.mrb[0].mxu0
        %4842 = vmatprep.mubr.f32.mxu0 0.0
        %v4843 = vand.u32 %v3933, 4294901760
        %4844 = vmatmul.mubr.f32.gmra.mrb[0].mxu0 %v4843
        %v4845 = vpop.f32.mrb[0].mxu0
        %v4846 = vadd.f32 %v4661, %v4845
        %v4847 = vpop.f32.mrb[0].mxu0
        %4848 = vmatprep.mubr.f32.mxu0 0.0
        %v4849 = vand.u32 %v3936, 4294901760
        %4850 = vmatmul.mubr.f32.gmra.mrb[0].mxu0 %v4849
        %v4851 = vpop.f32.mrb[0].mxu0
        %v4852 = vadd.f32 %v4669, %v4851
        %v4853 = vpop.f32.mrb[0].mxu0
        %4854 = vmatprep.mubr.f32.mxu0 0.0
        %v4855 = vand.u32 %v3939, 4294901760
        %4856 = vmatmul.mubr.f32.gmra.mrb[0].mxu0 %v4855
        %v4857 = vpop.f32.mrb[0].mxu0
        %v4858 = vadd.f32 %v4677, %v4857
        %v4859 = vpop.f32.mrb[0].mxu0
        %4860 = vmatprep.mubr.f32.mxu0 0.0
        %v4861 = vand.u32 %v3942, 4294901760
        %4862 = vmatmul.mubr.f32.gmra.mrb[0].mxu0 %v4861
        %v4863 = vpop.f32.mrb[0].mxu0
        %v4864 = vadd.f32 %v4685, %v4863
        %v4865 = vpop.f32.mrb[0].mxu0
        %4866 = vmatprep.mubr.f32.mxu0 0.0
        %v4867 = vand.u32 %v3945, 4294901760
        %4868 = vmatmul.mubr.f32.gmra.mrb[0].mxu0 %v4867
        %v4869 = vpop.f32.mrb[0].mxu0
        %v4870 = vadd.f32 %v4693, %v4869
        %v4871 = vpop.f32.mrb[0].mxu0
        %4872 = vmatprep.mubr.f32.mxu0 0.0
        %v4873 = vand.u32 %v3948, 4294901760
        %4874 = vmatmul.mubr.f32.gmra.mrb[0].mxu0 %v4873
        %v4875 = vpop.f32.mrb[0].mxu0
        %v4876 = vadd.f32 %v4701, %v4875
        %v4877 = vpop.f32.mrb[0].mxu0
        %4878 = vmatprep.mubr.f32.mxu0 0.0
        %v4879 = vand.u32 %v3951, 4294901760
        %4880 = vmatmul.mubr.f32.gmra.mrb[0].mxu0 %v4879
        %v4881 = vpop.f32.mrb[0].mxu0
        %v4882 = vadd.f32 %v4709, %v4881
        %v4883 = vpop.f32.mrb[0].mxu0
        %4884 = vmatprep.mubr.f32.mxu0 0.0
        %v4885 = vand.u32 %v3954, 4294901760
        %4886 = vmatmul.mubr.f32.gmra.mrb[0].mxu0 %v4885
        %v4887 = vpop.f32.mrb[0].mxu0
        %v4888 = vadd.f32 %v4717, %v4887
        %v4889 = vpop.f32.mrb[0].mxu0
        %4890 = vmatprep.mubr.f32.mxu0 0.0
        %v4891 = vand.u32 %v3957, 4294901760
        %4892 = vmatmul.mubr.f32.gmra.mrb[0].mxu0 %v4891
        %v4893 = vpop.f32.mrb[0].mxu0
        %v4894 = vadd.f32 %v4725, %v4893
        %v4895 = vpop.f32.mrb[0].mxu0
        %4896 = vmatprep.mubr.f32.mxu0 0.0
        %v4897 = vand.u32 %v3960, 4294901760
        %4898 = vmatmul.mubr.f32.gmra.mrb[0].mxu0 %v4897
        %v4899 = vpop.f32.mrb[0].mxu0
        %v4900 = vadd.f32 %v4733, %v4899
        %v4901 = vpop.f32.mrb[0].mxu0
        %4902 = vdwg.mxu0
        %4903 = vmatprep.subr.mxu0 0.0
        %v4904 = vand.u32 %v3878, 4294901760
        %4905 = vmatpush1.msra.mxu0 %v4904
        %4906 = vmatprep.subr.mxu0 0.0
        %v4907 = vand.u32 %v3879, 4294901760
        %4908 = vmatpush1.msra.mxu0 %v4907
        %4909 = vmatprep.subr.mxu0 0.0
        %4910 = vmatpush1.msra.mxu0 0.0
        %4911 = vmatprep.subr.mxu0 0.0
        %4912 = vmatpush1.msra.mxu0 0.0
        %4913 = vmatprep.subr.mxu0 0.0
        %4914 = vmatpush1.msra.mxu0 0.0
        %4915 = vmatprep.subr.mxu0 0.0
        %4916 = vmatpush1.msra.mxu0 0.0
        %4917 = vmatprep.subr.mxu0 0.0
        %4918 = vmatpush1.msra.mxu0 0.0
        %4919 = vmatprep.subr.mxu0 0.0
        %4920 = vmatpush1.msra.mxu0 0.0
        %4921 = vmatprep.subr.mxu0 0.0
        %4922 = vmatpush1.msra.mxu0 0.0
        %4923 = vmatprep.subr.mxu0 0.0
        %4924 = vmatpush1.msra.mxu0 0.0
        %4925 = vmatprep.subr.mxu0 0.0
        %4926 = vmatpush1.msra.mxu0 0.0
        %4927 = vmatprep.subr.mxu0 0.0
        %4928 = vmatpush1.msra.mxu0 0.0
        %4929 = vmatprep.subr.mxu0 0.0
        %4930 = vmatpush1.msra.mxu0 0.0
        %4931 = vmatprep.subr.mxu0 0.0
        %4932 = vmatpush1.msra.mxu0 0.0
        %4933 = vmatprep.subr.mxu0 0.0
        %4934 = vmatpush1.msra.mxu0 0.0
        %4935 = vmatprep.subr.mxu0 0.0
        %4936 = vmatpush1.msra.mxu0 0.0
        %4937 = vmatprep.subr.mxu0 0.0
        %4938 = vmatpush1.msra.mxu0 0.0
        %4939 = vmatprep.subr.mxu0 0.0
        %4940 = vmatpush1.msra.mxu0 0.0
        %4941 = vmatprep.subr.mxu0 0.0
        %4942 = vmatpush1.msra.mxu0 0.0
        %4943 = vmatprep.subr.mxu0 0.0
        %4944 = vmatpush1.msra.mxu0 0.0
        %4945 = vmatprep.subr.mxu0 0.0
        %4946 = vmatpush1.msra.mxu0 0.0
        %4947 = vmatprep.subr.mxu0 0.0
        %4948 = vmatpush1.msra.mxu0 0.0
        %4949 = vmatprep.subr.mxu0 0.0
        %4950 = vmatpush1.msra.mxu0 0.0
        %4951 = vmatprep.subr.mxu0 0.0
        %4952 = vmatpush1.msra.mxu0 0.0
        %4953 = vmatprep.subr.mxu0 0.0
        %4954 = vmatpush1.msra.mxu0 0.0
        %4955 = vmatprep.subr.mxu0 0.0
        %4956 = vmatpush1.msra.mxu0 0.0
        %4957 = vmatprep.subr.mxu0 0.0
        %4958 = vmatpush1.msra.mxu0 0.0
        %4959 = vmatprep.subr.mxu0 0.0
        %4960 = vmatpush1.msra.mxu0 0.0
        %4961 = vmatprep.subr.mxu0 0.0
        %4962 = vmatpush1.msra.mxu0 0.0
        %4963 = vmatprep.subr.mxu0 0.0
        %4964 = vmatpush1.msra.mxu0 0.0
        %4965 = vmatprep.subr.mxu0 0.0
        %4966 = vmatpush1.msra.mxu0 0.0
        %4967 = vmatprep.subr.mxu0 0.0
        %4968 = vmatpush1.msra.mxu0 0.0
        %4969 = vmatprep.mubr.f32.mxu0 0.0
        %v4970 = vand.u32 %v3915, 4294901760
        %4971 = vmatmul.mubr.f32.gmra.mrb[0].mxu0 %v4970
        %v4972 = vpop.f32.mrb[0].mxu0
        %v4973 = vadd.f32 %v4810, %v4972
        %v4974 = vpop.f32.mrb[0].mxu0
        %4975 = vmatprep.mubr.f32.mxu0 0.0
        %v4976 = vand.u32 %v3918, 4294901760
        %4977 = vmatmul.mubr.f32.gmra.mrb[0].mxu0 %v4976
        %v4978 = vpop.f32.mrb[0].mxu0
        %v4979 = vadd.f32 %v4816, %v4978
        %v4980 = vpop.f32.mrb[0].mxu0
        %4981 = vmatprep.mubr.f32.mxu0 0.0
        %v4982 = vand.u32 %v3921, 4294901760
        %4983 = vmatmul.mubr.f32.gmra.mrb[0].mxu0 %v4982
        %v4984 = vpop.f32.mrb[0].mxu0
        %v4985 = vadd.f32 %v4822, %v4984
        %v4986 = vpop.f32.mrb[0].mxu0
        %4987 = vmatprep.mubr.f32.mxu0 0.0
        %v4988 = vand.u32 %v3924, 4294901760
        %4989 = vmatmul.mubr.f32.gmra.mrb[0].mxu0 %v4988
        %v4990 = vpop.f32.mrb[0].mxu0
        %v4991 = vadd.f32 %v4828, %v4990
        %v4992 = vpop.f32.mrb[0].mxu0
        %4993 = vmatprep.mubr.f32.mxu0 0.0
        %v4994 = vand.u32 %v3927, 4294901760
        %4995 = vmatmul.mubr.f32.gmra.mrb[0].mxu0 %v4994
        %v4996 = vpop.f32.mrb[0].mxu0
        %v4997 = vadd.f32 %v4834, %v4996
        %v4998 = vpop.f32.mrb[0].mxu0
        %4999 = vmatprep.mubr.f32.mxu0 0.0
        %v5000 = vand.u32 %v3930, 4294901760
        %5001 = vmatmul.mubr.f32.gmra.mrb[0].mxu0 %v5000
        %v5002 = vpop.f32.mrb[0].mxu0
        %v5003 = vadd.f32 %v4840, %v5002
        %v5004 = vpop.f32.mrb[0].mxu0
        %5005 = vmatprep.mubr.f32.mxu0 0.0
        %v5006 = vand.u32 %v3933, 4294901760
        %5007 = vmatmul.mubr.f32.gmra.mrb[0].mxu0 %v5006
        %v5008 = vpop.f32.mrb[0].mxu0
        %v5009 = vadd.f32 %v4846, %v5008
        %v5010 = vpop.f32.mrb[0].mxu0
        %5011 = vmatprep.mubr.f32.mxu0 0.0
        %v5012 = vand.u32 %v3936, 4294901760
        %5013 = vmatmul.mubr.f32.gmra.mrb[0].mxu0 %v5012
        %v5014 = vpop.f32.mrb[0].mxu0
        %v5015 = vadd.f32 %v4852, %v5014
        %v5016 = vpop.f32.mrb[0].mxu0
        %5017 = vmatprep.mubr.f32.mxu0 0.0
        %v5018 = vand.u32 %v3939, 4294901760
        %5019 = vmatmul.mubr.f32.gmra.mrb[0].mxu0 %v5018
        %v5020 = vpop.f32.mrb[0].mxu0
        %v5021 = vadd.f32 %v4858, %v5020
        %v5022 = vpop.f32.mrb[0].mxu0
        %5023 = vmatprep.mubr.f32.mxu0 0.0
        %v5024 = vand.u32 %v3942, 4294901760
        %5025 = vmatmul.mubr.f32.gmra.mrb[0].mxu0 %v5024
        %v5026 = vpop.f32.mrb[0].mxu0
        %v5027 = vadd.f32 %v4864, %v5026
        %v5028 = vpop.f32.mrb[0].mxu0
        %5029 = vmatprep.mubr.f32.mxu0 0.0
        %v5030 = vand.u32 %v3945, 4294901760
        %5031 = vmatmul.mubr.f32.gmra.mrb[0].mxu0 %v5030
        %v5032 = vpop.f32.mrb[0].mxu0
        %v5033 = vadd.f32 %v4870, %v5032
        %v5034 = vpop.f32.mrb[0].mxu0
        %5035 = vmatprep.mubr.f32.mxu0 0.0
        %v5036 = vand.u32 %v3948, 4294901760
        %5037 = vmatmul.mubr.f32.gmra.mrb[0].mxu0 %v5036
        %v5038 = vpop.f32.mrb[0].mxu0
        %v5039 = vadd.f32 %v4876, %v5038
        %v5040 = vpop.f32.mrb[0].mxu0
        %5041 = vmatprep.mubr.f32.mxu0 0.0
        %v5042 = vand.u32 %v3951, 4294901760
        %5043 = vmatmul.mubr.f32.gmra.mrb[0].mxu0 %v5042
        %v5044 = vpop.f32.mrb[0].mxu0
        %v5045 = vadd.f32 %v4882, %v5044
        %v5046 = vpop.f32.mrb[0].mxu0
        %5047 = vmatprep.mubr.f32.mxu0 0.0
        %v5048 = vand.u32 %v3954, 4294901760
        %5049 = vmatmul.mubr.f32.gmra.mrb[0].mxu0 %v5048
        %v5050 = vpop.f32.mrb[0].mxu0
        %v5051 = vadd.f32 %v4888, %v5050
        %v5052 = vpop.f32.mrb[0].mxu0
        %5053 = vmatprep.mubr.f32.mxu0 0.0
        %v5054 = vand.u32 %v3957, 4294901760
        %5055 = vmatmul.mubr.f32.gmra.mrb[0].mxu0 %v5054
        %v5056 = vpop.f32.mrb[0].mxu0
        %v5057 = vadd.f32 %v4894, %v5056
        %v5058 = vpop.f32.mrb[0].mxu0
        %5059 = vmatprep.mubr.f32.mxu0 0.0
        %v5060 = vand.u32 %v3960, 4294901760
        %5061 = vmatmul.mubr.f32.gmra.mrb[0].mxu0 %v5060
        %v5062 = vpop.f32.mrb[0].mxu0
        %v5063 = vadd.f32 %v4900, %v5062
        %v5064 = vpop.f32.mrb[0].mxu0
        %5065 = vdwg.mxu0
        %v5066 = vmax.f32 %v4973, 0.0
        %v5067 = vmax.f32 %v4979, 0.0
        %v5068 = vmax.f32 %v4985, 0.0
        %v5069 = vmax.f32 %v4991, 0.0
        %v5070 = vmax.f32 %v4997, 0.0
        %v5071 = vmax.f32 %v5003, 0.0
        %v5072 = vmax.f32 %v5009, 0.0
        %v5073 = vmax.f32 %v5015, 0.0
        %v5074 = vmax.f32 %v5021, 0.0
        %v5075 = vmax.f32 %v5027, 0.0
        %v5076 = vmax.f32 %v5033, 0.0
        %v5077 = vmax.f32 %v5039, 0.0
        %v5078 = vmax.f32 %v5045, 0.0
        %v5079 = vmax.f32 %v5051, 0.0
        %v5080 = vmax.f32 %v5057, 0.0
        %v5081 = vmax.f32 %v5063, 0.0
        %s5082 = scalar_lea.vmem %s501, 128
        %v5083 = vld [vmem:[%s5082] sm:$0xff]
        %v5084 = vld [vmem:[%s5082 + $0x8] sm:$0xff]
        %v5085 = vld [vmem:[%s5082 + $0x10] sm:$0xff]
        %v5086 = vld [vmem:[%s5082 + $0x18] sm:$0xff]
        %v5087 = vld [vmem:[%s5082 + $0x20] sm:$0xff]
        %v5088 = vld [vmem:[%s5082 + $0x28] sm:$0xff]
        %v5089 = vld [vmem:[%s5082 + $0x30] sm:$0xff]
        %v5090 = vld [vmem:[%s5082 + $0x38] sm:$0xff]
        %v5091 = vld [vmem:[%s5082 + $0x40] sm:$0xff]
        %v5092 = vld [vmem:[%s5082 + $0x48] sm:$0xff]
        %v5093 = vld [vmem:[%s5082 + $0x50] sm:$0xff]
        %v5094 = vld [vmem:[%s5082 + $0x58] sm:$0xff]
        %v5095 = vld [vmem:[%s5082 + $0x60] sm:$0xff]
        %v5096 = vld [vmem:[%s5082 + $0x68] sm:$0xff]
        %v5097 = vld [vmem:[%s5082 + $0x70] sm:$0xff]
        %v5098 = vld [vmem:[%s5082 + $0x78] sm:$0xff]
        %s5099 = scalar_lea.vmem %s508, 128
        %v5100 = vld [vmem:[%s5099] sm:$0xff]
        %v5101 = vld [vmem:[%s5099 + $0x8] sm:$0xff]
        %v5102 = vld [vmem:[%s5099 + $0x10] sm:$0xff]
        %v5103 = vld [vmem:[%s5099 + $0x18] sm:$0xff]
        %v5104 = vld [vmem:[%s5099 + $0x20] sm:$0xff]
        %v5105 = vld [vmem:[%s5099 + $0x28] sm:$0xff]
        %v5106 = vld [vmem:[%s5099 + $0x30] sm:$0xff]
        %v5107 = vld [vmem:[%s5099 + $0x38] sm:$0xff]
        %v5108 = vld [vmem:[%s5099 + $0x40] sm:$0xff]
        %v5109 = vld [vmem:[%s5099 + $0x48] sm:$0xff]
        %v5110 = vld [vmem:[%s5099 + $0x50] sm:$0xff]
        %v5111 = vld [vmem:[%s5099 + $0x58] sm:$0xff]
        %v5112 = vld [vmem:[%s5099 + $0x60] sm:$0xff]
        %v5113 = vld [vmem:[%s5099 + $0x68] sm:$0xff]
        %v5114 = vld [vmem:[%s5099 + $0x70] sm:$0xff]
        %v5115 = vld [vmem:[%s5099 + $0x78] sm:$0xff]
        %5116 = vmatprep.subr.mxu0 0.0
        %v5117 = vand.u32 %v5066, 4294901760
        %5118 = vmatpush1.msra.mxu0 %v5117
        %5119 = vmatprep.subr.mxu0 0.0
        %v5120 = vand.u32 %v5067, 4294901760
        %5121 = vmatpush1.msra.mxu0 %v5120
        %5122 = vmatprep.subr.mxu0 0.0
        %v5123 = vand.u32 %v5068, 4294901760
        %5124 = vmatpush1.msra.mxu0 %v5123
        %5125 = vmatprep.subr.mxu0 0.0
        %v5126 = vand.u32 %v5069, 4294901760
        %5127 = vmatpush1.msra.mxu0 %v5126
        %5128 = vmatprep.subr.mxu0 0.0
        %v5129 = vand.u32 %v5070, 4294901760
        %5130 = vmatpush1.msra.mxu0 %v5129
        %5131 = vmatprep.subr.mxu0 0.0
        %v5132 = vand.u32 %v5071, 4294901760
        %5133 = vmatpush1.msra.mxu0 %v5132
        %5134 = vmatprep.subr.mxu0 0.0
        %v5135 = vand.u32 %v5072, 4294901760
        %5136 = vmatpush1.msra.mxu0 %v5135
        %5137 = vmatprep.subr.mxu0 0.0
        %v5138 = vand.u32 %v5073, 4294901760
        %5139 = vmatpush1.msra.mxu0 %v5138
        %5140 = vmatprep.subr.mxu0 0.0
        %v5141 = vand.u32 %v5074, 4294901760
        %5142 = vmatpush1.msra.mxu0 %v5141
        %5143 = vmatprep.subr.mxu0 0.0
        %v5144 = vand.u32 %v5075, 4294901760
        %5145 = vmatpush1.msra.mxu0 %v5144
        %5146 = vmatprep.subr.mxu0 0.0
        %v5147 = vand.u32 %v5076, 4294901760
        %5148 = vmatpush1.msra.mxu0 %v5147
        %5149 = vmatprep.subr.mxu0 0.0
        %v5150 = vand.u32 %v5077, 4294901760
        %5151 = vmatpush1.msra.mxu0 %v5150
        %5152 = vmatprep.subr.mxu0 0.0
        %v5153 = vand.u32 %v5078, 4294901760
        %5154 = vmatpush1.msra.mxu0 %v5153
        %5155 = vmatprep.subr.mxu0 0.0
        %v5156 = vand.u32 %v5079, 4294901760
        %5157 = vmatpush1.msra.mxu0 %v5156
        %5158 = vmatprep.subr.mxu0 0.0
        %v5159 = vand.u32 %v5080, 4294901760
        %5160 = vmatpush1.msra.mxu0 %v5159
        %5161 = vmatprep.subr.mxu0 0.0
        %v5162 = vand.u32 %v5081, 4294901760
        %5163 = vmatpush1.msra.mxu0 %v5162
        %5164 = vmatprep.subr.mxu0 0.0
        %5165 = vmatpush1.msra.mxu0 0.0
        %5166 = vmatprep.subr.mxu0 0.0
        %5167 = vmatpush1.msra.mxu0 0.0
        %5168 = vmatprep.subr.mxu0 0.0
        %5169 = vmatpush1.msra.mxu0 0.0
        %5170 = vmatprep.subr.mxu0 0.0
        %5171 = vmatpush1.msra.mxu0 0.0
        %5172 = vmatprep.subr.mxu0 0.0
        %5173 = vmatpush1.msra.mxu0 0.0
        %5174 = vmatprep.subr.mxu0 0.0
        %5175 = vmatpush1.msra.mxu0 0.0
        %5176 = vmatprep.subr.mxu0 0.0
        %5177 = vmatpush1.msra.mxu0 0.0
        %5178 = vmatprep.subr.mxu0 0.0
        %5179 = vmatpush1.msra.mxu0 0.0
        %5180 = vmatprep.subr.mxu0 0.0
        %5181 = vmatpush1.msra.mxu0 0.0
        %5182 = vmatprep.subr.mxu0 0.0
        %5183 = vmatpush1.msra.mxu0 0.0
        %5184 = vmatprep.subr.mxu0 0.0
        %5185 = vmatpush1.msra.mxu0 0.0
        %5186 = vmatprep.subr.mxu0 0.0
        %5187 = vmatpush1.msra.mxu0 0.0
        %5188 = vmatprep.subr.mxu0 0.0
        %5189 = vmatpush1.msra.mxu0 0.0
        %5190 = vmatprep.subr.mxu0 0.0
        %5191 = vmatpush1.msra.mxu0 0.0
        %5192 = vmatprep.subr.mxu0 0.0
        %5193 = vmatpush1.msra.mxu0 0.0
        %5194 = vmatprep.subr.mxu0 0.0
        %5195 = vmatpush1.msra.mxu0 0.0
        %5196 = vmatprep.mubr.f32.mxu0 0.0
        %v5197 = vand.u32 %v5083, 4294901760
        %v5198 = vsub.f32 %v5083, %v5197
        %v5199 = vand.u32 %v5198, 4294901760
        %v5200 = vsub.f32 %v5198, %v5199
        %v5201 = vand.u32 %v5200, 4294901760
        %5202 = vmatmul.mubr.f32.gmra.mrb[0].mxu0 %v5201
        %v5203 = vpop.f32.mrb[0].mxu0
        %v5204 = vadd.f32 %v5100, %v5203
        %v5205 = vpop.f32.mrb[0].mxu0
        %5206 = vmatprep.mubr.f32.mxu0 0.0
        %v5207 = vand.u32 %v5084, 4294901760
        %v5208 = vsub.f32 %v5084, %v5207
        %v5209 = vand.u32 %v5208, 4294901760
        %v5210 = vsub.f32 %v5208, %v5209
        %v5211 = vand.u32 %v5210, 4294901760
        %5212 = vmatmul.mubr.f32.gmra.mrb[0].mxu0 %v5211
        %v5213 = vpop.f32.mrb[0].mxu0
        %v5214 = vadd.f32 %v5101, %v5213
        %v5215 = vpop.f32.mrb[0].mxu0
        %5216 = vmatprep.mubr.f32.mxu0 0.0
        %v5217 = vand.u32 %v5085, 4294901760
        %v5218 = vsub.f32 %v5085, %v5217
        %v5219 = vand.u32 %v5218, 4294901760
        %v5220 = vsub.f32 %v5218, %v5219
        %v5221 = vand.u32 %v5220, 4294901760
        %5222 = vmatmul.mubr.f32.gmra.mrb[0].mxu0 %v5221
        %v5223 = vpop.f32.mrb[0].mxu0
        %v5224 = vadd.f32 %v5102, %v5223
        %v5225 = vpop.f32.mrb[0].mxu0
        %5226 = vmatprep.mubr.f32.mxu0 0.0
        %v5227 = vand.u32 %v5086, 4294901760
        %v5228 = vsub.f32 %v5086, %v5227
        %v5229 = vand.u32 %v5228, 4294901760
        %v5230 = vsub.f32 %v5228, %v5229
        %v5231 = vand.u32 %v5230, 4294901760
        %5232 = vmatmul.mubr.f32.gmra.mrb[0].mxu0 %v5231
        %v5233 = vpop.f32.mrb[0].mxu0
        %v5234 = vadd.f32 %v5103, %v5233
        %v5235 = vpop.f32.mrb[0].mxu0
        %5236 = vmatprep.mubr.f32.mxu0 0.0
        %v5237 = vand.u32 %v5087, 4294901760
        %v5238 = vsub.f32 %v5087, %v5237
        %v5239 = vand.u32 %v5238, 4294901760
        %v5240 = vsub.f32 %v5238, %v5239
        %v5241 = vand.u32 %v5240, 4294901760
        %5242 = vmatmul.mubr.f32.gmra.mrb[0].mxu0 %v5241
        %v5243 = vpop.f32.mrb[0].mxu0
        %v5244 = vadd.f32 %v5104, %v5243
        %v5245 = vpop.f32.mrb[0].mxu0
        %5246 = vmatprep.mubr.f32.mxu0 0.0
        %v5247 = vand.u32 %v5088, 4294901760
        %v5248 = vsub.f32 %v5088, %v5247
        %v5249 = vand.u32 %v5248, 4294901760
        %v5250 = vsub.f32 %v5248, %v5249
        %v5251 = vand.u32 %v5250, 4294901760
        %5252 = vmatmul.mubr.f32.gmra.mrb[0].mxu0 %v5251
        %v5253 = vpop.f32.mrb[0].mxu0
        %v5254 = vadd.f32 %v5105, %v5253
        %v5255 = vpop.f32.mrb[0].mxu0
        %5256 = vmatprep.mubr.f32.mxu0 0.0
        %v5257 = vand.u32 %v5089, 4294901760
        %v5258 = vsub.f32 %v5089, %v5257
        %v5259 = vand.u32 %v5258, 4294901760
        %v5260 = vsub.f32 %v5258, %v5259
        %v5261 = vand.u32 %v5260, 4294901760
        %5262 = vmatmul.mubr.f32.gmra.mrb[0].mxu0 %v5261
        %v5263 = vpop.f32.mrb[0].mxu0
        %v5264 = vadd.f32 %v5106, %v5263
        %v5265 = vpop.f32.mrb[0].mxu0
        %5266 = vmatprep.mubr.f32.mxu0 0.0
        %v5267 = vand.u32 %v5090, 4294901760
        %v5268 = vsub.f32 %v5090, %v5267
        %v5269 = vand.u32 %v5268, 4294901760
        %v5270 = vsub.f32 %v5268, %v5269
        %v5271 = vand.u32 %v5270, 4294901760
        %5272 = vmatmul.mubr.f32.gmra.mrb[0].mxu0 %v5271
        %v5273 = vpop.f32.mrb[0].mxu0
        %v5274 = vadd.f32 %v5107, %v5273
        %v5275 = vpop.f32.mrb[0].mxu0
        %5276 = vmatprep.mubr.f32.mxu0 0.0
        %v5277 = vand.u32 %v5091, 4294901760
        %v5278 = vsub.f32 %v5091, %v5277
        %v5279 = vand.u32 %v5278, 4294901760
        %v5280 = vsub.f32 %v5278, %v5279
        %v5281 = vand.u32 %v5280, 4294901760
        %5282 = vmatmul.mubr.f32.gmra.mrb[0].mxu0 %v5281
        %v5283 = vpop.f32.mrb[0].mxu0
        %v5284 = vadd.f32 %v5108, %v5283
        %v5285 = vpop.f32.mrb[0].mxu0
        %5286 = vmatprep.mubr.f32.mxu0 0.0
        %v5287 = vand.u32 %v5092, 4294901760
        %v5288 = vsub.f32 %v5092, %v5287
        %v5289 = vand.u32 %v5288, 4294901760
        %v5290 = vsub.f32 %v5288, %v5289
        %v5291 = vand.u32 %v5290, 4294901760
        %5292 = vmatmul.mubr.f32.gmra.mrb[0].mxu0 %v5291
        %v5293 = vpop.f32.mrb[0].mxu0
        %v5294 = vadd.f32 %v5109, %v5293
        %v5295 = vpop.f32.mrb[0].mxu0
        %5296 = vmatprep.mubr.f32.mxu0 0.0
        %v5297 = vand.u32 %v5093, 4294901760
        %v5298 = vsub.f32 %v5093, %v5297
        %v5299 = vand.u32 %v5298, 4294901760
        %v5300 = vsub.f32 %v5298, %v5299
        %v5301 = vand.u32 %v5300, 4294901760
        %5302 = vmatmul.mubr.f32.gmra.mrb[0].mxu0 %v5301
        %v5303 = vpop.f32.mrb[0].mxu0
        %v5304 = vadd.f32 %v5110, %v5303
        %v5305 = vpop.f32.mrb[0].mxu0
        %5306 = vmatprep.mubr.f32.mxu0 0.0
        %v5307 = vand.u32 %v5094, 4294901760
        %v5308 = vsub.f32 %v5094, %v5307
        %v5309 = vand.u32 %v5308, 4294901760
        %v5310 = vsub.f32 %v5308, %v5309
        %v5311 = vand.u32 %v5310, 4294901760
        %5312 = vmatmul.mubr.f32.gmra.mrb[0].mxu0 %v5311
        %v5313 = vpop.f32.mrb[0].mxu0
        %v5314 = vadd.f32 %v5111, %v5313
        %v5315 = vpop.f32.mrb[0].mxu0
        %5316 = vmatprep.mubr.f32.mxu0 0.0
        %v5317 = vand.u32 %v5095, 4294901760
        %v5318 = vsub.f32 %v5095, %v5317
        %v5319 = vand.u32 %v5318, 4294901760
        %v5320 = vsub.f32 %v5318, %v5319
        %v5321 = vand.u32 %v5320, 4294901760
        %5322 = vmatmul.mubr.f32.gmra.mrb[0].mxu0 %v5321
        %v5323 = vpop.f32.mrb[0].mxu0
        %v5324 = vadd.f32 %v5112, %v5323
        %v5325 = vpop.f32.mrb[0].mxu0
        %5326 = vmatprep.mubr.f32.mxu0 0.0
        %v5327 = vand.u32 %v5096, 4294901760
        %v5328 = vsub.f32 %v5096, %v5327
        %v5329 = vand.u32 %v5328, 4294901760
        %v5330 = vsub.f32 %v5328, %v5329
        %v5331 = vand.u32 %v5330, 4294901760
        %5332 = vmatmul.mubr.f32.gmra.mrb[0].mxu0 %v5331
        %v5333 = vpop.f32.mrb[0].mxu0
        %v5334 = vadd.f32 %v5113, %v5333
        %v5335 = vpop.f32.mrb[0].mxu0
        %5336 = vmatprep.mubr.f32.mxu0 0.0
        %v5337 = vand.u32 %v5097, 4294901760
        %v5338 = vsub.f32 %v5097, %v5337
        %v5339 = vand.u32 %v5338, 4294901760
        %v5340 = vsub.f32 %v5338, %v5339
        %v5341 = vand.u32 %v5340, 4294901760
        %5342 = vmatmul.mubr.f32.gmra.mrb[0].mxu0 %v5341
        %v5343 = vpop.f32.mrb[0].mxu0
        %v5344 = vadd.f32 %v5114, %v5343
        %v5345 = vpop.f32.mrb[0].mxu0
        %5346 = vmatprep.mubr.f32.mxu0 0.0
        %v5347 = vand.u32 %v5098, 4294901760
        %v5348 = vsub.f32 %v5098, %v5347
        %v5349 = vand.u32 %v5348, 4294901760
        %v5350 = vsub.f32 %v5348, %v5349
        %v5351 = vand.u32 %v5350, 4294901760
        %5352 = vmatmul.mubr.f32.gmra.mrb[0].mxu0 %v5351
        %v5353 = vpop.f32.mrb[0].mxu0
        %v5354 = vadd.f32 %v5115, %v5353
        %v5355 = vpop.f32.mrb[0].mxu0
        %5356 = vdwg.mxu0
        %5357 = vmatprep.subr.mxu0 0.0
        %v5358 = vand.u32 %v5066, 4294901760
        %v5359 = vsub.f32 %v5066, %v5358
        %v5360 = vand.u32 %v5359, 4294901760
        %v5361 = vsub.f32 %v5359, %v5360
        %v5362 = vand.u32 %v5361, 4294901760
        %5363 = vmatpush1.msra.mxu0 %v5362
        %5364 = vmatprep.subr.mxu0 0.0
        %v5365 = vand.u32 %v5067, 4294901760
        %v5366 = vsub.f32 %v5067, %v5365
        %v5367 = vand.u32 %v5366, 4294901760
        %v5368 = vsub.f32 %v5366, %v5367
        %v5369 = vand.u32 %v5368, 4294901760
        %5370 = vmatpush1.msra.mxu0 %v5369
        %5371 = vmatprep.subr.mxu0 0.0
        %v5372 = vand.u32 %v5068, 4294901760
        %v5373 = vsub.f32 %v5068, %v5372
        %v5374 = vand.u32 %v5373, 4294901760
        %v5375 = vsub.f32 %v5373, %v5374
        %v5376 = vand.u32 %v5375, 4294901760
        %5377 = vmatpush1.msra.mxu0 %v5376
        %5378 = vmatprep.subr.mxu0 0.0
        %v5379 = vand.u32 %v5069, 4294901760
        %v5380 = vsub.f32 %v5069, %v5379
        %v5381 = vand.u32 %v5380, 4294901760
        %v5382 = vsub.f32 %v5380, %v5381
        %v5383 = vand.u32 %v5382, 4294901760
        %5384 = vmatpush1.msra.mxu0 %v5383
        %5385 = vmatprep.subr.mxu0 0.0
        %v5386 = vand.u32 %v5070, 4294901760
        %v5387 = vsub.f32 %v5070, %v5386
        %v5388 = vand.u32 %v5387, 4294901760
        %v5389 = vsub.f32 %v5387, %v5388
        %v5390 = vand.u32 %v5389, 4294901760
        %5391 = vmatpush1.msra.mxu0 %v5390
        %5392 = vmatprep.subr.mxu0 0.0
        %v5393 = vand.u32 %v5071, 4294901760
        %v5394 = vsub.f32 %v5071, %v5393
        %v5395 = vand.u32 %v5394, 4294901760
        %v5396 = vsub.f32 %v5394, %v5395
        %v5397 = vand.u32 %v5396, 4294901760
        %5398 = vmatpush1.msra.mxu0 %v5397
        %5399 = vmatprep.subr.mxu0 0.0
        %v5400 = vand.u32 %v5072, 4294901760
        %v5401 = vsub.f32 %v5072, %v5400
        %v5402 = vand.u32 %v5401, 4294901760
        %v5403 = vsub.f32 %v5401, %v5402
        %v5404 = vand.u32 %v5403, 4294901760
        %5405 = vmatpush1.msra.mxu0 %v5404
        %5406 = vmatprep.subr.mxu0 0.0
        %v5407 = vand.u32 %v5073, 4294901760
        %v5408 = vsub.f32 %v5073, %v5407
        %v5409 = vand.u32 %v5408, 4294901760
        %v5410 = vsub.f32 %v5408, %v5409
        %v5411 = vand.u32 %v5410, 4294901760
        %5412 = vmatpush1.msra.mxu0 %v5411
        %5413 = vmatprep.subr.mxu0 0.0
        %v5414 = vand.u32 %v5074, 4294901760
        %v5415 = vsub.f32 %v5074, %v5414
        %v5416 = vand.u32 %v5415, 4294901760
        %v5417 = vsub.f32 %v5415, %v5416
        %v5418 = vand.u32 %v5417, 4294901760
        %5419 = vmatpush1.msra.mxu0 %v5418
        %5420 = vmatprep.subr.mxu0 0.0
        %v5421 = vand.u32 %v5075, 4294901760
        %v5422 = vsub.f32 %v5075, %v5421
        %v5423 = vand.u32 %v5422, 4294901760
        %v5424 = vsub.f32 %v5422, %v5423
        %v5425 = vand.u32 %v5424, 4294901760
        %5426 = vmatpush1.msra.mxu0 %v5425
        %5427 = vmatprep.subr.mxu0 0.0
        %v5428 = vand.u32 %v5076, 4294901760
        %v5429 = vsub.f32 %v5076, %v5428
        %v5430 = vand.u32 %v5429, 4294901760
        %v5431 = vsub.f32 %v5429, %v5430
        %v5432 = vand.u32 %v5431, 4294901760
        %5433 = vmatpush1.msra.mxu0 %v5432
        %5434 = vmatprep.subr.mxu0 0.0
        %v5435 = vand.u32 %v5077, 4294901760
        %v5436 = vsub.f32 %v5077, %v5435
        %v5437 = vand.u32 %v5436, 4294901760
        %v5438 = vsub.f32 %v5436, %v5437
        %v5439 = vand.u32 %v5438, 4294901760
        %5440 = vmatpush1.msra.mxu0 %v5439
        %5441 = vmatprep.subr.mxu0 0.0
        %v5442 = vand.u32 %v5078, 4294901760
        %v5443 = vsub.f32 %v5078, %v5442
        %v5444 = vand.u32 %v5443, 4294901760
        %v5445 = vsub.f32 %v5443, %v5444
        %v5446 = vand.u32 %v5445, 4294901760
        %5447 = vmatpush1.msra.mxu0 %v5446
        %5448 = vmatprep.subr.mxu0 0.0
        %v5449 = vand.u32 %v5079, 4294901760
        %v5450 = vsub.f32 %v5079, %v5449
        %v5451 = vand.u32 %v5450, 4294901760
        %v5452 = vsub.f32 %v5450, %v5451
        %v5453 = vand.u32 %v5452, 4294901760
        %5454 = vmatpush1.msra.mxu0 %v5453
        %5455 = vmatprep.subr.mxu0 0.0
        %v5456 = vand.u32 %v5080, 4294901760
        %v5457 = vsub.f32 %v5080, %v5456
        %v5458 = vand.u32 %v5457, 4294901760
        %v5459 = vsub.f32 %v5457, %v5458
        %v5460 = vand.u32 %v5459, 4294901760
        %5461 = vmatpush1.msra.mxu0 %v5460
        %5462 = vmatprep.subr.mxu0 0.0
        %v5463 = vand.u32 %v5081, 4294901760
        %v5464 = vsub.f32 %v5081, %v5463
        %v5465 = vand.u32 %v5464, 4294901760
        %v5466 = vsub.f32 %v5464, %v5465
        %v5467 = vand.u32 %v5466, 4294901760
        %5468 = vmatpush1.msra.mxu0 %v5467
        %5469 = vmatprep.subr.mxu0 0.0
        %5470 = vmatpush1.msra.mxu0 0.0
        %5471 = vmatprep.subr.mxu0 0.0
        %5472 = vmatpush1.msra.mxu0 0.0
        %5473 = vmatprep.subr.mxu0 0.0
        %5474 = vmatpush1.msra.mxu0 0.0
        %5475 = vmatprep.subr.mxu0 0.0
        %5476 = vmatpush1.msra.mxu0 0.0
        %5477 = vmatprep.subr.mxu0 0.0
        %5478 = vmatpush1.msra.mxu0 0.0
        %5479 = vmatprep.subr.mxu0 0.0
        %5480 = vmatpush1.msra.mxu0 0.0
        %5481 = vmatprep.subr.mxu0 0.0
        %5482 = vmatpush1.msra.mxu0 0.0
        %5483 = vmatprep.subr.mxu0 0.0
        %5484 = vmatpush1.msra.mxu0 0.0
        %5485 = vmatprep.subr.mxu0 0.0
        %5486 = vmatpush1.msra.mxu0 0.0
        %5487 = vmatprep.subr.mxu0 0.0
        %5488 = vmatpush1.msra.mxu0 0.0
        %5489 = vmatprep.subr.mxu0 0.0
        %5490 = vmatpush1.msra.mxu0 0.0
        %5491 = vmatprep.subr.mxu0 0.0
        %5492 = vmatpush1.msra.mxu0 0.0
        %5493 = vmatprep.subr.mxu0 0.0
        %5494 = vmatpush1.msra.mxu0 0.0
        %5495 = vmatprep.subr.mxu0 0.0
        %5496 = vmatpush1.msra.mxu0 0.0
        %5497 = vmatprep.subr.mxu0 0.0
        %5498 = vmatpush1.msra.mxu0 0.0
        %5499 = vmatprep.subr.mxu0 0.0
        %5500 = vmatpush1.msra.mxu0 0.0
        %5501 = vmatprep.mubr.f32.mxu0 0.0
        %v5502 = vand.u32 %v5083, 4294901760
        %5503 = vmatmul.mubr.f32.gmra.mrb[0].mxu0 %v5502
        %v5504 = vpop.f32.mrb[0].mxu0
        %v5505 = vadd.f32 %v5204, %v5504
        %v5506 = vpop.f32.mrb[0].mxu0
        %5507 = vmatprep.mubr.f32.mxu0 0.0
        %v5508 = vand.u32 %v5084, 4294901760
        %5509 = vmatmul.mubr.f32.gmra.mrb[0].mxu0 %v5508
        %v5510 = vpop.f32.mrb[0].mxu0
        %v5511 = vadd.f32 %v5214, %v5510
        %v5512 = vpop.f32.mrb[0].mxu0
        %5513 = vmatprep.mubr.f32.mxu0 0.0
        %v5514 = vand.u32 %v5085, 4294901760
        %5515 = vmatmul.mubr.f32.gmra.mrb[0].mxu0 %v5514
        %v5516 = vpop.f32.mrb[0].mxu0
        %v5517 = vadd.f32 %v5224, %v5516
        %v5518 = vpop.f32.mrb[0].mxu0
        %5519 = vmatprep.mubr.f32.mxu0 0.0
        %v5520 = vand.u32 %v5086, 4294901760
        %5521 = vmatmul.mubr.f32.gmra.mrb[0].mxu0 %v5520
        %v5522 = vpop.f32.mrb[0].mxu0
        %v5523 = vadd.f32 %v5234, %v5522
        %v5524 = vpop.f32.mrb[0].mxu0
        %5525 = vmatprep.mubr.f32.mxu0 0.0
        %v5526 = vand.u32 %v5087, 4294901760
        %5527 = vmatmul.mubr.f32.gmra.mrb[0].mxu0 %v5526
        %v5528 = vpop.f32.mrb[0].mxu0
        %v5529 = vadd.f32 %v5244, %v5528
        %v5530 = vpop.f32.mrb[0].mxu0
        %5531 = vmatprep.mubr.f32.mxu0 0.0
        %v5532 = vand.u32 %v5088, 4294901760
        %5533 = vmatmul.mubr.f32.gmra.mrb[0].mxu0 %v5532
        %v5534 = vpop.f32.mrb[0].mxu0
        %v5535 = vadd.f32 %v5254, %v5534
        %v5536 = vpop.f32.mrb[0].mxu0
        %5537 = vmatprep.mubr.f32.mxu0 0.0
        %v5538 = vand.u32 %v5089, 4294901760
        %5539 = vmatmul.mubr.f32.gmra.mrb[0].mxu0 %v5538
        %v5540 = vpop.f32.mrb[0].mxu0
        %v5541 = vadd.f32 %v5264, %v5540
        %v5542 = vpop.f32.mrb[0].mxu0
        %5543 = vmatprep.mubr.f32.mxu0 0.0
        %v5544 = vand.u32 %v5090, 4294901760
        %5545 = vmatmul.mubr.f32.gmra.mrb[0].mxu0 %v5544
        %v5546 = vpop.f32.mrb[0].mxu0
        %v5547 = vadd.f32 %v5274, %v5546
        %v5548 = vpop.f32.mrb[0].mxu0
        %5549 = vmatprep.mubr.f32.mxu0 0.0
        %v5550 = vand.u32 %v5091, 4294901760
        %5551 = vmatmul.mubr.f32.gmra.mrb[0].mxu0 %v5550
        %v5552 = vpop.f32.mrb[0].mxu0
        %v5553 = vadd.f32 %v5284, %v5552
        %v5554 = vpop.f32.mrb[0].mxu0
        %5555 = vmatprep.mubr.f32.mxu0 0.0
        %v5556 = vand.u32 %v5092, 4294901760
        %5557 = vmatmul.mubr.f32.gmra.mrb[0].mxu0 %v5556
        %v5558 = vpop.f32.mrb[0].mxu0
        %v5559 = vadd.f32 %v5294, %v5558
        %v5560 = vpop.f32.mrb[0].mxu0
        %5561 = vmatprep.mubr.f32.mxu0 0.0
        %v5562 = vand.u32 %v5093, 4294901760
        %5563 = vmatmul.mubr.f32.gmra.mrb[0].mxu0 %v5562
        %v5564 = vpop.f32.mrb[0].mxu0
        %v5565 = vadd.f32 %v5304, %v5564
        %v5566 = vpop.f32.mrb[0].mxu0
        %5567 = vmatprep.mubr.f32.mxu0 0.0
        %v5568 = vand.u32 %v5094, 4294901760
        %5569 = vmatmul.mubr.f32.gmra.mrb[0].mxu0 %v5568
        %v5570 = vpop.f32.mrb[0].mxu0
        %v5571 = vadd.f32 %v5314, %v5570
        %v5572 = vpop.f32.mrb[0].mxu0
        %5573 = vmatprep.mubr.f32.mxu0 0.0
        %v5574 = vand.u32 %v5095, 4294901760
        %5575 = vmatmul.mubr.f32.gmra.mrb[0].mxu0 %v5574
        %v5576 = vpop.f32.mrb[0].mxu0
        %v5577 = vadd.f32 %v5324, %v5576
        %v5578 = vpop.f32.mrb[0].mxu0
        %5579 = vmatprep.mubr.f32.mxu0 0.0
        %v5580 = vand.u32 %v5096, 4294901760
        %5581 = vmatmul.mubr.f32.gmra.mrb[0].mxu0 %v5580
        %v5582 = vpop.f32.mrb[0].mxu0
        %v5583 = vadd.f32 %v5334, %v5582
        %v5584 = vpop.f32.mrb[0].mxu0
        %5585 = vmatprep.mubr.f32.mxu0 0.0
        %v5586 = vand.u32 %v5097, 4294901760
        %5587 = vmatmul.mubr.f32.gmra.mrb[0].mxu0 %v5586
        %v5588 = vpop.f32.mrb[0].mxu0
        %v5589 = vadd.f32 %v5344, %v5588
        %v5590 = vpop.f32.mrb[0].mxu0
        %5591 = vmatprep.mubr.f32.mxu0 0.0
        %v5592 = vand.u32 %v5098, 4294901760
        %5593 = vmatmul.mubr.f32.gmra.mrb[0].mxu0 %v5592
        %v5594 = vpop.f32.mrb[0].mxu0
        %v5595 = vadd.f32 %v5354, %v5594
        %v5596 = vpop.f32.mrb[0].mxu0
        %5597 = vdwg.mxu0
        %5598 = vmatprep.subr.mxu0 0.0
        %v5599 = vand.u32 %v5066, 4294901760
        %v5600 = vsub.f32 %v5066, %v5599
        %5601 = vmatpush1.msra.mxu0 %v5600
        %5602 = vmatprep.subr.mxu0 0.0
        %v5603 = vand.u32 %v5067, 4294901760
        %v5604 = vsub.f32 %v5067, %v5603
        %5605 = vmatpush1.msra.mxu0 %v5604
        %5606 = vmatprep.subr.mxu0 0.0
        %v5607 = vand.u32 %v5068, 4294901760
        %v5608 = vsub.f32 %v5068, %v5607
        %5609 = vmatpush1.msra.mxu0 %v5608
        %5610 = vmatprep.subr.mxu0 0.0
        %v5611 = vand.u32 %v5069, 4294901760
        %v5612 = vsub.f32 %v5069, %v5611
        %5613 = vmatpush1.msra.mxu0 %v5612
        %5614 = vmatprep.subr.mxu0 0.0
        %v5615 = vand.u32 %v5070, 4294901760
        %v5616 = vsub.f32 %v5070, %v5615
        %5617 = vmatpush1.msra.mxu0 %v5616
        %5618 = vmatprep.subr.mxu0 0.0
        %v5619 = vand.u32 %v5071, 4294901760
        %v5620 = vsub.f32 %v5071, %v5619
        %5621 = vmatpush1.msra.mxu0 %v5620
        %5622 = vmatprep.subr.mxu0 0.0
        %v5623 = vand.u32 %v5072, 4294901760
        %v5624 = vsub.f32 %v5072, %v5623
        %5625 = vmatpush1.msra.mxu0 %v5624
        %5626 = vmatprep.subr.mxu0 0.0
        %v5627 = vand.u32 %v5073, 4294901760
        %v5628 = vsub.f32 %v5073, %v5627
        %5629 = vmatpush1.msra.mxu0 %v5628
        %5630 = vmatprep.subr.mxu0 0.0
        %v5631 = vand.u32 %v5074, 4294901760
        %v5632 = vsub.f32 %v5074, %v5631
        %5633 = vmatpush1.msra.mxu0 %v5632
        %5634 = vmatprep.subr.mxu0 0.0
        %v5635 = vand.u32 %v5075, 4294901760
        %v5636 = vsub.f32 %v5075, %v5635
        %5637 = vmatpush1.msra.mxu0 %v5636
        %5638 = vmatprep.subr.mxu0 0.0
        %v5639 = vand.u32 %v5076, 4294901760
        %v5640 = vsub.f32 %v5076, %v5639
        %5641 = vmatpush1.msra.mxu0 %v5640
        %5642 = vmatprep.subr.mxu0 0.0
        %v5643 = vand.u32 %v5077, 4294901760
        %v5644 = vsub.f32 %v5077, %v5643
        %5645 = vmatpush1.msra.mxu0 %v5644
        %5646 = vmatprep.subr.mxu0 0.0
        %v5647 = vand.u32 %v5078, 4294901760
        %v5648 = vsub.f32 %v5078, %v5647
        %5649 = vmatpush1.msra.mxu0 %v5648
        %5650 = vmatprep.subr.mxu0 0.0
        %v5651 = vand.u32 %v5079, 4294901760
        %v5652 = vsub.f32 %v5079, %v5651
        %5653 = vmatpush1.msra.mxu0 %v5652
        %5654 = vmatprep.subr.mxu0 0.0
        %v5655 = vand.u32 %v5080, 4294901760
        %v5656 = vsub.f32 %v5080, %v5655
        %5657 = vmatpush1.msra.mxu0 %v5656
        %5658 = vmatprep.subr.mxu0 0.0
        %v5659 = vand.u32 %v5081, 4294901760
        %v5660 = vsub.f32 %v5081, %v5659
        %5661 = vmatpush1.msra.mxu0 %v5660
        %5662 = vmatprep.subr.mxu0 0.0
        %5663 = vmatpush1.msra.mxu0 0.0
        %5664 = vmatprep.subr.mxu0 0.0
        %5665 = vmatpush1.msra.mxu0 0.0
        %5666 = vmatprep.subr.mxu0 0.0
        %5667 = vmatpush1.msra.mxu0 0.0
        %5668 = vmatprep.subr.mxu0 0.0
        %5669 = vmatpush1.msra.mxu0 0.0
        %5670 = vmatprep.subr.mxu0 0.0
        %5671 = vmatpush1.msra.mxu0 0.0
        %5672 = vmatprep.subr.mxu0 0.0
        %5673 = vmatpush1.msra.mxu0 0.0
        %5674 = vmatprep.subr.mxu0 0.0
        %5675 = vmatpush1.msra.mxu0 0.0
        %5676 = vmatprep.subr.mxu0 0.0
        %5677 = vmatpush1.msra.mxu0 0.0
        %5678 = vmatprep.subr.mxu0 0.0
        %5679 = vmatpush1.msra.mxu0 0.0
        %5680 = vmatprep.subr.mxu0 0.0
        %5681 = vmatpush1.msra.mxu0 0.0
        %5682 = vmatprep.subr.mxu0 0.0
        %5683 = vmatpush1.msra.mxu0 0.0
        %5684 = vmatprep.subr.mxu0 0.0
        %5685 = vmatpush1.msra.mxu0 0.0
        %5686 = vmatprep.subr.mxu0 0.0
        %5687 = vmatpush1.msra.mxu0 0.0
        %5688 = vmatprep.subr.mxu0 0.0
        %5689 = vmatpush1.msra.mxu0 0.0
        %5690 = vmatprep.subr.mxu0 0.0
        %5691 = vmatpush1.msra.mxu0 0.0
        %5692 = vmatprep.subr.mxu0 0.0
        %5693 = vmatpush1.msra.mxu0 0.0
        %5694 = vmatprep.mubr.f32.mxu0 0.0
        %v5695 = vand.u32 %v5083, 4294901760
        %v5696 = vsub.f32 %v5083, %v5695
        %5697 = vmatmul.mubr.f32.gmra.mrb[0].mxu0 %v5696
        %v5698 = vpop.f32.mrb[0].mxu0
        %v5699 = vadd.f32 %v5505, %v5698
        %v5700 = vpop.f32.mrb[0].mxu0
        %5701 = vmatprep.mubr.f32.mxu0 0.0
        %v5702 = vand.u32 %v5084, 4294901760
        %v5703 = vsub.f32 %v5084, %v5702
        %5704 = vmatmul.mubr.f32.gmra.mrb[0].mxu0 %v5703
        %v5705 = vpop.f32.mrb[0].mxu0
        %v5706 = vadd.f32 %v5511, %v5705
        %v5707 = vpop.f32.mrb[0].mxu0
        %5708 = vmatprep.mubr.f32.mxu0 0.0
        %v5709 = vand.u32 %v5085, 4294901760
        %v5710 = vsub.f32 %v5085, %v5709
        %5711 = vmatmul.mubr.f32.gmra.mrb[0].mxu0 %v5710
        %v5712 = vpop.f32.mrb[0].mxu0
        %v5713 = vadd.f32 %v5517, %v5712
        %v5714 = vpop.f32.mrb[0].mxu0
        %5715 = vmatprep.mubr.f32.mxu0 0.0
        %v5716 = vand.u32 %v5086, 4294901760
        %v5717 = vsub.f32 %v5086, %v5716
        %5718 = vmatmul.mubr.f32.gmra.mrb[0].mxu0 %v5717
        %v5719 = vpop.f32.mrb[0].mxu0
        %v5720 = vadd.f32 %v5523, %v5719
        %v5721 = vpop.f32.mrb[0].mxu0
        %5722 = vmatprep.mubr.f32.mxu0 0.0
        %v5723 = vand.u32 %v5087, 4294901760
        %v5724 = vsub.f32 %v5087, %v5723
        %5725 = vmatmul.mubr.f32.gmra.mrb[0].mxu0 %v5724
        %v5726 = vpop.f32.mrb[0].mxu0
        %v5727 = vadd.f32 %v5529, %v5726
        %v5728 = vpop.f32.mrb[0].mxu0
        %5729 = vmatprep.mubr.f32.mxu0 0.0
        %v5730 = vand.u32 %v5088, 4294901760
        %v5731 = vsub.f32 %v5088, %v5730
        %5732 = vmatmul.mubr.f32.gmra.mrb[0].mxu0 %v5731
        %v5733 = vpop.f32.mrb[0].mxu0
        %v5734 = vadd.f32 %v5535, %v5733
        %v5735 = vpop.f32.mrb[0].mxu0
        %5736 = vmatprep.mubr.f32.mxu0 0.0
        %v5737 = vand.u32 %v5089, 4294901760
        %v5738 = vsub.f32 %v5089, %v5737
        %5739 = vmatmul.mubr.f32.gmra.mrb[0].mxu0 %v5738
        %v5740 = vpop.f32.mrb[0].mxu0
        %v5741 = vadd.f32 %v5541, %v5740
        %v5742 = vpop.f32.mrb[0].mxu0
        %5743 = vmatprep.mubr.f32.mxu0 0.0
        %v5744 = vand.u32 %v5090, 4294901760
        %v5745 = vsub.f32 %v5090, %v5744
        %5746 = vmatmul.mubr.f32.gmra.mrb[0].mxu0 %v5745
        %v5747 = vpop.f32.mrb[0].mxu0
        %v5748 = vadd.f32 %v5547, %v5747
        %v5749 = vpop.f32.mrb[0].mxu0
        %5750 = vmatprep.mubr.f32.mxu0 0.0
        %v5751 = vand.u32 %v5091, 4294901760
        %v5752 = vsub.f32 %v5091, %v5751
        %5753 = vmatmul.mubr.f32.gmra.mrb[0].mxu0 %v5752
        %v5754 = vpop.f32.mrb[0].mxu0
        %v5755 = vadd.f32 %v5553, %v5754
        %v5756 = vpop.f32.mrb[0].mxu0
        %5757 = vmatprep.mubr.f32.mxu0 0.0
        %v5758 = vand.u32 %v5092, 4294901760
        %v5759 = vsub.f32 %v5092, %v5758
        %5760 = vmatmul.mubr.f32.gmra.mrb[0].mxu0 %v5759
        %v5761 = vpop.f32.mrb[0].mxu0
        %v5762 = vadd.f32 %v5559, %v5761
        %v5763 = vpop.f32.mrb[0].mxu0
        %5764 = vmatprep.mubr.f32.mxu0 0.0
        %v5765 = vand.u32 %v5093, 4294901760
        %v5766 = vsub.f32 %v5093, %v5765
        %5767 = vmatmul.mubr.f32.gmra.mrb[0].mxu0 %v5766
        %v5768 = vpop.f32.mrb[0].mxu0
        %v5769 = vadd.f32 %v5565, %v5768
        %v5770 = vpop.f32.mrb[0].mxu0
        %5771 = vmatprep.mubr.f32.mxu0 0.0
        %v5772 = vand.u32 %v5094, 4294901760
        %v5773 = vsub.f32 %v5094, %v5772
        %5774 = vmatmul.mubr.f32.gmra.mrb[0].mxu0 %v5773
        %v5775 = vpop.f32.mrb[0].mxu0
        %v5776 = vadd.f32 %v5571, %v5775
        %v5777 = vpop.f32.mrb[0].mxu0
        %5778 = vmatprep.mubr.f32.mxu0 0.0
        %v5779 = vand.u32 %v5095, 4294901760
        %v5780 = vsub.f32 %v5095, %v5779
        %5781 = vmatmul.mubr.f32.gmra.mrb[0].mxu0 %v5780
        %v5782 = vpop.f32.mrb[0].mxu0
        %v5783 = vadd.f32 %v5577, %v5782
        %v5784 = vpop.f32.mrb[0].mxu0
        %5785 = vmatprep.mubr.f32.mxu0 0.0
        %v5786 = vand.u32 %v5096, 4294901760
        %v5787 = vsub.f32 %v5096, %v5786
        %5788 = vmatmul.mubr.f32.gmra.mrb[0].mxu0 %v5787
        %v5789 = vpop.f32.mrb[0].mxu0
        %v5790 = vadd.f32 %v5583, %v5789
        %v5791 = vpop.f32.mrb[0].mxu0
        %5792 = vmatprep.mubr.f32.mxu0 0.0
        %v5793 = vand.u32 %v5097, 4294901760
        %v5794 = vsub.f32 %v5097, %v5793
        %5795 = vmatmul.mubr.f32.gmra.mrb[0].mxu0 %v5794
        %v5796 = vpop.f32.mrb[0].mxu0
        %v5797 = vadd.f32 %v5589, %v5796
        %v5798 = vpop.f32.mrb[0].mxu0
        %5799 = vmatprep.mubr.f32.mxu0 0.0
        %v5800 = vand.u32 %v5098, 4294901760
        %v5801 = vsub.f32 %v5098, %v5800
        %5802 = vmatmul.mubr.f32.gmra.mrb[0].mxu0 %v5801
        %v5803 = vpop.f32.mrb[0].mxu0
        %v5804 = vadd.f32 %v5595, %v5803
        %v5805 = vpop.f32.mrb[0].mxu0
        %5806 = vdwg.mxu0
        %5807 = vmatprep.subr.mxu0 0.0
        %v5808 = vand.u32 %v5066, 4294901760
        %5809 = vmatpush1.msra.mxu0 %v5808
        %5810 = vmatprep.subr.mxu0 0.0
        %v5811 = vand.u32 %v5067, 4294901760
        %5812 = vmatpush1.msra.mxu0 %v5811
        %5813 = vmatprep.subr.mxu0 0.0
        %v5814 = vand.u32 %v5068, 4294901760
        %5815 = vmatpush1.msra.mxu0 %v5814
        %5816 = vmatprep.subr.mxu0 0.0
        %v5817 = vand.u32 %v5069, 4294901760
        %5818 = vmatpush1.msra.mxu0 %v5817
        %5819 = vmatprep.subr.mxu0 0.0
        %v5820 = vand.u32 %v5070, 4294901760
        %5821 = vmatpush1.msra.mxu0 %v5820
        %5822 = vmatprep.subr.mxu0 0.0
        %v5823 = vand.u32 %v5071, 4294901760
        %5824 = vmatpush1.msra.mxu0 %v5823
        %5825 = vmatprep.subr.mxu0 0.0
        %v5826 = vand.u32 %v5072, 4294901760
        %5827 = vmatpush1.msra.mxu0 %v5826
        %5828 = vmatprep.subr.mxu0 0.0
        %v5829 = vand.u32 %v5073, 4294901760
        %5830 = vmatpush1.msra.mxu0 %v5829
        %5831 = vmatprep.subr.mxu0 0.0
        %v5832 = vand.u32 %v5074, 4294901760
        %5833 = vmatpush1.msra.mxu0 %v5832
        %5834 = vmatprep.subr.mxu0 0.0
        %v5835 = vand.u32 %v5075, 4294901760
        %5836 = vmatpush1.msra.mxu0 %v5835
        %5837 = vmatprep.subr.mxu0 0.0
        %v5838 = vand.u32 %v5076, 4294901760
        %5839 = vmatpush1.msra.mxu0 %v5838
        %5840 = vmatprep.subr.mxu0 0.0
        %v5841 = vand.u32 %v5077, 4294901760
        %5842 = vmatpush1.msra.mxu0 %v5841
        %5843 = vmatprep.subr.mxu0 0.0
        %v5844 = vand.u32 %v5078, 4294901760
        %5845 = vmatpush1.msra.mxu0 %v5844
        %5846 = vmatprep.subr.mxu0 0.0
        %v5847 = vand.u32 %v5079, 4294901760
        %5848 = vmatpush1.msra.mxu0 %v5847
        %5849 = vmatprep.subr.mxu0 0.0
        %v5850 = vand.u32 %v5080, 4294901760
        %5851 = vmatpush1.msra.mxu0 %v5850
        %5852 = vmatprep.subr.mxu0 0.0
        %v5853 = vand.u32 %v5081, 4294901760
        %5854 = vmatpush1.msra.mxu0 %v5853
        %5855 = vmatprep.subr.mxu0 0.0
        %5856 = vmatpush1.msra.mxu0 0.0
        %5857 = vmatprep.subr.mxu0 0.0
        %5858 = vmatpush1.msra.mxu0 0.0
        %5859 = vmatprep.subr.mxu0 0.0
        %5860 = vmatpush1.msra.mxu0 0.0
        %5861 = vmatprep.subr.mxu0 0.0
        %5862 = vmatpush1.msra.mxu0 0.0
        %5863 = vmatprep.subr.mxu0 0.0
        %5864 = vmatpush1.msra.mxu0 0.0
        %5865 = vmatprep.subr.mxu0 0.0
        %5866 = vmatpush1.msra.mxu0 0.0
        %5867 = vmatprep.subr.mxu0 0.0
        %5868 = vmatpush1.msra.mxu0 0.0
        %5869 = vmatprep.subr.mxu0 0.0
        %5870 = vmatpush1.msra.mxu0 0.0
        %5871 = vmatprep.subr.mxu0 0.0
        %5872 = vmatpush1.msra.mxu0 0.0
        %5873 = vmatprep.subr.mxu0 0.0
        %5874 = vmatpush1.msra.mxu0 0.0
        %5875 = vmatprep.subr.mxu0 0.0
        %5876 = vmatpush1.msra.mxu0 0.0
        %5877 = vmatprep.subr.mxu0 0.0
        %5878 = vmatpush1.msra.mxu0 0.0
        %5879 = vmatprep.subr.mxu0 0.0
        %5880 = vmatpush1.msra.mxu0 0.0
        %5881 = vmatprep.subr.mxu0 0.0
        %5882 = vmatpush1.msra.mxu0 0.0
        %5883 = vmatprep.subr.mxu0 0.0
        %5884 = vmatpush1.msra.mxu0 0.0
        %5885 = vmatprep.subr.mxu0 0.0
        %5886 = vmatpush1.msra.mxu0 0.0
        %5887 = vmatprep.mubr.f32.mxu0 0.0
        %v5888 = vand.u32 %v5083, 4294901760
        %v5889 = vsub.f32 %v5083, %v5888
        %v5890 = vand.u32 %v5889, 4294901760
        %5891 = vmatmul.mubr.f32.gmra.mrb[0].mxu0 %v5890
        %v5892 = vpop.f32.mrb[0].mxu0
        %v5893 = vadd.f32 %v5699, %v5892
        %v5894 = vpop.f32.mrb[0].mxu0
        %5895 = vmatprep.mubr.f32.mxu0 0.0
        %v5896 = vand.u32 %v5084, 4294901760
        %v5897 = vsub.f32 %v5084, %v5896
        %v5898 = vand.u32 %v5897, 4294901760
        %5899 = vmatmul.mubr.f32.gmra.mrb[0].mxu0 %v5898
        %v5900 = vpop.f32.mrb[0].mxu0
        %v5901 = vadd.f32 %v5706, %v5900
        %v5902 = vpop.f32.mrb[0].mxu0
        %5903 = vmatprep.mubr.f32.mxu0 0.0
        %v5904 = vand.u32 %v5085, 4294901760
        %v5905 = vsub.f32 %v5085, %v5904
        %v5906 = vand.u32 %v5905, 4294901760
        %5907 = vmatmul.mubr.f32.gmra.mrb[0].mxu0 %v5906
        %v5908 = vpop.f32.mrb[0].mxu0
        %v5909 = vadd.f32 %v5713, %v5908
        %v5910 = vpop.f32.mrb[0].mxu0
        %5911 = vmatprep.mubr.f32.mxu0 0.0
        %v5912 = vand.u32 %v5086, 4294901760
        %v5913 = vsub.f32 %v5086, %v5912
        %v5914 = vand.u32 %v5913, 4294901760
        %5915 = vmatmul.mubr.f32.gmra.mrb[0].mxu0 %v5914
        %v5916 = vpop.f32.mrb[0].mxu0
        %v5917 = vadd.f32 %v5720, %v5916
        %v5918 = vpop.f32.mrb[0].mxu0
        %5919 = vmatprep.mubr.f32.mxu0 0.0
        %v5920 = vand.u32 %v5087, 4294901760
        %v5921 = vsub.f32 %v5087, %v5920
        %v5922 = vand.u32 %v5921, 4294901760
        %5923 = vmatmul.mubr.f32.gmra.mrb[0].mxu0 %v5922
        %v5924 = vpop.f32.mrb[0].mxu0
        %v5925 = vadd.f32 %v5727, %v5924
        %v5926 = vpop.f32.mrb[0].mxu0
        %5927 = vmatprep.mubr.f32.mxu0 0.0
        %v5928 = vand.u32 %v5088, 4294901760
        %v5929 = vsub.f32 %v5088, %v5928
        %v5930 = vand.u32 %v5929, 4294901760
        %5931 = vmatmul.mubr.f32.gmra.mrb[0].mxu0 %v5930
        %v5932 = vpop.f32.mrb[0].mxu0
        %v5933 = vadd.f32 %v5734, %v5932
        %v5934 = vpop.f32.mrb[0].mxu0
        %5935 = vmatprep.mubr.f32.mxu0 0.0
        %v5936 = vand.u32 %v5089, 4294901760
        %v5937 = vsub.f32 %v5089, %v5936
        %v5938 = vand.u32 %v5937, 4294901760
        %5939 = vmatmul.mubr.f32.gmra.mrb[0].mxu0 %v5938
        %v5940 = vpop.f32.mrb[0].mxu0
        %v5941 = vadd.f32 %v5741, %v5940
        %v5942 = vpop.f32.mrb[0].mxu0
        %5943 = vmatprep.mubr.f32.mxu0 0.0
        %v5944 = vand.u32 %v5090, 4294901760
        %v5945 = vsub.f32 %v5090, %v5944
        %v5946 = vand.u32 %v5945, 4294901760
        %5947 = vmatmul.mubr.f32.gmra.mrb[0].mxu0 %v5946
        %v5948 = vpop.f32.mrb[0].mxu0
        %v5949 = vadd.f32 %v5748, %v5948
        %v5950 = vpop.f32.mrb[0].mxu0
        %5951 = vmatprep.mubr.f32.mxu0 0.0
        %v5952 = vand.u32 %v5091, 4294901760
        %v5953 = vsub.f32 %v5091, %v5952
        %v5954 = vand.u32 %v5953, 4294901760
        %5955 = vmatmul.mubr.f32.gmra.mrb[0].mxu0 %v5954
        %v5956 = vpop.f32.mrb[0].mxu0
        %v5957 = vadd.f32 %v5755, %v5956
        %v5958 = vpop.f32.mrb[0].mxu0
        %5959 = vmatprep.mubr.f32.mxu0 0.0
        %v5960 = vand.u32 %v5092, 4294901760
        %v5961 = vsub.f32 %v5092, %v5960
        %v5962 = vand.u32 %v5961, 4294901760
        %5963 = vmatmul.mubr.f32.gmra.mrb[0].mxu0 %v5962
        %v5964 = vpop.f32.mrb[0].mxu0
        %v5965 = vadd.f32 %v5762, %v5964
        %v5966 = vpop.f32.mrb[0].mxu0
        %5967 = vmatprep.mubr.f32.mxu0 0.0
        %v5968 = vand.u32 %v5093, 4294901760
        %v5969 = vsub.f32 %v5093, %v5968
        %v5970 = vand.u32 %v5969, 4294901760
        %5971 = vmatmul.mubr.f32.gmra.mrb[0].mxu0 %v5970
        %v5972 = vpop.f32.mrb[0].mxu0
        %v5973 = vadd.f32 %v5769, %v5972
        %v5974 = vpop.f32.mrb[0].mxu0
        %5975 = vmatprep.mubr.f32.mxu0 0.0
        %v5976 = vand.u32 %v5094, 4294901760
        %v5977 = vsub.f32 %v5094, %v5976
        %v5978 = vand.u32 %v5977, 4294901760
        %5979 = vmatmul.mubr.f32.gmra.mrb[0].mxu0 %v5978
        %v5980 = vpop.f32.mrb[0].mxu0
        %v5981 = vadd.f32 %v5776, %v5980
        %v5982 = vpop.f32.mrb[0].mxu0
        %5983 = vmatprep.mubr.f32.mxu0 0.0
        %v5984 = vand.u32 %v5095, 4294901760
        %v5985 = vsub.f32 %v5095, %v5984
        %v5986 = vand.u32 %v5985, 4294901760
        %5987 = vmatmul.mubr.f32.gmra.mrb[0].mxu0 %v5986
        %v5988 = vpop.f32.mrb[0].mxu0
        %v5989 = vadd.f32 %v5783, %v5988
        %v5990 = vpop.f32.mrb[0].mxu0
        %5991 = vmatprep.mubr.f32.mxu0 0.0
        %v5992 = vand.u32 %v5096, 4294901760
        %v5993 = vsub.f32 %v5096, %v5992
        %v5994 = vand.u32 %v5993, 4294901760
        %5995 = vmatmul.mubr.f32.gmra.mrb[0].mxu0 %v5994
        %v5996 = vpop.f32.mrb[0].mxu0
        %v5997 = vadd.f32 %v5790, %v5996
        %v5998 = vpop.f32.mrb[0].mxu0
        %5999 = vmatprep.mubr.f32.mxu0 0.0
        %v6000 = vand.u32 %v5097, 4294901760
        %v6001 = vsub.f32 %v5097, %v6000
        %v6002 = vand.u32 %v6001, 4294901760
        %6003 = vmatmul.mubr.f32.gmra.mrb[0].mxu0 %v6002
        %v6004 = vpop.f32.mrb[0].mxu0
        %v6005 = vadd.f32 %v5797, %v6004
        %v6006 = vpop.f32.mrb[0].mxu0
        %6007 = vmatprep.mubr.f32.mxu0 0.0
        %v6008 = vand.u32 %v5098, 4294901760
        %v6009 = vsub.f32 %v5098, %v6008
        %v6010 = vand.u32 %v6009, 4294901760
        %6011 = vmatmul.mubr.f32.gmra.mrb[0].mxu0 %v6010
        %v6012 = vpop.f32.mrb[0].mxu0
        %v6013 = vadd.f32 %v5804, %v6012
        %v6014 = vpop.f32.mrb[0].mxu0
        %6015 = vdwg.mxu0
        %6016 = vmatprep.subr.mxu0 0.0
        %v6017 = vand.u32 %v5066, 4294901760
        %v6018 = vsub.f32 %v5066, %v6017
        %v6019 = vand.u32 %v6018, 4294901760
        %6020 = vmatpush1.msra.mxu0 %v6019
        %6021 = vmatprep.subr.mxu0 0.0
        %v6022 = vand.u32 %v5067, 4294901760
        %v6023 = vsub.f32 %v5067, %v6022
        %v6024 = vand.u32 %v6023, 4294901760
        %6025 = vmatpush1.msra.mxu0 %v6024
        %6026 = vmatprep.subr.mxu0 0.0
        %v6027 = vand.u32 %v5068, 4294901760
        %v6028 = vsub.f32 %v5068, %v6027
        %v6029 = vand.u32 %v6028, 4294901760
        %6030 = vmatpush1.msra.mxu0 %v6029
        %6031 = vmatprep.subr.mxu0 0.0
        %v6032 = vand.u32 %v5069, 4294901760
        %v6033 = vsub.f32 %v5069, %v6032
        %v6034 = vand.u32 %v6033, 4294901760
        %6035 = vmatpush1.msra.mxu0 %v6034
        %6036 = vmatprep.subr.mxu0 0.0
        %v6037 = vand.u32 %v5070, 4294901760
        %v6038 = vsub.f32 %v5070, %v6037
        %v6039 = vand.u32 %v6038, 4294901760
        %6040 = vmatpush1.msra.mxu0 %v6039
        %6041 = vmatprep.subr.mxu0 0.0
        %v6042 = vand.u32 %v5071, 4294901760
        %v6043 = vsub.f32 %v5071, %v6042
        %v6044 = vand.u32 %v6043, 4294901760
        %6045 = vmatpush1.msra.mxu0 %v6044
        %6046 = vmatprep.subr.mxu0 0.0
        %v6047 = vand.u32 %v5072, 4294901760
        %v6048 = vsub.f32 %v5072, %v6047
        %v6049 = vand.u32 %v6048, 4294901760
        %6050 = vmatpush1.msra.mxu0 %v6049
        %6051 = vmatprep.subr.mxu0 0.0
        %v6052 = vand.u32 %v5073, 4294901760
        %v6053 = vsub.f32 %v5073, %v6052
        %v6054 = vand.u32 %v6053, 4294901760
        %6055 = vmatpush1.msra.mxu0 %v6054
        %6056 = vmatprep.subr.mxu0 0.0
        %v6057 = vand.u32 %v5074, 4294901760
        %v6058 = vsub.f32 %v5074, %v6057
        %v6059 = vand.u32 %v6058, 4294901760
        %6060 = vmatpush1.msra.mxu0 %v6059
        %6061 = vmatprep.subr.mxu0 0.0
        %v6062 = vand.u32 %v5075, 4294901760
        %v6063 = vsub.f32 %v5075, %v6062
        %v6064 = vand.u32 %v6063, 4294901760
        %6065 = vmatpush1.msra.mxu0 %v6064
        %6066 = vmatprep.subr.mxu0 0.0
        %v6067 = vand.u32 %v5076, 4294901760
        %v6068 = vsub.f32 %v5076, %v6067
        %v6069 = vand.u32 %v6068, 4294901760
        %6070 = vmatpush1.msra.mxu0 %v6069
        %6071 = vmatprep.subr.mxu0 0.0
        %v6072 = vand.u32 %v5077, 4294901760
        %v6073 = vsub.f32 %v5077, %v6072
        %v6074 = vand.u32 %v6073, 4294901760
        %6075 = vmatpush1.msra.mxu0 %v6074
        %6076 = vmatprep.subr.mxu0 0.0
        %v6077 = vand.u32 %v5078, 4294901760
        %v6078 = vsub.f32 %v5078, %v6077
        %v6079 = vand.u32 %v6078, 4294901760
        %6080 = vmatpush1.msra.mxu0 %v6079
        %6081 = vmatprep.subr.mxu0 0.0
        %v6082 = vand.u32 %v5079, 4294901760
        %v6083 = vsub.f32 %v5079, %v6082
        %v6084 = vand.u32 %v6083, 4294901760
        %6085 = vmatpush1.msra.mxu0 %v6084
        %6086 = vmatprep.subr.mxu0 0.0
        %v6087 = vand.u32 %v5080, 4294901760
        %v6088 = vsub.f32 %v5080, %v6087
        %v6089 = vand.u32 %v6088, 4294901760
        %6090 = vmatpush1.msra.mxu0 %v6089
        %6091 = vmatprep.subr.mxu0 0.0
        %v6092 = vand.u32 %v5081, 4294901760
        %v6093 = vsub.f32 %v5081, %v6092
        %v6094 = vand.u32 %v6093, 4294901760
        %6095 = vmatpush1.msra.mxu0 %v6094
        %6096 = vmatprep.subr.mxu0 0.0
        %6097 = vmatpush1.msra.mxu0 0.0
        %6098 = vmatprep.subr.mxu0 0.0
        %6099 = vmatpush1.msra.mxu0 0.0
        %6100 = vmatprep.subr.mxu0 0.0
        %6101 = vmatpush1.msra.mxu0 0.0
        %6102 = vmatprep.subr.mxu0 0.0
        %6103 = vmatpush1.msra.mxu0 0.0
        %6104 = vmatprep.subr.mxu0 0.0
        %6105 = vmatpush1.msra.mxu0 0.0
        %6106 = vmatprep.subr.mxu0 0.0
        %6107 = vmatpush1.msra.mxu0 0.0
        %6108 = vmatprep.subr.mxu0 0.0
        %6109 = vmatpush1.msra.mxu0 0.0
        %6110 = vmatprep.subr.mxu0 0.0
        %6111 = vmatpush1.msra.mxu0 0.0
        %6112 = vmatprep.subr.mxu0 0.0
        %6113 = vmatpush1.msra.mxu0 0.0
        %6114 = vmatprep.subr.mxu0 0.0
        %6115 = vmatpush1.msra.mxu0 0.0
        %6116 = vmatprep.subr.mxu0 0.0
        %6117 = vmatpush1.msra.mxu0 0.0
        %6118 = vmatprep.subr.mxu0 0.0
        %6119 = vmatpush1.msra.mxu0 0.0
        %6120 = vmatprep.subr.mxu0 0.0
        %6121 = vmatpush1.msra.mxu0 0.0
        %6122 = vmatprep.subr.mxu0 0.0
        %6123 = vmatpush1.msra.mxu0 0.0
        %6124 = vmatprep.subr.mxu0 0.0
        %6125 = vmatpush1.msra.mxu0 0.0
        %6126 = vmatprep.subr.mxu0 0.0
        %6127 = vmatpush1.msra.mxu0 0.0
        %6128 = vmatprep.mubr.f32.mxu0 0.0
        %v6129 = vand.u32 %v5083, 4294901760
        %6130 = vmatmul.mubr.f32.gmra.mrb[0].mxu0 %v6129
        %v6131 = vpop.f32.mrb[0].mxu0
        %v6132 = vadd.f32 %v5893, %v6131
        %v6133 = vpop.f32.mrb[0].mxu0
        %6134 = vmatprep.mubr.f32.mxu0 0.0
        %v6135 = vand.u32 %v5084, 4294901760
        %6136 = vmatmul.mubr.f32.gmra.mrb[0].mxu0 %v6135
        %v6137 = vpop.f32.mrb[0].mxu0
        %v6138 = vadd.f32 %v5901, %v6137
        %v6139 = vpop.f32.mrb[0].mxu0
        %6140 = vmatprep.mubr.f32.mxu0 0.0
        %v6141 = vand.u32 %v5085, 4294901760
        %6142 = vmatmul.mubr.f32.gmra.mrb[0].mxu0 %v6141
        %v6143 = vpop.f32.mrb[0].mxu0
        %v6144 = vadd.f32 %v5909, %v6143
        %v6145 = vpop.f32.mrb[0].mxu0
        %6146 = vmatprep.mubr.f32.mxu0 0.0
        %v6147 = vand.u32 %v5086, 4294901760
        %6148 = vmatmul.mubr.f32.gmra.mrb[0].mxu0 %v6147
        %v6149 = vpop.f32.mrb[0].mxu0
        %v6150 = vadd.f32 %v5917, %v6149
        %v6151 = vpop.f32.mrb[0].mxu0
        %6152 = vmatprep.mubr.f32.mxu0 0.0
        %v6153 = vand.u32 %v5087, 4294901760
        %6154 = vmatmul.mubr.f32.gmra.mrb[0].mxu0 %v6153
        %v6155 = vpop.f32.mrb[0].mxu0
        %v6156 = vadd.f32 %v5925, %v6155
        %v6157 = vpop.f32.mrb[0].mxu0
        %6158 = vmatprep.mubr.f32.mxu0 0.0
        %v6159 = vand.u32 %v5088, 4294901760
        %6160 = vmatmul.mubr.f32.gmra.mrb[0].mxu0 %v6159
        %v6161 = vpop.f32.mrb[0].mxu0
        %v6162 = vadd.f32 %v5933, %v6161
        %v6163 = vpop.f32.mrb[0].mxu0
        %6164 = vmatprep.mubr.f32.mxu0 0.0
        %v6165 = vand.u32 %v5089, 4294901760
        %6166 = vmatmul.mubr.f32.gmra.mrb[0].mxu0 %v6165
        %v6167 = vpop.f32.mrb[0].mxu0
        %v6168 = vadd.f32 %v5941, %v6167
        %v6169 = vpop.f32.mrb[0].mxu0
        %6170 = vmatprep.mubr.f32.mxu0 0.0
        %v6171 = vand.u32 %v5090, 4294901760
        %6172 = vmatmul.mubr.f32.gmra.mrb[0].mxu0 %v6171
        %v6173 = vpop.f32.mrb[0].mxu0
        %v6174 = vadd.f32 %v5949, %v6173
        %v6175 = vpop.f32.mrb[0].mxu0
        %6176 = vmatprep.mubr.f32.mxu0 0.0
        %v6177 = vand.u32 %v5091, 4294901760
        %6178 = vmatmul.mubr.f32.gmra.mrb[0].mxu0 %v6177
        %v6179 = vpop.f32.mrb[0].mxu0
        %v6180 = vadd.f32 %v5957, %v6179
        %v6181 = vpop.f32.mrb[0].mxu0
        %6182 = vmatprep.mubr.f32.mxu0 0.0
        %v6183 = vand.u32 %v5092, 4294901760
        %6184 = vmatmul.mubr.f32.gmra.mrb[0].mxu0 %v6183
        %v6185 = vpop.f32.mrb[0].mxu0
        %v6186 = vadd.f32 %v5965, %v6185
        %v6187 = vpop.f32.mrb[0].mxu0
        %6188 = vmatprep.mubr.f32.mxu0 0.0
        %v6189 = vand.u32 %v5093, 4294901760
        %6190 = vmatmul.mubr.f32.gmra.mrb[0].mxu0 %v6189
        %v6191 = vpop.f32.mrb[0].mxu0
        %v6192 = vadd.f32 %v5973, %v6191
        %v6193 = vpop.f32.mrb[0].mxu0
        %6194 = vmatprep.mubr.f32.mxu0 0.0
        %v6195 = vand.u32 %v5094, 4294901760
        %6196 = vmatmul.mubr.f32.gmra.mrb[0].mxu0 %v6195
        %v6197 = vpop.f32.mrb[0].mxu0
        %v6198 = vadd.f32 %v5981, %v6197
        %v6199 = vpop.f32.mrb[0].mxu0
        %6200 = vmatprep.mubr.f32.mxu0 0.0
        %v6201 = vand.u32 %v5095, 4294901760
        %6202 = vmatmul.mubr.f32.gmra.mrb[0].mxu0 %v6201
        %v6203 = vpop.f32.mrb[0].mxu0
        %v6204 = vadd.f32 %v5989, %v6203
        %v6205 = vpop.f32.mrb[0].mxu0
        %6206 = vmatprep.mubr.f32.mxu0 0.0
        %v6207 = vand.u32 %v5096, 4294901760
        %6208 = vmatmul.mubr.f32.gmra.mrb[0].mxu0 %v6207
        %v6209 = vpop.f32.mrb[0].mxu0
        %v6210 = vadd.f32 %v5997, %v6209
        %v6211 = vpop.f32.mrb[0].mxu0
        %6212 = vmatprep.mubr.f32.mxu0 0.0
        %v6213 = vand.u32 %v5097, 4294901760
        %6214 = vmatmul.mubr.f32.gmra.mrb[0].mxu0 %v6213
        %v6215 = vpop.f32.mrb[0].mxu0
        %v6216 = vadd.f32 %v6005, %v6215
        %v6217 = vpop.f32.mrb[0].mxu0
        %6218 = vmatprep.mubr.f32.mxu0 0.0
        %v6219 = vand.u32 %v5098, 4294901760
        %6220 = vmatmul.mubr.f32.gmra.mrb[0].mxu0 %v6219
        %v6221 = vpop.f32.mrb[0].mxu0
        %v6222 = vadd.f32 %v6013, %v6221
        %v6223 = vpop.f32.mrb[0].mxu0
        %6224 = vdwg.mxu0
        %6225 = vmatprep.subr.mxu0 0.0
        %v6226 = vand.u32 %v5066, 4294901760
        %6227 = vmatpush1.msra.mxu0 %v6226
        %6228 = vmatprep.subr.mxu0 0.0
        %v6229 = vand.u32 %v5067, 4294901760
        %6230 = vmatpush1.msra.mxu0 %v6229
        %6231 = vmatprep.subr.mxu0 0.0
        %v6232 = vand.u32 %v5068, 4294901760
        %6233 = vmatpush1.msra.mxu0 %v6232
        %6234 = vmatprep.subr.mxu0 0.0
        %v6235 = vand.u32 %v5069, 4294901760
        %6236 = vmatpush1.msra.mxu0 %v6235
        %6237 = vmatprep.subr.mxu0 0.0
        %v6238 = vand.u32 %v5070, 4294901760
        %6239 = vmatpush1.msra.mxu0 %v6238
        %6240 = vmatprep.subr.mxu0 0.0
        %v6241 = vand.u32 %v5071, 4294901760
        %6242 = vmatpush1.msra.mxu0 %v6241
        %6243 = vmatprep.subr.mxu0 0.0
        %v6244 = vand.u32 %v5072, 4294901760
        %6245 = vmatpush1.msra.mxu0 %v6244
        %6246 = vmatprep.subr.mxu0 0.0
        %v6247 = vand.u32 %v5073, 4294901760
        %6248 = vmatpush1.msra.mxu0 %v6247
        %6249 = vmatprep.subr.mxu0 0.0
        %v6250 = vand.u32 %v5074, 4294901760
        %6251 = vmatpush1.msra.mxu0 %v6250
        %6252 = vmatprep.subr.mxu0 0.0
        %v6253 = vand.u32 %v5075, 4294901760
        %6254 = vmatpush1.msra.mxu0 %v6253
        %6255 = vmatprep.subr.mxu0 0.0
        %v6256 = vand.u32 %v5076, 4294901760
        %6257 = vmatpush1.msra.mxu0 %v6256
        %6258 = vmatprep.subr.mxu0 0.0
        %v6259 = vand.u32 %v5077, 4294901760
        %6260 = vmatpush1.msra.mxu0 %v6259
        %6261 = vmatprep.subr.mxu0 0.0
        %v6262 = vand.u32 %v5078, 4294901760
        %6263 = vmatpush1.msra.mxu0 %v6262
        %6264 = vmatprep.subr.mxu0 0.0
        %v6265 = vand.u32 %v5079, 4294901760
        %6266 = vmatpush1.msra.mxu0 %v6265
        %6267 = vmatprep.subr.mxu0 0.0
        %v6268 = vand.u32 %v5080, 4294901760
        %6269 = vmatpush1.msra.mxu0 %v6268
        %6270 = vmatprep.subr.mxu0 0.0
        %v6271 = vand.u32 %v5081, 4294901760
        %6272 = vmatpush1.msra.mxu0 %v6271
        %6273 = vmatprep.subr.mxu0 0.0
        %6274 = vmatpush1.msra.mxu0 0.0
        %6275 = vmatprep.subr.mxu0 0.0
        %6276 = vmatpush1.msra.mxu0 0.0
        %6277 = vmatprep.subr.mxu0 0.0
        %6278 = vmatpush1.msra.mxu0 0.0
        %6279 = vmatprep.subr.mxu0 0.0
        %6280 = vmatpush1.msra.mxu0 0.0
        %6281 = vmatprep.subr.mxu0 0.0
        %6282 = vmatpush1.msra.mxu0 0.0
        %6283 = vmatprep.subr.mxu0 0.0
        %6284 = vmatpush1.msra.mxu0 0.0
        %6285 = vmatprep.subr.mxu0 0.0
        %6286 = vmatpush1.msra.mxu0 0.0
        %6287 = vmatprep.subr.mxu0 0.0
        %6288 = vmatpush1.msra.mxu0 0.0
        %6289 = vmatprep.subr.mxu0 0.0
        %6290 = vmatpush1.msra.mxu0 0.0
        %6291 = vmatprep.subr.mxu0 0.0
        %6292 = vmatpush1.msra.mxu0 0.0
        %6293 = vmatprep.subr.mxu0 0.0
        %6294 = vmatpush1.msra.mxu0 0.0
        %6295 = vmatprep.subr.mxu0 0.0
        %6296 = vmatpush1.msra.mxu0 0.0
        %6297 = vmatprep.subr.mxu0 0.0
        %6298 = vmatpush1.msra.mxu0 0.0
        %6299 = vmatprep.subr.mxu0 0.0
        %6300 = vmatpush1.msra.mxu0 0.0
        %6301 = vmatprep.subr.mxu0 0.0
        %6302 = vmatpush1.msra.mxu0 0.0
        %6303 = vmatprep.subr.mxu0 0.0
        %6304 = vmatpush1.msra.mxu0 0.0
        %6305 = vmatprep.mubr.f32.mxu0 0.0
        %v6306 = vand.u32 %v5083, 4294901760
        %6307 = vmatmul.mubr.f32.gmra.mrb[0].mxu0 %v6306
        %v6308 = vpop.f32.mrb[0].mxu0
        %v6309 = vadd.f32 %v6132, %v6308
        %v6310 = vpop.f32.mrb[0].mxu0
        %6311 = vmatprep.mubr.f32.mxu0 0.0
        %v6312 = vand.u32 %v5084, 4294901760
        %6313 = vmatmul.mubr.f32.gmra.mrb[0].mxu0 %v6312
        %v6314 = vpop.f32.mrb[0].mxu0
        %v6315 = vadd.f32 %v6138, %v6314
        %v6316 = vpop.f32.mrb[0].mxu0
        %6317 = vmatprep.mubr.f32.mxu0 0.0
        %v6318 = vand.u32 %v5085, 4294901760
        %6319 = vmatmul.mubr.f32.gmra.mrb[0].mxu0 %v6318
        %v6320 = vpop.f32.mrb[0].mxu0
        %v6321 = vadd.f32 %v6144, %v6320
        %v6322 = vpop.f32.mrb[0].mxu0
        %6323 = vmatprep.mubr.f32.mxu0 0.0
        %v6324 = vand.u32 %v5086, 4294901760
        %6325 = vmatmul.mubr.f32.gmra.mrb[0].mxu0 %v6324
        %v6326 = vpop.f32.mrb[0].mxu0
        %v6327 = vadd.f32 %v6150, %v6326
        %v6328 = vpop.f32.mrb[0].mxu0
        %6329 = vmatprep.mubr.f32.mxu0 0.0
        %v6330 = vand.u32 %v5087, 4294901760
        %6331 = vmatmul.mubr.f32.gmra.mrb[0].mxu0 %v6330
        %v6332 = vpop.f32.mrb[0].mxu0
        %v6333 = vadd.f32 %v6156, %v6332
        %v6334 = vpop.f32.mrb[0].mxu0
        %6335 = vmatprep.mubr.f32.mxu0 0.0
        %v6336 = vand.u32 %v5088, 4294901760
        %6337 = vmatmul.mubr.f32.gmra.mrb[0].mxu0 %v6336
        %v6338 = vpop.f32.mrb[0].mxu0
        %v6339 = vadd.f32 %v6162, %v6338
        %v6340 = vpop.f32.mrb[0].mxu0
        %6341 = vmatprep.mubr.f32.mxu0 0.0
        %v6342 = vand.u32 %v5089, 4294901760
        %6343 = vmatmul.mubr.f32.gmra.mrb[0].mxu0 %v6342
        %v6344 = vpop.f32.mrb[0].mxu0
        %v6345 = vadd.f32 %v6168, %v6344
        %v6346 = vpop.f32.mrb[0].mxu0
        %6347 = vmatprep.mubr.f32.mxu0 0.0
        %v6348 = vand.u32 %v5090, 4294901760
        %6349 = vmatmul.mubr.f32.gmra.mrb[0].mxu0 %v6348
        %v6350 = vpop.f32.mrb[0].mxu0
        %v6351 = vadd.f32 %v6174, %v6350
        %v6352 = vpop.f32.mrb[0].mxu0
        %6353 = vmatprep.mubr.f32.mxu0 0.0
        %v6354 = vand.u32 %v5091, 4294901760
        %6355 = vmatmul.mubr.f32.gmra.mrb[0].mxu0 %v6354
        %v6356 = vpop.f32.mrb[0].mxu0
        %v6357 = vadd.f32 %v6180, %v6356
        %v6358 = vpop.f32.mrb[0].mxu0
        %6359 = vmatprep.mubr.f32.mxu0 0.0
        %v6360 = vand.u32 %v5092, 4294901760
        %6361 = vmatmul.mubr.f32.gmra.mrb[0].mxu0 %v6360
        %v6362 = vpop.f32.mrb[0].mxu0
        %v6363 = vadd.f32 %v6186, %v6362
        %v6364 = vpop.f32.mrb[0].mxu0
        %6365 = vmatprep.mubr.f32.mxu0 0.0
        %v6366 = vand.u32 %v5093, 4294901760
        %6367 = vmatmul.mubr.f32.gmra.mrb[0].mxu0 %v6366
        %v6368 = vpop.f32.mrb[0].mxu0
        %v6369 = vadd.f32 %v6192, %v6368
        %v6370 = vpop.f32.mrb[0].mxu0
        %6371 = vmatprep.mubr.f32.mxu0 0.0
        %v6372 = vand.u32 %v5094, 4294901760
        %6373 = vmatmul.mubr.f32.gmra.mrb[0].mxu0 %v6372
        %v6374 = vpop.f32.mrb[0].mxu0
        %v6375 = vadd.f32 %v6198, %v6374
        %v6376 = vpop.f32.mrb[0].mxu0
        %6377 = vmatprep.mubr.f32.mxu0 0.0
        %v6378 = vand.u32 %v5095, 4294901760
        %6379 = vmatmul.mubr.f32.gmra.mrb[0].mxu0 %v6378
        %v6380 = vpop.f32.mrb[0].mxu0
        %v6381 = vadd.f32 %v6204, %v6380
        %v6382 = vpop.f32.mrb[0].mxu0
        %6383 = vmatprep.mubr.f32.mxu0 0.0
        %v6384 = vand.u32 %v5096, 4294901760
        %6385 = vmatmul.mubr.f32.gmra.mrb[0].mxu0 %v6384
        %v6386 = vpop.f32.mrb[0].mxu0
        %v6387 = vadd.f32 %v6210, %v6386
        %v6388 = vpop.f32.mrb[0].mxu0
        %6389 = vmatprep.mubr.f32.mxu0 0.0
        %v6390 = vand.u32 %v5097, 4294901760
        %6391 = vmatmul.mubr.f32.gmra.mrb[0].mxu0 %v6390
        %v6392 = vpop.f32.mrb[0].mxu0
        %v6393 = vadd.f32 %v6216, %v6392
        %v6394 = vpop.f32.mrb[0].mxu0
        %6395 = vmatprep.mubr.f32.mxu0 0.0
        %v6396 = vand.u32 %v5098, 4294901760
        %6397 = vmatmul.mubr.f32.gmra.mrb[0].mxu0 %v6396
        %v6398 = vpop.f32.mrb[0].mxu0
        %v6399 = vadd.f32 %v6222, %v6398
        %v6400 = vpop.f32.mrb[0].mxu0
        %6401 = vdwg.mxu0
        %v6402 = vmax.f32 %v6309, 0.0
        %v6403 = vmax.f32 %v6315, 0.0
        %v6404 = vmax.f32 %v6321, 0.0
        %v6405 = vmax.f32 %v6327, 0.0
        %v6406 = vmax.f32 %v6333, 0.0
        %v6407 = vmax.f32 %v6339, 0.0
        %v6408 = vmax.f32 %v6345, 0.0
        %v6409 = vmax.f32 %v6351, 0.0
        %v6410 = vmax.f32 %v6357, 0.0
        %v6411 = vmax.f32 %v6363, 0.0
        %v6412 = vmax.f32 %v6369, 0.0
        %v6413 = vmax.f32 %v6375, 0.0
        %v6414 = vmax.f32 %v6381, 0.0
        %v6415 = vmax.f32 %v6387, 0.0
        %v6416 = vmax.f32 %v6393, 0.0
        %v6417 = vmax.f32 %v6399, 0.0
        %s6418 = scalar_lea.vmem %s514, 8
        %v6419 = vld [vmem:[%s6418] sm:$0xff]
        %s6420 = scalar_lea.vmem %s520, 8
        %v6421 = vld [vmem:[%s6420] sm:$0xff]
        %6422 = vmatprep.subr.mxu0 0.0
        %v6423 = vand.u32 %v6402, 4294901760
        %6424 = vmatpush1.msra.mxu0 %v6423
        %6425 = vmatprep.subr.mxu0 0.0
        %v6426 = vand.u32 %v6403, 4294901760
        %6427 = vmatpush1.msra.mxu0 %v6426
        %6428 = vmatprep.subr.mxu0 0.0
        %v6429 = vand.u32 %v6404, 4294901760
        %6430 = vmatpush1.msra.mxu0 %v6429
        %6431 = vmatprep.subr.mxu0 0.0
        %v6432 = vand.u32 %v6405, 4294901760
        %6433 = vmatpush1.msra.mxu0 %v6432
        %6434 = vmatprep.subr.mxu0 0.0
        %v6435 = vand.u32 %v6406, 4294901760
        %6436 = vmatpush1.msra.mxu0 %v6435
        %6437 = vmatprep.subr.mxu0 0.0
        %v6438 = vand.u32 %v6407, 4294901760
        %6439 = vmatpush1.msra.mxu0 %v6438
        %6440 = vmatprep.subr.mxu0 0.0
        %v6441 = vand.u32 %v6408, 4294901760
        %6442 = vmatpush1.msra.mxu0 %v6441
        %6443 = vmatprep.subr.mxu0 0.0
        %v6444 = vand.u32 %v6409, 4294901760
        %6445 = vmatpush1.msra.mxu0 %v6444
        %6446 = vmatprep.subr.mxu0 0.0
        %v6447 = vand.u32 %v6410, 4294901760
        %6448 = vmatpush1.msra.mxu0 %v6447
        %6449 = vmatprep.subr.mxu0 0.0
        %v6450 = vand.u32 %v6411, 4294901760
        %6451 = vmatpush1.msra.mxu0 %v6450
        %6452 = vmatprep.subr.mxu0 0.0
        %v6453 = vand.u32 %v6412, 4294901760
        %6454 = vmatpush1.msra.mxu0 %v6453
        %6455 = vmatprep.subr.mxu0 0.0
        %v6456 = vand.u32 %v6413, 4294901760
        %6457 = vmatpush1.msra.mxu0 %v6456
        %6458 = vmatprep.subr.mxu0 0.0
        %v6459 = vand.u32 %v6414, 4294901760
        %6460 = vmatpush1.msra.mxu0 %v6459
        %6461 = vmatprep.subr.mxu0 0.0
        %v6462 = vand.u32 %v6415, 4294901760
        %6463 = vmatpush1.msra.mxu0 %v6462
        %6464 = vmatprep.subr.mxu0 0.0
        %v6465 = vand.u32 %v6416, 4294901760
        %6466 = vmatpush1.msra.mxu0 %v6465
        %6467 = vmatprep.subr.mxu0 0.0
        %v6468 = vand.u32 %v6417, 4294901760
        %6469 = vmatpush1.msra.mxu0 %v6468
        %6470 = vmatprep.subr.mxu0 0.0
        %6471 = vmatpush1.msra.mxu0 0.0
        %6472 = vmatprep.subr.mxu0 0.0
        %6473 = vmatpush1.msra.mxu0 0.0
        %6474 = vmatprep.subr.mxu0 0.0
        %6475 = vmatpush1.msra.mxu0 0.0
        %6476 = vmatprep.subr.mxu0 0.0
        %6477 = vmatpush1.msra.mxu0 0.0
        %6478 = vmatprep.subr.mxu0 0.0
        %6479 = vmatpush1.msra.mxu0 0.0
        %6480 = vmatprep.subr.mxu0 0.0
        %6481 = vmatpush1.msra.mxu0 0.0
        %6482 = vmatprep.subr.mxu0 0.0
        %6483 = vmatpush1.msra.mxu0 0.0
        %6484 = vmatprep.subr.mxu0 0.0
        %6485 = vmatpush1.msra.mxu0 0.0
        %6486 = vmatprep.subr.mxu0 0.0
        %6487 = vmatpush1.msra.mxu0 0.0
        %6488 = vmatprep.subr.mxu0 0.0
        %6489 = vmatpush1.msra.mxu0 0.0
        %6490 = vmatprep.subr.mxu0 0.0
        %6491 = vmatpush1.msra.mxu0 0.0
        %6492 = vmatprep.subr.mxu0 0.0
        %6493 = vmatpush1.msra.mxu0 0.0
        %6494 = vmatprep.subr.mxu0 0.0
        %6495 = vmatpush1.msra.mxu0 0.0
        %6496 = vmatprep.subr.mxu0 0.0
        %6497 = vmatpush1.msra.mxu0 0.0
        %6498 = vmatprep.subr.mxu0 0.0
        %6499 = vmatpush1.msra.mxu0 0.0
        %6500 = vmatprep.subr.mxu0 0.0
        %6501 = vmatpush1.msra.mxu0 0.0
        %6502 = vmatprep.mubr.f32.mxu0 0.0
        %v6503 = vand.u32 %v6419, 4294901760
        %v6504 = vsub.f32 %v6419, %v6503
        %v6505 = vand.u32 %v6504, 4294901760
        %v6506 = vsub.f32 %v6504, %v6505
        %v6507 = vand.u32 %v6506, 4294901760
        %6508 = vmatmul.mubr.f32.gmra.mrb[0].mxu0 %v6507
        %v6509 = vpop.f32.mrb[0].mxu0
        %v6510 = vadd.f32 %v6421, %v6509
        %v6511 = vpop.f32.mrb[0].mxu0
        %6512 = vdwg.mxu0
        %6513 = vmatprep.subr.mxu0 0.0
        %v6514 = vand.u32 %v6402, 4294901760
        %v6515 = vsub.f32 %v6402, %v6514
        %v6516 = vand.u32 %v6515, 4294901760
        %v6517 = vsub.f32 %v6515, %v6516
        %v6518 = vand.u32 %v6517, 4294901760
        %6519 = vmatpush1.msra.mxu0 %v6518
        %6520 = vmatprep.subr.mxu0 0.0
        %v6521 = vand.u32 %v6403, 4294901760
        %v6522 = vsub.f32 %v6403, %v6521
        %v6523 = vand.u32 %v6522, 4294901760
        %v6524 = vsub.f32 %v6522, %v6523
        %v6525 = vand.u32 %v6524, 4294901760
        %6526 = vmatpush1.msra.mxu0 %v6525
        %6527 = vmatprep.subr.mxu0 0.0
        %v6528 = vand.u32 %v6404, 4294901760
        %v6529 = vsub.f32 %v6404, %v6528
        %v6530 = vand.u32 %v6529, 4294901760
        %v6531 = vsub.f32 %v6529, %v6530
        %v6532 = vand.u32 %v6531, 4294901760
        %6533 = vmatpush1.msra.mxu0 %v6532
        %6534 = vmatprep.subr.mxu0 0.0
        %v6535 = vand.u32 %v6405, 4294901760
        %v6536 = vsub.f32 %v6405, %v6535
        %v6537 = vand.u32 %v6536, 4294901760
        %v6538 = vsub.f32 %v6536, %v6537
        %v6539 = vand.u32 %v6538, 4294901760
        %6540 = vmatpush1.msra.mxu0 %v6539
        %6541 = vmatprep.subr.mxu0 0.0
        %v6542 = vand.u32 %v6406, 4294901760
        %v6543 = vsub.f32 %v6406, %v6542
        %v6544 = vand.u32 %v6543, 4294901760
        %v6545 = vsub.f32 %v6543, %v6544
        %v6546 = vand.u32 %v6545, 4294901760
        %6547 = vmatpush1.msra.mxu0 %v6546
        %6548 = vmatprep.subr.mxu0 0.0
        %v6549 = vand.u32 %v6407, 4294901760
        %v6550 = vsub.f32 %v6407, %v6549
        %v6551 = vand.u32 %v6550, 4294901760
        %v6552 = vsub.f32 %v6550, %v6551
        %v6553 = vand.u32 %v6552, 4294901760
        %6554 = vmatpush1.msra.mxu0 %v6553
        %6555 = vmatprep.subr.mxu0 0.0
        %v6556 = vand.u32 %v6408, 4294901760
        %v6557 = vsub.f32 %v6408, %v6556
        %v6558 = vand.u32 %v6557, 4294901760
        %v6559 = vsub.f32 %v6557, %v6558
        %v6560 = vand.u32 %v6559, 4294901760
        %6561 = vmatpush1.msra.mxu0 %v6560
        %6562 = vmatprep.subr.mxu0 0.0
        %v6563 = vand.u32 %v6409, 4294901760
        %v6564 = vsub.f32 %v6409, %v6563
        %v6565 = vand.u32 %v6564, 4294901760
        %v6566 = vsub.f32 %v6564, %v6565
        %v6567 = vand.u32 %v6566, 4294901760
        %6568 = vmatpush1.msra.mxu0 %v6567
        %6569 = vmatprep.subr.mxu0 0.0
        %v6570 = vand.u32 %v6410, 4294901760
        %v6571 = vsub.f32 %v6410, %v6570
        %v6572 = vand.u32 %v6571, 4294901760
        %v6573 = vsub.f32 %v6571, %v6572
        %v6574 = vand.u32 %v6573, 4294901760
        %6575 = vmatpush1.msra.mxu0 %v6574
        %6576 = vmatprep.subr.mxu0 0.0
        %v6577 = vand.u32 %v6411, 4294901760
        %v6578 = vsub.f32 %v6411, %v6577
        %v6579 = vand.u32 %v6578, 4294901760
        %v6580 = vsub.f32 %v6578, %v6579
        %v6581 = vand.u32 %v6580, 4294901760
        %6582 = vmatpush1.msra.mxu0 %v6581
        %6583 = vmatprep.subr.mxu0 0.0
        %v6584 = vand.u32 %v6412, 4294901760
        %v6585 = vsub.f32 %v6412, %v6584
        %v6586 = vand.u32 %v6585, 4294901760
        %v6587 = vsub.f32 %v6585, %v6586
        %v6588 = vand.u32 %v6587, 4294901760
        %6589 = vmatpush1.msra.mxu0 %v6588
        %6590 = vmatprep.subr.mxu0 0.0
        %v6591 = vand.u32 %v6413, 4294901760
        %v6592 = vsub.f32 %v6413, %v6591
        %v6593 = vand.u32 %v6592, 4294901760
        %v6594 = vsub.f32 %v6592, %v6593
        %v6595 = vand.u32 %v6594, 4294901760
        %6596 = vmatpush1.msra.mxu0 %v6595
        %6597 = vmatprep.subr.mxu0 0.0
        %v6598 = vand.u32 %v6414, 4294901760
        %v6599 = vsub.f32 %v6414, %v6598
        %v6600 = vand.u32 %v6599, 4294901760
        %v6601 = vsub.f32 %v6599, %v6600
        %v6602 = vand.u32 %v6601, 4294901760
        %6603 = vmatpush1.msra.mxu0 %v6602
        %6604 = vmatprep.subr.mxu0 0.0
        %v6605 = vand.u32 %v6415, 4294901760
        %v6606 = vsub.f32 %v6415, %v6605
        %v6607 = vand.u32 %v6606, 4294901760
        %v6608 = vsub.f32 %v6606, %v6607
        %v6609 = vand.u32 %v6608, 4294901760
        %6610 = vmatpush1.msra.mxu0 %v6609
        %6611 = vmatprep.subr.mxu0 0.0
        %v6612 = vand.u32 %v6416, 4294901760
        %v6613 = vsub.f32 %v6416, %v6612
        %v6614 = vand.u32 %v6613, 4294901760
        %v6615 = vsub.f32 %v6613, %v6614
        %v6616 = vand.u32 %v6615, 4294901760
        %6617 = vmatpush1.msra.mxu0 %v6616
        %6618 = vmatprep.subr.mxu0 0.0
        %v6619 = vand.u32 %v6417, 4294901760
        %v6620 = vsub.f32 %v6417, %v6619
        %v6621 = vand.u32 %v6620, 4294901760
        %v6622 = vsub.f32 %v6620, %v6621
        %v6623 = vand.u32 %v6622, 4294901760
        %6624 = vmatpush1.msra.mxu0 %v6623
        %6625 = vmatprep.subr.mxu0 0.0
        %6626 = vmatpush1.msra.mxu0 0.0
        %6627 = vmatprep.subr.mxu0 0.0
        %6628 = vmatpush1.msra.mxu0 0.0
        %6629 = vmatprep.subr.mxu0 0.0
        %6630 = vmatpush1.msra.mxu0 0.0
        %6631 = vmatprep.subr.mxu0 0.0
        %6632 = vmatpush1.msra.mxu0 0.0
        %6633 = vmatprep.subr.mxu0 0.0
        %6634 = vmatpush1.msra.mxu0 0.0
        %6635 = vmatprep.subr.mxu0 0.0
        %6636 = vmatpush1.msra.mxu0 0.0
        %6637 = vmatprep.subr.mxu0 0.0
        %6638 = vmatpush1.msra.mxu0 0.0
        %6639 = vmatprep.subr.mxu0 0.0
        %6640 = vmatpush1.msra.mxu0 0.0
        %6641 = vmatprep.subr.mxu0 0.0
        %6642 = vmatpush1.msra.mxu0 0.0
        %6643 = vmatprep.subr.mxu0 0.0
        %6644 = vmatpush1.msra.mxu0 0.0
        %6645 = vmatprep.subr.mxu0 0.0
        %6646 = vmatpush1.msra.mxu0 0.0
        %6647 = vmatprep.subr.mxu0 0.0
        %6648 = vmatpush1.msra.mxu0 0.0
        %6649 = vmatprep.subr.mxu0 0.0
        %6650 = vmatpush1.msra.mxu0 0.0
        %6651 = vmatprep.subr.mxu0 0.0
        %6652 = vmatpush1.msra.mxu0 0.0
        %6653 = vmatprep.subr.mxu0 0.0
        %6654 = vmatpush1.msra.mxu0 0.0
        %6655 = vmatprep.subr.mxu0 0.0
        %6656 = vmatpush1.msra.mxu0 0.0
        %6657 = vmatprep.mubr.f32.mxu0 0.0
        %v6658 = vand.u32 %v6419, 4294901760
        %6659 = vmatmul.mubr.f32.gmra.mrb[0].mxu0 %v6658
        %v6660 = vpop.f32.mrb[0].mxu0
        %v6661 = vadd.f32 %v6510, %v6660
        %v6662 = vpop.f32.mrb[0].mxu0
        %6663 = vdwg.mxu0
        %6664 = vmatprep.subr.mxu0 0.0
        %v6665 = vand.u32 %v6402, 4294901760
        %v6666 = vsub.f32 %v6402, %v6665
        %6667 = vmatpush1.msra.mxu0 %v6666
        %6668 = vmatprep.subr.mxu0 0.0
        %v6669 = vand.u32 %v6403, 4294901760
        %v6670 = vsub.f32 %v6403, %v6669
        %6671 = vmatpush1.msra.mxu0 %v6670
        %6672 = vmatprep.subr.mxu0 0.0
        %v6673 = vand.u32 %v6404, 4294901760
        %v6674 = vsub.f32 %v6404, %v6673
        %6675 = vmatpush1.msra.mxu0 %v6674
        %6676 = vmatprep.subr.mxu0 0.0
        %v6677 = vand.u32 %v6405, 4294901760
        %v6678 = vsub.f32 %v6405, %v6677
        %6679 = vmatpush1.msra.mxu0 %v6678
        %6680 = vmatprep.subr.mxu0 0.0
        %v6681 = vand.u32 %v6406, 4294901760
        %v6682 = vsub.f32 %v6406, %v6681
        %6683 = vmatpush1.msra.mxu0 %v6682
        %6684 = vmatprep.subr.mxu0 0.0
        %v6685 = vand.u32 %v6407, 4294901760
        %v6686 = vsub.f32 %v6407, %v6685
        %6687 = vmatpush1.msra.mxu0 %v6686
        %6688 = vmatprep.subr.mxu0 0.0
        %v6689 = vand.u32 %v6408, 4294901760
        %v6690 = vsub.f32 %v6408, %v6689
        %6691 = vmatpush1.msra.mxu0 %v6690
        %6692 = vmatprep.subr.mxu0 0.0
        %v6693 = vand.u32 %v6409, 4294901760
        %v6694 = vsub.f32 %v6409, %v6693
        %6695 = vmatpush1.msra.mxu0 %v6694
        %6696 = vmatprep.subr.mxu0 0.0
        %v6697 = vand.u32 %v6410, 4294901760
        %v6698 = vsub.f32 %v6410, %v6697
        %6699 = vmatpush1.msra.mxu0 %v6698
        %6700 = vmatprep.subr.mxu0 0.0
        %v6701 = vand.u32 %v6411, 4294901760
        %v6702 = vsub.f32 %v6411, %v6701
        %6703 = vmatpush1.msra.mxu0 %v6702
        %6704 = vmatprep.subr.mxu0 0.0
        %v6705 = vand.u32 %v6412, 4294901760
        %v6706 = vsub.f32 %v6412, %v6705
        %6707 = vmatpush1.msra.mxu0 %v6706
        %6708 = vmatprep.subr.mxu0 0.0
        %v6709 = vand.u32 %v6413, 4294901760
        %v6710 = vsub.f32 %v6413, %v6709
        %6711 = vmatpush1.msra.mxu0 %v6710
        %6712 = vmatprep.subr.mxu0 0.0
        %v6713 = vand.u32 %v6414, 4294901760
        %v6714 = vsub.f32 %v6414, %v6713
        %6715 = vmatpush1.msra.mxu0 %v6714
        %6716 = vmatprep.subr.mxu0 0.0
        %v6717 = vand.u32 %v6415, 4294901760
        %v6718 = vsub.f32 %v6415, %v6717
        %6719 = vmatpush1.msra.mxu0 %v6718
        %6720 = vmatprep.subr.mxu0 0.0
        %v6721 = vand.u32 %v6416, 4294901760
        %v6722 = vsub.f32 %v6416, %v6721
        %6723 = vmatpush1.msra.mxu0 %v6722
        %6724 = vmatprep.subr.mxu0 0.0
        %v6725 = vand.u32 %v6417, 4294901760
        %v6726 = vsub.f32 %v6417, %v6725
        %6727 = vmatpush1.msra.mxu0 %v6726
        %6728 = vmatprep.subr.mxu0 0.0
        %6729 = vmatpush1.msra.mxu0 0.0
        %6730 = vmatprep.subr.mxu0 0.0
        %6731 = vmatpush1.msra.mxu0 0.0
        %6732 = vmatprep.subr.mxu0 0.0
        %6733 = vmatpush1.msra.mxu0 0.0
        %6734 = vmatprep.subr.mxu0 0.0
        %6735 = vmatpush1.msra.mxu0 0.0
        %6736 = vmatprep.subr.mxu0 0.0
        %6737 = vmatpush1.msra.mxu0 0.0
        %6738 = vmatprep.subr.mxu0 0.0
        %6739 = vmatpush1.msra.mxu0 0.0
        %6740 = vmatprep.subr.mxu0 0.0
        %6741 = vmatpush1.msra.mxu0 0.0
        %6742 = vmatprep.subr.mxu0 0.0
        %6743 = vmatpush1.msra.mxu0 0.0
        %6744 = vmatprep.subr.mxu0 0.0
        %6745 = vmatpush1.msra.mxu0 0.0
        %6746 = vmatprep.subr.mxu0 0.0
        %6747 = vmatpush1.msra.mxu0 0.0
        %6748 = vmatprep.subr.mxu0 0.0
        %6749 = vmatpush1.msra.mxu0 0.0
        %6750 = vmatprep.subr.mxu0 0.0
        %6751 = vmatpush1.msra.mxu0 0.0
        %6752 = vmatprep.subr.mxu0 0.0
        %6753 = vmatpush1.msra.mxu0 0.0
        %6754 = vmatprep.subr.mxu0 0.0
        %6755 = vmatpush1.msra.mxu0 0.0
        %6756 = vmatprep.subr.mxu0 0.0
        %6757 = vmatpush1.msra.mxu0 0.0
        %6758 = vmatprep.subr.mxu0 0.0
        %6759 = vmatpush1.msra.mxu0 0.0
        %6760 = vmatprep.mubr.f32.mxu0 0.0
        %v6761 = vand.u32 %v6419, 4294901760
        %v6762 = vsub.f32 %v6419, %v6761
        %6763 = vmatmul.mubr.f32.gmra.mrb[0].mxu0 %v6762
        %v6764 = vpop.f32.mrb[0].mxu0
        %v6765 = vadd.f32 %v6661, %v6764
        %v6766 = vpop.f32.mrb[0].mxu0
        %6767 = vdwg.mxu0
        %6768 = vmatprep.subr.mxu0 0.0
        %v6769 = vand.u32 %v6402, 4294901760
        %6770 = vmatpush1.msra.mxu0 %v6769
        %6771 = vmatprep.subr.mxu0 0.0
        %v6772 = vand.u32 %v6403, 4294901760
        %6773 = vmatpush1.msra.mxu0 %v6772
        %6774 = vmatprep.subr.mxu0 0.0
        %v6775 = vand.u32 %v6404, 4294901760
        %6776 = vmatpush1.msra.mxu0 %v6775
        %6777 = vmatprep.subr.mxu0 0.0
        %v6778 = vand.u32 %v6405, 4294901760
        %6779 = vmatpush1.msra.mxu0 %v6778
        %6780 = vmatprep.subr.mxu0 0.0
        %v6781 = vand.u32 %v6406, 4294901760
        %6782 = vmatpush1.msra.mxu0 %v6781
        %6783 = vmatprep.subr.mxu0 0.0
        %v6784 = vand.u32 %v6407, 4294901760
        %6785 = vmatpush1.msra.mxu0 %v6784
        %6786 = vmatprep.subr.mxu0 0.0
        %v6787 = vand.u32 %v6408, 4294901760
        %6788 = vmatpush1.msra.mxu0 %v6787
        %6789 = vmatprep.subr.mxu0 0.0
        %v6790 = vand.u32 %v6409, 4294901760
        %6791 = vmatpush1.msra.mxu0 %v6790
        %6792 = vmatprep.subr.mxu0 0.0
        %v6793 = vand.u32 %v6410, 4294901760
        %6794 = vmatpush1.msra.mxu0 %v6793
        %6795 = vmatprep.subr.mxu0 0.0
        %v6796 = vand.u32 %v6411, 4294901760
        %6797 = vmatpush1.msra.mxu0 %v6796
        %6798 = vmatprep.subr.mxu0 0.0
        %v6799 = vand.u32 %v6412, 4294901760
        %6800 = vmatpush1.msra.mxu0 %v6799
        %6801 = vmatprep.subr.mxu0 0.0
        %v6802 = vand.u32 %v6413, 4294901760
        %6803 = vmatpush1.msra.mxu0 %v6802
        %6804 = vmatprep.subr.mxu0 0.0
        %v6805 = vand.u32 %v6414, 4294901760
        %6806 = vmatpush1.msra.mxu0 %v6805
        %6807 = vmatprep.subr.mxu0 0.0
        %v6808 = vand.u32 %v6415, 4294901760
        %6809 = vmatpush1.msra.mxu0 %v6808
        %6810 = vmatprep.subr.mxu0 0.0
        %v6811 = vand.u32 %v6416, 4294901760
        %6812 = vmatpush1.msra.mxu0 %v6811
        %6813 = vmatprep.subr.mxu0 0.0
        %v6814 = vand.u32 %v6417, 4294901760
        %6815 = vmatpush1.msra.mxu0 %v6814
        %6816 = vmatprep.subr.mxu0 0.0
        %6817 = vmatpush1.msra.mxu0 0.0
        %6818 = vmatprep.subr.mxu0 0.0
        %6819 = vmatpush1.msra.mxu0 0.0
        %6820 = vmatprep.subr.mxu0 0.0
        %6821 = vmatpush1.msra.mxu0 0.0
        %6822 = vmatprep.subr.mxu0 0.0
        %6823 = vmatpush1.msra.mxu0 0.0
        %6824 = vmatprep.subr.mxu0 0.0
        %6825 = vmatpush1.msra.mxu0 0.0
        %6826 = vmatprep.subr.mxu0 0.0
        %6827 = vmatpush1.msra.mxu0 0.0
        %6828 = vmatprep.subr.mxu0 0.0
        %6829 = vmatpush1.msra.mxu0 0.0
        %6830 = vmatprep.subr.mxu0 0.0
        %6831 = vmatpush1.msra.mxu0 0.0
        %6832 = vmatprep.subr.mxu0 0.0
        %6833 = vmatpush1.msra.mxu0 0.0
        %6834 = vmatprep.subr.mxu0 0.0
        %6835 = vmatpush1.msra.mxu0 0.0
        %6836 = vmatprep.subr.mxu0 0.0
        %6837 = vmatpush1.msra.mxu0 0.0
        %6838 = vmatprep.subr.mxu0 0.0
        %6839 = vmatpush1.msra.mxu0 0.0
        %6840 = vmatprep.subr.mxu0 0.0
        %6841 = vmatpush1.msra.mxu0 0.0
        %6842 = vmatprep.subr.mxu0 0.0
        %6843 = vmatpush1.msra.mxu0 0.0
        %6844 = vmatprep.subr.mxu0 0.0
        %6845 = vmatpush1.msra.mxu0 0.0
        %6846 = vmatprep.subr.mxu0 0.0
        %6847 = vmatpush1.msra.mxu0 0.0
        %6848 = vmatprep.mubr.f32.mxu0 0.0
        %v6849 = vand.u32 %v6419, 4294901760
        %v6850 = vsub.f32 %v6419, %v6849
        %v6851 = vand.u32 %v6850, 4294901760
        %6852 = vmatmul.mubr.f32.gmra.mrb[0].mxu0 %v6851
        %v6853 = vpop.f32.mrb[0].mxu0
        %v6854 = vadd.f32 %v6765, %v6853
        %v6855 = vpop.f32.mrb[0].mxu0
        %6856 = vdwg.mxu0
        %6857 = vmatprep.subr.mxu0 0.0
        %v6858 = vand.u32 %v6402, 4294901760
        %v6859 = vsub.f32 %v6402, %v6858
        %v6860 = vand.u32 %v6859, 4294901760
        %6861 = vmatpush1.msra.mxu0 %v6860
        %6862 = vmatprep.subr.mxu0 0.0
        %v6863 = vand.u32 %v6403, 4294901760
        %v6864 = vsub.f32 %v6403, %v6863
        %v6865 = vand.u32 %v6864, 4294901760
        %6866 = vmatpush1.msra.mxu0 %v6865
        %6867 = vmatprep.subr.mxu0 0.0
        %v6868 = vand.u32 %v6404, 4294901760
        %v6869 = vsub.f32 %v6404, %v6868
        %v6870 = vand.u32 %v6869, 4294901760
        %6871 = vmatpush1.msra.mxu0 %v6870
        %6872 = vmatprep.subr.mxu0 0.0
        %v6873 = vand.u32 %v6405, 4294901760
        %v6874 = vsub.f32 %v6405, %v6873
        %v6875 = vand.u32 %v6874, 4294901760
        %6876 = vmatpush1.msra.mxu0 %v6875
        %6877 = vmatprep.subr.mxu0 0.0
        %v6878 = vand.u32 %v6406, 4294901760
        %v6879 = vsub.f32 %v6406, %v6878
        %v6880 = vand.u32 %v6879, 4294901760
        %6881 = vmatpush1.msra.mxu0 %v6880
        %6882 = vmatprep.subr.mxu0 0.0
        %v6883 = vand.u32 %v6407, 4294901760
        %v6884 = vsub.f32 %v6407, %v6883
        %v6885 = vand.u32 %v6884, 4294901760
        %6886 = vmatpush1.msra.mxu0 %v6885
        %6887 = vmatprep.subr.mxu0 0.0
        %v6888 = vand.u32 %v6408, 4294901760
        %v6889 = vsub.f32 %v6408, %v6888
        %v6890 = vand.u32 %v6889, 4294901760
        %6891 = vmatpush1.msra.mxu0 %v6890
        %6892 = vmatprep.subr.mxu0 0.0
        %v6893 = vand.u32 %v6409, 4294901760
        %v6894 = vsub.f32 %v6409, %v6893
        %v6895 = vand.u32 %v6894, 4294901760
        %6896 = vmatpush1.msra.mxu0 %v6895
        %6897 = vmatprep.subr.mxu0 0.0
        %v6898 = vand.u32 %v6410, 4294901760
        %v6899 = vsub.f32 %v6410, %v6898
        %v6900 = vand.u32 %v6899, 4294901760
        %6901 = vmatpush1.msra.mxu0 %v6900
        %6902 = vmatprep.subr.mxu0 0.0
        %v6903 = vand.u32 %v6411, 4294901760
        %v6904 = vsub.f32 %v6411, %v6903
        %v6905 = vand.u32 %v6904, 4294901760
        %6906 = vmatpush1.msra.mxu0 %v6905
        %6907 = vmatprep.subr.mxu0 0.0
        %v6908 = vand.u32 %v6412, 4294901760
        %v6909 = vsub.f32 %v6412, %v6908
        %v6910 = vand.u32 %v6909, 4294901760
        %6911 = vmatpush1.msra.mxu0 %v6910
        %6912 = vmatprep.subr.mxu0 0.0
        %v6913 = vand.u32 %v6413, 4294901760
        %v6914 = vsub.f32 %v6413, %v6913
        %v6915 = vand.u32 %v6914, 4294901760
        %6916 = vmatpush1.msra.mxu0 %v6915
        %6917 = vmatprep.subr.mxu0 0.0
        %v6918 = vand.u32 %v6414, 4294901760
        %v6919 = vsub.f32 %v6414, %v6918
        %v6920 = vand.u32 %v6919, 4294901760
        %6921 = vmatpush1.msra.mxu0 %v6920
        %6922 = vmatprep.subr.mxu0 0.0
        %v6923 = vand.u32 %v6415, 4294901760
        %v6924 = vsub.f32 %v6415, %v6923
        %v6925 = vand.u32 %v6924, 4294901760
        %6926 = vmatpush1.msra.mxu0 %v6925
        %6927 = vmatprep.subr.mxu0 0.0
        %v6928 = vand.u32 %v6416, 4294901760
        %v6929 = vsub.f32 %v6416, %v6928
        %v6930 = vand.u32 %v6929, 4294901760
        %6931 = vmatpush1.msra.mxu0 %v6930
        %6932 = vmatprep.subr.mxu0 0.0
        %v6933 = vand.u32 %v6417, 4294901760
        %v6934 = vsub.f32 %v6417, %v6933
        %v6935 = vand.u32 %v6934, 4294901760
        %6936 = vmatpush1.msra.mxu0 %v6935
        %6937 = vmatprep.subr.mxu0 0.0
        %6938 = vmatpush1.msra.mxu0 0.0
        %6939 = vmatprep.subr.mxu0 0.0
        %6940 = vmatpush1.msra.mxu0 0.0
        %6941 = vmatprep.subr.mxu0 0.0
        %6942 = vmatpush1.msra.mxu0 0.0
        %6943 = vmatprep.subr.mxu0 0.0
        %6944 = vmatpush1.msra.mxu0 0.0
        %6945 = vmatprep.subr.mxu0 0.0
        %6946 = vmatpush1.msra.mxu0 0.0
        %6947 = vmatprep.subr.mxu0 0.0
        %6948 = vmatpush1.msra.mxu0 0.0
        %6949 = vmatprep.subr.mxu0 0.0
        %6950 = vmatpush1.msra.mxu0 0.0
        %6951 = vmatprep.subr.mxu0 0.0
        %6952 = vmatpush1.msra.mxu0 0.0
        %6953 = vmatprep.subr.mxu0 0.0
        %6954 = vmatpush1.msra.mxu0 0.0
        %6955 = vmatprep.subr.mxu0 0.0
        %6956 = vmatpush1.msra.mxu0 0.0
        %6957 = vmatprep.subr.mxu0 0.0
        %6958 = vmatpush1.msra.mxu0 0.0
        %6959 = vmatprep.subr.mxu0 0.0
        %6960 = vmatpush1.msra.mxu0 0.0
        %6961 = vmatprep.subr.mxu0 0.0
        %6962 = vmatpush1.msra.mxu0 0.0
        %6963 = vmatprep.subr.mxu0 0.0
        %6964 = vmatpush1.msra.mxu0 0.0
        %6965 = vmatprep.subr.mxu0 0.0
        %6966 = vmatpush1.msra.mxu0 0.0
        %6967 = vmatprep.subr.mxu0 0.0
        %6968 = vmatpush1.msra.mxu0 0.0
        %6969 = vmatprep.mubr.f32.mxu0 0.0
        %v6970 = vand.u32 %v6419, 4294901760
        %6971 = vmatmul.mubr.f32.gmra.mrb[0].mxu0 %v6970
        %v6972 = vpop.f32.mrb[0].mxu0
        %v6973 = vadd.f32 %v6854, %v6972
        %v6974 = vpop.f32.mrb[0].mxu0
        %6975 = vdwg.mxu0
        %6976 = vmatprep.subr.mxu0 0.0
        %v6977 = vand.u32 %v6402, 4294901760
        %6978 = vmatpush1.msra.mxu0 %v6977
        %6979 = vmatprep.subr.mxu0 0.0
        %v6980 = vand.u32 %v6403, 4294901760
        %6981 = vmatpush1.msra.mxu0 %v6980
        %6982 = vmatprep.subr.mxu0 0.0
        %v6983 = vand.u32 %v6404, 4294901760
        %6984 = vmatpush1.msra.mxu0 %v6983
        %6985 = vmatprep.subr.mxu0 0.0
        %v6986 = vand.u32 %v6405, 4294901760
        %6987 = vmatpush1.msra.mxu0 %v6986
        %6988 = vmatprep.subr.mxu0 0.0
        %v6989 = vand.u32 %v6406, 4294901760
        %6990 = vmatpush1.msra.mxu0 %v6989
        %6991 = vmatprep.subr.mxu0 0.0
        %v6992 = vand.u32 %v6407, 4294901760
        %6993 = vmatpush1.msra.mxu0 %v6992
        %6994 = vmatprep.subr.mxu0 0.0
        %v6995 = vand.u32 %v6408, 4294901760
        %6996 = vmatpush1.msra.mxu0 %v6995
        %6997 = vmatprep.subr.mxu0 0.0
        %v6998 = vand.u32 %v6409, 4294901760
        %6999 = vmatpush1.msra.mxu0 %v6998
        %7000 = vmatprep.subr.mxu0 0.0
        %v7001 = vand.u32 %v6410, 4294901760
        %7002 = vmatpush1.msra.mxu0 %v7001
        %7003 = vmatprep.subr.mxu0 0.0
        %v7004 = vand.u32 %v6411, 4294901760
        %7005 = vmatpush1.msra.mxu0 %v7004
        %7006 = vmatprep.subr.mxu0 0.0
        %v7007 = vand.u32 %v6412, 4294901760
        %7008 = vmatpush1.msra.mxu0 %v7007
        %7009 = vmatprep.subr.mxu0 0.0
        %v7010 = vand.u32 %v6413, 4294901760
        %7011 = vmatpush1.msra.mxu0 %v7010
        %7012 = vmatprep.subr.mxu0 0.0
        %v7013 = vand.u32 %v6414, 4294901760
        %7014 = vmatpush1.msra.mxu0 %v7013
        %7015 = vmatprep.subr.mxu0 0.0
        %v7016 = vand.u32 %v6415, 4294901760
        %7017 = vmatpush1.msra.mxu0 %v7016
        %7018 = vmatprep.subr.mxu0 0.0
        %v7019 = vand.u32 %v6416, 4294901760
        %7020 = vmatpush1.msra.mxu0 %v7019
        %7021 = vmatprep.subr.mxu0 0.0
        %v7022 = vand.u32 %v6417, 4294901760
        %7023 = vmatpush1.msra.mxu0 %v7022
        %7024 = vmatprep.subr.mxu0 0.0
        %7025 = vmatpush1.msra.mxu0 0.0
        %7026 = vmatprep.subr.mxu0 0.0
        %7027 = vmatpush1.msra.mxu0 0.0
        %7028 = vmatprep.subr.mxu0 0.0
        %7029 = vmatpush1.msra.mxu0 0.0
        %7030 = vmatprep.subr.mxu0 0.0
        %7031 = vmatpush1.msra.mxu0 0.0
        %7032 = vmatprep.subr.mxu0 0.0
        %7033 = vmatpush1.msra.mxu0 0.0
        %7034 = vmatprep.subr.mxu0 0.0
        %7035 = vmatpush1.msra.mxu0 0.0
        %7036 = vmatprep.subr.mxu0 0.0
        %7037 = vmatpush1.msra.mxu0 0.0
        %7038 = vmatprep.subr.mxu0 0.0
        %7039 = vmatpush1.msra.mxu0 0.0
        %7040 = vmatprep.subr.mxu0 0.0
        %7041 = vmatpush1.msra.mxu0 0.0
        %7042 = vmatprep.subr.mxu0 0.0
        %7043 = vmatpush1.msra.mxu0 0.0
        %7044 = vmatprep.subr.mxu0 0.0
        %7045 = vmatpush1.msra.mxu0 0.0
        %7046 = vmatprep.subr.mxu0 0.0
        %7047 = vmatpush1.msra.mxu0 0.0
        %7048 = vmatprep.subr.mxu0 0.0
        %7049 = vmatpush1.msra.mxu0 0.0
        %7050 = vmatprep.subr.mxu0 0.0
        %7051 = vmatpush1.msra.mxu0 0.0
        %7052 = vmatprep.subr.mxu0 0.0
        %7053 = vmatpush1.msra.mxu0 0.0
        %7054 = vmatprep.subr.mxu0 0.0
        %7055 = vmatpush1.msra.mxu0 0.0
        %7056 = vmatprep.mubr.f32.mxu0 0.0
        %v7057 = vand.u32 %v6419, 4294901760
        %7058 = vmatmul.mubr.f32.gmra.mrb[0].mxu0 %v7057
        %v7059 = vpop.f32.mrb[0].mxu0
        %v7060 = vadd.f32 %v6973, %v7059
        %v7061 = vpop.f32.mrb[0].mxu0
        %7062 = vdwg.mxu0
        %v7063 = vxor.u32 %v7060, 2147483648
        %v7064 = vmul.f32 %v7063, 1.442695
        %v7065 = vpow.pop %v7064
        %v7066 = vadd.f32 %v7065, 1.0
        %v7067 = vrcp.pop %v7066
        %v7068 = vmul.f32 1.0, %v7067
        %v7070 = vrot.slane %v7068, 4
        %v7072 = vsub.f32 %v7068, %v7070
        %v7073 = vxor.u32 %v7072, 2147483648
        %v7074 = vmul.f32 %v7073, 1.442695
        %v7075 = vpow.pop %v7074
        %v7076 = vadd.f32 %v7075, 1.0
        %v7077 = vrcp.pop %v7076
        %v7078 = vmul.f32 1.0, %v7077
        %7080 = vset.pattern.permute.xlu0 0
        %7081 = vperm.xlu0 %7080, %v7078
        %v7082 = vpop.permute.xlu0 %7081
        %v7084 = vunpack.c.l.s4 839922192
        %v7085 = vunpack.c.0.s8 %v7084
        %v7086 = vlaneseq
        %v7087 = vshrl.u32 %v7086, 7
        %v7088 = vsub.s32 %v7085, %v7087
        %v7089 = vrot.slane %v7082, %v7088
        %v7091 = vmul.f32 %v532, %v7089
        %v7093 = vcombine.high %v7091, %v7091
        %v7095 = vsel %vm562, %v7091, 0.0
        %v7096 = vrot.slane %v7095, 4
        %v7097 = vadd.f32 %v7095, %v7096
        %v7098 = vrot.slane %v7097, 2
        %v7099 = vadd.f32 %v7097, %v7098
        %v7100 = vrot.slane %v7099, 1
        %v7101 = vadd.f32 %v7099, %v7100
        %v7102 = vsel %vm562, %v7093, 0.0
        %v7103 = vrot.slane %v7102, 4
        %v7104 = vadd.f32 %v7102, %v7103
        %v7105 = vrot.slane %v7104, 2
        %v7106 = vadd.f32 %v7104, %v7105
        %v7107 = vrot.slane %v7106, 1
        %v7108 = vadd.f32 %v7106, %v7107
        %v7111 = vcombine.low %v7101, %v7108
        %v7113 = vmul.f32 %v3823, %v7111
        %v7114 = vadd.f32 %v3821, %v7113
        %v7115 = vld [vmem:[%s526] sm:$0x77]
        %v7116 = vadd.f32 %v7115, %v7114
        %7117 = vst [vmem:[%s526] sm:$0x77] %v7116
        %p7118 = scmp.lt.s32.totalorder %s23, 1
        %s7119 = scalar_select %p7118, %s23, 1
        %s7120 = smul.addr %s7119, 2
        %s7121 = smul.addr %s7120, 4
        %s7122 = scalar_lea.vmem %s8, %s7121
        // Predicated region
        $region95: #{tpu_custom_call.1} parent=85 // pred_check
          %p7123 = pneg %p259
        $region96: #{tpu_custom_call.1} parent=85 // pred_check_branch
          %7125 = sbr.rel (%p7123) target = $region98
        $region97: #{tpu_custom_call.1} parent=85 // pred_region
          _
        $region98: #{tpu_custom_call.1} parent=85 // pred_fallthru
          _
      $region86: #{tpu_custom_call.1} parent=5 // pred_fallthru
        _
      %p7126 = scmp.le.s32.totalorder 2, %s14
      // Predicated region
      $region99: #{tpu_custom_call.1} parent=5 // pred_check
        %p7127 = pneg %p7126
      $region100: #{tpu_custom_call.1} parent=5 // pred_check_branch
        %7129 = sbr.rel (%p7127) target = $region102
      $region101: #{tpu_custom_call.1} parent=5 // pred_region
        %s7130 = ssub.s32 %s14, 2
        // Predicated region
        $region103: #{tpu_custom_call.1} parent=101 // pred_check
          %p7131 = pneg %p265
        $region104: #{tpu_custom_call.1} parent=101 // pred_check_branch
          %7133 = sbr.rel (%p7131) target = $region106
        $region105: #{tpu_custom_call.1} parent=101 // pred_region
          %p7134 = scmp.lt.s32.totalorder %s25, 1
          %s7135 = scalar_select %p7134, %s25, 1
          %s7136 = smul.addr %s7135, 2
          %s7137 = smul.addr %s7136, 4
          %s7138 = scalar_lea.vmem %s8, %s7137
        $region106: #{tpu_custom_call.1} parent=101 // pred_fallthru
          _
      $region102: #{tpu_custom_call.1} parent=5 // pred_fallthru
        _
    $region6: #{tpu_custom_call.1} parent=1 // loop_footer
      %s18 = sadd.s32 1, %s14
    $region7: #{tpu_custom_call.1} parent=1 // loop_footer_branch
      %13 = sbr.rel target = $region3
    $region8: #{tpu_custom_call.1} parent=1 // loop_exit
      _

</llo_original>
